<compile_context>
chip_gen: v5e
topology: v5e:2x2
jax: 0.10.0
libtpu: 0.0.40
codegen_flags: <defaults>
</compile_context>

<pallas_src>
import functools

import jax
import jax.numpy as jnp
import numpy as np
from jax.experimental import pallas as pl
from jax.experimental.pallas import tpu as pltpu

EPS = 1e-5  # PyTorch InstanceNorm3d default


def _resblock_kernel(x_ref, mask_ref, pavg_ref,
                     B1_ref, b1_ref, g1_ref, be1_ref,
                     B2_ref, b2_ref, g2_ref, be2_ref,
                     o_ref, h1_ref, *, d_out):
    # x_ref   : (Rp, Lpad)      padded input slab for this batch element
    #                           (row = padded depth index, rows >= Dp are unused zeros)
    # mask_ref: (1, Lpad)       1.0 at interior (h, w) / real-channel lanes, else 0.0
    # pavg_ref: (Lpad, Lpad)    channel-averaging matrix (same-channel lanes / (D*H*W))
    # B*_ref  : (3, Lpad, Lpad) block-banded conv matrices, one per kd tap
    # b*/g*/be*: (1, Lpad)      bias / gamma / beta pre-tiled across lanes
    # o_ref   : (d_out, Lpad)   output rows = interior depth positions
    # h1_ref  : (d_out+2, Lpad) VMEM scratch for block-1 ReLU output (+ zero pad rows)
    dp = d_out + 2
    lp = h1_ref.shape[1]

    mask = mask_ref[...]            # (1, Lpad)
    pavg = pavg_ref[...]            # (Lpad, Lpad)

    def conv(src_ref, B_ref, b_ref):
        # 3 accumulating MXU matmuls over +/-1 row-shifted, full-lane slices.
        acc = jnp.dot(src_ref[0:d_out, :], B_ref[0],
                      preferred_element_type=jnp.float32)
        acc = acc + jnp.dot(src_ref[1:1 + d_out, :], B_ref[1],
                            preferred_element_type=jnp.float32)
        acc = acc + jnp.dot(src_ref[2:2 + d_out, :], B_ref[2],
                            preferred_element_type=jnp.float32)
        return acc + b_ref[...]                     # broadcast bias row

    def inorm(y, g_ref, be_ref):
        # Single-pass masked statistics: reduce rows first, then pool channels
        # with one small matmul.
        ym = y * mask
        rs = jnp.sum(ym, axis=0, keepdims=True)           # (1, Lpad)
        rs2 = jnp.sum(ym * ym, axis=0, keepdims=True)      # (1, Lpad)
        mean_l = jnp.dot(rs, pavg, preferred_element_type=jnp.float32)
        msq_l = jnp.dot(rs2, pavg, preferred_element_type=jnp.float32)
        var_l = msq_l - mean_l * mean_l
        inv_l = jax.lax.rsqrt(var_l + EPS)
        return (y - mean_l) * inv_l * g_ref[...] + be_ref[...]

    # conv1 -> IN1 -> ReLU on the interior depth rows; zero non-interior lanes so
    # conv2 sees correct "same" padding in (h, w).
    y1 = conv(x_ref, B1_ref, b1_ref)
    h1 = jnp.maximum(inorm(y1, g1_ref, be1_ref), 0.0) * mask

    zrow = jnp.zeros((1, lp), jnp.float32)
    h1_ref[0:1, :] = zrow                    # depth padding rows (cheap: 2 rows)
    h1_ref[dp - 1:dp, :] = zrow
    h1_ref[1:1 + d_out, :] = h1

    # conv2 -> IN2
    y2 = conv(h1_ref, B2_ref, b2_ref)
    y2 = inorm(y2, g2_ref, be2_ref)

    # residual add + final ReLU (wrapper extracts the interior (h, w) lanes)
    x_int = x_ref[1:1 + d_out, :]
    o_ref[...] = jnp.maximum(x_int + y2, 0.0).astype(o_ref.dtype)


def resblock_forward(x_ncdhw, params):
    """x_ncdhw: (N, C, D, H, W) float32 — PyTorch layout."""
    N, C, D, H, W = x_ncdhw.shape
    w1, b1, g1, be1, w2, b2, g2, be2 = params
    f32 = jnp.float32

    Dp, Hp, Wp = D + 2, H + 2, W + 2
    Lreal = Hp * Wp * C                              # real lane width (h, w, c folded)
    Lpad = ((Lreal + 127) // 128) * 128              # lane width padded to 128-multiple
    Rp = ((Dp + 7) // 8) * 8                         # sublane-aligned row count

    # ---- layout: NCDHW -> padded NDHWC -> (rows = Dp, lanes = Hp*Wp*C) slab ----
    x_ndhwc = jnp.transpose(x_ncdhw, (0, 2, 3, 4, 1)).astype(f32)
    x_pad = jnp.pad(x_ndhwc, ((0, 0), (1, 1), (1, 1), (1, 1), (0, 0)))
    x_slab = x_pad.reshape(N, Dp, Lreal)
    x_slab = jnp.pad(x_slab, ((0, 0), (0, Rp - Dp), (0, Lpad - Lreal)))

    # ---- block-banded conv matrices: fold (kh, kw, cin -> cout) into (Lpad, Lpad)
    #      per kd tap, built from Kronecker products of shift matrices. ----
    colh = jnp.zeros((Hp,), f32).at[1:Hp - 1].set(1.0)   # valid output h positions
    colw = jnp.zeros((Wp,), f32).at[1:Wp - 1].set(1.0)   # valid output w positions

    def build_banded(wgt):            # wgt: (cout, cin, kd, kh, kw)
        wgt = wgt.astype(f32)
        mats = []
        for kd in range(3):
            B = jnp.zeros((Lreal, Lreal), f32)
            for kh in range(3):
                Ah = jnp.eye(Hp, Hp, k=1 - kh, dtype=f32) * colh[None, :]
                for kw in range(3):
                    Aw = jnp.eye(Wp, Wp, k=1 - kw, dtype=f32) * colw[None, :]
                    Cc = wgt[:, :, kd, kh, kw].T          # (ci, co)
                    B = B + jnp.kron(Ah, jnp.kron(Aw, Cc))
            mats.append(B)
        Bk = jnp.stack(mats)                              # (3, Lreal, Lreal)
        return jnp.pad(Bk, ((0, 0), (0, Lpad - Lreal), (0, Lpad - Lreal)))

    B1 = build_banded(w1)
    B2 = build_banded(w2)

    # interior (h, w) / real-channel lane mask, shared by every depth row
    mhw = jnp.pad(jnp.ones((H, W, C), f32), ((1, 1), (1, 1), (0, 0))).reshape(Lreal)
    mask = jnp.pad(mhw, (0, Lpad - Lreal))[None, :]       # (1, Lpad)

    # per-channel averaging matrix: sums same-channel lanes / (D*H*W)
    sel = jnp.tile(jnp.eye(C, dtype=f32), (Hp * Wp, 1))   # (Lreal, C)
    pavg = (sel @ sel.T) / float(D * H * W)               # (Lreal, Lreal)
    pavg = jnp.pad(pavg, ((0, Lpad - Lreal), (0, Lpad - Lreal)))

    def lane_tile(v):                 # (C,) -> (1, Lpad), replicated per (h, w)
        t = jnp.tile(v.astype(f32), Hp * Wp)
        return jnp.pad(t, (0, Lpad - Lreal))[None, :]

    b1l, g1l, be1l = lane_tile(b1), lane_tile(g1), lane_tile(be1)
    b2l, g2l, be2l = lane_tile(b2), lane_tile(g2), lane_tile(be2)

    kernel = functools.partial(_resblock_kernel, d_out=D)

    def const_spec(shape):
        zeros = (0,) * len(shape)
        return pl.BlockSpec(shape, lambda n, _z=zeros: _z)

    out_slab = pl.pallas_call(
        kernel,
        out_shape=jax.ShapeDtypeStruct((N, D, Lpad), f32),
        grid_spec=pltpu.PrefetchScalarGridSpec(
            num_scalar_prefetch=0,
            grid=(N,),
            in_specs=[
                pl.BlockSpec((None, Rp, Lpad), lambda n: (n, 0, 0)),   # x slab
                const_spec((1, Lpad)),                                  # lane mask
                const_spec((Lpad, Lpad)),                               # channel-avg
                const_spec((3, Lpad, Lpad)),                            # conv1 banded
                const_spec((1, Lpad)), const_spec((1, Lpad)), const_spec((1, Lpad)),
                const_spec((3, Lpad, Lpad)),                            # conv2 banded
                const_spec((1, Lpad)), const_spec((1, Lpad)), const_spec((1, Lpad)),
            ],
            out_specs=pl.BlockSpec((None, D, Lpad), lambda n: (n, 0, 0)),
            scratch_shapes=[pltpu.VMEM((Dp, Lpad), jnp.float32)],        # h1
        ),
        compiler_params=pltpu.CompilerParams(
            dimension_semantics=("parallel",),        # N=2 shards across v7x's 2 TCs
            vmem_limit_bytes=32 * 1024 * 1024),       # ~15 MiB footprint + headroom
    )(x_slab, mask, pavg, B1, b1l, g1l, be1l, B2, b2l, g2l, be2l)

    # (N, D, Lpad) -> interior (h, w) voxels -> NCDHW
    out = out_slab[:, :, :Lreal].reshape(N, D, Hp, Wp, C)[:, :, 1:-1, 1:-1, :]
    return jnp.transpose(out, (0, 4, 1, 2, 3))


# ------------------------- pure-JAX reference -------------------------
def resblock_ref(x, params):
    w1, b1, g1, be1, w2, b2, g2, be2 = params

    def conv(a, w, b):
        y = jax.lax.conv_general_dilated(
            a, w, window_strides=(1, 1, 1),
            padding=((1, 1), (1, 1), (1, 1)),
            dimension_numbers=('NCDHW', 'OIDHW', 'NCDHW'),
            precision=jax.lax.Precision.HIGHEST)
        return y + b.reshape(1, -1, 1, 1, 1)

    def inorm(y, g, be):
        m = jnp.mean(y, axis=(2, 3, 4), keepdims=True)
        v = jnp.mean((y - m) ** 2, axis=(2, 3, 4), keepdims=True)
        return (y - m) * jax.lax.rsqrt(v + EPS) * g.reshape(1, -1, 1, 1, 1) \
               + be.reshape(1, -1, 1, 1, 1)

    r = conv(x, w1, b1)
    r = inorm(r, g1, be1)
    r = jnp.maximum(r, 0.0)
    r = conv(r, w2, b2)
    r = inorm(r, g2, be2)
    return jnp.maximum(x + r, 0.0)


if __name__ == "__main__":
    N, C, D, H, W = 2, 4, 8, 8, 8
    key = jax.random.PRNGKey(0)
    kx, k1, k2, k3, k4, k5, k6, k7, k8 = jax.random.split(key, 9)

    x = jax.random.normal(kx, (N, C, D, H, W), jnp.float32)

    # deterministic synthetic parameters (shapes from ResBlock.__init__)
    w1 = 0.1 * jax.random.normal(k1, (C, C, 3, 3, 3), jnp.float32)
    b1 = 0.1 * jax.random.normal(k2, (C,), jnp.float32)
    g1 = 1.0 + 0.1 * jax.random.normal(k3, (C,), jnp.float32)
    be1 = 0.1 * jax.random.normal(k4, (C,), jnp.float32)
    w2 = 0.1 * jax.random.normal(k5, (C, C, 3, 3, 3), jnp.float32)
    b2 = 0.1 * jax.random.normal(k6, (C,), jnp.float32)
    g2 = 1.0 + 0.1 * jax.random.normal(k7, (C,), jnp.float32)
    be2 = 0.1 * jax.random.normal(k8, (C,), jnp.float32)
    params = (w1, b1, g1, be1, w2, b2, g2, be2)

    out = jax.block_until_ready(resblock_forward(x, params))
    ref = jax.block_until_ready(resblock_ref(x, params))

    np.testing.assert_allclose(np.asarray(out), np.asarray(ref),
                               rtol=1e-3, atol=1e-3)
    print("KERNEL_OK")
</pallas_src>

<mosaic_0001>
module attributes {stable_mosaic.version = 11 : i64} {
  func.func @_resblock_kernel(%arg0: i32, %arg1: memref<1x16x512xf32, #tpu.memory_space<vmem>>, %arg2: memref<1x512xf32, #tpu.memory_space<vmem>>, %arg3: memref<512x512xf32, #tpu.memory_space<vmem>>, %arg4: memref<3x512x512xf32, #tpu.memory_space<vmem>>, %arg5: memref<1x512xf32, #tpu.memory_space<vmem>>, %arg6: memref<1x512xf32, #tpu.memory_space<vmem>>, %arg7: memref<1x512xf32, #tpu.memory_space<vmem>>, %arg8: memref<3x512x512xf32, #tpu.memory_space<vmem>>, %arg9: memref<1x512xf32, #tpu.memory_space<vmem>>, %arg10: memref<1x512xf32, #tpu.memory_space<vmem>>, %arg11: memref<1x512xf32, #tpu.memory_space<vmem>>, %arg12: memref<1x8x512xf32, #tpu.memory_space<vmem>>, %arg13: memref<10x512xf32, #tpu.memory_space<vmem>>) attributes {dimension_semantics = [#tpu.dimension_semantics<parallel>], iteration_bounds = array<i64: 2>, scalar_prefetch = 0 : i64, scratch_operands = 1 : i64, tpu.core_type = #tpu.core_type<tc>, window_params = [{transform_indices = @transform_0, window_bounds = array<i64: 1, 16, 512>}, {pipeline_mode = #tpu.pipeline_mode<synchronous>, transform_indices = @transform_1, window_bounds = array<i64: 1, 512>}, {pipeline_mode = #tpu.pipeline_mode<synchronous>, transform_indices = @transform_2, window_bounds = array<i64: 512, 512>}, {pipeline_mode = #tpu.pipeline_mode<synchronous>, transform_indices = @transform_3, window_bounds = array<i64: 3, 512, 512>}, {pipeline_mode = #tpu.pipeline_mode<synchronous>, transform_indices = @transform_4, window_bounds = array<i64: 1, 512>}, {pipeline_mode = #tpu.pipeline_mode<synchronous>, transform_indices = @transform_5, window_bounds = array<i64: 1, 512>}, {pipeline_mode = #tpu.pipeline_mode<synchronous>, transform_indices = @transform_6, window_bounds = array<i64: 1, 512>}, {pipeline_mode = #tpu.pipeline_mode<synchronous>, transform_indices = @transform_7, window_bounds = array<i64: 3, 512, 512>}, {pipeline_mode = #tpu.pipeline_mode<synchronous>, transform_indices = @transform_8, window_bounds = array<i64: 1, 512>}, {pipeline_mode = #tpu.pipeline_mode<synchronous>, transform_indices = @transform_9, window_bounds = array<i64: 1, 512>}, {pipeline_mode = #tpu.pipeline_mode<synchronous>, transform_indices = @transform_10, window_bounds = array<i64: 1, 512>}, {transform_indices = @transform_11, window_bounds = array<i64: 1, 8, 512>}]} {
    %c0 = arith.constant 0 : index
    %c0_0 = arith.constant 0 : index
    %0 = vector.load %arg2[%c0, %c0_0] : memref<1x512xf32, #tpu.memory_space<vmem>>, vector<1x512xf32>
    %c0_1 = arith.constant 0 : index
    %c0_2 = arith.constant 0 : index
    %1 = vector.load %arg3[%c0_1, %c0_2] : memref<512x512xf32, #tpu.memory_space<vmem>>, vector<512x512xf32>
    %c0_3 = arith.constant 0 : index
    %c0_4 = arith.constant 0 : index
    %c0_5 = arith.constant 0 : index
    %2 = vector.load %arg1[%c0_3, %c0_4, %c0_5] : memref<1x16x512xf32, #tpu.memory_space<vmem>>, vector<1x8x512xf32>
    %3 = vector.shape_cast %2 : vector<1x8x512xf32> to vector<8x512xf32>
    %c0_6 = arith.constant 0 : index
    %c0_7 = arith.constant 0 : index
    %c0_8 = arith.constant 0 : index
    %4 = vector.load %arg4[%c0_6, %c0_7, %c0_8] : memref<3x512x512xf32, #tpu.memory_space<vmem>>, vector<1x512x512xf32>
    %5 = vector.shape_cast %4 : vector<1x512x512xf32> to vector<512x512xf32>
    %cst = arith.constant dense<0.000000e+00> : vector<8x512xf32>
    %6 = tpu.matmul %3, %5, %cst {dimension_numbers = #tpu.dot_dimension_numbers<[1], [0], [0], [1], [0, 0, 1, 1], [], []>} : vector<8x512xf32>, vector<512x512xf32>, vector<8x512xf32> -> vector<8x512xf32>
    %c0_9 = arith.constant 0 : index
    %c1 = arith.constant 1 : index
    %c0_10 = arith.constant 0 : index
    %7 = vector.load %arg1[%c0_9, %c1, %c0_10] : memref<1x16x512xf32, #tpu.memory_space<vmem>>, vector<1x8x512xf32>
    %8 = vector.shape_cast %7 : vector<1x8x512xf32> to vector<8x512xf32>
    %c1_11 = arith.constant 1 : index
    %c0_12 = arith.constant 0 : index
    %c0_13 = arith.constant 0 : index
    %9 = vector.load %arg4[%c1_11, %c0_12, %c0_13] : memref<3x512x512xf32, #tpu.memory_space<vmem>>, vector<1x512x512xf32>
    %10 = vector.shape_cast %9 : vector<1x512x512xf32> to vector<512x512xf32>
    %cst_14 = arith.constant dense<0.000000e+00> : vector<8x512xf32>
    %11 = tpu.matmul %8, %10, %cst_14 {dimension_numbers = #tpu.dot_dimension_numbers<[1], [0], [0], [1], [0, 0, 1, 1], [], []>} : vector<8x512xf32>, vector<512x512xf32>, vector<8x512xf32> -> vector<8x512xf32>
    %12 = arith.addf %6, %11 : vector<8x512xf32>
    %c0_15 = arith.constant 0 : index
    %c2 = arith.constant 2 : index
    %c0_16 = arith.constant 0 : index
    %13 = vector.load %arg1[%c0_15, %c2, %c0_16] : memref<1x16x512xf32, #tpu.memory_space<vmem>>, vector<1x8x512xf32>
    %14 = vector.shape_cast %13 : vector<1x8x512xf32> to vector<8x512xf32>
    %c2_17 = arith.constant 2 : index
    %c0_18 = arith.constant 0 : index
    %c0_19 = arith.constant 0 : index
    %15 = vector.load %arg4[%c2_17, %c0_18, %c0_19] : memref<3x512x512xf32, #tpu.memory_space<vmem>>, vector<1x512x512xf32>
    %16 = vector.shape_cast %15 : vector<1x512x512xf32> to vector<512x512xf32>
    %cst_20 = arith.constant dense<0.000000e+00> : vector<8x512xf32>
    %17 = tpu.matmul %14, %16, %cst_20 {dimension_numbers = #tpu.dot_dimension_numbers<[1], [0], [0], [1], [0, 0, 1, 1], [], []>} : vector<8x512xf32>, vector<512x512xf32>, vector<8x512xf32> -> vector<8x512xf32>
    %18 = arith.addf %12, %17 : vector<8x512xf32>
    %c0_21 = arith.constant 0 : index
    %c0_22 = arith.constant 0 : index
    %19 = vector.load %arg5[%c0_21, %c0_22] : memref<1x512xf32, #tpu.memory_space<vmem>>, vector<1x512xf32>
    %20 = vector.broadcast %19 : vector<1x512xf32> to vector<8x512xf32>
    %21 = arith.addf %18, %20 : vector<8x512xf32>
    %22 = vector.broadcast %0 : vector<1x512xf32> to vector<8x512xf32>
    %23 = arith.mulf %21, %22 : vector<8x512xf32>
    %cst_23 = arith.constant dense<0.000000e+00> : vector<512xf32>
    %24 = vector.multi_reduction <add>, %23, %cst_23 [0] : vector<8x512xf32> to vector<512xf32>
    %25 = vector.shape_cast %24 : vector<512xf32> to vector<1x512xf32>
    %26 = arith.mulf %23, %23 : vector<8x512xf32>
    %cst_24 = arith.constant dense<0.000000e+00> : vector<512xf32>
    %27 = vector.multi_reduction <add>, %26, %cst_24 [0] : vector<8x512xf32> to vector<512xf32>
    %28 = vector.shape_cast %27 : vector<512xf32> to vector<1x512xf32>
    %cst_25 = arith.constant dense<0.000000e+00> : vector<1x512xf32>
    %29 = tpu.matmul %25, %1, %cst_25 {dimension_numbers = #tpu.dot_dimension_numbers<[1], [0], [0], [1], [0, 0, 1, 1], [], []>} : vector<1x512xf32>, vector<512x512xf32>, vector<1x512xf32> -> vector<1x512xf32>
    %cst_26 = arith.constant dense<0.000000e+00> : vector<1x512xf32>
    %30 = tpu.matmul %28, %1, %cst_26 {dimension_numbers = #tpu.dot_dimension_numbers<[1], [0], [0], [1], [0, 0, 1, 1], [], []>} : vector<1x512xf32>, vector<512x512xf32>, vector<1x512xf32> -> vector<1x512xf32>
    %31 = arith.mulf %29, %29 : vector<1x512xf32>
    %32 = arith.subf %30, %31 : vector<1x512xf32>
    %cst_27 = arith.constant 9.99999974E-6 : f32
    %33 = vector.broadcast %cst_27 : f32 to vector<1x512xf32>
    %34 = arith.addf %32, %33 : vector<1x512xf32>
    %35 = math.rsqrt %34 : vector<1x512xf32>
    %36 = vector.broadcast %29 : vector<1x512xf32> to vector<8x512xf32>
    %37 = arith.subf %21, %36 : vector<8x512xf32>
    %38 = vector.broadcast %35 : vector<1x512xf32> to vector<8x512xf32>
    %39 = arith.mulf %37, %38 : vector<8x512xf32>
    %c0_28 = arith.constant 0 : index
    %c0_29 = arith.constant 0 : index
    %40 = vector.load %arg6[%c0_28, %c0_29] : memref<1x512xf32, #tpu.memory_space<vmem>>, vector<1x512xf32>
    %41 = vector.broadcast %40 : vector<1x512xf32> to vector<8x512xf32>
    %42 = arith.mulf %39, %41 : vector<8x512xf32>
    %c0_30 = arith.constant 0 : index
    %c0_31 = arith.constant 0 : index
    %43 = vector.load %arg7[%c0_30, %c0_31] : memref<1x512xf32, #tpu.memory_space<vmem>>, vector<1x512xf32>
    %44 = vector.broadcast %43 : vector<1x512xf32> to vector<8x512xf32>
    %45 = arith.addf %42, %44 : vector<8x512xf32>
    %cst_32 = arith.constant 0.000000e+00 : f32
    %46 = vector.broadcast %cst_32 : f32 to vector<8x512xf32>
    %47 = arith.maximumf %45, %46 : vector<8x512xf32>
    %48 = vector.broadcast %0 : vector<1x512xf32> to vector<8x512xf32>
    %49 = arith.mulf %47, %48 : vector<8x512xf32>
    %cst_33 = arith.constant 0.000000e+00 : f32
    %50 = vector.broadcast %cst_33 : f32 to vector<1x512xf32>
    %c0_34 = arith.constant 0 : index
    %c0_35 = arith.constant 0 : index
    %51 = vector.load %arg13[%c0_34, %c0_35] : memref<10x512xf32, #tpu.memory_space<vmem>>, vector<1x512xf32>
    tpu.vector_store %arg13[%c0_34, %c0_35], %50 {strides = array<i32>} : memref<10x512xf32, #tpu.memory_space<vmem>>, vector<1x512xf32>,
    %c9 = arith.constant 9 : index
    %c0_36 = arith.constant 0 : index
    %52 = vector.load %arg13[%c9, %c0_36] : memref<10x512xf32, #tpu.memory_space<vmem>>, vector<1x512xf32>
    tpu.vector_store %arg13[%c9, %c0_36], %50 {strides = array<i32>} : memref<10x512xf32, #tpu.memory_space<vmem>>, vector<1x512xf32>,
    %c1_37 = arith.constant 1 : index
    %c0_38 = arith.constant 0 : index
    %53 = vector.load %arg13[%c1_37, %c0_38] : memref<10x512xf32, #tpu.memory_space<vmem>>, vector<8x512xf32>
    tpu.vector_store %arg13[%c1_37, %c0_38], %49 {strides = array<i32>} : memref<10x512xf32, #tpu.memory_space<vmem>>, vector<8x512xf32>,
    %c0_39 = arith.constant 0 : index
    %c0_40 = arith.constant 0 : index
    %54 = vector.load %arg13[%c0_39, %c0_40] : memref<10x512xf32, #tpu.memory_space<vmem>>, vector<8x512xf32>
    %c0_41 = arith.constant 0 : index
    %c0_42 = arith.constant 0 : index
    %c0_43 = arith.constant 0 : index
    %55 = vector.load %arg8[%c0_41, %c0_42, %c0_43] : memref<3x512x512xf32, #tpu.memory_space<vmem>>, vector<1x512x512xf32>
    %56 = vector.shape_cast %55 : vector<1x512x512xf32> to vector<512x512xf32>
    %cst_44 = arith.constant dense<0.000000e+00> : vector<8x512xf32>
    %57 = tpu.matmul %54, %56, %cst_44 {dimension_numbers = #tpu.dot_dimension_numbers<[1], [0], [0], [1], [0, 0, 1, 1], [], []>} : vector<8x512xf32>, vector<512x512xf32>, vector<8x512xf32> -> vector<8x512xf32>
    %c1_45 = arith.constant 1 : index
    %c0_46 = arith.constant 0 : index
    %58 = vector.load %arg13[%c1_45, %c0_46] : memref<10x512xf32, #tpu.memory_space<vmem>>, vector<8x512xf32>
    %c1_47 = arith.constant 1 : index
    %c0_48 = arith.constant 0 : index
    %c0_49 = arith.constant 0 : index
    %59 = vector.load %arg8[%c1_47, %c0_48, %c0_49] : memref<3x512x512xf32, #tpu.memory_space<vmem>>, vector<1x512x512xf32>
    %60 = vector.shape_cast %59 : vector<1x512x512xf32> to vector<512x512xf32>
    %cst_50 = arith.constant dense<0.000000e+00> : vector<8x512xf32>
    %61 = tpu.matmul %58, %60, %cst_50 {dimension_numbers = #tpu.dot_dimension_numbers<[1], [0], [0], [1], [0, 0, 1, 1], [], []>} : vector<8x512xf32>, vector<512x512xf32>, vector<8x512xf32> -> vector<8x512xf32>
    %62 = arith.addf %57, %61 : vector<8x512xf32>
    %c2_51 = arith.constant 2 : index
    %c0_52 = arith.constant 0 : index
    %63 = vector.load %arg13[%c2_51, %c0_52] : memref<10x512xf32, #tpu.memory_space<vmem>>, vector<8x512xf32>
    %c2_53 = arith.constant 2 : index
    %c0_54 = arith.constant 0 : index
    %c0_55 = arith.constant 0 : index
    %64 = vector.load %arg8[%c2_53, %c0_54, %c0_55] : memref<3x512x512xf32, #tpu.memory_space<vmem>>, vector<1x512x512xf32>
    %65 = vector.shape_cast %64 : vector<1x512x512xf32> to vector<512x512xf32>
    %cst_56 = arith.constant dense<0.000000e+00> : vector<8x512xf32>
    %66 = tpu.matmul %63, %65, %cst_56 {dimension_numbers = #tpu.dot_dimension_numbers<[1], [0], [0], [1], [0, 0, 1, 1], [], []>} : vector<8x512xf32>, vector<512x512xf32>, vector<8x512xf32> -> vector<8x512xf32>
    %67 = arith.addf %62, %66 : vector<8x512xf32>
    %c0_57 = arith.constant 0 : index
    %c0_58 = arith.constant 0 : index
    %68 = vector.load %arg9[%c0_57, %c0_58] : memref<1x512xf32, #tpu.memory_space<vmem>>, vector<1x512xf32>
    %69 = vector.broadcast %68 : vector<1x512xf32> to vector<8x512xf32>
    %70 = arith.addf %67, %69 : vector<8x512xf32>
    %71 = vector.broadcast %0 : vector<1x512xf32> to vector<8x512xf32>
    %72 = arith.mulf %70, %71 : vector<8x512xf32>
    %cst_59 = arith.constant dense<0.000000e+00> : vector<512xf32>
    %73 = vector.multi_reduction <add>, %72, %cst_59 [0] : vector<8x512xf32> to vector<512xf32>
    %74 = vector.shape_cast %73 : vector<512xf32> to vector<1x512xf32>
    %75 = arith.mulf %72, %72 : vector<8x512xf32>
    %cst_60 = arith.constant dense<0.000000e+00> : vector<512xf32>
    %76 = vector.multi_reduction <add>, %75, %cst_60 [0] : vector<8x512xf32> to vector<512xf32>
    %77 = vector.shape_cast %76 : vector<512xf32> to vector<1x512xf32>
    %cst_61 = arith.constant dense<0.000000e+00> : vector<1x512xf32>
    %78 = tpu.matmul %74, %1, %cst_61 {dimension_numbers = #tpu.dot_dimension_numbers<[1], [0], [0], [1], [0, 0, 1, 1], [], []>} : vector<1x512xf32>, vector<512x512xf32>, vector<1x512xf32> -> vector<1x512xf32>
    %cst_62 = arith.constant dense<0.000000e+00> : vector<1x512xf32>
    %79 = tpu.matmul %77, %1, %cst_62 {dimension_numbers = #tpu.dot_dimension_numbers<[1], [0], [0], [1], [0, 0, 1, 1], [], []>} : vector<1x512xf32>, vector<512x512xf32>, vector<1x512xf32> -> vector<1x512xf32>
    %80 = arith.mulf %78, %78 : vector<1x512xf32>
    %81 = arith.subf %79, %80 : vector<1x512xf32>
    %cst_63 = arith.constant 9.99999974E-6 : f32
    %82 = vector.broadcast %cst_63 : f32 to vector<1x512xf32>
    %83 = arith.addf %81, %82 : vector<1x512xf32>
    %84 = math.rsqrt %83 : vector<1x512xf32>
    %85 = vector.broadcast %78 : vector<1x512xf32> to vector<8x512xf32>
    %86 = arith.subf %70, %85 : vector<8x512xf32>
    %87 = vector.broadcast %84 : vector<1x512xf32> to vector<8x512xf32>
    %88 = arith.mulf %86, %87 : vector<8x512xf32>
    %c0_64 = arith.constant 0 : index
    %c0_65 = arith.constant 0 : index
    %89 = vector.load %arg10[%c0_64, %c0_65] : memref<1x512xf32, #tpu.memory_space<vmem>>, vector<1x512xf32>
    %90 = vector.broadcast %89 : vector<1x512xf32> to vector<8x512xf32>
    %91 = arith.mulf %88, %90 : vector<8x512xf32>
    %c0_66 = arith.constant 0 : index
    %c0_67 = arith.constant 0 : index
    %92 = vector.load %arg11[%c0_66, %c0_67] : memref<1x512xf32, #tpu.memory_space<vmem>>, vector<1x512xf32>
    %93 = vector.broadcast %92 : vector<1x512xf32> to vector<8x512xf32>
    %94 = arith.addf %91, %93 : vector<8x512xf32>
    %c0_68 = arith.constant 0 : index
    %c1_69 = arith.constant 1 : index
    %c0_70 = arith.constant 0 : index
    %95 = vector.load %arg1[%c0_68, %c1_69, %c0_70] : memref<1x16x512xf32, #tpu.memory_space<vmem>>, vector<1x8x512xf32>
    %96 = vector.shape_cast %95 : vector<1x8x512xf32> to vector<8x512xf32>
    %97 = arith.addf %96, %94 : vector<8x512xf32>
    %cst_71 = arith.constant 0.000000e+00 : f32
    %98 = vector.broadcast %cst_71 : f32 to vector<8x512xf32>
    %99 = arith.maximumf %97, %98 : vector<8x512xf32>
    %c0_72 = arith.constant 0 : index
    %c0_73 = arith.constant 0 : index
    %c0_74 = arith.constant 0 : index
    %100 = vector.load %arg12[%c0_72, %c0_73, %c0_74] : memref<1x8x512xf32, #tpu.memory_space<vmem>>, vector<1x8x512xf32>
    %101 = vector.shape_cast %100 : vector<1x8x512xf32> to vector<8x512xf32>
    %102 = vector.shape_cast %99 : vector<8x512xf32> to vector<1x8x512xf32>
    tpu.vector_store %arg12[%c0_72, %c0_73, %c0_74], %102 {strides = array<i32>} : memref<1x8x512xf32, #tpu.memory_space<vmem>>, vector<1x8x512xf32>,
    return
  }
  func.func @transform_0(%arg0: i32) -> (i32, i32, i32) {
    %c0_i32 = arith.constant 0 : i32
    %c0_i32_0 = arith.constant 0 : i32
    %c0_i32_1 = arith.constant 0 : i32
    return %arg0, %c0_i32, %c0_i32_0 : i32, i32, i32
  }
  func.func @transform_1(%arg0: i32) -> (i32, i32) {
    %c0_i32 = arith.constant 0 : i32
    %c0_i32_0 = arith.constant 0 : i32
    %c0_i32_1 = arith.constant 0 : i32
    return %c0_i32, %c0_i32_0 : i32, i32
  }
  func.func @transform_2(%arg0: i32) -> (i32, i32) {
    %c0_i32 = arith.constant 0 : i32
    %c0_i32_0 = arith.constant 0 : i32
    %c0_i32_1 = arith.constant 0 : i32
    return %c0_i32, %c0_i32_0 : i32, i32
  }
  func.func @transform_3(%arg0: i32) -> (i32, i32, i32) {
    %c0_i32 = arith.constant 0 : i32
    %c0_i32_0 = arith.constant 0 : i32
    %c0_i32_1 = arith.constant 0 : i32
    %c0_i32_2 = arith.constant 0 : i32
    return %c0_i32, %c0_i32_0, %c0_i32_1 : i32, i32, i32
  }
  func.func @transform_4(%arg0: i32) -> (i32, i32) {
    %c0_i32 = arith.constant 0 : i32
    %c0_i32_0 = arith.constant 0 : i32
    %c0_i32_1 = arith.constant 0 : i32
    return %c0_i32, %c0_i32_0 : i32, i32
  }
  func.func @transform_5(%arg0: i32) -> (i32, i32) {
    %c0_i32 = arith.constant 0 : i32
    %c0_i32_0 = arith.constant 0 : i32
    %c0_i32_1 = arith.constant 0 : i32
    return %c0_i32, %c0_i32_0 : i32, i32
  }
  func.func @transform_6(%arg0: i32) -> (i32, i32) {
    %c0_i32 = arith.constant 0 : i32
    %c0_i32_0 = arith.constant 0 : i32
    %c0_i32_1 = arith.constant 0 : i32
    return %c0_i32, %c0_i32_0 : i32, i32
  }
  func.func @transform_7(%arg0: i32) -> (i32, i32, i32) {
    %c0_i32 = arith.constant 0 : i32
    %c0_i32_0 = arith.constant 0 : i32
    %c0_i32_1 = arith.constant 0 : i32
    %c0_i32_2 = arith.constant 0 : i32
    return %c0_i32, %c0_i32_0, %c0_i32_1 : i32, i32, i32
  }
  func.func @transform_8(%arg0: i32) -> (i32, i32) {
    %c0_i32 = arith.constant 0 : i32
    %c0_i32_0 = arith.constant 0 : i32
    %c0_i32_1 = arith.constant 0 : i32
    return %c0_i32, %c0_i32_0 : i32, i32
  }
  func.func @transform_9(%arg0: i32) -> (i32, i32) {
    %c0_i32 = arith.constant 0 : i32
    %c0_i32_0 = arith.constant 0 : i32
    %c0_i32_1 = arith.constant 0 : i32
    return %c0_i32, %c0_i32_0 : i32, i32
  }
  func.func @transform_10(%arg0: i32) -> (i32, i32) {
    %c0_i32 = arith.constant 0 : i32
    %c0_i32_0 = arith.constant 0 : i32
    %c0_i32_1 = arith.constant 0 : i32
    return %c0_i32, %c0_i32_0 : i32, i32
  }
  func.func @transform_11(%arg0: i32) -> (i32, i32, i32) {
    %c0_i32 = arith.constant 0 : i32
    %c0_i32_0 = arith.constant 0 : i32
    %c0_i32_1 = arith.constant 0 : i32
    return %arg0, %c0_i32, %c0_i32_0 : i32, i32, i32
  }
}

</mosaic_0001>

<llo_original>
// kernel: tpu_custom_call.1
$region0: #{tpu_custom_call.1}
  #allocation0 [shape = 'u32[]', space=smem, size = 0x4, offset = 0x4, fixed_abs, tag = 'smem constant byte address 0x4 - core index']
  #allocation1 [shape = 'u32[72,128]{1,0:T(1,128)}', space=vmem, size = 0x9000, scoped, tag = 'internal scratch']
  #allocation2 [shape = 'f32[10,512]{1,0:T(8,128)}', space=vmem, size = 0x8000, scoped, tag = 'scratch operand']
  %s0 = inlined_call_operand.hbm [shape: f32[2,16,512], index: 0, kind: input, shape index: {}]
  %s1 = inlined_call_operand.hbm [shape: f32[1,512], index: 1, kind: input, shape index: {}]
  %s2 = inlined_call_operand.hbm [shape: f32[512,512], index: 2, kind: input, shape index: {}]
  %s3 = inlined_call_operand.hbm [shape: f32[3,512,512], index: 3, kind: input, shape index: {}]
  %s4 = inlined_call_operand.hbm [shape: f32[1,512], index: 4, kind: input, shape index: {}]
  %s5 = inlined_call_operand.hbm [shape: f32[1,512], index: 5, kind: input, shape index: {}]
  %s6 = inlined_call_operand.hbm [shape: f32[1,512], index: 6, kind: input, shape index: {}]
  %s7 = inlined_call_operand.hbm [shape: f32[3,512,512], index: 7, kind: input, shape index: {}]
  %s8 = inlined_call_operand.hbm [shape: f32[1,512], index: 8, kind: input, shape index: {}]
  %s9 = inlined_call_operand.hbm [shape: f32[1,512], index: 9, kind: input, shape index: {}]
  %s10 = inlined_call_operand.hbm [shape: f32[1,512], index: 10, kind: input, shape index: {}]
  %s11 = inlined_call_operand.hbm [shape: f32[2,8,512], index: 11, kind: output, shape index: {}]
  %s12 = sld [smem:[#allocation0]]
  $region121: #{tpu_custom_call.1} parent=0
    _
  %s14 = ssub.s32 1, %s12
  %s15 = scalar_select 0, %s14, %s12
  $region1: #{tpu_custom_call.1} parent=0
    #allocation3 [shape = 'u8[65536]{0}', space=vmem, size = 0x10000, scoped, tag = 'input window, operand 0']
    #allocation4 [shape = 's32[2]{0}', space=sflag, size = 0x8, scoped, tag = 'scoped memory for tpu_custom_call.1']
    #allocation5 [shape = 's32[2]{0}', space=sflag, size = 0x8, scoped, tag = 'scoped memory for tpu_custom_call.1']
    #allocation6 [shape = 'u8[2048]{0}', space=vmem, size = 0x800, scoped, tag = 'input window, operand 1, single buffered']
    #allocation7 [shape = 's32[1]{0}', space=sflag, size = 0x4, scoped, tag = 'scoped memory for tpu_custom_call.1']
    #allocation8 [shape = 'u8[1048576]{0}', space=vmem, size = 0x100000, scoped, tag = 'input window, operand 2, single buffered']
    #allocation9 [shape = 'u8[3145728]{0}', space=vmem, size = 0x300000, scoped, tag = 'input window, operand 3, single buffered']
    #allocation10 [shape = 's32[1]{0}', space=sflag, size = 0x4, scoped, tag = 'scoped memory for tpu_custom_call.1']
    #allocation11 [shape = 'u8[2048]{0}', space=vmem, size = 0x800, scoped, tag = 'input window, operand 4, single buffered']
    #allocation12 [shape = 'u8[2048]{0}', space=vmem, size = 0x800, scoped, tag = 'input window, operand 5, single buffered']
    #allocation13 [shape = 's32[1]{0}', space=sflag, size = 0x4, scoped, tag = 'scoped memory for tpu_custom_call.1']
    #allocation14 [shape = 'u8[2048]{0}', space=vmem, size = 0x800, scoped, tag = 'input window, operand 6, single buffered']
    #allocation15 [shape = 'u8[3145728]{0}', space=vmem, size = 0x300000, scoped, tag = 'input window, operand 7, single buffered']
    #allocation16 [shape = 's32[1]{0}', space=sflag, size = 0x4, scoped, tag = 'scoped memory for tpu_custom_call.1']
    #allocation17 [shape = 'u8[2048]{0}', space=vmem, size = 0x800, scoped, tag = 'input window, operand 8, single buffered']
    #allocation18 [shape = 'u8[2048]{0}', space=vmem, size = 0x800, scoped, tag = 'input window, operand 9, single buffered']
    #allocation19 [shape = 's32[1]{0}', space=sflag, size = 0x4, scoped, tag = 'scoped memory for tpu_custom_call.1']
    #allocation20 [shape = 'u8[2048]{0}', space=vmem, size = 0x800, scoped, tag = 'input window, operand 10, single buffered']
    #allocation21 [shape = 'u8[32768]{0}', space=vmem, size = 0x8000, scoped, tag = 'output window, operand 0']
    %16 = vsyncpa [#allocation4], 0
    %s17 = scalar_lea.sflag [#allocation4], 1
    %18 = vsyncpa %s17, 0
    %19 = vsyncpa [#allocation7], 0
    %20 = vsyncpa [#allocation10], 0
    %21 = vsyncpa [#allocation13], 0
    %22 = vsyncpa [#allocation16], 0
    %23 = vsyncpa [#allocation19], 0
    %24 = vsyncpa [#allocation5], 0
    %s25 = scalar_lea.sflag [#allocation5], 1
    %26 = vsyncpa %s25, 0
    loop: start=0, step=1, limit=4
    $region2: #{tpu_custom_call.1} parent=1 // loop_pre_header
      _
    $region3: #{tpu_custom_call.1} parent=1 // loop_header
      %s28 = sphi 0, %s32
      %p29 = scmp.ge.s32.totalorder %s28, 4
      %s38 = sphi 0, %s40
      %s41 = sphi 0, %s38
      %s42 = sphi 0, %s41
      %s58 = sphi 0, %s42
      %s62 = sphi 0, %s62
      %s64 = sphi 0, %s62
      %s65 = sphi 0, %s64
      %s79 = sphi 0, %s65
      %s83 = sphi 0, %s83
      %s85 = sphi 0, %s83
      %s86 = sphi 0, %s85
      %s100 = sphi 0, %s86
      %s104 = sphi 0, %s104
      %s106 = sphi 0, %s104
      %s107 = sphi 0, %s106
      %s121 = sphi 0, %s107
      %s125 = sphi 0, %s125
      %s127 = sphi 0, %s125
      %s128 = sphi 0, %s127
      %s142 = sphi 0, %s128
      %s146 = sphi 0, %s146
      %s148 = sphi 0, %s146
      %s149 = sphi 0, %s148
      %s163 = sphi 0, %s149
      %s167 = sphi 0, %s167
      %s169 = sphi 0, %s167
      %s170 = sphi 0, %s169
      %s184 = sphi 0, %s170
      %s188 = sphi 0, %s188
      %s190 = sphi 0, %s188
      %s191 = sphi 0, %s190
      %s205 = sphi 0, %s191
      %s209 = sphi 0, %s209
      %s211 = sphi 0, %s209
      %s212 = sphi 0, %s211
      %s226 = sphi 0, %s212
      %s230 = sphi 0, %s230
      %s232 = sphi 0, %s230
      %s233 = sphi 0, %s232
      %s247 = sphi 0, %s233
      %s251 = sphi 0, %s251
      %s253 = sphi 0, %s251
      %s254 = sphi 0, %s253
      %s268 = sphi 0, %s254
      %s274 = sphi 0, %s276
      %s277 = sphi 0, %s274
      %s278 = sphi 0, %s277
      %s294 = sphi 0, %s278
    $region4: #{tpu_custom_call.1} parent=1 // loop_header_branch
      %31 = sbr.rel (%p29) target = $region8
    $region5: #{tpu_custom_call.1} parent=1 // loop_body
      %s33 = ssub.s32 %s28, 1
      %s34 = ssub.s32 %s28, 2
      %s35 = sadd.s32 %s28, 1
      %s36 = ssub.s32 %s28, %s35
      %p37 = scmp.eq.s32.totalorder %s36, 0
      %s39 = sadd.s32 %s38, 1
      %s40 = scalar_select %p37, %s38, %s39
      %p43 = pneg %p37
      %p44 = scmp.eq.s32.totalorder %s28, 1
      %p45 = por %p43, %p44
      %p46 = scmp.ne.s32.totalorder %s38, %s41
      %p47 = scmp.eq.s32.totalorder %s28, 0
      %p48 = por %p46, %p47
      %p49 = scmp.ne.s32.totalorder %s38, %s41
      %p50 = scmp.eq.s32.totalorder %s33, 1
      %p51 = por %p49, %p50
      %p52 = scmp.ne.s32.totalorder %s41, %s42
      %p53 = scmp.eq.s32.totalorder %s33, 0
      %p54 = por %p52, %p53
      %p55 = scmp.ne.s32.totalorder %s41, %s42
      %p56 = scmp.eq.s32.totalorder %s34, 1
      %p57 = por %p55, %p56
      %p59 = scmp.ne.s32.totalorder %s42, %s58
      %p60 = scmp.eq.s32.totalorder %s34, 0
      %p61 = por %p59, %p60
      %s63 = sadd.s32 %s62, 1
      %p66 = scmp.eq.s32.totalorder %s28, 1
      %p67 = scmp.ne.s32.totalorder %s62, %s64
      %p68 = scmp.eq.s32.totalorder %s28, 0
      %p69 = por %p67, %p68
      %p70 = scmp.ne.s32.totalorder %s62, %s64
      %p71 = scmp.eq.s32.totalorder %s33, 1
      %p72 = por %p70, %p71
      %p73 = scmp.ne.s32.totalorder %s64, %s65
      %p74 = scmp.eq.s32.totalorder %s33, 0
      %p75 = por %p73, %p74
      %p76 = scmp.ne.s32.totalorder %s64, %s65
      %p77 = scmp.eq.s32.totalorder %s34, 1
      %p78 = por %p76, %p77
      %p80 = scmp.ne.s32.totalorder %s65, %s79
      %p81 = scmp.eq.s32.totalorder %s34, 0
      %p82 = por %p80, %p81
      %s84 = sadd.s32 %s83, 1
      %p87 = scmp.eq.s32.totalorder %s28, 1
      %p88 = scmp.ne.s32.totalorder %s83, %s85
      %p89 = scmp.eq.s32.totalorder %s28, 0
      %p90 = por %p88, %p89
      %p91 = scmp.ne.s32.totalorder %s83, %s85
      %p92 = scmp.eq.s32.totalorder %s33, 1
      %p93 = por %p91, %p92
      %p94 = scmp.ne.s32.totalorder %s85, %s86
      %p95 = scmp.eq.s32.totalorder %s33, 0
      %p96 = por %p94, %p95
      %p97 = scmp.ne.s32.totalorder %s85, %s86
      %p98 = scmp.eq.s32.totalorder %s34, 1
      %p99 = por %p97, %p98
      %p101 = scmp.ne.s32.totalorder %s86, %s100
      %p102 = scmp.eq.s32.totalorder %s34, 0
      %p103 = por %p101, %p102
      %s105 = sadd.s32 %s104, 1
      %p108 = scmp.eq.s32.totalorder %s28, 1
      %p109 = scmp.ne.s32.totalorder %s104, %s106
      %p110 = scmp.eq.s32.totalorder %s28, 0
      %p111 = por %p109, %p110
      %p112 = scmp.ne.s32.totalorder %s104, %s106
      %p113 = scmp.eq.s32.totalorder %s33, 1
      %p114 = por %p112, %p113
      %p115 = scmp.ne.s32.totalorder %s106, %s107
      %p116 = scmp.eq.s32.totalorder %s33, 0
      %p117 = por %p115, %p116
      %p118 = scmp.ne.s32.totalorder %s106, %s107
      %p119 = scmp.eq.s32.totalorder %s34, 1
      %p120 = por %p118, %p119
      %p122 = scmp.ne.s32.totalorder %s107, %s121
      %p123 = scmp.eq.s32.totalorder %s34, 0
      %p124 = por %p122, %p123
      %s126 = sadd.s32 %s125, 1
      %p129 = scmp.eq.s32.totalorder %s28, 1
      %p130 = scmp.ne.s32.totalorder %s125, %s127
      %p131 = scmp.eq.s32.totalorder %s28, 0
      %p132 = por %p130, %p131
      %p133 = scmp.ne.s32.totalorder %s125, %s127
      %p134 = scmp.eq.s32.totalorder %s33, 1
      %p135 = por %p133, %p134
      %p136 = scmp.ne.s32.totalorder %s127, %s128
      %p137 = scmp.eq.s32.totalorder %s33, 0
      %p138 = por %p136, %p137
      %p139 = scmp.ne.s32.totalorder %s127, %s128
      %p140 = scmp.eq.s32.totalorder %s34, 1
      %p141 = por %p139, %p140
      %p143 = scmp.ne.s32.totalorder %s128, %s142
      %p144 = scmp.eq.s32.totalorder %s34, 0
      %p145 = por %p143, %p144
      %s147 = sadd.s32 %s146, 1
      %p150 = scmp.eq.s32.totalorder %s28, 1
      %p151 = scmp.ne.s32.totalorder %s146, %s148
      %p152 = scmp.eq.s32.totalorder %s28, 0
      %p153 = por %p151, %p152
      %p154 = scmp.ne.s32.totalorder %s146, %s148
      %p155 = scmp.eq.s32.totalorder %s33, 1
      %p156 = por %p154, %p155
      %p157 = scmp.ne.s32.totalorder %s148, %s149
      %p158 = scmp.eq.s32.totalorder %s33, 0
      %p159 = por %p157, %p158
      %p160 = scmp.ne.s32.totalorder %s148, %s149
      %p161 = scmp.eq.s32.totalorder %s34, 1
      %p162 = por %p160, %p161
      %p164 = scmp.ne.s32.totalorder %s149, %s163
      %p165 = scmp.eq.s32.totalorder %s34, 0
      %p166 = por %p164, %p165
      %s168 = sadd.s32 %s167, 1
      %p171 = scmp.eq.s32.totalorder %s28, 1
      %p172 = scmp.ne.s32.totalorder %s167, %s169
      %p173 = scmp.eq.s32.totalorder %s28, 0
      %p174 = por %p172, %p173
      %p175 = scmp.ne.s32.totalorder %s167, %s169
      %p176 = scmp.eq.s32.totalorder %s33, 1
      %p177 = por %p175, %p176
      %p178 = scmp.ne.s32.totalorder %s169, %s170
      %p179 = scmp.eq.s32.totalorder %s33, 0
      %p180 = por %p178, %p179
      %p181 = scmp.ne.s32.totalorder %s169, %s170
      %p182 = scmp.eq.s32.totalorder %s34, 1
      %p183 = por %p181, %p182
      %p185 = scmp.ne.s32.totalorder %s170, %s184
      %p186 = scmp.eq.s32.totalorder %s34, 0
      %p187 = por %p185, %p186
      %s189 = sadd.s32 %s188, 1
      %p192 = scmp.eq.s32.totalorder %s28, 1
      %p193 = scmp.ne.s32.totalorder %s188, %s190
      %p194 = scmp.eq.s32.totalorder %s28, 0
      %p195 = por %p193, %p194
      %p196 = scmp.ne.s32.totalorder %s188, %s190
      %p197 = scmp.eq.s32.totalorder %s33, 1
      %p198 = por %p196, %p197
      %p199 = scmp.ne.s32.totalorder %s190, %s191
      %p200 = scmp.eq.s32.totalorder %s33, 0
      %p201 = por %p199, %p200
      %p202 = scmp.ne.s32.totalorder %s190, %s191
      %p203 = scmp.eq.s32.totalorder %s34, 1
      %p204 = por %p202, %p203
      %p206 = scmp.ne.s32.totalorder %s191, %s205
      %p207 = scmp.eq.s32.totalorder %s34, 0
      %p208 = por %p206, %p207
      %s210 = sadd.s32 %s209, 1
      %p213 = scmp.eq.s32.totalorder %s28, 1
      %p214 = scmp.ne.s32.totalorder %s209, %s211
      %p215 = scmp.eq.s32.totalorder %s28, 0
      %p216 = por %p214, %p215
      %p217 = scmp.ne.s32.totalorder %s209, %s211
      %p218 = scmp.eq.s32.totalorder %s33, 1
      %p219 = por %p217, %p218
      %p220 = scmp.ne.s32.totalorder %s211, %s212
      %p221 = scmp.eq.s32.totalorder %s33, 0
      %p222 = por %p220, %p221
      %p223 = scmp.ne.s32.totalorder %s211, %s212
      %p224 = scmp.eq.s32.totalorder %s34, 1
      %p225 = por %p223, %p224
      %p227 = scmp.ne.s32.totalorder %s212, %s226
      %p228 = scmp.eq.s32.totalorder %s34, 0
      %p229 = por %p227, %p228
      %s231 = sadd.s32 %s230, 1
      %p234 = scmp.eq.s32.totalorder %s28, 1
      %p235 = scmp.ne.s32.totalorder %s230, %s232
      %p236 = scmp.eq.s32.totalorder %s28, 0
      %p237 = por %p235, %p236
      %p238 = scmp.ne.s32.totalorder %s230, %s232
      %p239 = scmp.eq.s32.totalorder %s33, 1
      %p240 = por %p238, %p239
      %p241 = scmp.ne.s32.totalorder %s232, %s233
      %p242 = scmp.eq.s32.totalorder %s33, 0
      %p243 = por %p241, %p242
      %p244 = scmp.ne.s32.totalorder %s232, %s233
      %p245 = scmp.eq.s32.totalorder %s34, 1
      %p246 = por %p244, %p245
      %p248 = scmp.ne.s32.totalorder %s233, %s247
      %p249 = scmp.eq.s32.totalorder %s34, 0
      %p250 = por %p248, %p249
      %s252 = sadd.s32 %s251, 1
      %p255 = scmp.eq.s32.totalorder %s28, 1
      %p256 = scmp.ne.s32.totalorder %s251, %s253
      %p257 = scmp.eq.s32.totalorder %s28, 0
      %p258 = por %p256, %p257
      %p259 = scmp.ne.s32.totalorder %s251, %s253
      %p260 = scmp.eq.s32.totalorder %s33, 1
      %p261 = por %p259, %p260
      %p262 = scmp.ne.s32.totalorder %s253, %s254
      %p263 = scmp.eq.s32.totalorder %s33, 0
      %p264 = por %p262, %p263
      %p265 = scmp.ne.s32.totalorder %s253, %s254
      %p266 = scmp.eq.s32.totalorder %s34, 1
      %p267 = por %p265, %p266
      %p269 = scmp.ne.s32.totalorder %s254, %s268
      %p270 = scmp.eq.s32.totalorder %s34, 0
      %p271 = por %p269, %p270
      %s272 = ssub.s32 %s28, %s35
      %p273 = scmp.eq.s32.totalorder %s272, 0
      %s275 = sadd.s32 %s274, 1
      %s276 = scalar_select %p273, %s274, %s275
      %p279 = pneg %p273
      %p280 = scmp.eq.s32.totalorder %s28, 1
      %p281 = por %p279, %p280
      %p282 = scmp.ne.s32.totalorder %s274, %s277
      %p283 = scmp.eq.s32.totalorder %s28, 0
      %p284 = por %p282, %p283
      %p285 = scmp.ne.s32.totalorder %s274, %s277
      %p286 = scmp.eq.s32.totalorder %s33, 1
      %p287 = por %p285, %p286
      %p288 = scmp.ne.s32.totalorder %s277, %s278
      %p289 = scmp.eq.s32.totalorder %s33, 0
      %p290 = por %p288, %p289
      %p291 = scmp.ne.s32.totalorder %s277, %s278
      %p292 = scmp.eq.s32.totalorder %s34, 1
      %p293 = por %p291, %p292
      %p295 = scmp.ne.s32.totalorder %s278, %s294
      %p296 = scmp.eq.s32.totalorder %s34, 0
      %p297 = por %p295, %p296
      %p298 = scmp.le.s32.totalorder 1, %s28
      %p299 = scmp.lt.s32.totalorder %s28, 3
      %p300 = pnand %p298, %p299
      %p301 = pneg %p300
      // Predicated region
      $region9: #{tpu_custom_call.1} parent=5 // pred_check
        _
      $region10: #{tpu_custom_call.1} parent=5 // pred_check_branch
        %303 = sbr.rel (%p300) target = $region12
      $region11: #{tpu_custom_call.1} parent=5 // pred_region
        %s304 = ssub.s32 %s28, 1
        // Predicated region
        $region13: #{tpu_custom_call.1} parent=11 // pred_check
          %p305 = pneg %p75
        $region14: #{tpu_custom_call.1} parent=11 // pred_check_branch
          %307 = sbr.rel (%p305) target = $region16
        $region15: #{tpu_custom_call.1} parent=11 // pred_region
          %309 = vsyncadd [#allocation7], 0
          %s311 = sshll.u32 %s1, 4
          %s312 = int_to_ptr.hbm [resolvable:$true] %s311
          %s313 = sshll.u32 [#allocation6], 4
          %s314 = int_to_ptr.vmem [resolvable:$true] %s313
          %316 = dma.hbm_to_vmem [thread:$0]  %s312, 64, %s314, [#allocation7]
        $region16: #{tpu_custom_call.1} parent=11 // pred_fallthru
          _
        // Predicated region
        $region17: #{tpu_custom_call.1} parent=11 // pred_check
          %p317 = pneg %p96
        $region18: #{tpu_custom_call.1} parent=11 // pred_check_branch
          %319 = sbr.rel (%p317) target = $region20
        $region19: #{tpu_custom_call.1} parent=11 // pred_region
          %321 = vsyncadd [#allocation7], 0
          %s322 = sshll.u32 %s2, 4
          %s323 = int_to_ptr.hbm [resolvable:$true] %s322
          %s324 = sshll.u32 [#allocation8], 4
          %s325 = int_to_ptr.vmem [resolvable:$true] %s324
          %330 = dma.hbm_to_vmem [thread:$0]  %s323, 32768, %s325, [#allocation7], 512, 512, 32
        $region20: #{tpu_custom_call.1} parent=11 // pred_fallthru
          _
        // Predicated region
        $region21: #{tpu_custom_call.1} parent=11 // pred_check
          %p331 = pneg %p117
        $region22: #{tpu_custom_call.1} parent=11 // pred_check_branch
          %333 = sbr.rel (%p331) target = $region24
        $region23: #{tpu_custom_call.1} parent=11 // pred_region
          %335 = vsyncadd [#allocation10], 0
          %s336 = sshll.u32 %s3, 4
          %s337 = int_to_ptr.hbm [resolvable:$true] %s336
          %s338 = sshll.u32 [#allocation9], 4
          %s339 = int_to_ptr.vmem [resolvable:$true] %s338
          %344 = dma.hbm_to_vmem [thread:$0]  %s337, 98304, %s339, [#allocation10], 512, 512, 32
        $region24: #{tpu_custom_call.1} parent=11 // pred_fallthru
          _
        // Predicated region
        $region25: #{tpu_custom_call.1} parent=11 // pred_check
          %p345 = pneg %p138
        $region26: #{tpu_custom_call.1} parent=11 // pred_check_branch
          %347 = sbr.rel (%p345) target = $region28
        $region27: #{tpu_custom_call.1} parent=11 // pred_region
          %349 = vsyncadd [#allocation10], 0
          %s351 = sshll.u32 %s4, 4
          %s352 = int_to_ptr.hbm [resolvable:$true] %s351
          %s353 = sshll.u32 [#allocation11], 4
          %s354 = int_to_ptr.vmem [resolvable:$true] %s353
          %356 = dma.hbm_to_vmem [thread:$0]  %s352, 64, %s354, [#allocation10]
        $region28: #{tpu_custom_call.1} parent=11 // pred_fallthru
          _
        // Predicated region
        $region29: #{tpu_custom_call.1} parent=11 // pred_check
          %p357 = pneg %p159
        $region30: #{tpu_custom_call.1} parent=11 // pred_check_branch
          %359 = sbr.rel (%p357) target = $region32
        $region31: #{tpu_custom_call.1} parent=11 // pred_region
          %361 = vsyncadd [#allocation13], 0
          %s363 = sshll.u32 %s5, 4
          %s364 = int_to_ptr.hbm [resolvable:$true] %s363
          %s365 = sshll.u32 [#allocation12], 4
          %s366 = int_to_ptr.vmem [resolvable:$true] %s365
          %368 = dma.hbm_to_vmem [thread:$0]  %s364, 64, %s366, [#allocation13]
        $region32: #{tpu_custom_call.1} parent=11 // pred_fallthru
          _
        // Predicated region
        $region33: #{tpu_custom_call.1} parent=11 // pred_check
          %p369 = pneg %p180
        $region34: #{tpu_custom_call.1} parent=11 // pred_check_branch
          %371 = sbr.rel (%p369) target = $region36
        $region35: #{tpu_custom_call.1} parent=11 // pred_region
          %373 = vsyncadd [#allocation13], 0
          %s375 = sshll.u32 %s6, 4
          %s376 = int_to_ptr.hbm [resolvable:$true] %s375
          %s377 = sshll.u32 [#allocation14], 4
          %s378 = int_to_ptr.vmem [resolvable:$true] %s377
          %380 = dma.hbm_to_vmem [thread:$0]  %s376, 64, %s378, [#allocation13]
        $region36: #{tpu_custom_call.1} parent=11 // pred_fallthru
          _
        // Predicated region
        $region37: #{tpu_custom_call.1} parent=11 // pred_check
          %p381 = pneg %p201
        $region38: #{tpu_custom_call.1} parent=11 // pred_check_branch
          %383 = sbr.rel (%p381) target = $region40
        $region39: #{tpu_custom_call.1} parent=11 // pred_region
          %385 = vsyncadd [#allocation16], 0
          %s386 = sshll.u32 %s7, 4
          %s387 = int_to_ptr.hbm [resolvable:$true] %s386
          %s388 = sshll.u32 [#allocation15], 4
          %s389 = int_to_ptr.vmem [resolvable:$true] %s388
          %394 = dma.hbm_to_vmem [thread:$0]  %s387, 98304, %s389, [#allocation16], 512, 512, 32
        $region40: #{tpu_custom_call.1} parent=11 // pred_fallthru
          _
        // Predicated region
        $region41: #{tpu_custom_call.1} parent=11 // pred_check
          %p395 = pneg %p222
        $region42: #{tpu_custom_call.1} parent=11 // pred_check_branch
          %397 = sbr.rel (%p395) target = $region44
        $region43: #{tpu_custom_call.1} parent=11 // pred_region
          %399 = vsyncadd [#allocation16], 0
          %s401 = sshll.u32 %s8, 4
          %s402 = int_to_ptr.hbm [resolvable:$true] %s401
          %s403 = sshll.u32 [#allocation17], 4
          %s404 = int_to_ptr.vmem [resolvable:$true] %s403
          %406 = dma.hbm_to_vmem [thread:$0]  %s402, 64, %s404, [#allocation16]
        $region44: #{tpu_custom_call.1} parent=11 // pred_fallthru
          _
        // Predicated region
        $region45: #{tpu_custom_call.1} parent=11 // pred_check
          %p407 = pneg %p243
        $region46: #{tpu_custom_call.1} parent=11 // pred_check_branch
          %409 = sbr.rel (%p407) target = $region48
        $region47: #{tpu_custom_call.1} parent=11 // pred_region
          %411 = vsyncadd [#allocation19], 0
          %s413 = sshll.u32 %s9, 4
          %s414 = int_to_ptr.hbm [resolvable:$true] %s413
          %s415 = sshll.u32 [#allocation18], 4
          %s416 = int_to_ptr.vmem [resolvable:$true] %s415
          %418 = dma.hbm_to_vmem [thread:$0]  %s414, 64, %s416, [#allocation19]
        $region48: #{tpu_custom_call.1} parent=11 // pred_fallthru
          _
        // Predicated region
        $region49: #{tpu_custom_call.1} parent=11 // pred_check
          %p419 = pneg %p264
        $region50: #{tpu_custom_call.1} parent=11 // pred_check_branch
          %421 = sbr.rel (%p419) target = $region52
        $region51: #{tpu_custom_call.1} parent=11 // pred_region
          %423 = vsyncadd [#allocation19], 0
          %s425 = sshll.u32 %s10, 4
          %s426 = int_to_ptr.hbm [resolvable:$true] %s425
          %s427 = sshll.u32 [#allocation20], 4
          %s428 = int_to_ptr.vmem [resolvable:$true] %s427
          %430 = dma.hbm_to_vmem [thread:$0]  %s426, 64, %s428, [#allocation19]
        $region52: #{tpu_custom_call.1} parent=11 // pred_fallthru
          _
      $region12: #{tpu_custom_call.1} parent=5 // pred_fallthru
        _
      %p431 = scmp.lt.s32.totalorder %s28, 2
      // Predicated region
      $region53: #{tpu_custom_call.1} parent=5 // pred_check
        %p432 = pneg %p431
      $region54: #{tpu_custom_call.1} parent=5 // pred_check_branch
        %434 = sbr.rel (%p432) target = $region56
      $region55: #{tpu_custom_call.1} parent=5 // pred_region
        // Predicated region
        $region57: #{tpu_custom_call.1} parent=55 // pred_check
          %p435 = pneg %p48
        $region58: #{tpu_custom_call.1} parent=55 // pred_check_branch
          %437 = sbr.rel (%p435) target = $region60
        $region59: #{tpu_custom_call.1} parent=55 // pred_region
          %s438 = sand.u32 %s38, 1
          %s439 = scalar_lea.sflag [#allocation4], %s438
          %s440 = sand.u32 %s38, 1
          %s441 = smul.addr %s440, 64
          %s442 = scalar_lea.vmem [#allocation3], %s441
          %444 = vsyncadd %s439, 0
          %s445 = smul.addr %s28, 8
          %s446 = smul.addr %s445, 8
          %s447 = scalar_lea.hbm %s0, %s446
          %s448 = sshll.u32 %s447, 4
          %s449 = int_to_ptr.hbm [resolvable:$true] %s448
          %s450 = sshll.u32 %s442, 4
          %s451 = int_to_ptr.vmem [resolvable:$true] %s450
          %456 = dma.hbm_to_vmem [thread:$0]  %s449, 1024, %s451, %s439, 512, 512, 32
        $region60: #{tpu_custom_call.1} parent=55 // pred_fallthru
          _
      $region56: #{tpu_custom_call.1} parent=5 // pred_fallthru
        _
      %p457 = scmp.le.s32.totalorder 1, %s28
      %p458 = scmp.lt.s32.totalorder %s28, 3
      %p459 = pnand %p457, %p458
      %p460 = pneg %p459
      // Predicated region
      $region61: #{tpu_custom_call.1} parent=5 // pred_check
        _
      $region62: #{tpu_custom_call.1} parent=5 // pred_check_branch
        %462 = sbr.rel (%p459) target = $region64
      $region63: #{tpu_custom_call.1} parent=5 // pred_region
        %s463 = ssub.s32 %s28, 1
        %s464 = sand.u32 %s41, 1
        %s465 = scalar_lea.sflag [#allocation4], %s464
        %s466 = sand.u32 %s41, 1
        %s467 = smul.addr %s466, 64
        %s468 = scalar_lea.vmem [#allocation3], %s467
        // Predicated region
        $region65: #{tpu_custom_call.1} parent=63 // pred_check
          %p469 = pneg %p54
        $region66: #{tpu_custom_call.1} parent=63 // pred_check_branch
          %471 = sbr.rel (%p469) target = $region68
        $region67: #{tpu_custom_call.1} parent=63 // pred_region
          %473 = dma.done %s465, 1024
        $region68: #{tpu_custom_call.1} parent=63 // pred_fallthru
          _
        // Predicated region
        $region69: #{tpu_custom_call.1} parent=63 // pred_check
          %p474 = pneg %p75
        $region70: #{tpu_custom_call.1} parent=63 // pred_check_branch
          %476 = sbr.rel (%p474) target = $region72
        $region71: #{tpu_custom_call.1} parent=63 // pred_region
          %478 = dma.done [#allocation7], 64
        $region72: #{tpu_custom_call.1} parent=63 // pred_fallthru
          _
        // Predicated region
        $region73: #{tpu_custom_call.1} parent=63 // pred_check
          %p479 = pneg %p96
        $region74: #{tpu_custom_call.1} parent=63 // pred_check_branch
          %481 = sbr.rel (%p479) target = $region76
        $region75: #{tpu_custom_call.1} parent=63 // pred_region
          %483 = dma.done [#allocation7], 32768
        $region76: #{tpu_custom_call.1} parent=63 // pred_fallthru
          _
        // Predicated region
        $region77: #{tpu_custom_call.1} parent=63 // pred_check
          %p484 = pneg %p117
        $region78: #{tpu_custom_call.1} parent=63 // pred_check_branch
          %486 = sbr.rel (%p484) target = $region80
        $region79: #{tpu_custom_call.1} parent=63 // pred_region
          %488 = dma.done [#allocation10], 98304
        $region80: #{tpu_custom_call.1} parent=63 // pred_fallthru
          _
        // Predicated region
        $region81: #{tpu_custom_call.1} parent=63 // pred_check
          %p489 = pneg %p138
        $region82: #{tpu_custom_call.1} parent=63 // pred_check_branch
          %491 = sbr.rel (%p489) target = $region84
        $region83: #{tpu_custom_call.1} parent=63 // pred_region
          %493 = dma.done [#allocation10], 64
        $region84: #{tpu_custom_call.1} parent=63 // pred_fallthru
          _
        // Predicated region
        $region85: #{tpu_custom_call.1} parent=63 // pred_check
          %p494 = pneg %p159
        $region86: #{tpu_custom_call.1} parent=63 // pred_check_branch
          %496 = sbr.rel (%p494) target = $region88
        $region87: #{tpu_custom_call.1} parent=63 // pred_region
          %498 = dma.done [#allocation13], 64
        $region88: #{tpu_custom_call.1} parent=63 // pred_fallthru
          _
        // Predicated region
        $region89: #{tpu_custom_call.1} parent=63 // pred_check
          %p499 = pneg %p180
        $region90: #{tpu_custom_call.1} parent=63 // pred_check_branch
          %501 = sbr.rel (%p499) target = $region92
        $region91: #{tpu_custom_call.1} parent=63 // pred_region
          %503 = dma.done [#allocation13], 64
        $region92: #{tpu_custom_call.1} parent=63 // pred_fallthru
          _
        // Predicated region
        $region93: #{tpu_custom_call.1} parent=63 // pred_check
          %p504 = pneg %p201
        $region94: #{tpu_custom_call.1} parent=63 // pred_check_branch
          %506 = sbr.rel (%p504) target = $region96
        $region95: #{tpu_custom_call.1} parent=63 // pred_region
          %508 = dma.done [#allocation16], 98304
        $region96: #{tpu_custom_call.1} parent=63 // pred_fallthru
          _
        // Predicated region
        $region97: #{tpu_custom_call.1} parent=63 // pred_check
          %p509 = pneg %p222
        $region98: #{tpu_custom_call.1} parent=63 // pred_check_branch
          %511 = sbr.rel (%p509) target = $region100
        $region99: #{tpu_custom_call.1} parent=63 // pred_region
          %513 = dma.done [#allocation16], 64
        $region100: #{tpu_custom_call.1} parent=63 // pred_fallthru
          _
        // Predicated region
        $region101: #{tpu_custom_call.1} parent=63 // pred_check
          %p514 = pneg %p243
        $region102: #{tpu_custom_call.1} parent=63 // pred_check_branch
          %516 = sbr.rel (%p514) target = $region104
        $region103: #{tpu_custom_call.1} parent=63 // pred_region
          %518 = dma.done [#allocation19], 64
        $region104: #{tpu_custom_call.1} parent=63 // pred_fallthru
          _
        // Predicated region
        $region105: #{tpu_custom_call.1} parent=63 // pred_check
          %p519 = pneg %p264
        $region106: #{tpu_custom_call.1} parent=63 // pred_check_branch
          %521 = sbr.rel (%p519) target = $region108
        $region107: #{tpu_custom_call.1} parent=63 // pred_region
          %523 = dma.done [#allocation19], 64
        $region108: #{tpu_custom_call.1} parent=63 // pred_fallthru
          _
        %s524 = sand.u32 %s41, 1
        %s525 = scalar_lea.sflag [#allocation4], %s524
        %s526 = sand.u32 %s41, 1
        %s527 = smul.addr %s526, 64
        %s528 = scalar_lea.vmem [#allocation3], %s527
        %p529 = pneg %p54
        %p530 = pneg %p51
        %p531 = pneg %p75
        %p532 = pneg %p72
        %p533 = pneg %p96
        %p534 = pneg %p93
        %p535 = pneg %p117
        %p536 = pneg %p114
        %p537 = pneg %p138
        %p538 = pneg %p135
        %p539 = pneg %p159
        %p540 = pneg %p156
        %p541 = pneg %p180
        %p542 = pneg %p177
        %p543 = pneg %p201
        %p544 = pneg %p198
        %p545 = pneg %p222
        %p546 = pneg %p219
        %p547 = pneg %p243
        %p548 = pneg %p240
        %p549 = pneg %p264
        %p550 = pneg %p261
        %p551 = pneg %p290
        %p552 = pneg %p287
        %s553 = sand.u32 %s277, 1
        %s554 = scalar_lea.sflag [#allocation5], %s553
        %s555 = sand.u32 %s277, 1
        %s556 = smul.addr %s555, 32
        %s557 = scalar_lea.vmem [#allocation21], %s556
        %v558 = vld [vmem:[#allocation6] sm:$0xf]
        %v559 = vld [vmem:[#allocation8] sm:$0xff]
        %v560 = vld [vmem:[#allocation8 + $0x8] sm:$0xff]
        %v561 = vld [vmem:[#allocation8 + $0x10] sm:$0xff]
        %v562 = vld [vmem:[#allocation8 + $0x18] sm:$0xff]
        %v563 = vld [vmem:[#allocation8 + $0x20] sm:$0xff]
        %v564 = vld [vmem:[#allocation8 + $0x28] sm:$0xff]
        %v565 = vld [vmem:[#allocation8 + $0x30] sm:$0xff]
        %v566 = vld [vmem:[#allocation8 + $0x38] sm:$0xff]
        %v567 = vld [vmem:[#allocation8 + $0x40] sm:$0xff]
        %v568 = vld [vmem:[#allocation8 + $0x48] sm:$0xff]
        %v569 = vld [vmem:[#allocation8 + $0x50] sm:$0xff]
        %v570 = vld [vmem:[#allocation8 + $0x58] sm:$0xff]
        %v571 = vld [vmem:[#allocation8 + $0x60] sm:$0xff]
        %v572 = vld [vmem:[#allocation8 + $0x68] sm:$0xff]
        %v573 = vld [vmem:[#allocation8 + $0x70] sm:$0xff]
        %v574 = vld [vmem:[#allocation8 + $0x78] sm:$0xff]
        %v575 = vld [vmem:[#allocation8 + $0x80] sm:$0xff]
        %v576 = vld [vmem:[#allocation8 + $0x88] sm:$0xff]
        %v577 = vld [vmem:[#allocation8 + $0x90] sm:$0xff]
        %v578 = vld [vmem:[#allocation8 + $0x98] sm:$0xff]
        %v579 = vld [vmem:[#allocation8 + $0xa0] sm:$0xff]
        %v580 = vld [vmem:[#allocation8 + $0xa8] sm:$0xff]
        %v581 = vld [vmem:[#allocation8 + $0xb0] sm:$0xff]
        %v582 = vld [vmem:[#allocation8 + $0xb8] sm:$0xff]
        %v583 = vld [vmem:[#allocation8 + $0xc0] sm:$0xff]
        %v584 = vld [vmem:[#allocation8 + $0xc8] sm:$0xff]
        %v585 = vld [vmem:[#allocation8 + $0xd0] sm:$0xff]
        %v586 = vld [vmem:[#allocation8 + $0xd8] sm:$0xff]
        %v587 = vld [vmem:[#allocation8 + $0xe0] sm:$0xff]
        %v588 = vld [vmem:[#allocation8 + $0xe8] sm:$0xff]
        %v589 = vld [vmem:[#allocation8 + $0xf0] sm:$0xff]
        %v590 = vld [vmem:[#allocation8 + $0xf8] sm:$0xff]
        %v591 = vld [vmem:[#allocation8 + $0x100] sm:$0xff]
        %v592 = vld [vmem:[#allocation8 + $0x108] sm:$0xff]
        %v593 = vld [vmem:[#allocation8 + $0x110] sm:$0xff]
        %v594 = vld [vmem:[#allocation8 + $0x118] sm:$0xff]
        %v595 = vld [vmem:[#allocation8 + $0x120] sm:$0xff]
        %v596 = vld [vmem:[#allocation8 + $0x128] sm:$0xff]
        %v597 = vld [vmem:[#allocation8 + $0x130] sm:$0xff]
        %v598 = vld [vmem:[#allocation8 + $0x138] sm:$0xff]
        %v599 = vld [vmem:[#allocation8 + $0x140] sm:$0xff]
        %v600 = vld [vmem:[#allocation8 + $0x148] sm:$0xff]
        %v601 = vld [vmem:[#allocation8 + $0x150] sm:$0xff]
        %v602 = vld [vmem:[#allocation8 + $0x158] sm:$0xff]
        %v603 = vld [vmem:[#allocation8 + $0x160] sm:$0xff]
        %v604 = vld [vmem:[#allocation8 + $0x168] sm:$0xff]
        %v605 = vld [vmem:[#allocation8 + $0x170] sm:$0xff]
        %v606 = vld [vmem:[#allocation8 + $0x178] sm:$0xff]
        %v607 = vld [vmem:[#allocation8 + $0x180] sm:$0xff]
        %v608 = vld [vmem:[#allocation8 + $0x188] sm:$0xff]
        %v609 = vld [vmem:[#allocation8 + $0x190] sm:$0xff]
        %v610 = vld [vmem:[#allocation8 + $0x198] sm:$0xff]
        %v611 = vld [vmem:[#allocation8 + $0x1a0] sm:$0xff]
        %v612 = vld [vmem:[#allocation8 + $0x1a8] sm:$0xff]
        %v613 = vld [vmem:[#allocation8 + $0x1b0] sm:$0xff]
        %v614 = vld [vmem:[#allocation8 + $0x1b8] sm:$0xff]
        %v615 = vld [vmem:[#allocation8 + $0x1c0] sm:$0xff]
        %v616 = vld [vmem:[#allocation8 + $0x1c8] sm:$0xff]
        %v617 = vld [vmem:[#allocation8 + $0x1d0] sm:$0xff]
        %v618 = vld [vmem:[#allocation8 + $0x1d8] sm:$0xff]
        %v619 = vld [vmem:[#allocation8 + $0x1e0] sm:$0xff]
        %v620 = vld [vmem:[#allocation8 + $0x1e8] sm:$0xff]
        %v621 = vld [vmem:[#allocation8 + $0x1f0] sm:$0xff]
        %v622 = vld [vmem:[#allocation8 + $0x1f8] sm:$0xff]
        %v623 = vld [vmem:[#allocation8 + $0x200] sm:$0xff]
        %v624 = vld [vmem:[#allocation8 + $0x208] sm:$0xff]
        %v625 = vld [vmem:[#allocation8 + $0x210] sm:$0xff]
        %v626 = vld [vmem:[#allocation8 + $0x218] sm:$0xff]
        %v627 = vld [vmem:[#allocation8 + $0x220] sm:$0xff]
        %v628 = vld [vmem:[#allocation8 + $0x228] sm:$0xff]
        %v629 = vld [vmem:[#allocation8 + $0x230] sm:$0xff]
        %v630 = vld [vmem:[#allocation8 + $0x238] sm:$0xff]
        %v631 = vld [vmem:[#allocation8 + $0x240] sm:$0xff]
        %v632 = vld [vmem:[#allocation8 + $0x248] sm:$0xff]
        %v633 = vld [vmem:[#allocation8 + $0x250] sm:$0xff]
        %v634 = vld [vmem:[#allocation8 + $0x258] sm:$0xff]
        %v635 = vld [vmem:[#allocation8 + $0x260] sm:$0xff]
        %v636 = vld [vmem:[#allocation8 + $0x268] sm:$0xff]
        %v637 = vld [vmem:[#allocation8 + $0x270] sm:$0xff]
        %v638 = vld [vmem:[#allocation8 + $0x278] sm:$0xff]
        %v639 = vld [vmem:[#allocation8 + $0x280] sm:$0xff]
        %v640 = vld [vmem:[#allocation8 + $0x288] sm:$0xff]
        %v641 = vld [vmem:[#allocation8 + $0x290] sm:$0xff]
        %v642 = vld [vmem:[#allocation8 + $0x298] sm:$0xff]
        %v643 = vld [vmem:[#allocation8 + $0x2a0] sm:$0xff]
        %v644 = vld [vmem:[#allocation8 + $0x2a8] sm:$0xff]
        %v645 = vld [vmem:[#allocation8 + $0x2b0] sm:$0xff]
        %v646 = vld [vmem:[#allocation8 + $0x2b8] sm:$0xff]
        %v647 = vld [vmem:[#allocation8 + $0x2c0] sm:$0xff]
        %v648 = vld [vmem:[#allocation8 + $0x2c8] sm:$0xff]
        %v649 = vld [vmem:[#allocation8 + $0x2d0] sm:$0xff]
        %v650 = vld [vmem:[#allocation8 + $0x2d8] sm:$0xff]
        %v651 = vld [vmem:[#allocation8 + $0x2e0] sm:$0xff]
        %v652 = vld [vmem:[#allocation8 + $0x2e8] sm:$0xff]
        %v653 = vld [vmem:[#allocation8 + $0x2f0] sm:$0xff]
        %v654 = vld [vmem:[#allocation8 + $0x2f8] sm:$0xff]
        %v655 = vld [vmem:[#allocation8 + $0x300] sm:$0xff]
        %v656 = vld [vmem:[#allocation8 + $0x308] sm:$0xff]
        %v657 = vld [vmem:[#allocation8 + $0x310] sm:$0xff]
        %v658 = vld [vmem:[#allocation8 + $0x318] sm:$0xff]
        %v659 = vld [vmem:[#allocation8 + $0x320] sm:$0xff]
        %v660 = vld [vmem:[#allocation8 + $0x328] sm:$0xff]
        %v661 = vld [vmem:[#allocation8 + $0x330] sm:$0xff]
        %v662 = vld [vmem:[#allocation8 + $0x338] sm:$0xff]
        %v663 = vld [vmem:[#allocation8 + $0x340] sm:$0xff]
        %v664 = vld [vmem:[#allocation8 + $0x348] sm:$0xff]
        %v665 = vld [vmem:[#allocation8 + $0x350] sm:$0xff]
        %v666 = vld [vmem:[#allocation8 + $0x358] sm:$0xff]
        %v667 = vld [vmem:[#allocation8 + $0x360] sm:$0xff]
        %v668 = vld [vmem:[#allocation8 + $0x368] sm:$0xff]
        %v669 = vld [vmem:[#allocation8 + $0x370] sm:$0xff]
        %v670 = vld [vmem:[#allocation8 + $0x378] sm:$0xff]
        %v671 = vld [vmem:[#allocation8 + $0x380] sm:$0xff]
        %v672 = vld [vmem:[#allocation8 + $0x388] sm:$0xff]
        %v673 = vld [vmem:[#allocation8 + $0x390] sm:$0xff]
        %v674 = vld [vmem:[#allocation8 + $0x398] sm:$0xff]
        %v675 = vld [vmem:[#allocation8 + $0x3a0] sm:$0xff]
        %v676 = vld [vmem:[#allocation8 + $0x3a8] sm:$0xff]
        %v677 = vld [vmem:[#allocation8 + $0x3b0] sm:$0xff]
        %v678 = vld [vmem:[#allocation8 + $0x3b8] sm:$0xff]
        %v679 = vld [vmem:[#allocation8 + $0x3c0] sm:$0xff]
        %v680 = vld [vmem:[#allocation8 + $0x3c8] sm:$0xff]
        %v681 = vld [vmem:[#allocation8 + $0x3d0] sm:$0xff]
        %v682 = vld [vmem:[#allocation8 + $0x3d8] sm:$0xff]
        %v683 = vld [vmem:[#allocation8 + $0x3e0] sm:$0xff]
        %v684 = vld [vmem:[#allocation8 + $0x3e8] sm:$0xff]
        %v685 = vld [vmem:[#allocation8 + $0x3f0] sm:$0xff]
        %v686 = vld [vmem:[#allocation8 + $0x3f8] sm:$0xff]
        %v687 = vld [vmem:[#allocation8 + $0x400] sm:$0xff]
        %v688 = vld [vmem:[#allocation8 + $0x408] sm:$0xff]
        %v689 = vld [vmem:[#allocation8 + $0x410] sm:$0xff]
        %v690 = vld [vmem:[#allocation8 + $0x418] sm:$0xff]
        %v691 = vld [vmem:[#allocation8 + $0x420] sm:$0xff]
        %v692 = vld [vmem:[#allocation8 + $0x428] sm:$0xff]
        %v693 = vld [vmem:[#allocation8 + $0x430] sm:$0xff]
        %v694 = vld [vmem:[#allocation8 + $0x438] sm:$0xff]
        %v695 = vld [vmem:[#allocation8 + $0x440] sm:$0xff]
        %v696 = vld [vmem:[#allocation8 + $0x448] sm:$0xff]
        %v697 = vld [vmem:[#allocation8 + $0x450] sm:$0xff]
        %v698 = vld [vmem:[#allocation8 + $0x458] sm:$0xff]
        %v699 = vld [vmem:[#allocation8 + $0x460] sm:$0xff]
        %v700 = vld [vmem:[#allocation8 + $0x468] sm:$0xff]
        %v701 = vld [vmem:[#allocation8 + $0x470] sm:$0xff]
        %v702 = vld [vmem:[#allocation8 + $0x478] sm:$0xff]
        %v703 = vld [vmem:[#allocation8 + $0x480] sm:$0xff]
        %v704 = vld [vmem:[#allocation8 + $0x488] sm:$0xff]
        %v705 = vld [vmem:[#allocation8 + $0x490] sm:$0xff]
        %v706 = vld [vmem:[#allocation8 + $0x498] sm:$0xff]
        %v707 = vld [vmem:[#allocation8 + $0x4a0] sm:$0xff]
        %v708 = vld [vmem:[#allocation8 + $0x4a8] sm:$0xff]
        %v709 = vld [vmem:[#allocation8 + $0x4b0] sm:$0xff]
        %v710 = vld [vmem:[#allocation8 + $0x4b8] sm:$0xff]
        %v711 = vld [vmem:[#allocation8 + $0x4c0] sm:$0xff]
        %v712 = vld [vmem:[#allocation8 + $0x4c8] sm:$0xff]
        %v713 = vld [vmem:[#allocation8 + $0x4d0] sm:$0xff]
        %v714 = vld [vmem:[#allocation8 + $0x4d8] sm:$0xff]
        %v715 = vld [vmem:[#allocation8 + $0x4e0] sm:$0xff]
        %v716 = vld [vmem:[#allocation8 + $0x4e8] sm:$0xff]
        %v717 = vld [vmem:[#allocation8 + $0x4f0] sm:$0xff]
        %v718 = vld [vmem:[#allocation8 + $0x4f8] sm:$0xff]
        %v719 = vld [vmem:[#allocation8 + $0x500] sm:$0xff]
        %v720 = vld [vmem:[#allocation8 + $0x508] sm:$0xff]
        %v721 = vld [vmem:[#allocation8 + $0x510] sm:$0xff]
        %v722 = vld [vmem:[#allocation8 + $0x518] sm:$0xff]
        %v723 = vld [vmem:[#allocation8 + $0x520] sm:$0xff]
        %v724 = vld [vmem:[#allocation8 + $0x528] sm:$0xff]
        %v725 = vld [vmem:[#allocation8 + $0x530] sm:$0xff]
        %v726 = vld [vmem:[#allocation8 + $0x538] sm:$0xff]
        %v727 = vld [vmem:[#allocation8 + $0x540] sm:$0xff]
        %v728 = vld [vmem:[#allocation8 + $0x548] sm:$0xff]
        %v729 = vld [vmem:[#allocation8 + $0x550] sm:$0xff]
        %v730 = vld [vmem:[#allocation8 + $0x558] sm:$0xff]
        %v731 = vld [vmem:[#allocation8 + $0x560] sm:$0xff]
        %v732 = vld [vmem:[#allocation8 + $0x568] sm:$0xff]
        %v733 = vld [vmem:[#allocation8 + $0x570] sm:$0xff]
        %v734 = vld [vmem:[#allocation8 + $0x578] sm:$0xff]
        %v735 = vld [vmem:[#allocation8 + $0x580] sm:$0xff]
        %v736 = vld [vmem:[#allocation8 + $0x588] sm:$0xff]
        %v737 = vld [vmem:[#allocation8 + $0x590] sm:$0xff]
        %v738 = vld [vmem:[#allocation8 + $0x598] sm:$0xff]
        %v739 = vld [vmem:[#allocation8 + $0x5a0] sm:$0xff]
        %v740 = vld [vmem:[#allocation8 + $0x5a8] sm:$0xff]
        %v741 = vld [vmem:[#allocation8 + $0x5b0] sm:$0xff]
        %v742 = vld [vmem:[#allocation8 + $0x5b8] sm:$0xff]
        %v743 = vld [vmem:[#allocation8 + $0x5c0] sm:$0xff]
        %v744 = vld [vmem:[#allocation8 + $0x5c8] sm:$0xff]
        %v745 = vld [vmem:[#allocation8 + $0x5d0] sm:$0xff]
        %v746 = vld [vmem:[#allocation8 + $0x5d8] sm:$0xff]
        %v747 = vld [vmem:[#allocation8 + $0x5e0] sm:$0xff]
        %v748 = vld [vmem:[#allocation8 + $0x5e8] sm:$0xff]
        %v749 = vld [vmem:[#allocation8 + $0x5f0] sm:$0xff]
        %v750 = vld [vmem:[#allocation8 + $0x5f8] sm:$0xff]
        %v751 = vld [vmem:[#allocation8 + $0x600] sm:$0xff]
        %v752 = vld [vmem:[#allocation8 + $0x608] sm:$0xff]
        %v753 = vld [vmem:[#allocation8 + $0x610] sm:$0xff]
        %v754 = vld [vmem:[#allocation8 + $0x618] sm:$0xff]
        %v755 = vld [vmem:[#allocation8 + $0x620] sm:$0xff]
        %v756 = vld [vmem:[#allocation8 + $0x628] sm:$0xff]
        %v757 = vld [vmem:[#allocation8 + $0x630] sm:$0xff]
        %v758 = vld [vmem:[#allocation8 + $0x638] sm:$0xff]
        %v759 = vld [vmem:[#allocation8 + $0x640] sm:$0xff]
        %v760 = vld [vmem:[#allocation8 + $0x648] sm:$0xff]
        %v761 = vld [vmem:[#allocation8 + $0x650] sm:$0xff]
        %v762 = vld [vmem:[#allocation8 + $0x658] sm:$0xff]
        %v763 = vld [vmem:[#allocation8 + $0x660] sm:$0xff]
        %v764 = vld [vmem:[#allocation8 + $0x668] sm:$0xff]
        %v765 = vld [vmem:[#allocation8 + $0x670] sm:$0xff]
        %v766 = vld [vmem:[#allocation8 + $0x678] sm:$0xff]
        %v767 = vld [vmem:[#allocation8 + $0x680] sm:$0xff]
        %v768 = vld [vmem:[#allocation8 + $0x688] sm:$0xff]
        %v769 = vld [vmem:[#allocation8 + $0x690] sm:$0xff]
        %v770 = vld [vmem:[#allocation8 + $0x698] sm:$0xff]
        %v771 = vld [vmem:[#allocation8 + $0x6a0] sm:$0xff]
        %v772 = vld [vmem:[#allocation8 + $0x6a8] sm:$0xff]
        %v773 = vld [vmem:[#allocation8 + $0x6b0] sm:$0xff]
        %v774 = vld [vmem:[#allocation8 + $0x6b8] sm:$0xff]
        %v775 = vld [vmem:[#allocation8 + $0x6c0] sm:$0xff]
        %v776 = vld [vmem:[#allocation8 + $0x6c8] sm:$0xff]
        %v777 = vld [vmem:[#allocation8 + $0x6d0] sm:$0xff]
        %v778 = vld [vmem:[#allocation8 + $0x6d8] sm:$0xff]
        %v779 = vld [vmem:[#allocation8 + $0x6e0] sm:$0xff]
        %v780 = vld [vmem:[#allocation8 + $0x6e8] sm:$0xff]
        %v781 = vld [vmem:[#allocation8 + $0x6f0] sm:$0xff]
        %v782 = vld [vmem:[#allocation8 + $0x6f8] sm:$0xff]
        %v783 = vld [vmem:[#allocation8 + $0x700] sm:$0xff]
        %v784 = vld [vmem:[#allocation8 + $0x708] sm:$0xff]
        %v785 = vld [vmem:[#allocation8 + $0x710] sm:$0xff]
        %v786 = vld [vmem:[#allocation8 + $0x718] sm:$0xff]
        %v787 = vld [vmem:[#allocation8 + $0x720] sm:$0xff]
        %v788 = vld [vmem:[#allocation8 + $0x728] sm:$0xff]
        %v789 = vld [vmem:[#allocation8 + $0x730] sm:$0xff]
        %v790 = vld [vmem:[#allocation8 + $0x738] sm:$0xff]
        %v791 = vld [vmem:[#allocation8 + $0x740] sm:$0xff]
        %v792 = vld [vmem:[#allocation8 + $0x748] sm:$0xff]
        %v793 = vld [vmem:[#allocation8 + $0x750] sm:$0xff]
        %v794 = vld [vmem:[#allocation8 + $0x758] sm:$0xff]
        %v795 = vld [vmem:[#allocation8 + $0x760] sm:$0xff]
        %v796 = vld [vmem:[#allocation8 + $0x768] sm:$0xff]
        %v797 = vld [vmem:[#allocation8 + $0x770] sm:$0xff]
        %v798 = vld [vmem:[#allocation8 + $0x778] sm:$0xff]
        %v799 = vld [vmem:[#allocation8 + $0x780] sm:$0xff]
        %v800 = vld [vmem:[#allocation8 + $0x788] sm:$0xff]
        %v801 = vld [vmem:[#allocation8 + $0x790] sm:$0xff]
        %v802 = vld [vmem:[#allocation8 + $0x798] sm:$0xff]
        %v803 = vld [vmem:[#allocation8 + $0x7a0] sm:$0xff]
        %v804 = vld [vmem:[#allocation8 + $0x7a8] sm:$0xff]
        %v805 = vld [vmem:[#allocation8 + $0x7b0] sm:$0xff]
        %v806 = vld [vmem:[#allocation8 + $0x7b8] sm:$0xff]
        %v807 = vld [vmem:[#allocation8 + $0x7c0] sm:$0xff]
        %v808 = vld [vmem:[#allocation8 + $0x7c8] sm:$0xff]
        %v809 = vld [vmem:[#allocation8 + $0x7d0] sm:$0xff]
        %v810 = vld [vmem:[#allocation8 + $0x7d8] sm:$0xff]
        %v811 = vld [vmem:[#allocation8 + $0x7e0] sm:$0xff]
        %v812 = vld [vmem:[#allocation8 + $0x7e8] sm:$0xff]
        %v813 = vld [vmem:[#allocation8 + $0x7f0] sm:$0xff]
        %v814 = vld [vmem:[#allocation8 + $0x7f8] sm:$0xff]
        %v815 = vld [vmem:[%s468] sm:$0xff]
        %v816 = vld [vmem:[%s468 + $0x8] sm:$0xff]
        %v817 = vld [vmem:[%s468 + $0x10] sm:$0xff]
        %v818 = vld [vmem:[%s468 + $0x18] sm:$0xff]
        %v819 = vld [vmem:[#allocation9] sm:$0xff]
        %v820 = vld [vmem:[#allocation9 + $0x8] sm:$0xff]
        %v821 = vld [vmem:[#allocation9 + $0x10] sm:$0xff]
        %v822 = vld [vmem:[#allocation9 + $0x18] sm:$0xff]
        %v823 = vld [vmem:[#allocation9 + $0x20] sm:$0xff]
        %v824 = vld [vmem:[#allocation9 + $0x28] sm:$0xff]
        %v825 = vld [vmem:[#allocation9 + $0x30] sm:$0xff]
        %v826 = vld [vmem:[#allocation9 + $0x38] sm:$0xff]
        %v827 = vld [vmem:[#allocation9 + $0x40] sm:$0xff]
        %v828 = vld [vmem:[#allocation9 + $0x48] sm:$0xff]
        %v829 = vld [vmem:[#allocation9 + $0x50] sm:$0xff]
        %v830 = vld [vmem:[#allocation9 + $0x58] sm:$0xff]
        %v831 = vld [vmem:[#allocation9 + $0x60] sm:$0xff]
        %v832 = vld [vmem:[#allocation9 + $0x68] sm:$0xff]
        %v833 = vld [vmem:[#allocation9 + $0x70] sm:$0xff]
        %v834 = vld [vmem:[#allocation9 + $0x78] sm:$0xff]
        %v835 = vld [vmem:[#allocation9 + $0x80] sm:$0xff]
        %v836 = vld [vmem:[#allocation9 + $0x88] sm:$0xff]
        %v837 = vld [vmem:[#allocation9 + $0x90] sm:$0xff]
        %v838 = vld [vmem:[#allocation9 + $0x98] sm:$0xff]
        %v839 = vld [vmem:[#allocation9 + $0xa0] sm:$0xff]
        %v840 = vld [vmem:[#allocation9 + $0xa8] sm:$0xff]
        %v841 = vld [vmem:[#allocation9 + $0xb0] sm:$0xff]
        %v842 = vld [vmem:[#allocation9 + $0xb8] sm:$0xff]
        %v843 = vld [vmem:[#allocation9 + $0xc0] sm:$0xff]
        %v844 = vld [vmem:[#allocation9 + $0xc8] sm:$0xff]
        %v845 = vld [vmem:[#allocation9 + $0xd0] sm:$0xff]
        %v846 = vld [vmem:[#allocation9 + $0xd8] sm:$0xff]
        %v847 = vld [vmem:[#allocation9 + $0xe0] sm:$0xff]
        %v848 = vld [vmem:[#allocation9 + $0xe8] sm:$0xff]
        %v849 = vld [vmem:[#allocation9 + $0xf0] sm:$0xff]
        %v850 = vld [vmem:[#allocation9 + $0xf8] sm:$0xff]
        %v851 = vld [vmem:[#allocation9 + $0x100] sm:$0xff]
        %v852 = vld [vmem:[#allocation9 + $0x108] sm:$0xff]
        %v853 = vld [vmem:[#allocation9 + $0x110] sm:$0xff]
        %v854 = vld [vmem:[#allocation9 + $0x118] sm:$0xff]
        %v855 = vld [vmem:[#allocation9 + $0x120] sm:$0xff]
        %v856 = vld [vmem:[#allocation9 + $0x128] sm:$0xff]
        %v857 = vld [vmem:[#allocation9 + $0x130] sm:$0xff]
        %v858 = vld [vmem:[#allocation9 + $0x138] sm:$0xff]
        %v859 = vld [vmem:[#allocation9 + $0x140] sm:$0xff]
        %v860 = vld [vmem:[#allocation9 + $0x148] sm:$0xff]
        %v861 = vld [vmem:[#allocation9 + $0x150] sm:$0xff]
        %v862 = vld [vmem:[#allocation9 + $0x158] sm:$0xff]
        %v863 = vld [vmem:[#allocation9 + $0x160] sm:$0xff]
        %v864 = vld [vmem:[#allocation9 + $0x168] sm:$0xff]
        %v865 = vld [vmem:[#allocation9 + $0x170] sm:$0xff]
        %v866 = vld [vmem:[#allocation9 + $0x178] sm:$0xff]
        %v867 = vld [vmem:[#allocation9 + $0x180] sm:$0xff]
        %v868 = vld [vmem:[#allocation9 + $0x188] sm:$0xff]
        %v869 = vld [vmem:[#allocation9 + $0x190] sm:$0xff]
        %v870 = vld [vmem:[#allocation9 + $0x198] sm:$0xff]
        %v871 = vld [vmem:[#allocation9 + $0x1a0] sm:$0xff]
        %v872 = vld [vmem:[#allocation9 + $0x1a8] sm:$0xff]
        %v873 = vld [vmem:[#allocation9 + $0x1b0] sm:$0xff]
        %v874 = vld [vmem:[#allocation9 + $0x1b8] sm:$0xff]
        %v875 = vld [vmem:[#allocation9 + $0x1c0] sm:$0xff]
        %v876 = vld [vmem:[#allocation9 + $0x1c8] sm:$0xff]
        %v877 = vld [vmem:[#allocation9 + $0x1d0] sm:$0xff]
        %v878 = vld [vmem:[#allocation9 + $0x1d8] sm:$0xff]
        %v879 = vld [vmem:[#allocation9 + $0x1e0] sm:$0xff]
        %v880 = vld [vmem:[#allocation9 + $0x1e8] sm:$0xff]
        %v881 = vld [vmem:[#allocation9 + $0x1f0] sm:$0xff]
        %v882 = vld [vmem:[#allocation9 + $0x1f8] sm:$0xff]
        %v883 = vld [vmem:[#allocation9 + $0x200] sm:$0xff]
        %v884 = vld [vmem:[#allocation9 + $0x208] sm:$0xff]
        %v885 = vld [vmem:[#allocation9 + $0x210] sm:$0xff]
        %v886 = vld [vmem:[#allocation9 + $0x218] sm:$0xff]
        %v887 = vld [vmem:[#allocation9 + $0x220] sm:$0xff]
        %v888 = vld [vmem:[#allocation9 + $0x228] sm:$0xff]
        %v889 = vld [vmem:[#allocation9 + $0x230] sm:$0xff]
        %v890 = vld [vmem:[#allocation9 + $0x238] sm:$0xff]
        %v891 = vld [vmem:[#allocation9 + $0x240] sm:$0xff]
        %v892 = vld [vmem:[#allocation9 + $0x248] sm:$0xff]
        %v893 = vld [vmem:[#allocation9 + $0x250] sm:$0xff]
        %v894 = vld [vmem:[#allocation9 + $0x258] sm:$0xff]
        %v895 = vld [vmem:[#allocation9 + $0x260] sm:$0xff]
        %v896 = vld [vmem:[#allocation9 + $0x268] sm:$0xff]
        %v897 = vld [vmem:[#allocation9 + $0x270] sm:$0xff]
        %v898 = vld [vmem:[#allocation9 + $0x278] sm:$0xff]
        %v899 = vld [vmem:[#allocation9 + $0x280] sm:$0xff]
        %v900 = vld [vmem:[#allocation9 + $0x288] sm:$0xff]
        %v901 = vld [vmem:[#allocation9 + $0x290] sm:$0xff]
        %v902 = vld [vmem:[#allocation9 + $0x298] sm:$0xff]
        %v903 = vld [vmem:[#allocation9 + $0x2a0] sm:$0xff]
        %v904 = vld [vmem:[#allocation9 + $0x2a8] sm:$0xff]
        %v905 = vld [vmem:[#allocation9 + $0x2b0] sm:$0xff]
        %v906 = vld [vmem:[#allocation9 + $0x2b8] sm:$0xff]
        %v907 = vld [vmem:[#allocation9 + $0x2c0] sm:$0xff]
        %v908 = vld [vmem:[#allocation9 + $0x2c8] sm:$0xff]
        %v909 = vld [vmem:[#allocation9 + $0x2d0] sm:$0xff]
        %v910 = vld [vmem:[#allocation9 + $0x2d8] sm:$0xff]
        %v911 = vld [vmem:[#allocation9 + $0x2e0] sm:$0xff]
        %v912 = vld [vmem:[#allocation9 + $0x2e8] sm:$0xff]
        %v913 = vld [vmem:[#allocation9 + $0x2f0] sm:$0xff]
        %v914 = vld [vmem:[#allocation9 + $0x2f8] sm:$0xff]
        %v915 = vld [vmem:[#allocation9 + $0x300] sm:$0xff]
        %v916 = vld [vmem:[#allocation9 + $0x308] sm:$0xff]
        %v917 = vld [vmem:[#allocation9 + $0x310] sm:$0xff]
        %v918 = vld [vmem:[#allocation9 + $0x318] sm:$0xff]
        %v919 = vld [vmem:[#allocation9 + $0x320] sm:$0xff]
        %v920 = vld [vmem:[#allocation9 + $0x328] sm:$0xff]
        %v921 = vld [vmem:[#allocation9 + $0x330] sm:$0xff]
        %v922 = vld [vmem:[#allocation9 + $0x338] sm:$0xff]
        %v923 = vld [vmem:[#allocation9 + $0x340] sm:$0xff]
        %v924 = vld [vmem:[#allocation9 + $0x348] sm:$0xff]
        %v925 = vld [vmem:[#allocation9 + $0x350] sm:$0xff]
        %v926 = vld [vmem:[#allocation9 + $0x358] sm:$0xff]
        %v927 = vld [vmem:[#allocation9 + $0x360] sm:$0xff]
        %v928 = vld [vmem:[#allocation9 + $0x368] sm:$0xff]
        %v929 = vld [vmem:[#allocation9 + $0x370] sm:$0xff]
        %v930 = vld [vmem:[#allocation9 + $0x378] sm:$0xff]
        %v931 = vld [vmem:[#allocation9 + $0x380] sm:$0xff]
        %v932 = vld [vmem:[#allocation9 + $0x388] sm:$0xff]
        %v933 = vld [vmem:[#allocation9 + $0x390] sm:$0xff]
        %v934 = vld [vmem:[#allocation9 + $0x398] sm:$0xff]
        %v935 = vld [vmem:[#allocation9 + $0x3a0] sm:$0xff]
        %v936 = vld [vmem:[#allocation9 + $0x3a8] sm:$0xff]
        %v937 = vld [vmem:[#allocation9 + $0x3b0] sm:$0xff]
        %v938 = vld [vmem:[#allocation9 + $0x3b8] sm:$0xff]
        %v939 = vld [vmem:[#allocation9 + $0x3c0] sm:$0xff]
        %v940 = vld [vmem:[#allocation9 + $0x3c8] sm:$0xff]
        %v941 = vld [vmem:[#allocation9 + $0x3d0] sm:$0xff]
        %v942 = vld [vmem:[#allocation9 + $0x3d8] sm:$0xff]
        %v943 = vld [vmem:[#allocation9 + $0x3e0] sm:$0xff]
        %v944 = vld [vmem:[#allocation9 + $0x3e8] sm:$0xff]
        %v945 = vld [vmem:[#allocation9 + $0x3f0] sm:$0xff]
        %v946 = vld [vmem:[#allocation9 + $0x3f8] sm:$0xff]
        %v947 = vld [vmem:[#allocation9 + $0x400] sm:$0xff]
        %v948 = vld [vmem:[#allocation9 + $0x408] sm:$0xff]
        %v949 = vld [vmem:[#allocation9 + $0x410] sm:$0xff]
        %v950 = vld [vmem:[#allocation9 + $0x418] sm:$0xff]
        %v951 = vld [vmem:[#allocation9 + $0x420] sm:$0xff]
        %v952 = vld [vmem:[#allocation9 + $0x428] sm:$0xff]
        %v953 = vld [vmem:[#allocation9 + $0x430] sm:$0xff]
        %v954 = vld [vmem:[#allocation9 + $0x438] sm:$0xff]
        %v955 = vld [vmem:[#allocation9 + $0x440] sm:$0xff]
        %v956 = vld [vmem:[#allocation9 + $0x448] sm:$0xff]
        %v957 = vld [vmem:[#allocation9 + $0x450] sm:$0xff]
        %v958 = vld [vmem:[#allocation9 + $0x458] sm:$0xff]
        %v959 = vld [vmem:[#allocation9 + $0x460] sm:$0xff]
        %v960 = vld [vmem:[#allocation9 + $0x468] sm:$0xff]
        %v961 = vld [vmem:[#allocation9 + $0x470] sm:$0xff]
        %v962 = vld [vmem:[#allocation9 + $0x478] sm:$0xff]
        %v963 = vld [vmem:[#allocation9 + $0x480] sm:$0xff]
        %v964 = vld [vmem:[#allocation9 + $0x488] sm:$0xff]
        %v965 = vld [vmem:[#allocation9 + $0x490] sm:$0xff]
        %v966 = vld [vmem:[#allocation9 + $0x498] sm:$0xff]
        %v967 = vld [vmem:[#allocation9 + $0x4a0] sm:$0xff]
        %v968 = vld [vmem:[#allocation9 + $0x4a8] sm:$0xff]
        %v969 = vld [vmem:[#allocation9 + $0x4b0] sm:$0xff]
        %v970 = vld [vmem:[#allocation9 + $0x4b8] sm:$0xff]
        %v971 = vld [vmem:[#allocation9 + $0x4c0] sm:$0xff]
        %v972 = vld [vmem:[#allocation9 + $0x4c8] sm:$0xff]
        %v973 = vld [vmem:[#allocation9 + $0x4d0] sm:$0xff]
        %v974 = vld [vmem:[#allocation9 + $0x4d8] sm:$0xff]
        %v975 = vld [vmem:[#allocation9 + $0x4e0] sm:$0xff]
        %v976 = vld [vmem:[#allocation9 + $0x4e8] sm:$0xff]
        %v977 = vld [vmem:[#allocation9 + $0x4f0] sm:$0xff]
        %v978 = vld [vmem:[#allocation9 + $0x4f8] sm:$0xff]
        %v979 = vld [vmem:[#allocation9 + $0x500] sm:$0xff]
        %v980 = vld [vmem:[#allocation9 + $0x508] sm:$0xff]
        %v981 = vld [vmem:[#allocation9 + $0x510] sm:$0xff]
        %v982 = vld [vmem:[#allocation9 + $0x518] sm:$0xff]
        %v983 = vld [vmem:[#allocation9 + $0x520] sm:$0xff]
        %v984 = vld [vmem:[#allocation9 + $0x528] sm:$0xff]
        %v985 = vld [vmem:[#allocation9 + $0x530] sm:$0xff]
        %v986 = vld [vmem:[#allocation9 + $0x538] sm:$0xff]
        %v987 = vld [vmem:[#allocation9 + $0x540] sm:$0xff]
        %v988 = vld [vmem:[#allocation9 + $0x548] sm:$0xff]
        %v989 = vld [vmem:[#allocation9 + $0x550] sm:$0xff]
        %v990 = vld [vmem:[#allocation9 + $0x558] sm:$0xff]
        %v991 = vld [vmem:[#allocation9 + $0x560] sm:$0xff]
        %v992 = vld [vmem:[#allocation9 + $0x568] sm:$0xff]
        %v993 = vld [vmem:[#allocation9 + $0x570] sm:$0xff]
        %v994 = vld [vmem:[#allocation9 + $0x578] sm:$0xff]
        %v995 = vld [vmem:[#allocation9 + $0x580] sm:$0xff]
        %v996 = vld [vmem:[#allocation9 + $0x588] sm:$0xff]
        %v997 = vld [vmem:[#allocation9 + $0x590] sm:$0xff]
        %v998 = vld [vmem:[#allocation9 + $0x598] sm:$0xff]
        %v999 = vld [vmem:[#allocation9 + $0x5a0] sm:$0xff]
        %v1000 = vld [vmem:[#allocation9 + $0x5a8] sm:$0xff]
        %v1001 = vld [vmem:[#allocation9 + $0x5b0] sm:$0xff]
        %v1002 = vld [vmem:[#allocation9 + $0x5b8] sm:$0xff]
        %v1003 = vld [vmem:[#allocation9 + $0x5c0] sm:$0xff]
        %v1004 = vld [vmem:[#allocation9 + $0x5c8] sm:$0xff]
        %v1005 = vld [vmem:[#allocation9 + $0x5d0] sm:$0xff]
        %v1006 = vld [vmem:[#allocation9 + $0x5d8] sm:$0xff]
        %v1007 = vld [vmem:[#allocation9 + $0x5e0] sm:$0xff]
        %v1008 = vld [vmem:[#allocation9 + $0x5e8] sm:$0xff]
        %v1009 = vld [vmem:[#allocation9 + $0x5f0] sm:$0xff]
        %v1010 = vld [vmem:[#allocation9 + $0x5f8] sm:$0xff]
        %v1011 = vld [vmem:[#allocation9 + $0x600] sm:$0xff]
        %v1012 = vld [vmem:[#allocation9 + $0x608] sm:$0xff]
        %v1013 = vld [vmem:[#allocation9 + $0x610] sm:$0xff]
        %v1014 = vld [vmem:[#allocation9 + $0x618] sm:$0xff]
        %v1015 = vld [vmem:[#allocation9 + $0x620] sm:$0xff]
        %v1016 = vld [vmem:[#allocation9 + $0x628] sm:$0xff]
        %v1017 = vld [vmem:[#allocation9 + $0x630] sm:$0xff]
        %v1018 = vld [vmem:[#allocation9 + $0x638] sm:$0xff]
        %v1019 = vld [vmem:[#allocation9 + $0x640] sm:$0xff]
        %v1020 = vld [vmem:[#allocation9 + $0x648] sm:$0xff]
        %v1021 = vld [vmem:[#allocation9 + $0x650] sm:$0xff]
        %v1022 = vld [vmem:[#allocation9 + $0x658] sm:$0xff]
        %v1023 = vld [vmem:[#allocation9 + $0x660] sm:$0xff]
        %v1024 = vld [vmem:[#allocation9 + $0x668] sm:$0xff]
        %v1025 = vld [vmem:[#allocation9 + $0x670] sm:$0xff]
        %v1026 = vld [vmem:[#allocation9 + $0x678] sm:$0xff]
        %v1027 = vld [vmem:[#allocation9 + $0x680] sm:$0xff]
        %v1028 = vld [vmem:[#allocation9 + $0x688] sm:$0xff]
        %v1029 = vld [vmem:[#allocation9 + $0x690] sm:$0xff]
        %v1030 = vld [vmem:[#allocation9 + $0x698] sm:$0xff]
        %v1031 = vld [vmem:[#allocation9 + $0x6a0] sm:$0xff]
        %v1032 = vld [vmem:[#allocation9 + $0x6a8] sm:$0xff]
        %v1033 = vld [vmem:[#allocation9 + $0x6b0] sm:$0xff]
        %v1034 = vld [vmem:[#allocation9 + $0x6b8] sm:$0xff]
        %v1035 = vld [vmem:[#allocation9 + $0x6c0] sm:$0xff]
        %v1036 = vld [vmem:[#allocation9 + $0x6c8] sm:$0xff]
        %v1037 = vld [vmem:[#allocation9 + $0x6d0] sm:$0xff]
        %v1038 = vld [vmem:[#allocation9 + $0x6d8] sm:$0xff]
        %v1039 = vld [vmem:[#allocation9 + $0x6e0] sm:$0xff]
        %v1040 = vld [vmem:[#allocation9 + $0x6e8] sm:$0xff]
        %v1041 = vld [vmem:[#allocation9 + $0x6f0] sm:$0xff]
        %v1042 = vld [vmem:[#allocation9 + $0x6f8] sm:$0xff]
        %v1043 = vld [vmem:[#allocation9 + $0x700] sm:$0xff]
        %v1044 = vld [vmem:[#allocation9 + $0x708] sm:$0xff]
        %v1045 = vld [vmem:[#allocation9 + $0x710] sm:$0xff]
        %v1046 = vld [vmem:[#allocation9 + $0x718] sm:$0xff]
        %v1047 = vld [vmem:[#allocation9 + $0x720] sm:$0xff]
        %v1048 = vld [vmem:[#allocation9 + $0x728] sm:$0xff]
        %v1049 = vld [vmem:[#allocation9 + $0x730] sm:$0xff]
        %v1050 = vld [vmem:[#allocation9 + $0x738] sm:$0xff]
        %v1051 = vld [vmem:[#allocation9 + $0x740] sm:$0xff]
        %v1052 = vld [vmem:[#allocation9 + $0x748] sm:$0xff]
        %v1053 = vld [vmem:[#allocation9 + $0x750] sm:$0xff]
        %v1054 = vld [vmem:[#allocation9 + $0x758] sm:$0xff]
        %v1055 = vld [vmem:[#allocation9 + $0x760] sm:$0xff]
        %v1056 = vld [vmem:[#allocation9 + $0x768] sm:$0xff]
        %v1057 = vld [vmem:[#allocation9 + $0x770] sm:$0xff]
        %v1058 = vld [vmem:[#allocation9 + $0x778] sm:$0xff]
        %v1059 = vld [vmem:[#allocation9 + $0x780] sm:$0xff]
        %v1060 = vld [vmem:[#allocation9 + $0x788] sm:$0xff]
        %v1061 = vld [vmem:[#allocation9 + $0x790] sm:$0xff]
        %v1062 = vld [vmem:[#allocation9 + $0x798] sm:$0xff]
        %v1063 = vld [vmem:[#allocation9 + $0x7a0] sm:$0xff]
        %v1064 = vld [vmem:[#allocation9 + $0x7a8] sm:$0xff]
        %v1065 = vld [vmem:[#allocation9 + $0x7b0] sm:$0xff]
        %v1066 = vld [vmem:[#allocation9 + $0x7b8] sm:$0xff]
        %v1067 = vld [vmem:[#allocation9 + $0x7c0] sm:$0xff]
        %v1068 = vld [vmem:[#allocation9 + $0x7c8] sm:$0xff]
        %v1069 = vld [vmem:[#allocation9 + $0x7d0] sm:$0xff]
        %v1070 = vld [vmem:[#allocation9 + $0x7d8] sm:$0xff]
        %v1071 = vld [vmem:[#allocation9 + $0x7e0] sm:$0xff]
        %v1072 = vld [vmem:[#allocation9 + $0x7e8] sm:$0xff]
        %v1073 = vld [vmem:[#allocation9 + $0x7f0] sm:$0xff]
        %v1074 = vld [vmem:[#allocation9 + $0x7f8] sm:$0xff]
        %v1075 = vld [vmem:[%s468] sm:$0xfe]
        %v1076 = vld [vmem:[%s468 + $0x8] sm:$0xfe]
        %v1077 = vld [vmem:[%s468 + $0x10] sm:$0xfe]
        %v1078 = vld [vmem:[%s468 + $0x18] sm:$0xfe]
        %v1079 = vld [vmem:[%s468 + $0x20] sm:$0x1]
        %v1080 = vld [vmem:[%s468 + $0x28] sm:$0x1]
        %v1081 = vld [vmem:[%s468 + $0x30] sm:$0x1]
        %v1082 = vld [vmem:[%s468 + $0x38] sm:$0x1]
        %s1083 = scalar_lea.vmem [#allocation9], 2048
        %v1084 = vld [vmem:[%s1083] sm:$0xff]
        %v1085 = vld [vmem:[%s1083 + $0x8] sm:$0xff]
        %v1086 = vld [vmem:[%s1083 + $0x10] sm:$0xff]
        %v1087 = vld [vmem:[%s1083 + $0x18] sm:$0xff]
        %v1088 = vld [vmem:[%s1083 + $0x20] sm:$0xff]
        %v1089 = vld [vmem:[%s1083 + $0x28] sm:$0xff]
        %v1090 = vld [vmem:[%s1083 + $0x30] sm:$0xff]
        %v1091 = vld [vmem:[%s1083 + $0x38] sm:$0xff]
        %v1092 = vld [vmem:[%s1083 + $0x40] sm:$0xff]
        %v1093 = vld [vmem:[%s1083 + $0x48] sm:$0xff]
        %v1094 = vld [vmem:[%s1083 + $0x50] sm:$0xff]
        %v1095 = vld [vmem:[%s1083 + $0x58] sm:$0xff]
        %v1096 = vld [vmem:[%s1083 + $0x60] sm:$0xff]
        %v1097 = vld [vmem:[%s1083 + $0x68] sm:$0xff]
        %v1098 = vld [vmem:[%s1083 + $0x70] sm:$0xff]
        %v1099 = vld [vmem:[%s1083 + $0x78] sm:$0xff]
        %v1100 = vld [vmem:[%s1083 + $0x80] sm:$0xff]
        %v1101 = vld [vmem:[%s1083 + $0x88] sm:$0xff]
        %v1102 = vld [vmem:[%s1083 + $0x90] sm:$0xff]
        %v1103 = vld [vmem:[%s1083 + $0x98] sm:$0xff]
        %v1104 = vld [vmem:[%s1083 + $0xa0] sm:$0xff]
        %v1105 = vld [vmem:[%s1083 + $0xa8] sm:$0xff]
        %v1106 = vld [vmem:[%s1083 + $0xb0] sm:$0xff]
        %v1107 = vld [vmem:[%s1083 + $0xb8] sm:$0xff]
        %v1108 = vld [vmem:[%s1083 + $0xc0] sm:$0xff]
        %v1109 = vld [vmem:[%s1083 + $0xc8] sm:$0xff]
        %v1110 = vld [vmem:[%s1083 + $0xd0] sm:$0xff]
        %v1111 = vld [vmem:[%s1083 + $0xd8] sm:$0xff]
        %v1112 = vld [vmem:[%s1083 + $0xe0] sm:$0xff]
        %v1113 = vld [vmem:[%s1083 + $0xe8] sm:$0xff]
        %v1114 = vld [vmem:[%s1083 + $0xf0] sm:$0xff]
        %v1115 = vld [vmem:[%s1083 + $0xf8] sm:$0xff]
        %v1116 = vld [vmem:[%s1083 + $0x100] sm:$0xff]
        %v1117 = vld [vmem:[%s1083 + $0x108] sm:$0xff]
        %v1118 = vld [vmem:[%s1083 + $0x110] sm:$0xff]
        %v1119 = vld [vmem:[%s1083 + $0x118] sm:$0xff]
        %v1120 = vld [vmem:[%s1083 + $0x120] sm:$0xff]
        %v1121 = vld [vmem:[%s1083 + $0x128] sm:$0xff]
        %v1122 = vld [vmem:[%s1083 + $0x130] sm:$0xff]
        %v1123 = vld [vmem:[%s1083 + $0x138] sm:$0xff]
        %v1124 = vld [vmem:[%s1083 + $0x140] sm:$0xff]
        %v1125 = vld [vmem:[%s1083 + $0x148] sm:$0xff]
        %v1126 = vld [vmem:[%s1083 + $0x150] sm:$0xff]
        %v1127 = vld [vmem:[%s1083 + $0x158] sm:$0xff]
        %v1128 = vld [vmem:[%s1083 + $0x160] sm:$0xff]
        %v1129 = vld [vmem:[%s1083 + $0x168] sm:$0xff]
        %v1130 = vld [vmem:[%s1083 + $0x170] sm:$0xff]
        %v1131 = vld [vmem:[%s1083 + $0x178] sm:$0xff]
        %v1132 = vld [vmem:[%s1083 + $0x180] sm:$0xff]
        %v1133 = vld [vmem:[%s1083 + $0x188] sm:$0xff]
        %v1134 = vld [vmem:[%s1083 + $0x190] sm:$0xff]
        %v1135 = vld [vmem:[%s1083 + $0x198] sm:$0xff]
        %v1136 = vld [vmem:[%s1083 + $0x1a0] sm:$0xff]
        %v1137 = vld [vmem:[%s1083 + $0x1a8] sm:$0xff]
        %v1138 = vld [vmem:[%s1083 + $0x1b0] sm:$0xff]
        %v1139 = vld [vmem:[%s1083 + $0x1b8] sm:$0xff]
        %v1140 = vld [vmem:[%s1083 + $0x1c0] sm:$0xff]
        %v1141 = vld [vmem:[%s1083 + $0x1c8] sm:$0xff]
        %v1142 = vld [vmem:[%s1083 + $0x1d0] sm:$0xff]
        %v1143 = vld [vmem:[%s1083 + $0x1d8] sm:$0xff]
        %v1144 = vld [vmem:[%s1083 + $0x1e0] sm:$0xff]
        %v1145 = vld [vmem:[%s1083 + $0x1e8] sm:$0xff]
        %v1146 = vld [vmem:[%s1083 + $0x1f0] sm:$0xff]
        %v1147 = vld [vmem:[%s1083 + $0x1f8] sm:$0xff]
        %v1148 = vld [vmem:[%s1083 + $0x200] sm:$0xff]
        %v1149 = vld [vmem:[%s1083 + $0x208] sm:$0xff]
        %v1150 = vld [vmem:[%s1083 + $0x210] sm:$0xff]
        %v1151 = vld [vmem:[%s1083 + $0x218] sm:$0xff]
        %v1152 = vld [vmem:[%s1083 + $0x220] sm:$0xff]
        %v1153 = vld [vmem:[%s1083 + $0x228] sm:$0xff]
        %v1154 = vld [vmem:[%s1083 + $0x230] sm:$0xff]
        %v1155 = vld [vmem:[%s1083 + $0x238] sm:$0xff]
        %v1156 = vld [vmem:[%s1083 + $0x240] sm:$0xff]
        %v1157 = vld [vmem:[%s1083 + $0x248] sm:$0xff]
        %v1158 = vld [vmem:[%s1083 + $0x250] sm:$0xff]
        %v1159 = vld [vmem:[%s1083 + $0x258] sm:$0xff]
        %v1160 = vld [vmem:[%s1083 + $0x260] sm:$0xff]
        %v1161 = vld [vmem:[%s1083 + $0x268] sm:$0xff]
        %v1162 = vld [vmem:[%s1083 + $0x270] sm:$0xff]
        %v1163 = vld [vmem:[%s1083 + $0x278] sm:$0xff]
        %v1164 = vld [vmem:[%s1083 + $0x280] sm:$0xff]
        %v1165 = vld [vmem:[%s1083 + $0x288] sm:$0xff]
        %v1166 = vld [vmem:[%s1083 + $0x290] sm:$0xff]
        %v1167 = vld [vmem:[%s1083 + $0x298] sm:$0xff]
        %v1168 = vld [vmem:[%s1083 + $0x2a0] sm:$0xff]
        %v1169 = vld [vmem:[%s1083 + $0x2a8] sm:$0xff]
        %v1170 = vld [vmem:[%s1083 + $0x2b0] sm:$0xff]
        %v1171 = vld [vmem:[%s1083 + $0x2b8] sm:$0xff]
        %v1172 = vld [vmem:[%s1083 + $0x2c0] sm:$0xff]
        %v1173 = vld [vmem:[%s1083 + $0x2c8] sm:$0xff]
        %v1174 = vld [vmem:[%s1083 + $0x2d0] sm:$0xff]
        %v1175 = vld [vmem:[%s1083 + $0x2d8] sm:$0xff]
        %v1176 = vld [vmem:[%s1083 + $0x2e0] sm:$0xff]
        %v1177 = vld [vmem:[%s1083 + $0x2e8] sm:$0xff]
        %v1178 = vld [vmem:[%s1083 + $0x2f0] sm:$0xff]
        %v1179 = vld [vmem:[%s1083 + $0x2f8] sm:$0xff]
        %v1180 = vld [vmem:[%s1083 + $0x300] sm:$0xff]
        %v1181 = vld [vmem:[%s1083 + $0x308] sm:$0xff]
        %v1182 = vld [vmem:[%s1083 + $0x310] sm:$0xff]
        %v1183 = vld [vmem:[%s1083 + $0x318] sm:$0xff]
        %v1184 = vld [vmem:[%s1083 + $0x320] sm:$0xff]
        %v1185 = vld [vmem:[%s1083 + $0x328] sm:$0xff]
        %v1186 = vld [vmem:[%s1083 + $0x330] sm:$0xff]
        %v1187 = vld [vmem:[%s1083 + $0x338] sm:$0xff]
        %v1188 = vld [vmem:[%s1083 + $0x340] sm:$0xff]
        %v1189 = vld [vmem:[%s1083 + $0x348] sm:$0xff]
        %v1190 = vld [vmem:[%s1083 + $0x350] sm:$0xff]
        %v1191 = vld [vmem:[%s1083 + $0x358] sm:$0xff]
        %v1192 = vld [vmem:[%s1083 + $0x360] sm:$0xff]
        %v1193 = vld [vmem:[%s1083 + $0x368] sm:$0xff]
        %v1194 = vld [vmem:[%s1083 + $0x370] sm:$0xff]
        %v1195 = vld [vmem:[%s1083 + $0x378] sm:$0xff]
        %v1196 = vld [vmem:[%s1083 + $0x380] sm:$0xff]
        %v1197 = vld [vmem:[%s1083 + $0x388] sm:$0xff]
        %v1198 = vld [vmem:[%s1083 + $0x390] sm:$0xff]
        %v1199 = vld [vmem:[%s1083 + $0x398] sm:$0xff]
        %v1200 = vld [vmem:[%s1083 + $0x3a0] sm:$0xff]
        %v1201 = vld [vmem:[%s1083 + $0x3a8] sm:$0xff]
        %v1202 = vld [vmem:[%s1083 + $0x3b0] sm:$0xff]
        %v1203 = vld [vmem:[%s1083 + $0x3b8] sm:$0xff]
        %v1204 = vld [vmem:[%s1083 + $0x3c0] sm:$0xff]
        %v1205 = vld [vmem:[%s1083 + $0x3c8] sm:$0xff]
        %v1206 = vld [vmem:[%s1083 + $0x3d0] sm:$0xff]
        %v1207 = vld [vmem:[%s1083 + $0x3d8] sm:$0xff]
        %v1208 = vld [vmem:[%s1083 + $0x3e0] sm:$0xff]
        %v1209 = vld [vmem:[%s1083 + $0x3e8] sm:$0xff]
        %v1210 = vld [vmem:[%s1083 + $0x3f0] sm:$0xff]
        %v1211 = vld [vmem:[%s1083 + $0x3f8] sm:$0xff]
        %v1212 = vld [vmem:[%s1083 + $0x400] sm:$0xff]
        %v1213 = vld [vmem:[%s1083 + $0x408] sm:$0xff]
        %v1214 = vld [vmem:[%s1083 + $0x410] sm:$0xff]
        %v1215 = vld [vmem:[%s1083 + $0x418] sm:$0xff]
        %v1216 = vld [vmem:[%s1083 + $0x420] sm:$0xff]
        %v1217 = vld [vmem:[%s1083 + $0x428] sm:$0xff]
        %v1218 = vld [vmem:[%s1083 + $0x430] sm:$0xff]
        %v1219 = vld [vmem:[%s1083 + $0x438] sm:$0xff]
        %v1220 = vld [vmem:[%s1083 + $0x440] sm:$0xff]
        %v1221 = vld [vmem:[%s1083 + $0x448] sm:$0xff]
        %v1222 = vld [vmem:[%s1083 + $0x450] sm:$0xff]
        %v1223 = vld [vmem:[%s1083 + $0x458] sm:$0xff]
        %v1224 = vld [vmem:[%s1083 + $0x460] sm:$0xff]
        %v1225 = vld [vmem:[%s1083 + $0x468] sm:$0xff]
        %v1226 = vld [vmem:[%s1083 + $0x470] sm:$0xff]
        %v1227 = vld [vmem:[%s1083 + $0x478] sm:$0xff]
        %v1228 = vld [vmem:[%s1083 + $0x480] sm:$0xff]
        %v1229 = vld [vmem:[%s1083 + $0x488] sm:$0xff]
        %v1230 = vld [vmem:[%s1083 + $0x490] sm:$0xff]
        %v1231 = vld [vmem:[%s1083 + $0x498] sm:$0xff]
        %v1232 = vld [vmem:[%s1083 + $0x4a0] sm:$0xff]
        %v1233 = vld [vmem:[%s1083 + $0x4a8] sm:$0xff]
        %v1234 = vld [vmem:[%s1083 + $0x4b0] sm:$0xff]
        %v1235 = vld [vmem:[%s1083 + $0x4b8] sm:$0xff]
        %v1236 = vld [vmem:[%s1083 + $0x4c0] sm:$0xff]
        %v1237 = vld [vmem:[%s1083 + $0x4c8] sm:$0xff]
        %v1238 = vld [vmem:[%s1083 + $0x4d0] sm:$0xff]
        %v1239 = vld [vmem:[%s1083 + $0x4d8] sm:$0xff]
        %v1240 = vld [vmem:[%s1083 + $0x4e0] sm:$0xff]
        %v1241 = vld [vmem:[%s1083 + $0x4e8] sm:$0xff]
        %v1242 = vld [vmem:[%s1083 + $0x4f0] sm:$0xff]
        %v1243 = vld [vmem:[%s1083 + $0x4f8] sm:$0xff]
        %v1244 = vld [vmem:[%s1083 + $0x500] sm:$0xff]
        %v1245 = vld [vmem:[%s1083 + $0x508] sm:$0xff]
        %v1246 = vld [vmem:[%s1083 + $0x510] sm:$0xff]
        %v1247 = vld [vmem:[%s1083 + $0x518] sm:$0xff]
        %v1248 = vld [vmem:[%s1083 + $0x520] sm:$0xff]
        %v1249 = vld [vmem:[%s1083 + $0x528] sm:$0xff]
        %v1250 = vld [vmem:[%s1083 + $0x530] sm:$0xff]
        %v1251 = vld [vmem:[%s1083 + $0x538] sm:$0xff]
        %v1252 = vld [vmem:[%s1083 + $0x540] sm:$0xff]
        %v1253 = vld [vmem:[%s1083 + $0x548] sm:$0xff]
        %v1254 = vld [vmem:[%s1083 + $0x550] sm:$0xff]
        %v1255 = vld [vmem:[%s1083 + $0x558] sm:$0xff]
        %v1256 = vld [vmem:[%s1083 + $0x560] sm:$0xff]
        %v1257 = vld [vmem:[%s1083 + $0x568] sm:$0xff]
        %v1258 = vld [vmem:[%s1083 + $0x570] sm:$0xff]
        %v1259 = vld [vmem:[%s1083 + $0x578] sm:$0xff]
        %v1260 = vld [vmem:[%s1083 + $0x580] sm:$0xff]
        %v1261 = vld [vmem:[%s1083 + $0x588] sm:$0xff]
        %v1262 = vld [vmem:[%s1083 + $0x590] sm:$0xff]
        %v1263 = vld [vmem:[%s1083 + $0x598] sm:$0xff]
        %v1264 = vld [vmem:[%s1083 + $0x5a0] sm:$0xff]
        %v1265 = vld [vmem:[%s1083 + $0x5a8] sm:$0xff]
        %v1266 = vld [vmem:[%s1083 + $0x5b0] sm:$0xff]
        %v1267 = vld [vmem:[%s1083 + $0x5b8] sm:$0xff]
        %v1268 = vld [vmem:[%s1083 + $0x5c0] sm:$0xff]
        %v1269 = vld [vmem:[%s1083 + $0x5c8] sm:$0xff]
        %v1270 = vld [vmem:[%s1083 + $0x5d0] sm:$0xff]
        %v1271 = vld [vmem:[%s1083 + $0x5d8] sm:$0xff]
        %v1272 = vld [vmem:[%s1083 + $0x5e0] sm:$0xff]
        %v1273 = vld [vmem:[%s1083 + $0x5e8] sm:$0xff]
        %v1274 = vld [vmem:[%s1083 + $0x5f0] sm:$0xff]
        %v1275 = vld [vmem:[%s1083 + $0x5f8] sm:$0xff]
        %v1276 = vld [vmem:[%s1083 + $0x600] sm:$0xff]
        %v1277 = vld [vmem:[%s1083 + $0x608] sm:$0xff]
        %v1278 = vld [vmem:[%s1083 + $0x610] sm:$0xff]
        %v1279 = vld [vmem:[%s1083 + $0x618] sm:$0xff]
        %v1280 = vld [vmem:[%s1083 + $0x620] sm:$0xff]
        %v1281 = vld [vmem:[%s1083 + $0x628] sm:$0xff]
        %v1282 = vld [vmem:[%s1083 + $0x630] sm:$0xff]
        %v1283 = vld [vmem:[%s1083 + $0x638] sm:$0xff]
        %v1284 = vld [vmem:[%s1083 + $0x640] sm:$0xff]
        %v1285 = vld [vmem:[%s1083 + $0x648] sm:$0xff]
        %v1286 = vld [vmem:[%s1083 + $0x650] sm:$0xff]
        %v1287 = vld [vmem:[%s1083 + $0x658] sm:$0xff]
        %v1288 = vld [vmem:[%s1083 + $0x660] sm:$0xff]
        %v1289 = vld [vmem:[%s1083 + $0x668] sm:$0xff]
        %v1290 = vld [vmem:[%s1083 + $0x670] sm:$0xff]
        %v1291 = vld [vmem:[%s1083 + $0x678] sm:$0xff]
        %v1292 = vld [vmem:[%s1083 + $0x680] sm:$0xff]
        %v1293 = vld [vmem:[%s1083 + $0x688] sm:$0xff]
        %v1294 = vld [vmem:[%s1083 + $0x690] sm:$0xff]
        %v1295 = vld [vmem:[%s1083 + $0x698] sm:$0xff]
        %v1296 = vld [vmem:[%s1083 + $0x6a0] sm:$0xff]
        %v1297 = vld [vmem:[%s1083 + $0x6a8] sm:$0xff]
        %v1298 = vld [vmem:[%s1083 + $0x6b0] sm:$0xff]
        %v1299 = vld [vmem:[%s1083 + $0x6b8] sm:$0xff]
        %v1300 = vld [vmem:[%s1083 + $0x6c0] sm:$0xff]
        %v1301 = vld [vmem:[%s1083 + $0x6c8] sm:$0xff]
        %v1302 = vld [vmem:[%s1083 + $0x6d0] sm:$0xff]
        %v1303 = vld [vmem:[%s1083 + $0x6d8] sm:$0xff]
        %v1304 = vld [vmem:[%s1083 + $0x6e0] sm:$0xff]
        %v1305 = vld [vmem:[%s1083 + $0x6e8] sm:$0xff]
        %v1306 = vld [vmem:[%s1083 + $0x6f0] sm:$0xff]
        %v1307 = vld [vmem:[%s1083 + $0x6f8] sm:$0xff]
        %v1308 = vld [vmem:[%s1083 + $0x700] sm:$0xff]
        %v1309 = vld [vmem:[%s1083 + $0x708] sm:$0xff]
        %v1310 = vld [vmem:[%s1083 + $0x710] sm:$0xff]
        %v1311 = vld [vmem:[%s1083 + $0x718] sm:$0xff]
        %v1312 = vld [vmem:[%s1083 + $0x720] sm:$0xff]
        %v1313 = vld [vmem:[%s1083 + $0x728] sm:$0xff]
        %v1314 = vld [vmem:[%s1083 + $0x730] sm:$0xff]
        %v1315 = vld [vmem:[%s1083 + $0x738] sm:$0xff]
        %v1316 = vld [vmem:[%s1083 + $0x740] sm:$0xff]
        %v1317 = vld [vmem:[%s1083 + $0x748] sm:$0xff]
        %v1318 = vld [vmem:[%s1083 + $0x750] sm:$0xff]
        %v1319 = vld [vmem:[%s1083 + $0x758] sm:$0xff]
        %v1320 = vld [vmem:[%s1083 + $0x760] sm:$0xff]
        %v1321 = vld [vmem:[%s1083 + $0x768] sm:$0xff]
        %v1322 = vld [vmem:[%s1083 + $0x770] sm:$0xff]
        %v1323 = vld [vmem:[%s1083 + $0x778] sm:$0xff]
        %v1324 = vld [vmem:[%s1083 + $0x780] sm:$0xff]
        %v1325 = vld [vmem:[%s1083 + $0x788] sm:$0xff]
        %v1326 = vld [vmem:[%s1083 + $0x790] sm:$0xff]
        %v1327 = vld [vmem:[%s1083 + $0x798] sm:$0xff]
        %v1328 = vld [vmem:[%s1083 + $0x7a0] sm:$0xff]
        %v1329 = vld [vmem:[%s1083 + $0x7a8] sm:$0xff]
        %v1330 = vld [vmem:[%s1083 + $0x7b0] sm:$0xff]
        %v1331 = vld [vmem:[%s1083 + $0x7b8] sm:$0xff]
        %v1332 = vld [vmem:[%s1083 + $0x7c0] sm:$0xff]
        %v1333 = vld [vmem:[%s1083 + $0x7c8] sm:$0xff]
        %v1334 = vld [vmem:[%s1083 + $0x7d0] sm:$0xff]
        %v1335 = vld [vmem:[%s1083 + $0x7d8] sm:$0xff]
        %v1336 = vld [vmem:[%s1083 + $0x7e0] sm:$0xff]
        %v1337 = vld [vmem:[%s1083 + $0x7e8] sm:$0xff]
        %v1338 = vld [vmem:[%s1083 + $0x7f0] sm:$0xff]
        %v1339 = vld [vmem:[%s1083 + $0x7f8] sm:$0xff]
        %vm1348 = vcmask 1046528
        %v1349 = vrot.slane %v1075, 1
        %v1350 = vrot.slane %v1079, 1
        %v1351 = vsel %vm1348, %v1349, %v1350
        %v1352 = vrot.slane %v1076, 1
        %v1353 = vrot.slane %v1080, 1
        %v1354 = vsel %vm1348, %v1352, %v1353
        %v1355 = vrot.slane %v1077, 1
        %v1356 = vrot.slane %v1081, 1
        %v1357 = vsel %vm1348, %v1355, %v1356
        %v1358 = vrot.slane %v1078, 1
        %v1359 = vrot.slane %v1082, 1
        %v1360 = vsel %vm1348, %v1358, %v1359
        %1365 = vmatpush.msra.mxu0 %v1144
        %1366 = vmatpush.msra.mxu0 %v1140
        %1367 = vmatpush.msra.mxu0 %v1136
        %1368 = vmatpush.msra.mxu0 %v1132
        %1369 = vmatpush.msra.mxu0 %v1128
        %1370 = vmatpush.msra.mxu0 %v1124
        %1371 = vmatpush.msra.mxu0 %v1120
        %1372 = vmatpush.msra.mxu0 %v1116
        %1373 = vmatpush.msra.mxu0 %v1112
        %1374 = vmatpush.msra.mxu0 %v1108
        %1375 = vmatpush.msra.mxu0 %v1104
        %1376 = vmatpush.msra.mxu0 %v1100
        %1377 = vmatpush.msra.mxu0 %v1096
        %1378 = vmatpush.msra.mxu0 %v1092
        %1379 = vmatpush.msra.mxu0 %v1088
        %1380 = vmatpush.msra.mxu0 %v1084
        %1381 = vmatmul.f32.gmra.mxu0 %v1351
        %v1382 = vpop.f32.mrf.mxu0
        %v1383 = vadd.f32 0.0, %v1382
        %1384 = vdwg.mxu0
        %1385 = vmatpush.msra.mxu0 %v1208
        %1386 = vmatpush.msra.mxu0 %v1204
        %1387 = vmatpush.msra.mxu0 %v1200
        %1388 = vmatpush.msra.mxu0 %v1196
        %1389 = vmatpush.msra.mxu0 %v1192
        %1390 = vmatpush.msra.mxu0 %v1188
        %1391 = vmatpush.msra.mxu0 %v1184
        %1392 = vmatpush.msra.mxu0 %v1180
        %1393 = vmatpush.msra.mxu0 %v1176
        %1394 = vmatpush.msra.mxu0 %v1172
        %1395 = vmatpush.msra.mxu0 %v1168
        %1396 = vmatpush.msra.mxu0 %v1164
        %1397 = vmatpush.msra.mxu0 %v1160
        %1398 = vmatpush.msra.mxu0 %v1156
        %1399 = vmatpush.msra.mxu0 %v1152
        %1400 = vmatpush.msra.mxu0 %v1148
        %1401 = vmatmul.f32.gmra.mxu0 %v1354
        %v1402 = vpop.f32.mrf.mxu0
        %v1403 = vadd.f32 %v1383, %v1402
        %1404 = vdwg.mxu0
        %1405 = vmatpush.msra.mxu0 %v1272
        %1406 = vmatpush.msra.mxu0 %v1268
        %1407 = vmatpush.msra.mxu0 %v1264
        %1408 = vmatpush.msra.mxu0 %v1260
        %1409 = vmatpush.msra.mxu0 %v1256
        %1410 = vmatpush.msra.mxu0 %v1252
        %1411 = vmatpush.msra.mxu0 %v1248
        %1412 = vmatpush.msra.mxu0 %v1244
        %1413 = vmatpush.msra.mxu0 %v1240
        %1414 = vmatpush.msra.mxu0 %v1236
        %1415 = vmatpush.msra.mxu0 %v1232
        %1416 = vmatpush.msra.mxu0 %v1228
        %1417 = vmatpush.msra.mxu0 %v1224
        %1418 = vmatpush.msra.mxu0 %v1220
        %1419 = vmatpush.msra.mxu0 %v1216
        %1420 = vmatpush.msra.mxu0 %v1212
        %1421 = vmatmul.f32.gmra.mxu0 %v1357
        %v1422 = vpop.f32.mrf.mxu0
        %v1423 = vadd.f32 %v1403, %v1422
        %1424 = vdwg.mxu0
        %1425 = vmatpush.msra.mxu0 %v1336
        %1426 = vmatpush.msra.mxu0 %v1332
        %1427 = vmatpush.msra.mxu0 %v1328
        %1428 = vmatpush.msra.mxu0 %v1324
        %1429 = vmatpush.msra.mxu0 %v1320
        %1430 = vmatpush.msra.mxu0 %v1316
        %1431 = vmatpush.msra.mxu0 %v1312
        %1432 = vmatpush.msra.mxu0 %v1308
        %1433 = vmatpush.msra.mxu0 %v1304
        %1434 = vmatpush.msra.mxu0 %v1300
        %1435 = vmatpush.msra.mxu0 %v1296
        %1436 = vmatpush.msra.mxu0 %v1292
        %1437 = vmatpush.msra.mxu0 %v1288
        %1438 = vmatpush.msra.mxu0 %v1284
        %1439 = vmatpush.msra.mxu0 %v1280
        %1440 = vmatpush.msra.mxu0 %v1276
        %1441 = vmatmul.f32.gmra.mxu0 %v1360
        %v1442 = vpop.f32.mrf.mxu0
        %v1443 = vadd.f32 %v1423, %v1442
        %1444 = vdwg.mxu0
        %1445 = vmatpush.msra.mxu0 %v1145
        %1446 = vmatpush.msra.mxu0 %v1141
        %1447 = vmatpush.msra.mxu0 %v1137
        %1448 = vmatpush.msra.mxu0 %v1133
        %1449 = vmatpush.msra.mxu0 %v1129
        %1450 = vmatpush.msra.mxu0 %v1125
        %1451 = vmatpush.msra.mxu0 %v1121
        %1452 = vmatpush.msra.mxu0 %v1117
        %1453 = vmatpush.msra.mxu0 %v1113
        %1454 = vmatpush.msra.mxu0 %v1109
        %1455 = vmatpush.msra.mxu0 %v1105
        %1456 = vmatpush.msra.mxu0 %v1101
        %1457 = vmatpush.msra.mxu0 %v1097
        %1458 = vmatpush.msra.mxu0 %v1093
        %1459 = vmatpush.msra.mxu0 %v1089
        %1460 = vmatpush.msra.mxu0 %v1085
        %1461 = vmatmul.f32.gmra.mxu0 %v1351
        %v1462 = vpop.f32.mrf.mxu0
        %v1463 = vadd.f32 0.0, %v1462
        %1464 = vdwg.mxu0
        %1465 = vmatpush.msra.mxu0 %v1209
        %1466 = vmatpush.msra.mxu0 %v1205
        %1467 = vmatpush.msra.mxu0 %v1201
        %1468 = vmatpush.msra.mxu0 %v1197
        %1469 = vmatpush.msra.mxu0 %v1193
        %1470 = vmatpush.msra.mxu0 %v1189
        %1471 = vmatpush.msra.mxu0 %v1185
        %1472 = vmatpush.msra.mxu0 %v1181
        %1473 = vmatpush.msra.mxu0 %v1177
        %1474 = vmatpush.msra.mxu0 %v1173
        %1475 = vmatpush.msra.mxu0 %v1169
        %1476 = vmatpush.msra.mxu0 %v1165
        %1477 = vmatpush.msra.mxu0 %v1161
        %1478 = vmatpush.msra.mxu0 %v1157
        %1479 = vmatpush.msra.mxu0 %v1153
        %1480 = vmatpush.msra.mxu0 %v1149
        %1481 = vmatmul.f32.gmra.mxu0 %v1354
        %v1482 = vpop.f32.mrf.mxu0
        %v1483 = vadd.f32 %v1463, %v1482
        %1484 = vdwg.mxu0
        %1485 = vmatpush.msra.mxu0 %v1273
        %1486 = vmatpush.msra.mxu0 %v1269
        %1487 = vmatpush.msra.mxu0 %v1265
        %1488 = vmatpush.msra.mxu0 %v1261
        %1489 = vmatpush.msra.mxu0 %v1257
        %1490 = vmatpush.msra.mxu0 %v1253
        %1491 = vmatpush.msra.mxu0 %v1249
        %1492 = vmatpush.msra.mxu0 %v1245
        %1493 = vmatpush.msra.mxu0 %v1241
        %1494 = vmatpush.msra.mxu0 %v1237
        %1495 = vmatpush.msra.mxu0 %v1233
        %1496 = vmatpush.msra.mxu0 %v1229
        %1497 = vmatpush.msra.mxu0 %v1225
        %1498 = vmatpush.msra.mxu0 %v1221
        %1499 = vmatpush.msra.mxu0 %v1217
        %1500 = vmatpush.msra.mxu0 %v1213
        %1501 = vmatmul.f32.gmra.mxu0 %v1357
        %v1502 = vpop.f32.mrf.mxu0
        %v1503 = vadd.f32 %v1483, %v1502
        %1504 = vdwg.mxu0
        %1505 = vmatpush.msra.mxu0 %v1337
        %1506 = vmatpush.msra.mxu0 %v1333
        %1507 = vmatpush.msra.mxu0 %v1329
        %1508 = vmatpush.msra.mxu0 %v1325
        %1509 = vmatpush.msra.mxu0 %v1321
        %1510 = vmatpush.msra.mxu0 %v1317
        %1511 = vmatpush.msra.mxu0 %v1313
        %1512 = vmatpush.msra.mxu0 %v1309
        %1513 = vmatpush.msra.mxu0 %v1305
        %1514 = vmatpush.msra.mxu0 %v1301
        %1515 = vmatpush.msra.mxu0 %v1297
        %1516 = vmatpush.msra.mxu0 %v1293
        %1517 = vmatpush.msra.mxu0 %v1289
        %1518 = vmatpush.msra.mxu0 %v1285
        %1519 = vmatpush.msra.mxu0 %v1281
        %1520 = vmatpush.msra.mxu0 %v1277
        %1521 = vmatmul.f32.gmra.mxu0 %v1360
        %v1522 = vpop.f32.mrf.mxu0
        %v1523 = vadd.f32 %v1503, %v1522
        %1524 = vdwg.mxu0
        %1525 = vmatpush.msra.mxu0 %v1146
        %1526 = vmatpush.msra.mxu0 %v1142
        %1527 = vmatpush.msra.mxu0 %v1138
        %1528 = vmatpush.msra.mxu0 %v1134
        %1529 = vmatpush.msra.mxu0 %v1130
        %1530 = vmatpush.msra.mxu0 %v1126
        %1531 = vmatpush.msra.mxu0 %v1122
        %1532 = vmatpush.msra.mxu0 %v1118
        %1533 = vmatpush.msra.mxu0 %v1114
        %1534 = vmatpush.msra.mxu0 %v1110
        %1535 = vmatpush.msra.mxu0 %v1106
        %1536 = vmatpush.msra.mxu0 %v1102
        %1537 = vmatpush.msra.mxu0 %v1098
        %1538 = vmatpush.msra.mxu0 %v1094
        %1539 = vmatpush.msra.mxu0 %v1090
        %1540 = vmatpush.msra.mxu0 %v1086
        %1541 = vmatmul.f32.gmra.mxu0 %v1351
        %v1542 = vpop.f32.mrf.mxu0
        %v1543 = vadd.f32 0.0, %v1542
        %1544 = vdwg.mxu0
        %1545 = vmatpush.msra.mxu0 %v1210
        %1546 = vmatpush.msra.mxu0 %v1206
        %1547 = vmatpush.msra.mxu0 %v1202
        %1548 = vmatpush.msra.mxu0 %v1198
        %1549 = vmatpush.msra.mxu0 %v1194
        %1550 = vmatpush.msra.mxu0 %v1190
        %1551 = vmatpush.msra.mxu0 %v1186
        %1552 = vmatpush.msra.mxu0 %v1182
        %1553 = vmatpush.msra.mxu0 %v1178
        %1554 = vmatpush.msra.mxu0 %v1174
        %1555 = vmatpush.msra.mxu0 %v1170
        %1556 = vmatpush.msra.mxu0 %v1166
        %1557 = vmatpush.msra.mxu0 %v1162
        %1558 = vmatpush.msra.mxu0 %v1158
        %1559 = vmatpush.msra.mxu0 %v1154
        %1560 = vmatpush.msra.mxu0 %v1150
        %1561 = vmatmul.f32.gmra.mxu0 %v1354
        %v1562 = vpop.f32.mrf.mxu0
        %v1563 = vadd.f32 %v1543, %v1562
        %1564 = vdwg.mxu0
        %1565 = vmatpush.msra.mxu0 %v1274
        %1566 = vmatpush.msra.mxu0 %v1270
        %1567 = vmatpush.msra.mxu0 %v1266
        %1568 = vmatpush.msra.mxu0 %v1262
        %1569 = vmatpush.msra.mxu0 %v1258
        %1570 = vmatpush.msra.mxu0 %v1254
        %1571 = vmatpush.msra.mxu0 %v1250
        %1572 = vmatpush.msra.mxu0 %v1246
        %1573 = vmatpush.msra.mxu0 %v1242
        %1574 = vmatpush.msra.mxu0 %v1238
        %1575 = vmatpush.msra.mxu0 %v1234
        %1576 = vmatpush.msra.mxu0 %v1230
        %1577 = vmatpush.msra.mxu0 %v1226
        %1578 = vmatpush.msra.mxu0 %v1222
        %1579 = vmatpush.msra.mxu0 %v1218
        %1580 = vmatpush.msra.mxu0 %v1214
        %1581 = vmatmul.f32.gmra.mxu0 %v1357
        %v1582 = vpop.f32.mrf.mxu0
        %v1583 = vadd.f32 %v1563, %v1582
        %1584 = vdwg.mxu0
        %1585 = vmatpush.msra.mxu0 %v1338
        %1586 = vmatpush.msra.mxu0 %v1334
        %1587 = vmatpush.msra.mxu0 %v1330
        %1588 = vmatpush.msra.mxu0 %v1326
        %1589 = vmatpush.msra.mxu0 %v1322
        %1590 = vmatpush.msra.mxu0 %v1318
        %1591 = vmatpush.msra.mxu0 %v1314
        %1592 = vmatpush.msra.mxu0 %v1310
        %1593 = vmatpush.msra.mxu0 %v1306
        %1594 = vmatpush.msra.mxu0 %v1302
        %1595 = vmatpush.msra.mxu0 %v1298
        %1596 = vmatpush.msra.mxu0 %v1294
        %1597 = vmatpush.msra.mxu0 %v1290
        %1598 = vmatpush.msra.mxu0 %v1286
        %1599 = vmatpush.msra.mxu0 %v1282
        %1600 = vmatpush.msra.mxu0 %v1278
        %1601 = vmatmul.f32.gmra.mxu0 %v1360
        %v1602 = vpop.f32.mrf.mxu0
        %v1603 = vadd.f32 %v1583, %v1602
        %1604 = vdwg.mxu0
        %1605 = vmatpush.msra.mxu0 %v1147
        %1606 = vmatpush.msra.mxu0 %v1143
        %1607 = vmatpush.msra.mxu0 %v1139
        %1608 = vmatpush.msra.mxu0 %v1135
        %1609 = vmatpush.msra.mxu0 %v1131
        %1610 = vmatpush.msra.mxu0 %v1127
        %1611 = vmatpush.msra.mxu0 %v1123
        %1612 = vmatpush.msra.mxu0 %v1119
        %1613 = vmatpush.msra.mxu0 %v1115
        %1614 = vmatpush.msra.mxu0 %v1111
        %1615 = vmatpush.msra.mxu0 %v1107
        %1616 = vmatpush.msra.mxu0 %v1103
        %1617 = vmatpush.msra.mxu0 %v1099
        %1618 = vmatpush.msra.mxu0 %v1095
        %1619 = vmatpush.msra.mxu0 %v1091
        %1620 = vmatpush.msra.mxu0 %v1087
        %1621 = vmatmul.f32.gmra.mxu0 %v1351
        %v1622 = vpop.f32.mrf.mxu0
        %v1623 = vadd.f32 0.0, %v1622
        %1624 = vdwg.mxu0
        %1625 = vmatpush.msra.mxu0 %v1211
        %1626 = vmatpush.msra.mxu0 %v1207
        %1627 = vmatpush.msra.mxu0 %v1203
        %1628 = vmatpush.msra.mxu0 %v1199
        %1629 = vmatpush.msra.mxu0 %v1195
        %1630 = vmatpush.msra.mxu0 %v1191
        %1631 = vmatpush.msra.mxu0 %v1187
        %1632 = vmatpush.msra.mxu0 %v1183
        %1633 = vmatpush.msra.mxu0 %v1179
        %1634 = vmatpush.msra.mxu0 %v1175
        %1635 = vmatpush.msra.mxu0 %v1171
        %1636 = vmatpush.msra.mxu0 %v1167
        %1637 = vmatpush.msra.mxu0 %v1163
        %1638 = vmatpush.msra.mxu0 %v1159
        %1639 = vmatpush.msra.mxu0 %v1155
        %1640 = vmatpush.msra.mxu0 %v1151
        %1641 = vmatmul.f32.gmra.mxu0 %v1354
        %v1642 = vpop.f32.mrf.mxu0
        %v1643 = vadd.f32 %v1623, %v1642
        %1644 = vdwg.mxu0
        %1645 = vmatpush.msra.mxu0 %v1275
        %1646 = vmatpush.msra.mxu0 %v1271
        %1647 = vmatpush.msra.mxu0 %v1267
        %1648 = vmatpush.msra.mxu0 %v1263
        %1649 = vmatpush.msra.mxu0 %v1259
        %1650 = vmatpush.msra.mxu0 %v1255
        %1651 = vmatpush.msra.mxu0 %v1251
        %1652 = vmatpush.msra.mxu0 %v1247
        %1653 = vmatpush.msra.mxu0 %v1243
        %1654 = vmatpush.msra.mxu0 %v1239
        %1655 = vmatpush.msra.mxu0 %v1235
        %1656 = vmatpush.msra.mxu0 %v1231
        %1657 = vmatpush.msra.mxu0 %v1227
        %1658 = vmatpush.msra.mxu0 %v1223
        %1659 = vmatpush.msra.mxu0 %v1219
        %1660 = vmatpush.msra.mxu0 %v1215
        %1661 = vmatmul.f32.gmra.mxu0 %v1357
        %v1662 = vpop.f32.mrf.mxu0
        %v1663 = vadd.f32 %v1643, %v1662
        %1664 = vdwg.mxu0
        %1665 = vmatpush.msra.mxu0 %v1339
        %1666 = vmatpush.msra.mxu0 %v1335
        %1667 = vmatpush.msra.mxu0 %v1331
        %1668 = vmatpush.msra.mxu0 %v1327
        %1669 = vmatpush.msra.mxu0 %v1323
        %1670 = vmatpush.msra.mxu0 %v1319
        %1671 = vmatpush.msra.mxu0 %v1315
        %1672 = vmatpush.msra.mxu0 %v1311
        %1673 = vmatpush.msra.mxu0 %v1307
        %1674 = vmatpush.msra.mxu0 %v1303
        %1675 = vmatpush.msra.mxu0 %v1299
        %1676 = vmatpush.msra.mxu0 %v1295
        %1677 = vmatpush.msra.mxu0 %v1291
        %1678 = vmatpush.msra.mxu0 %v1287
        %1679 = vmatpush.msra.mxu0 %v1283
        %1680 = vmatpush.msra.mxu0 %v1279
        %1681 = vmatmul.f32.gmra.mxu0 %v1360
        %v1682 = vpop.f32.mrf.mxu0
        %v1683 = vadd.f32 %v1663, %v1682
        %1684 = vdwg.mxu0
        %1685 = vmatpush.msra.mxu0 %v879
        %1686 = vmatpush.msra.mxu0 %v875
        %1687 = vmatpush.msra.mxu0 %v871
        %1688 = vmatpush.msra.mxu0 %v867
        %1689 = vmatpush.msra.mxu0 %v863
        %1690 = vmatpush.msra.mxu0 %v859
        %1691 = vmatpush.msra.mxu0 %v855
        %1692 = vmatpush.msra.mxu0 %v851
        %1693 = vmatpush.msra.mxu0 %v847
        %1694 = vmatpush.msra.mxu0 %v843
        %1695 = vmatpush.msra.mxu0 %v839
        %1696 = vmatpush.msra.mxu0 %v835
        %1697 = vmatpush.msra.mxu0 %v831
        %1698 = vmatpush.msra.mxu0 %v827
        %1699 = vmatpush.msra.mxu0 %v823
        %1700 = vmatpush.msra.mxu0 %v819
        %1701 = vmatmul.f32.gmra.mxu0 %v815
        %v1702 = vpop.f32.mrf.mxu0
        %v1703 = vadd.f32 %v1443, %v1702
        %1704 = vdwg.mxu0
        %1705 = vmatpush.msra.mxu0 %v943
        %1706 = vmatpush.msra.mxu0 %v939
        %1707 = vmatpush.msra.mxu0 %v935
        %1708 = vmatpush.msra.mxu0 %v931
        %1709 = vmatpush.msra.mxu0 %v927
        %1710 = vmatpush.msra.mxu0 %v923
        %1711 = vmatpush.msra.mxu0 %v919
        %1712 = vmatpush.msra.mxu0 %v915
        %1713 = vmatpush.msra.mxu0 %v911
        %1714 = vmatpush.msra.mxu0 %v907
        %1715 = vmatpush.msra.mxu0 %v903
        %1716 = vmatpush.msra.mxu0 %v899
        %1717 = vmatpush.msra.mxu0 %v895
        %1718 = vmatpush.msra.mxu0 %v891
        %1719 = vmatpush.msra.mxu0 %v887
        %1720 = vmatpush.msra.mxu0 %v883
        %1721 = vmatmul.f32.gmra.mxu0 %v816
        %v1722 = vpop.f32.mrf.mxu0
        %v1723 = vadd.f32 %v1703, %v1722
        %1724 = vdwg.mxu0
        %1725 = vmatpush.msra.mxu0 %v1007
        %1726 = vmatpush.msra.mxu0 %v1003
        %1727 = vmatpush.msra.mxu0 %v999
        %1728 = vmatpush.msra.mxu0 %v995
        %1729 = vmatpush.msra.mxu0 %v991
        %1730 = vmatpush.msra.mxu0 %v987
        %1731 = vmatpush.msra.mxu0 %v983
        %1732 = vmatpush.msra.mxu0 %v979
        %1733 = vmatpush.msra.mxu0 %v975
        %1734 = vmatpush.msra.mxu0 %v971
        %1735 = vmatpush.msra.mxu0 %v967
        %1736 = vmatpush.msra.mxu0 %v963
        %1737 = vmatpush.msra.mxu0 %v959
        %1738 = vmatpush.msra.mxu0 %v955
        %1739 = vmatpush.msra.mxu0 %v951
        %1740 = vmatpush.msra.mxu0 %v947
        %1741 = vmatmul.f32.gmra.mxu0 %v817
        %v1742 = vpop.f32.mrf.mxu0
        %v1743 = vadd.f32 %v1723, %v1742
        %1744 = vdwg.mxu0
        %1745 = vmatpush.msra.mxu0 %v1071
        %1746 = vmatpush.msra.mxu0 %v1067
        %1747 = vmatpush.msra.mxu0 %v1063
        %1748 = vmatpush.msra.mxu0 %v1059
        %1749 = vmatpush.msra.mxu0 %v1055
        %1750 = vmatpush.msra.mxu0 %v1051
        %1751 = vmatpush.msra.mxu0 %v1047
        %1752 = vmatpush.msra.mxu0 %v1043
        %1753 = vmatpush.msra.mxu0 %v1039
        %1754 = vmatpush.msra.mxu0 %v1035
        %1755 = vmatpush.msra.mxu0 %v1031
        %1756 = vmatpush.msra.mxu0 %v1027
        %1757 = vmatpush.msra.mxu0 %v1023
        %1758 = vmatpush.msra.mxu0 %v1019
        %1759 = vmatpush.msra.mxu0 %v1015
        %1760 = vmatpush.msra.mxu0 %v1011
        %1761 = vmatmul.f32.gmra.mxu0 %v818
        %v1762 = vpop.f32.mrf.mxu0
        %v1763 = vadd.f32 %v1743, %v1762
        %1764 = vdwg.mxu0
        %1765 = vmatpush.msra.mxu0 %v880
        %1766 = vmatpush.msra.mxu0 %v876
        %1767 = vmatpush.msra.mxu0 %v872
        %1768 = vmatpush.msra.mxu0 %v868
        %1769 = vmatpush.msra.mxu0 %v864
        %1770 = vmatpush.msra.mxu0 %v860
        %1771 = vmatpush.msra.mxu0 %v856
        %1772 = vmatpush.msra.mxu0 %v852
        %1773 = vmatpush.msra.mxu0 %v848
        %1774 = vmatpush.msra.mxu0 %v844
        %1775 = vmatpush.msra.mxu0 %v840
        %1776 = vmatpush.msra.mxu0 %v836
        %1777 = vmatpush.msra.mxu0 %v832
        %1778 = vmatpush.msra.mxu0 %v828
        %1779 = vmatpush.msra.mxu0 %v824
        %1780 = vmatpush.msra.mxu0 %v820
        %1781 = vmatmul.f32.gmra.mxu0 %v815
        %v1782 = vpop.f32.mrf.mxu0
        %v1783 = vadd.f32 %v1523, %v1782
        %1784 = vdwg.mxu0
        %1785 = vmatpush.msra.mxu0 %v944
        %1786 = vmatpush.msra.mxu0 %v940
        %1787 = vmatpush.msra.mxu0 %v936
        %1788 = vmatpush.msra.mxu0 %v932
        %1789 = vmatpush.msra.mxu0 %v928
        %1790 = vmatpush.msra.mxu0 %v924
        %1791 = vmatpush.msra.mxu0 %v920
        %1792 = vmatpush.msra.mxu0 %v916
        %1793 = vmatpush.msra.mxu0 %v912
        %1794 = vmatpush.msra.mxu0 %v908
        %1795 = vmatpush.msra.mxu0 %v904
        %1796 = vmatpush.msra.mxu0 %v900
        %1797 = vmatpush.msra.mxu0 %v896
        %1798 = vmatpush.msra.mxu0 %v892
        %1799 = vmatpush.msra.mxu0 %v888
        %1800 = vmatpush.msra.mxu0 %v884
        %1801 = vmatmul.f32.gmra.mxu0 %v816
        %v1802 = vpop.f32.mrf.mxu0
        %v1803 = vadd.f32 %v1783, %v1802
        %1804 = vdwg.mxu0
        %1805 = vmatpush.msra.mxu0 %v1008
        %1806 = vmatpush.msra.mxu0 %v1004
        %1807 = vmatpush.msra.mxu0 %v1000
        %1808 = vmatpush.msra.mxu0 %v996
        %1809 = vmatpush.msra.mxu0 %v992
        %1810 = vmatpush.msra.mxu0 %v988
        %1811 = vmatpush.msra.mxu0 %v984
        %1812 = vmatpush.msra.mxu0 %v980
        %1813 = vmatpush.msra.mxu0 %v976
        %1814 = vmatpush.msra.mxu0 %v972
        %1815 = vmatpush.msra.mxu0 %v968
        %1816 = vmatpush.msra.mxu0 %v964
        %1817 = vmatpush.msra.mxu0 %v960
        %1818 = vmatpush.msra.mxu0 %v956
        %1819 = vmatpush.msra.mxu0 %v952
        %1820 = vmatpush.msra.mxu0 %v948
        %1821 = vmatmul.f32.gmra.mxu0 %v817
        %v1822 = vpop.f32.mrf.mxu0
        %v1823 = vadd.f32 %v1803, %v1822
        %1824 = vdwg.mxu0
        %1825 = vmatpush.msra.mxu0 %v1072
        %1826 = vmatpush.msra.mxu0 %v1068
        %1827 = vmatpush.msra.mxu0 %v1064
        %1828 = vmatpush.msra.mxu0 %v1060
        %1829 = vmatpush.msra.mxu0 %v1056
        %1830 = vmatpush.msra.mxu0 %v1052
        %1831 = vmatpush.msra.mxu0 %v1048
        %1832 = vmatpush.msra.mxu0 %v1044
        %1833 = vmatpush.msra.mxu0 %v1040
        %1834 = vmatpush.msra.mxu0 %v1036
        %1835 = vmatpush.msra.mxu0 %v1032
        %1836 = vmatpush.msra.mxu0 %v1028
        %1837 = vmatpush.msra.mxu0 %v1024
        %1838 = vmatpush.msra.mxu0 %v1020
        %1839 = vmatpush.msra.mxu0 %v1016
        %1840 = vmatpush.msra.mxu0 %v1012
        %1841 = vmatmul.f32.gmra.mxu0 %v818
        %v1842 = vpop.f32.mrf.mxu0
        %v1843 = vadd.f32 %v1823, %v1842
        %1844 = vdwg.mxu0
        %1845 = vmatpush.msra.mxu0 %v881
        %1846 = vmatpush.msra.mxu0 %v877
        %1847 = vmatpush.msra.mxu0 %v873
        %1848 = vmatpush.msra.mxu0 %v869
        %1849 = vmatpush.msra.mxu0 %v865
        %1850 = vmatpush.msra.mxu0 %v861
        %1851 = vmatpush.msra.mxu0 %v857
        %1852 = vmatpush.msra.mxu0 %v853
        %1853 = vmatpush.msra.mxu0 %v849
        %1854 = vmatpush.msra.mxu0 %v845
        %1855 = vmatpush.msra.mxu0 %v841
        %1856 = vmatpush.msra.mxu0 %v837
        %1857 = vmatpush.msra.mxu0 %v833
        %1858 = vmatpush.msra.mxu0 %v829
        %1859 = vmatpush.msra.mxu0 %v825
        %1860 = vmatpush.msra.mxu0 %v821
        %1861 = vmatmul.f32.gmra.mxu0 %v815
        %v1862 = vpop.f32.mrf.mxu0
        %v1863 = vadd.f32 %v1603, %v1862
        %1864 = vdwg.mxu0
        %1865 = vmatpush.msra.mxu0 %v945
        %1866 = vmatpush.msra.mxu0 %v941
        %1867 = vmatpush.msra.mxu0 %v937
        %1868 = vmatpush.msra.mxu0 %v933
        %1869 = vmatpush.msra.mxu0 %v929
        %1870 = vmatpush.msra.mxu0 %v925
        %1871 = vmatpush.msra.mxu0 %v921
        %1872 = vmatpush.msra.mxu0 %v917
        %1873 = vmatpush.msra.mxu0 %v913
        %1874 = vmatpush.msra.mxu0 %v909
        %1875 = vmatpush.msra.mxu0 %v905
        %1876 = vmatpush.msra.mxu0 %v901
        %1877 = vmatpush.msra.mxu0 %v897
        %1878 = vmatpush.msra.mxu0 %v893
        %1879 = vmatpush.msra.mxu0 %v889
        %1880 = vmatpush.msra.mxu0 %v885
        %1881 = vmatmul.f32.gmra.mxu0 %v816
        %v1882 = vpop.f32.mrf.mxu0
        %v1883 = vadd.f32 %v1863, %v1882
        %1884 = vdwg.mxu0
        %1885 = vmatpush.msra.mxu0 %v1009
        %1886 = vmatpush.msra.mxu0 %v1005
        %1887 = vmatpush.msra.mxu0 %v1001
        %1888 = vmatpush.msra.mxu0 %v997
        %1889 = vmatpush.msra.mxu0 %v993
        %1890 = vmatpush.msra.mxu0 %v989
        %1891 = vmatpush.msra.mxu0 %v985
        %1892 = vmatpush.msra.mxu0 %v981
        %1893 = vmatpush.msra.mxu0 %v977
        %1894 = vmatpush.msra.mxu0 %v973
        %1895 = vmatpush.msra.mxu0 %v969
        %1896 = vmatpush.msra.mxu0 %v965
        %1897 = vmatpush.msra.mxu0 %v961
        %1898 = vmatpush.msra.mxu0 %v957
        %1899 = vmatpush.msra.mxu0 %v953
        %1900 = vmatpush.msra.mxu0 %v949
        %1901 = vmatmul.f32.gmra.mxu0 %v817
        %v1902 = vpop.f32.mrf.mxu0
        %v1903 = vadd.f32 %v1883, %v1902
        %1904 = vdwg.mxu0
        %1905 = vmatpush.msra.mxu0 %v1073
        %1906 = vmatpush.msra.mxu0 %v1069
        %1907 = vmatpush.msra.mxu0 %v1065
        %1908 = vmatpush.msra.mxu0 %v1061
        %1909 = vmatpush.msra.mxu0 %v1057
        %1910 = vmatpush.msra.mxu0 %v1053
        %1911 = vmatpush.msra.mxu0 %v1049
        %1912 = vmatpush.msra.mxu0 %v1045
        %1913 = vmatpush.msra.mxu0 %v1041
        %1914 = vmatpush.msra.mxu0 %v1037
        %1915 = vmatpush.msra.mxu0 %v1033
        %1916 = vmatpush.msra.mxu0 %v1029
        %1917 = vmatpush.msra.mxu0 %v1025
        %1918 = vmatpush.msra.mxu0 %v1021
        %1919 = vmatpush.msra.mxu0 %v1017
        %1920 = vmatpush.msra.mxu0 %v1013
        %1921 = vmatmul.f32.gmra.mxu0 %v818
        %v1922 = vpop.f32.mrf.mxu0
        %v1923 = vadd.f32 %v1903, %v1922
        %1924 = vdwg.mxu0
        %1925 = vmatpush.msra.mxu0 %v882
        %1926 = vmatpush.msra.mxu0 %v878
        %1927 = vmatpush.msra.mxu0 %v874
        %1928 = vmatpush.msra.mxu0 %v870
        %1929 = vmatpush.msra.mxu0 %v866
        %1930 = vmatpush.msra.mxu0 %v862
        %1931 = vmatpush.msra.mxu0 %v858
        %1932 = vmatpush.msra.mxu0 %v854
        %1933 = vmatpush.msra.mxu0 %v850
        %1934 = vmatpush.msra.mxu0 %v846
        %1935 = vmatpush.msra.mxu0 %v842
        %1936 = vmatpush.msra.mxu0 %v838
        %1937 = vmatpush.msra.mxu0 %v834
        %1938 = vmatpush.msra.mxu0 %v830
        %1939 = vmatpush.msra.mxu0 %v826
        %1940 = vmatpush.msra.mxu0 %v822
        %1941 = vmatmul.f32.gmra.mxu0 %v815
        %v1942 = vpop.f32.mrf.mxu0
        %v1943 = vadd.f32 %v1683, %v1942
        %1944 = vdwg.mxu0
        %1945 = vmatpush.msra.mxu0 %v946
        %1946 = vmatpush.msra.mxu0 %v942
        %1947 = vmatpush.msra.mxu0 %v938
        %1948 = vmatpush.msra.mxu0 %v934
        %1949 = vmatpush.msra.mxu0 %v930
        %1950 = vmatpush.msra.mxu0 %v926
        %1951 = vmatpush.msra.mxu0 %v922
        %1952 = vmatpush.msra.mxu0 %v918
        %1953 = vmatpush.msra.mxu0 %v914
        %1954 = vmatpush.msra.mxu0 %v910
        %1955 = vmatpush.msra.mxu0 %v906
        %1956 = vmatpush.msra.mxu0 %v902
        %1957 = vmatpush.msra.mxu0 %v898
        %1958 = vmatpush.msra.mxu0 %v894
        %1959 = vmatpush.msra.mxu0 %v890
        %1960 = vmatpush.msra.mxu0 %v886
        %1961 = vmatmul.f32.gmra.mxu0 %v816
        %v1962 = vpop.f32.mrf.mxu0
        %v1963 = vadd.f32 %v1943, %v1962
        %1964 = vdwg.mxu0
        %1965 = vmatpush.msra.mxu0 %v1010
        %1966 = vmatpush.msra.mxu0 %v1006
        %1967 = vmatpush.msra.mxu0 %v1002
        %1968 = vmatpush.msra.mxu0 %v998
        %1969 = vmatpush.msra.mxu0 %v994
        %1970 = vmatpush.msra.mxu0 %v990
        %1971 = vmatpush.msra.mxu0 %v986
        %1972 = vmatpush.msra.mxu0 %v982
        %1973 = vmatpush.msra.mxu0 %v978
        %1974 = vmatpush.msra.mxu0 %v974
        %1975 = vmatpush.msra.mxu0 %v970
        %1976 = vmatpush.msra.mxu0 %v966
        %1977 = vmatpush.msra.mxu0 %v962
        %1978 = vmatpush.msra.mxu0 %v958
        %1979 = vmatpush.msra.mxu0 %v954
        %1980 = vmatpush.msra.mxu0 %v950
        %1981 = vmatmul.f32.gmra.mxu0 %v817
        %v1982 = vpop.f32.mrf.mxu0
        %v1983 = vadd.f32 %v1963, %v1982
        %1984 = vdwg.mxu0
        %1985 = vmatpush.msra.mxu0 %v1074
        %1986 = vmatpush.msra.mxu0 %v1070
        %1987 = vmatpush.msra.mxu0 %v1066
        %1988 = vmatpush.msra.mxu0 %v1062
        %1989 = vmatpush.msra.mxu0 %v1058
        %1990 = vmatpush.msra.mxu0 %v1054
        %1991 = vmatpush.msra.mxu0 %v1050
        %1992 = vmatpush.msra.mxu0 %v1046
        %1993 = vmatpush.msra.mxu0 %v1042
        %1994 = vmatpush.msra.mxu0 %v1038
        %1995 = vmatpush.msra.mxu0 %v1034
        %1996 = vmatpush.msra.mxu0 %v1030
        %1997 = vmatpush.msra.mxu0 %v1026
        %1998 = vmatpush.msra.mxu0 %v1022
        %1999 = vmatpush.msra.mxu0 %v1018
        %2000 = vmatpush.msra.mxu0 %v1014
        %2001 = vmatmul.f32.gmra.mxu0 %v818
        %v2002 = vpop.f32.mrf.mxu0
        %v2003 = vadd.f32 %v1983, %v2002
        %2004 = vdwg.mxu0
        %v2005 = vld [vmem:[%s468] sm:$0xfc]
        %v2006 = vld [vmem:[%s468 + $0x8] sm:$0xfc]
        %v2007 = vld [vmem:[%s468 + $0x10] sm:$0xfc]
        %v2008 = vld [vmem:[%s468 + $0x18] sm:$0xfc]
        %v2009 = vld [vmem:[%s468 + $0x20] sm:$0x3]
        %v2010 = vld [vmem:[%s468 + $0x28] sm:$0x3]
        %v2011 = vld [vmem:[%s468 + $0x30] sm:$0x3]
        %v2012 = vld [vmem:[%s468 + $0x38] sm:$0x3]
        %s2013 = scalar_lea.vmem [#allocation9], 4096
        %v2014 = vld [vmem:[%s2013] sm:$0xff]
        %v2015 = vld [vmem:[%s2013 + $0x8] sm:$0xff]
        %v2016 = vld [vmem:[%s2013 + $0x10] sm:$0xff]
        %v2017 = vld [vmem:[%s2013 + $0x18] sm:$0xff]
        %v2018 = vld [vmem:[%s2013 + $0x20] sm:$0xff]
        %v2019 = vld [vmem:[%s2013 + $0x28] sm:$0xff]
        %v2020 = vld [vmem:[%s2013 + $0x30] sm:$0xff]
        %v2021 = vld [vmem:[%s2013 + $0x38] sm:$0xff]
        %v2022 = vld [vmem:[%s2013 + $0x40] sm:$0xff]
        %v2023 = vld [vmem:[%s2013 + $0x48] sm:$0xff]
        %v2024 = vld [vmem:[%s2013 + $0x50] sm:$0xff]
        %v2025 = vld [vmem:[%s2013 + $0x58] sm:$0xff]
        %v2026 = vld [vmem:[%s2013 + $0x60] sm:$0xff]
        %v2027 = vld [vmem:[%s2013 + $0x68] sm:$0xff]
        %v2028 = vld [vmem:[%s2013 + $0x70] sm:$0xff]
        %v2029 = vld [vmem:[%s2013 + $0x78] sm:$0xff]
        %v2030 = vld [vmem:[%s2013 + $0x80] sm:$0xff]
        %v2031 = vld [vmem:[%s2013 + $0x88] sm:$0xff]
        %v2032 = vld [vmem:[%s2013 + $0x90] sm:$0xff]
        %v2033 = vld [vmem:[%s2013 + $0x98] sm:$0xff]
        %v2034 = vld [vmem:[%s2013 + $0xa0] sm:$0xff]
        %v2035 = vld [vmem:[%s2013 + $0xa8] sm:$0xff]
        %v2036 = vld [vmem:[%s2013 + $0xb0] sm:$0xff]
        %v2037 = vld [vmem:[%s2013 + $0xb8] sm:$0xff]
        %v2038 = vld [vmem:[%s2013 + $0xc0] sm:$0xff]
        %v2039 = vld [vmem:[%s2013 + $0xc8] sm:$0xff]
        %v2040 = vld [vmem:[%s2013 + $0xd0] sm:$0xff]
        %v2041 = vld [vmem:[%s2013 + $0xd8] sm:$0xff]
        %v2042 = vld [vmem:[%s2013 + $0xe0] sm:$0xff]
        %v2043 = vld [vmem:[%s2013 + $0xe8] sm:$0xff]
        %v2044 = vld [vmem:[%s2013 + $0xf0] sm:$0xff]
        %v2045 = vld [vmem:[%s2013 + $0xf8] sm:$0xff]
        %v2046 = vld [vmem:[%s2013 + $0x100] sm:$0xff]
        %v2047 = vld [vmem:[%s2013 + $0x108] sm:$0xff]
        %v2048 = vld [vmem:[%s2013 + $0x110] sm:$0xff]
        %v2049 = vld [vmem:[%s2013 + $0x118] sm:$0xff]
        %v2050 = vld [vmem:[%s2013 + $0x120] sm:$0xff]
        %v2051 = vld [vmem:[%s2013 + $0x128] sm:$0xff]
        %v2052 = vld [vmem:[%s2013 + $0x130] sm:$0xff]
        %v2053 = vld [vmem:[%s2013 + $0x138] sm:$0xff]
        %v2054 = vld [vmem:[%s2013 + $0x140] sm:$0xff]
        %v2055 = vld [vmem:[%s2013 + $0x148] sm:$0xff]
        %v2056 = vld [vmem:[%s2013 + $0x150] sm:$0xff]
        %v2057 = vld [vmem:[%s2013 + $0x158] sm:$0xff]
        %v2058 = vld [vmem:[%s2013 + $0x160] sm:$0xff]
        %v2059 = vld [vmem:[%s2013 + $0x168] sm:$0xff]
        %v2060 = vld [vmem:[%s2013 + $0x170] sm:$0xff]
        %v2061 = vld [vmem:[%s2013 + $0x178] sm:$0xff]
        %v2062 = vld [vmem:[%s2013 + $0x180] sm:$0xff]
        %v2063 = vld [vmem:[%s2013 + $0x188] sm:$0xff]
        %v2064 = vld [vmem:[%s2013 + $0x190] sm:$0xff]
        %v2065 = vld [vmem:[%s2013 + $0x198] sm:$0xff]
        %v2066 = vld [vmem:[%s2013 + $0x1a0] sm:$0xff]
        %v2067 = vld [vmem:[%s2013 + $0x1a8] sm:$0xff]
        %v2068 = vld [vmem:[%s2013 + $0x1b0] sm:$0xff]
        %v2069 = vld [vmem:[%s2013 + $0x1b8] sm:$0xff]
        %v2070 = vld [vmem:[%s2013 + $0x1c0] sm:$0xff]
        %v2071 = vld [vmem:[%s2013 + $0x1c8] sm:$0xff]
        %v2072 = vld [vmem:[%s2013 + $0x1d0] sm:$0xff]
        %v2073 = vld [vmem:[%s2013 + $0x1d8] sm:$0xff]
        %v2074 = vld [vmem:[%s2013 + $0x1e0] sm:$0xff]
        %v2075 = vld [vmem:[%s2013 + $0x1e8] sm:$0xff]
        %v2076 = vld [vmem:[%s2013 + $0x1f0] sm:$0xff]
        %v2077 = vld [vmem:[%s2013 + $0x1f8] sm:$0xff]
        %v2078 = vld [vmem:[%s2013 + $0x200] sm:$0xff]
        %v2079 = vld [vmem:[%s2013 + $0x208] sm:$0xff]
        %v2080 = vld [vmem:[%s2013 + $0x210] sm:$0xff]
        %v2081 = vld [vmem:[%s2013 + $0x218] sm:$0xff]
        %v2082 = vld [vmem:[%s2013 + $0x220] sm:$0xff]
        %v2083 = vld [vmem:[%s2013 + $0x228] sm:$0xff]
        %v2084 = vld [vmem:[%s2013 + $0x230] sm:$0xff]
        %v2085 = vld [vmem:[%s2013 + $0x238] sm:$0xff]
        %v2086 = vld [vmem:[%s2013 + $0x240] sm:$0xff]
        %v2087 = vld [vmem:[%s2013 + $0x248] sm:$0xff]
        %v2088 = vld [vmem:[%s2013 + $0x250] sm:$0xff]
        %v2089 = vld [vmem:[%s2013 + $0x258] sm:$0xff]
        %v2090 = vld [vmem:[%s2013 + $0x260] sm:$0xff]
        %v2091 = vld [vmem:[%s2013 + $0x268] sm:$0xff]
        %v2092 = vld [vmem:[%s2013 + $0x270] sm:$0xff]
        %v2093 = vld [vmem:[%s2013 + $0x278] sm:$0xff]
        %v2094 = vld [vmem:[%s2013 + $0x280] sm:$0xff]
        %v2095 = vld [vmem:[%s2013 + $0x288] sm:$0xff]
        %v2096 = vld [vmem:[%s2013 + $0x290] sm:$0xff]
        %v2097 = vld [vmem:[%s2013 + $0x298] sm:$0xff]
        %v2098 = vld [vmem:[%s2013 + $0x2a0] sm:$0xff]
        %v2099 = vld [vmem:[%s2013 + $0x2a8] sm:$0xff]
        %v2100 = vld [vmem:[%s2013 + $0x2b0] sm:$0xff]
        %v2101 = vld [vmem:[%s2013 + $0x2b8] sm:$0xff]
        %v2102 = vld [vmem:[%s2013 + $0x2c0] sm:$0xff]
        %v2103 = vld [vmem:[%s2013 + $0x2c8] sm:$0xff]
        %v2104 = vld [vmem:[%s2013 + $0x2d0] sm:$0xff]
        %v2105 = vld [vmem:[%s2013 + $0x2d8] sm:$0xff]
        %v2106 = vld [vmem:[%s2013 + $0x2e0] sm:$0xff]
        %v2107 = vld [vmem:[%s2013 + $0x2e8] sm:$0xff]
        %v2108 = vld [vmem:[%s2013 + $0x2f0] sm:$0xff]
        %v2109 = vld [vmem:[%s2013 + $0x2f8] sm:$0xff]
        %v2110 = vld [vmem:[%s2013 + $0x300] sm:$0xff]
        %v2111 = vld [vmem:[%s2013 + $0x308] sm:$0xff]
        %v2112 = vld [vmem:[%s2013 + $0x310] sm:$0xff]
        %v2113 = vld [vmem:[%s2013 + $0x318] sm:$0xff]
        %v2114 = vld [vmem:[%s2013 + $0x320] sm:$0xff]
        %v2115 = vld [vmem:[%s2013 + $0x328] sm:$0xff]
        %v2116 = vld [vmem:[%s2013 + $0x330] sm:$0xff]
        %v2117 = vld [vmem:[%s2013 + $0x338] sm:$0xff]
        %v2118 = vld [vmem:[%s2013 + $0x340] sm:$0xff]
        %v2119 = vld [vmem:[%s2013 + $0x348] sm:$0xff]
        %v2120 = vld [vmem:[%s2013 + $0x350] sm:$0xff]
        %v2121 = vld [vmem:[%s2013 + $0x358] sm:$0xff]
        %v2122 = vld [vmem:[%s2013 + $0x360] sm:$0xff]
        %v2123 = vld [vmem:[%s2013 + $0x368] sm:$0xff]
        %v2124 = vld [vmem:[%s2013 + $0x370] sm:$0xff]
        %v2125 = vld [vmem:[%s2013 + $0x378] sm:$0xff]
        %v2126 = vld [vmem:[%s2013 + $0x380] sm:$0xff]
        %v2127 = vld [vmem:[%s2013 + $0x388] sm:$0xff]
        %v2128 = vld [vmem:[%s2013 + $0x390] sm:$0xff]
        %v2129 = vld [vmem:[%s2013 + $0x398] sm:$0xff]
        %v2130 = vld [vmem:[%s2013 + $0x3a0] sm:$0xff]
        %v2131 = vld [vmem:[%s2013 + $0x3a8] sm:$0xff]
        %v2132 = vld [vmem:[%s2013 + $0x3b0] sm:$0xff]
        %v2133 = vld [vmem:[%s2013 + $0x3b8] sm:$0xff]
        %v2134 = vld [vmem:[%s2013 + $0x3c0] sm:$0xff]
        %v2135 = vld [vmem:[%s2013 + $0x3c8] sm:$0xff]
        %v2136 = vld [vmem:[%s2013 + $0x3d0] sm:$0xff]
        %v2137 = vld [vmem:[%s2013 + $0x3d8] sm:$0xff]
        %v2138 = vld [vmem:[%s2013 + $0x3e0] sm:$0xff]
        %v2139 = vld [vmem:[%s2013 + $0x3e8] sm:$0xff]
        %v2140 = vld [vmem:[%s2013 + $0x3f0] sm:$0xff]
        %v2141 = vld [vmem:[%s2013 + $0x3f8] sm:$0xff]
        %v2142 = vld [vmem:[%s2013 + $0x400] sm:$0xff]
        %v2143 = vld [vmem:[%s2013 + $0x408] sm:$0xff]
        %v2144 = vld [vmem:[%s2013 + $0x410] sm:$0xff]
        %v2145 = vld [vmem:[%s2013 + $0x418] sm:$0xff]
        %v2146 = vld [vmem:[%s2013 + $0x420] sm:$0xff]
        %v2147 = vld [vmem:[%s2013 + $0x428] sm:$0xff]
        %v2148 = vld [vmem:[%s2013 + $0x430] sm:$0xff]
        %v2149 = vld [vmem:[%s2013 + $0x438] sm:$0xff]
        %v2150 = vld [vmem:[%s2013 + $0x440] sm:$0xff]
        %v2151 = vld [vmem:[%s2013 + $0x448] sm:$0xff]
        %v2152 = vld [vmem:[%s2013 + $0x450] sm:$0xff]
        %v2153 = vld [vmem:[%s2013 + $0x458] sm:$0xff]
        %v2154 = vld [vmem:[%s2013 + $0x460] sm:$0xff]
        %v2155 = vld [vmem:[%s2013 + $0x468] sm:$0xff]
        %v2156 = vld [vmem:[%s2013 + $0x470] sm:$0xff]
        %v2157 = vld [vmem:[%s2013 + $0x478] sm:$0xff]
        %v2158 = vld [vmem:[%s2013 + $0x480] sm:$0xff]
        %v2159 = vld [vmem:[%s2013 + $0x488] sm:$0xff]
        %v2160 = vld [vmem:[%s2013 + $0x490] sm:$0xff]
        %v2161 = vld [vmem:[%s2013 + $0x498] sm:$0xff]
        %v2162 = vld [vmem:[%s2013 + $0x4a0] sm:$0xff]
        %v2163 = vld [vmem:[%s2013 + $0x4a8] sm:$0xff]
        %v2164 = vld [vmem:[%s2013 + $0x4b0] sm:$0xff]
        %v2165 = vld [vmem:[%s2013 + $0x4b8] sm:$0xff]
        %v2166 = vld [vmem:[%s2013 + $0x4c0] sm:$0xff]
        %v2167 = vld [vmem:[%s2013 + $0x4c8] sm:$0xff]
        %v2168 = vld [vmem:[%s2013 + $0x4d0] sm:$0xff]
        %v2169 = vld [vmem:[%s2013 + $0x4d8] sm:$0xff]
        %v2170 = vld [vmem:[%s2013 + $0x4e0] sm:$0xff]
        %v2171 = vld [vmem:[%s2013 + $0x4e8] sm:$0xff]
        %v2172 = vld [vmem:[%s2013 + $0x4f0] sm:$0xff]
        %v2173 = vld [vmem:[%s2013 + $0x4f8] sm:$0xff]
        %v2174 = vld [vmem:[%s2013 + $0x500] sm:$0xff]
        %v2175 = vld [vmem:[%s2013 + $0x508] sm:$0xff]
        %v2176 = vld [vmem:[%s2013 + $0x510] sm:$0xff]
        %v2177 = vld [vmem:[%s2013 + $0x518] sm:$0xff]
        %v2178 = vld [vmem:[%s2013 + $0x520] sm:$0xff]
        %v2179 = vld [vmem:[%s2013 + $0x528] sm:$0xff]
        %v2180 = vld [vmem:[%s2013 + $0x530] sm:$0xff]
        %v2181 = vld [vmem:[%s2013 + $0x538] sm:$0xff]
        %v2182 = vld [vmem:[%s2013 + $0x540] sm:$0xff]
        %v2183 = vld [vmem:[%s2013 + $0x548] sm:$0xff]
        %v2184 = vld [vmem:[%s2013 + $0x550] sm:$0xff]
        %v2185 = vld [vmem:[%s2013 + $0x558] sm:$0xff]
        %v2186 = vld [vmem:[%s2013 + $0x560] sm:$0xff]
        %v2187 = vld [vmem:[%s2013 + $0x568] sm:$0xff]
        %v2188 = vld [vmem:[%s2013 + $0x570] sm:$0xff]
        %v2189 = vld [vmem:[%s2013 + $0x578] sm:$0xff]
        %v2190 = vld [vmem:[%s2013 + $0x580] sm:$0xff]
        %v2191 = vld [vmem:[%s2013 + $0x588] sm:$0xff]
        %v2192 = vld [vmem:[%s2013 + $0x590] sm:$0xff]
        %v2193 = vld [vmem:[%s2013 + $0x598] sm:$0xff]
        %v2194 = vld [vmem:[%s2013 + $0x5a0] sm:$0xff]
        %v2195 = vld [vmem:[%s2013 + $0x5a8] sm:$0xff]
        %v2196 = vld [vmem:[%s2013 + $0x5b0] sm:$0xff]
        %v2197 = vld [vmem:[%s2013 + $0x5b8] sm:$0xff]
        %v2198 = vld [vmem:[%s2013 + $0x5c0] sm:$0xff]
        %v2199 = vld [vmem:[%s2013 + $0x5c8] sm:$0xff]
        %v2200 = vld [vmem:[%s2013 + $0x5d0] sm:$0xff]
        %v2201 = vld [vmem:[%s2013 + $0x5d8] sm:$0xff]
        %v2202 = vld [vmem:[%s2013 + $0x5e0] sm:$0xff]
        %v2203 = vld [vmem:[%s2013 + $0x5e8] sm:$0xff]
        %v2204 = vld [vmem:[%s2013 + $0x5f0] sm:$0xff]
        %v2205 = vld [vmem:[%s2013 + $0x5f8] sm:$0xff]
        %v2206 = vld [vmem:[%s2013 + $0x600] sm:$0xff]
        %v2207 = vld [vmem:[%s2013 + $0x608] sm:$0xff]
        %v2208 = vld [vmem:[%s2013 + $0x610] sm:$0xff]
        %v2209 = vld [vmem:[%s2013 + $0x618] sm:$0xff]
        %v2210 = vld [vmem:[%s2013 + $0x620] sm:$0xff]
        %v2211 = vld [vmem:[%s2013 + $0x628] sm:$0xff]
        %v2212 = vld [vmem:[%s2013 + $0x630] sm:$0xff]
        %v2213 = vld [vmem:[%s2013 + $0x638] sm:$0xff]
        %v2214 = vld [vmem:[%s2013 + $0x640] sm:$0xff]
        %v2215 = vld [vmem:[%s2013 + $0x648] sm:$0xff]
        %v2216 = vld [vmem:[%s2013 + $0x650] sm:$0xff]
        %v2217 = vld [vmem:[%s2013 + $0x658] sm:$0xff]
        %v2218 = vld [vmem:[%s2013 + $0x660] sm:$0xff]
        %v2219 = vld [vmem:[%s2013 + $0x668] sm:$0xff]
        %v2220 = vld [vmem:[%s2013 + $0x670] sm:$0xff]
        %v2221 = vld [vmem:[%s2013 + $0x678] sm:$0xff]
        %v2222 = vld [vmem:[%s2013 + $0x680] sm:$0xff]
        %v2223 = vld [vmem:[%s2013 + $0x688] sm:$0xff]
        %v2224 = vld [vmem:[%s2013 + $0x690] sm:$0xff]
        %v2225 = vld [vmem:[%s2013 + $0x698] sm:$0xff]
        %v2226 = vld [vmem:[%s2013 + $0x6a0] sm:$0xff]
        %v2227 = vld [vmem:[%s2013 + $0x6a8] sm:$0xff]
        %v2228 = vld [vmem:[%s2013 + $0x6b0] sm:$0xff]
        %v2229 = vld [vmem:[%s2013 + $0x6b8] sm:$0xff]
        %v2230 = vld [vmem:[%s2013 + $0x6c0] sm:$0xff]
        %v2231 = vld [vmem:[%s2013 + $0x6c8] sm:$0xff]
        %v2232 = vld [vmem:[%s2013 + $0x6d0] sm:$0xff]
        %v2233 = vld [vmem:[%s2013 + $0x6d8] sm:$0xff]
        %v2234 = vld [vmem:[%s2013 + $0x6e0] sm:$0xff]
        %v2235 = vld [vmem:[%s2013 + $0x6e8] sm:$0xff]
        %v2236 = vld [vmem:[%s2013 + $0x6f0] sm:$0xff]
        %v2237 = vld [vmem:[%s2013 + $0x6f8] sm:$0xff]
        %v2238 = vld [vmem:[%s2013 + $0x700] sm:$0xff]
        %v2239 = vld [vmem:[%s2013 + $0x708] sm:$0xff]
        %v2240 = vld [vmem:[%s2013 + $0x710] sm:$0xff]
        %v2241 = vld [vmem:[%s2013 + $0x718] sm:$0xff]
        %v2242 = vld [vmem:[%s2013 + $0x720] sm:$0xff]
        %v2243 = vld [vmem:[%s2013 + $0x728] sm:$0xff]
        %v2244 = vld [vmem:[%s2013 + $0x730] sm:$0xff]
        %v2245 = vld [vmem:[%s2013 + $0x738] sm:$0xff]
        %v2246 = vld [vmem:[%s2013 + $0x740] sm:$0xff]
        %v2247 = vld [vmem:[%s2013 + $0x748] sm:$0xff]
        %v2248 = vld [vmem:[%s2013 + $0x750] sm:$0xff]
        %v2249 = vld [vmem:[%s2013 + $0x758] sm:$0xff]
        %v2250 = vld [vmem:[%s2013 + $0x760] sm:$0xff]
        %v2251 = vld [vmem:[%s2013 + $0x768] sm:$0xff]
        %v2252 = vld [vmem:[%s2013 + $0x770] sm:$0xff]
        %v2253 = vld [vmem:[%s2013 + $0x778] sm:$0xff]
        %v2254 = vld [vmem:[%s2013 + $0x780] sm:$0xff]
        %v2255 = vld [vmem:[%s2013 + $0x788] sm:$0xff]
        %v2256 = vld [vmem:[%s2013 + $0x790] sm:$0xff]
        %v2257 = vld [vmem:[%s2013 + $0x798] sm:$0xff]
        %v2258 = vld [vmem:[%s2013 + $0x7a0] sm:$0xff]
        %v2259 = vld [vmem:[%s2013 + $0x7a8] sm:$0xff]
        %v2260 = vld [vmem:[%s2013 + $0x7b0] sm:$0xff]
        %v2261 = vld [vmem:[%s2013 + $0x7b8] sm:$0xff]
        %v2262 = vld [vmem:[%s2013 + $0x7c0] sm:$0xff]
        %v2263 = vld [vmem:[%s2013 + $0x7c8] sm:$0xff]
        %v2264 = vld [vmem:[%s2013 + $0x7d0] sm:$0xff]
        %v2265 = vld [vmem:[%s2013 + $0x7d8] sm:$0xff]
        %v2266 = vld [vmem:[%s2013 + $0x7e0] sm:$0xff]
        %v2267 = vld [vmem:[%s2013 + $0x7e8] sm:$0xff]
        %v2268 = vld [vmem:[%s2013 + $0x7f0] sm:$0xff]
        %v2269 = vld [vmem:[%s2013 + $0x7f8] sm:$0xff]
        %vm2278 = vcmask 1045504
        %v2279 = vrot.slane %v2005, 2
        %v2280 = vrot.slane %v2009, 2
        %v2281 = vsel %vm2278, %v2279, %v2280
        %v2282 = vrot.slane %v2006, 2
        %v2283 = vrot.slane %v2010, 2
        %v2284 = vsel %vm2278, %v2282, %v2283
        %v2285 = vrot.slane %v2007, 2
        %v2286 = vrot.slane %v2011, 2
        %v2287 = vsel %vm2278, %v2285, %v2286
        %v2288 = vrot.slane %v2008, 2
        %v2289 = vrot.slane %v2012, 2
        %v2290 = vsel %vm2278, %v2288, %v2289
        %2295 = vmatpush.msra.mxu0 %v2074
        %2296 = vmatpush.msra.mxu0 %v2070
        %2297 = vmatpush.msra.mxu0 %v2066
        %2298 = vmatpush.msra.mxu0 %v2062
        %2299 = vmatpush.msra.mxu0 %v2058
        %2300 = vmatpush.msra.mxu0 %v2054
        %2301 = vmatpush.msra.mxu0 %v2050
        %2302 = vmatpush.msra.mxu0 %v2046
        %2303 = vmatpush.msra.mxu0 %v2042
        %2304 = vmatpush.msra.mxu0 %v2038
        %2305 = vmatpush.msra.mxu0 %v2034
        %2306 = vmatpush.msra.mxu0 %v2030
        %2307 = vmatpush.msra.mxu0 %v2026
        %2308 = vmatpush.msra.mxu0 %v2022
        %2309 = vmatpush.msra.mxu0 %v2018
        %2310 = vmatpush.msra.mxu0 %v2014
        %2311 = vmatmul.f32.gmra.mxu0 %v2281
        %v2312 = vpop.f32.mrf.mxu0
        %v2313 = vadd.f32 0.0, %v2312
        %2314 = vdwg.mxu0
        %2315 = vmatpush.msra.mxu0 %v2138
        %2316 = vmatpush.msra.mxu0 %v2134
        %2317 = vmatpush.msra.mxu0 %v2130
        %2318 = vmatpush.msra.mxu0 %v2126
        %2319 = vmatpush.msra.mxu0 %v2122
        %2320 = vmatpush.msra.mxu0 %v2118
        %2321 = vmatpush.msra.mxu0 %v2114
        %2322 = vmatpush.msra.mxu0 %v2110
        %2323 = vmatpush.msra.mxu0 %v2106
        %2324 = vmatpush.msra.mxu0 %v2102
        %2325 = vmatpush.msra.mxu0 %v2098
        %2326 = vmatpush.msra.mxu0 %v2094
        %2327 = vmatpush.msra.mxu0 %v2090
        %2328 = vmatpush.msra.mxu0 %v2086
        %2329 = vmatpush.msra.mxu0 %v2082
        %2330 = vmatpush.msra.mxu0 %v2078
        %2331 = vmatmul.f32.gmra.mxu0 %v2284
        %v2332 = vpop.f32.mrf.mxu0
        %v2333 = vadd.f32 %v2313, %v2332
        %2334 = vdwg.mxu0
        %2335 = vmatpush.msra.mxu0 %v2202
        %2336 = vmatpush.msra.mxu0 %v2198
        %2337 = vmatpush.msra.mxu0 %v2194
        %2338 = vmatpush.msra.mxu0 %v2190
        %2339 = vmatpush.msra.mxu0 %v2186
        %2340 = vmatpush.msra.mxu0 %v2182
        %2341 = vmatpush.msra.mxu0 %v2178
        %2342 = vmatpush.msra.mxu0 %v2174
        %2343 = vmatpush.msra.mxu0 %v2170
        %2344 = vmatpush.msra.mxu0 %v2166
        %2345 = vmatpush.msra.mxu0 %v2162
        %2346 = vmatpush.msra.mxu0 %v2158
        %2347 = vmatpush.msra.mxu0 %v2154
        %2348 = vmatpush.msra.mxu0 %v2150
        %2349 = vmatpush.msra.mxu0 %v2146
        %2350 = vmatpush.msra.mxu0 %v2142
        %2351 = vmatmul.f32.gmra.mxu0 %v2287
        %v2352 = vpop.f32.mrf.mxu0
        %v2353 = vadd.f32 %v2333, %v2352
        %2354 = vdwg.mxu0
        %2355 = vmatpush.msra.mxu0 %v2266
        %2356 = vmatpush.msra.mxu0 %v2262
        %2357 = vmatpush.msra.mxu0 %v2258
        %2358 = vmatpush.msra.mxu0 %v2254
        %2359 = vmatpush.msra.mxu0 %v2250
        %2360 = vmatpush.msra.mxu0 %v2246
        %2361 = vmatpush.msra.mxu0 %v2242
        %2362 = vmatpush.msra.mxu0 %v2238
        %2363 = vmatpush.msra.mxu0 %v2234
        %2364 = vmatpush.msra.mxu0 %v2230
        %2365 = vmatpush.msra.mxu0 %v2226
        %2366 = vmatpush.msra.mxu0 %v2222
        %2367 = vmatpush.msra.mxu0 %v2218
        %2368 = vmatpush.msra.mxu0 %v2214
        %2369 = vmatpush.msra.mxu0 %v2210
        %2370 = vmatpush.msra.mxu0 %v2206
        %2371 = vmatmul.f32.gmra.mxu0 %v2290
        %v2372 = vpop.f32.mrf.mxu0
        %v2373 = vadd.f32 %v2353, %v2372
        %2374 = vdwg.mxu0
        %2375 = vmatpush.msra.mxu0 %v2075
        %2376 = vmatpush.msra.mxu0 %v2071
        %2377 = vmatpush.msra.mxu0 %v2067
        %2378 = vmatpush.msra.mxu0 %v2063
        %2379 = vmatpush.msra.mxu0 %v2059
        %2380 = vmatpush.msra.mxu0 %v2055
        %2381 = vmatpush.msra.mxu0 %v2051
        %2382 = vmatpush.msra.mxu0 %v2047
        %2383 = vmatpush.msra.mxu0 %v2043
        %2384 = vmatpush.msra.mxu0 %v2039
        %2385 = vmatpush.msra.mxu0 %v2035
        %2386 = vmatpush.msra.mxu0 %v2031
        %2387 = vmatpush.msra.mxu0 %v2027
        %2388 = vmatpush.msra.mxu0 %v2023
        %2389 = vmatpush.msra.mxu0 %v2019
        %2390 = vmatpush.msra.mxu0 %v2015
        %2391 = vmatmul.f32.gmra.mxu0 %v2281
        %v2392 = vpop.f32.mrf.mxu0
        %v2393 = vadd.f32 0.0, %v2392
        %2394 = vdwg.mxu0
        %2395 = vmatpush.msra.mxu0 %v2139
        %2396 = vmatpush.msra.mxu0 %v2135
        %2397 = vmatpush.msra.mxu0 %v2131
        %2398 = vmatpush.msra.mxu0 %v2127
        %2399 = vmatpush.msra.mxu0 %v2123
        %2400 = vmatpush.msra.mxu0 %v2119
        %2401 = vmatpush.msra.mxu0 %v2115
        %2402 = vmatpush.msra.mxu0 %v2111
        %2403 = vmatpush.msra.mxu0 %v2107
        %2404 = vmatpush.msra.mxu0 %v2103
        %2405 = vmatpush.msra.mxu0 %v2099
        %2406 = vmatpush.msra.mxu0 %v2095
        %2407 = vmatpush.msra.mxu0 %v2091
        %2408 = vmatpush.msra.mxu0 %v2087
        %2409 = vmatpush.msra.mxu0 %v2083
        %2410 = vmatpush.msra.mxu0 %v2079
        %2411 = vmatmul.f32.gmra.mxu0 %v2284
        %v2412 = vpop.f32.mrf.mxu0
        %v2413 = vadd.f32 %v2393, %v2412
        %2414 = vdwg.mxu0
        %2415 = vmatpush.msra.mxu0 %v2203
        %2416 = vmatpush.msra.mxu0 %v2199
        %2417 = vmatpush.msra.mxu0 %v2195
        %2418 = vmatpush.msra.mxu0 %v2191
        %2419 = vmatpush.msra.mxu0 %v2187
        %2420 = vmatpush.msra.mxu0 %v2183
        %2421 = vmatpush.msra.mxu0 %v2179
        %2422 = vmatpush.msra.mxu0 %v2175
        %2423 = vmatpush.msra.mxu0 %v2171
        %2424 = vmatpush.msra.mxu0 %v2167
        %2425 = vmatpush.msra.mxu0 %v2163
        %2426 = vmatpush.msra.mxu0 %v2159
        %2427 = vmatpush.msra.mxu0 %v2155
        %2428 = vmatpush.msra.mxu0 %v2151
        %2429 = vmatpush.msra.mxu0 %v2147
        %2430 = vmatpush.msra.mxu0 %v2143
        %2431 = vmatmul.f32.gmra.mxu0 %v2287
        %v2432 = vpop.f32.mrf.mxu0
        %v2433 = vadd.f32 %v2413, %v2432
        %2434 = vdwg.mxu0
        %2435 = vmatpush.msra.mxu0 %v2267
        %2436 = vmatpush.msra.mxu0 %v2263
        %2437 = vmatpush.msra.mxu0 %v2259
        %2438 = vmatpush.msra.mxu0 %v2255
        %2439 = vmatpush.msra.mxu0 %v2251
        %2440 = vmatpush.msra.mxu0 %v2247
        %2441 = vmatpush.msra.mxu0 %v2243
        %2442 = vmatpush.msra.mxu0 %v2239
        %2443 = vmatpush.msra.mxu0 %v2235
        %2444 = vmatpush.msra.mxu0 %v2231
        %2445 = vmatpush.msra.mxu0 %v2227
        %2446 = vmatpush.msra.mxu0 %v2223
        %2447 = vmatpush.msra.mxu0 %v2219
        %2448 = vmatpush.msra.mxu0 %v2215
        %2449 = vmatpush.msra.mxu0 %v2211
        %2450 = vmatpush.msra.mxu0 %v2207
        %2451 = vmatmul.f32.gmra.mxu0 %v2290
        %v2452 = vpop.f32.mrf.mxu0
        %v2453 = vadd.f32 %v2433, %v2452
        %2454 = vdwg.mxu0
        %2455 = vmatpush.msra.mxu0 %v2076
        %2456 = vmatpush.msra.mxu0 %v2072
        %2457 = vmatpush.msra.mxu0 %v2068
        %2458 = vmatpush.msra.mxu0 %v2064
        %2459 = vmatpush.msra.mxu0 %v2060
        %2460 = vmatpush.msra.mxu0 %v2056
        %2461 = vmatpush.msra.mxu0 %v2052
        %2462 = vmatpush.msra.mxu0 %v2048
        %2463 = vmatpush.msra.mxu0 %v2044
        %2464 = vmatpush.msra.mxu0 %v2040
        %2465 = vmatpush.msra.mxu0 %v2036
        %2466 = vmatpush.msra.mxu0 %v2032
        %2467 = vmatpush.msra.mxu0 %v2028
        %2468 = vmatpush.msra.mxu0 %v2024
        %2469 = vmatpush.msra.mxu0 %v2020
        %2470 = vmatpush.msra.mxu0 %v2016
        %2471 = vmatmul.f32.gmra.mxu0 %v2281
        %v2472 = vpop.f32.mrf.mxu0
        %v2473 = vadd.f32 0.0, %v2472
        %2474 = vdwg.mxu0
        %2475 = vmatpush.msra.mxu0 %v2140
        %2476 = vmatpush.msra.mxu0 %v2136
        %2477 = vmatpush.msra.mxu0 %v2132
        %2478 = vmatpush.msra.mxu0 %v2128
        %2479 = vmatpush.msra.mxu0 %v2124
        %2480 = vmatpush.msra.mxu0 %v2120
        %2481 = vmatpush.msra.mxu0 %v2116
        %2482 = vmatpush.msra.mxu0 %v2112
        %2483 = vmatpush.msra.mxu0 %v2108
        %2484 = vmatpush.msra.mxu0 %v2104
        %2485 = vmatpush.msra.mxu0 %v2100
        %2486 = vmatpush.msra.mxu0 %v2096
        %2487 = vmatpush.msra.mxu0 %v2092
        %2488 = vmatpush.msra.mxu0 %v2088
        %2489 = vmatpush.msra.mxu0 %v2084
        %2490 = vmatpush.msra.mxu0 %v2080
        %2491 = vmatmul.f32.gmra.mxu0 %v2284
        %v2492 = vpop.f32.mrf.mxu0
        %v2493 = vadd.f32 %v2473, %v2492
        %2494 = vdwg.mxu0
        %2495 = vmatpush.msra.mxu0 %v2204
        %2496 = vmatpush.msra.mxu0 %v2200
        %2497 = vmatpush.msra.mxu0 %v2196
        %2498 = vmatpush.msra.mxu0 %v2192
        %2499 = vmatpush.msra.mxu0 %v2188
        %2500 = vmatpush.msra.mxu0 %v2184
        %2501 = vmatpush.msra.mxu0 %v2180
        %2502 = vmatpush.msra.mxu0 %v2176
        %2503 = vmatpush.msra.mxu0 %v2172
        %2504 = vmatpush.msra.mxu0 %v2168
        %2505 = vmatpush.msra.mxu0 %v2164
        %2506 = vmatpush.msra.mxu0 %v2160
        %2507 = vmatpush.msra.mxu0 %v2156
        %2508 = vmatpush.msra.mxu0 %v2152
        %2509 = vmatpush.msra.mxu0 %v2148
        %2510 = vmatpush.msra.mxu0 %v2144
        %2511 = vmatmul.f32.gmra.mxu0 %v2287
        %v2512 = vpop.f32.mrf.mxu0
        %v2513 = vadd.f32 %v2493, %v2512
        %2514 = vdwg.mxu0
        %2515 = vmatpush.msra.mxu0 %v2268
        %2516 = vmatpush.msra.mxu0 %v2264
        %2517 = vmatpush.msra.mxu0 %v2260
        %2518 = vmatpush.msra.mxu0 %v2256
        %2519 = vmatpush.msra.mxu0 %v2252
        %2520 = vmatpush.msra.mxu0 %v2248
        %2521 = vmatpush.msra.mxu0 %v2244
        %2522 = vmatpush.msra.mxu0 %v2240
        %2523 = vmatpush.msra.mxu0 %v2236
        %2524 = vmatpush.msra.mxu0 %v2232
        %2525 = vmatpush.msra.mxu0 %v2228
        %2526 = vmatpush.msra.mxu0 %v2224
        %2527 = vmatpush.msra.mxu0 %v2220
        %2528 = vmatpush.msra.mxu0 %v2216
        %2529 = vmatpush.msra.mxu0 %v2212
        %2530 = vmatpush.msra.mxu0 %v2208
        %2531 = vmatmul.f32.gmra.mxu0 %v2290
        %v2532 = vpop.f32.mrf.mxu0
        %v2533 = vadd.f32 %v2513, %v2532
        %2534 = vdwg.mxu0
        %2535 = vmatpush.msra.mxu0 %v2077
        %2536 = vmatpush.msra.mxu0 %v2073
        %2537 = vmatpush.msra.mxu0 %v2069
        %2538 = vmatpush.msra.mxu0 %v2065
        %2539 = vmatpush.msra.mxu0 %v2061
        %2540 = vmatpush.msra.mxu0 %v2057
        %2541 = vmatpush.msra.mxu0 %v2053
        %2542 = vmatpush.msra.mxu0 %v2049
        %2543 = vmatpush.msra.mxu0 %v2045
        %2544 = vmatpush.msra.mxu0 %v2041
        %2545 = vmatpush.msra.mxu0 %v2037
        %2546 = vmatpush.msra.mxu0 %v2033
        %2547 = vmatpush.msra.mxu0 %v2029
        %2548 = vmatpush.msra.mxu0 %v2025
        %2549 = vmatpush.msra.mxu0 %v2021
        %2550 = vmatpush.msra.mxu0 %v2017
        %2551 = vmatmul.f32.gmra.mxu0 %v2281
        %v2552 = vpop.f32.mrf.mxu0
        %v2553 = vadd.f32 0.0, %v2552
        %2554 = vdwg.mxu0
        %2555 = vmatpush.msra.mxu0 %v2141
        %2556 = vmatpush.msra.mxu0 %v2137
        %2557 = vmatpush.msra.mxu0 %v2133
        %2558 = vmatpush.msra.mxu0 %v2129
        %2559 = vmatpush.msra.mxu0 %v2125
        %2560 = vmatpush.msra.mxu0 %v2121
        %2561 = vmatpush.msra.mxu0 %v2117
        %2562 = vmatpush.msra.mxu0 %v2113
        %2563 = vmatpush.msra.mxu0 %v2109
        %2564 = vmatpush.msra.mxu0 %v2105
        %2565 = vmatpush.msra.mxu0 %v2101
        %2566 = vmatpush.msra.mxu0 %v2097
        %2567 = vmatpush.msra.mxu0 %v2093
        %2568 = vmatpush.msra.mxu0 %v2089
        %2569 = vmatpush.msra.mxu0 %v2085
        %2570 = vmatpush.msra.mxu0 %v2081
        %2571 = vmatmul.f32.gmra.mxu0 %v2284
        %v2572 = vpop.f32.mrf.mxu0
        %v2573 = vadd.f32 %v2553, %v2572
        %2574 = vdwg.mxu0
        %2575 = vmatpush.msra.mxu0 %v2205
        %2576 = vmatpush.msra.mxu0 %v2201
        %2577 = vmatpush.msra.mxu0 %v2197
        %2578 = vmatpush.msra.mxu0 %v2193
        %2579 = vmatpush.msra.mxu0 %v2189
        %2580 = vmatpush.msra.mxu0 %v2185
        %2581 = vmatpush.msra.mxu0 %v2181
        %2582 = vmatpush.msra.mxu0 %v2177
        %2583 = vmatpush.msra.mxu0 %v2173
        %2584 = vmatpush.msra.mxu0 %v2169
        %2585 = vmatpush.msra.mxu0 %v2165
        %2586 = vmatpush.msra.mxu0 %v2161
        %2587 = vmatpush.msra.mxu0 %v2157
        %2588 = vmatpush.msra.mxu0 %v2153
        %2589 = vmatpush.msra.mxu0 %v2149
        %2590 = vmatpush.msra.mxu0 %v2145
        %2591 = vmatmul.f32.gmra.mxu0 %v2287
        %v2592 = vpop.f32.mrf.mxu0
        %v2593 = vadd.f32 %v2573, %v2592
        %2594 = vdwg.mxu0
        %2595 = vmatpush.msra.mxu0 %v2269
        %2596 = vmatpush.msra.mxu0 %v2265
        %2597 = vmatpush.msra.mxu0 %v2261
        %2598 = vmatpush.msra.mxu0 %v2257
        %2599 = vmatpush.msra.mxu0 %v2253
        %2600 = vmatpush.msra.mxu0 %v2249
        %2601 = vmatpush.msra.mxu0 %v2245
        %2602 = vmatpush.msra.mxu0 %v2241
        %2603 = vmatpush.msra.mxu0 %v2237
        %2604 = vmatpush.msra.mxu0 %v2233
        %2605 = vmatpush.msra.mxu0 %v2229
        %2606 = vmatpush.msra.mxu0 %v2225
        %2607 = vmatpush.msra.mxu0 %v2221
        %2608 = vmatpush.msra.mxu0 %v2217
        %2609 = vmatpush.msra.mxu0 %v2213
        %2610 = vmatpush.msra.mxu0 %v2209
        %2611 = vmatmul.f32.gmra.mxu0 %v2290
        %v2612 = vpop.f32.mrf.mxu0
        %v2613 = vadd.f32 %v2593, %v2612
        %2614 = vdwg.mxu0
        %v2615 = vadd.f32 %v1763, %v2373
        %v2616 = vadd.f32 %v1843, %v2453
        %v2617 = vadd.f32 %v1923, %v2533
        %v2618 = vadd.f32 %v2003, %v2613
        %v2619 = vld [vmem:[#allocation11] sm:$0xf]
        %v2621 = vperm.slane %v2619, 0
        %v2622 = vperm.slane %v2619, 1
        %v2623 = vperm.slane %v2619, 2
        %v2624 = vperm.slane %v2619, 3
        %v2629 = vadd.f32 %v2615, %v2621
        %v2630 = vadd.f32 %v2616, %v2622
        %v2631 = vadd.f32 %v2617, %v2623
        %v2632 = vadd.f32 %v2618, %v2624
        %v2634 = vperm.slane %v558, 0
        %v2635 = vperm.slane %v558, 1
        %v2636 = vperm.slane %v558, 2
        %v2637 = vperm.slane %v558, 3
        %v2642 = vmul.f32 %v2629, %v2634
        %v2643 = vmul.f32 %v2630, %v2635
        %v2644 = vmul.f32 %v2631, %v2636
        %v2645 = vmul.f32 %v2632, %v2637
        %v2646 = vrot.slane %v2642, 4
        %v2647 = vadd.f32 %v2642, %v2646
        %v2648 = vrot.slane %v2647, 2
        %v2649 = vadd.f32 %v2647, %v2648
        %v2650 = vrot.slane %v2649, 1
        %v2651 = vadd.f32 %v2649, %v2650
        %v2652 = vrot.slane %v2643, 4
        %v2653 = vadd.f32 %v2643, %v2652
        %v2654 = vrot.slane %v2653, 2
        %v2655 = vadd.f32 %v2653, %v2654
        %v2656 = vrot.slane %v2655, 1
        %v2657 = vadd.f32 %v2655, %v2656
        %v2658 = vrot.slane %v2644, 4
        %v2659 = vadd.f32 %v2644, %v2658
        %v2660 = vrot.slane %v2659, 2
        %v2661 = vadd.f32 %v2659, %v2660
        %v2662 = vrot.slane %v2661, 1
        %v2663 = vadd.f32 %v2661, %v2662
        %v2664 = vrot.slane %v2645, 4
        %v2665 = vadd.f32 %v2645, %v2664
        %v2666 = vrot.slane %v2665, 2
        %v2667 = vadd.f32 %v2665, %v2666
        %v2668 = vrot.slane %v2667, 1
        %v2669 = vadd.f32 %v2667, %v2668
        %v2670 = vmul.f32 %v2642, %v2642
        %v2671 = vmul.f32 %v2643, %v2643
        %v2672 = vmul.f32 %v2644, %v2644
        %v2673 = vmul.f32 %v2645, %v2645
        %v2674 = vrot.slane %v2670, 4
        %v2675 = vadd.f32 %v2670, %v2674
        %v2676 = vrot.slane %v2675, 2
        %v2677 = vadd.f32 %v2675, %v2676
        %v2678 = vrot.slane %v2677, 1
        %v2679 = vadd.f32 %v2677, %v2678
        %v2680 = vrot.slane %v2671, 4
        %v2681 = vadd.f32 %v2671, %v2680
        %v2682 = vrot.slane %v2681, 2
        %v2683 = vadd.f32 %v2681, %v2682
        %v2684 = vrot.slane %v2683, 1
        %v2685 = vadd.f32 %v2683, %v2684
        %v2686 = vrot.slane %v2672, 4
        %v2687 = vadd.f32 %v2672, %v2686
        %v2688 = vrot.slane %v2687, 2
        %v2689 = vadd.f32 %v2687, %v2688
        %v2690 = vrot.slane %v2689, 1
        %v2691 = vadd.f32 %v2689, %v2690
        %v2692 = vrot.slane %v2673, 4
        %v2693 = vadd.f32 %v2673, %v2692
        %v2694 = vrot.slane %v2693, 2
        %v2695 = vadd.f32 %v2693, %v2694
        %v2696 = vrot.slane %v2695, 1
        %v2697 = vadd.f32 %v2695, %v2696
        %2698 = vmatpush.msra.mxu0 %v619
        %2699 = vmatpush.msra.mxu0 %v615
        %2700 = vmatpush.msra.mxu0 %v611
        %2701 = vmatpush.msra.mxu0 %v607
        %2702 = vmatpush.msra.mxu0 %v603
        %2703 = vmatpush.msra.mxu0 %v599
        %2704 = vmatpush.msra.mxu0 %v595
        %2705 = vmatpush.msra.mxu0 %v591
        %2706 = vmatpush.msra.mxu0 %v587
        %2707 = vmatpush.msra.mxu0 %v583
        %2708 = vmatpush.msra.mxu0 %v579
        %2709 = vmatpush.msra.mxu0 %v575
        %2710 = vmatpush.msra.mxu0 %v571
        %2711 = vmatpush.msra.mxu0 %v567
        %2712 = vmatpush.msra.mxu0 %v563
        %2713 = vmatpush.msra.mxu0 %v559
        %2714 = vmatmul.f32.gmra.mxu0 %v2651
        %v2715 = vpop.f32.mrf.mxu0
        %v2716 = vadd.f32 0.0, %v2715
        %2717 = vdwg.mxu0
        %2718 = vmatpush.msra.mxu0 %v683
        %2719 = vmatpush.msra.mxu0 %v679
        %2720 = vmatpush.msra.mxu0 %v675
        %2721 = vmatpush.msra.mxu0 %v671
        %2722 = vmatpush.msra.mxu0 %v667
        %2723 = vmatpush.msra.mxu0 %v663
        %2724 = vmatpush.msra.mxu0 %v659
        %2725 = vmatpush.msra.mxu0 %v655
        %2726 = vmatpush.msra.mxu0 %v651
        %2727 = vmatpush.msra.mxu0 %v647
        %2728 = vmatpush.msra.mxu0 %v643
        %2729 = vmatpush.msra.mxu0 %v639
        %2730 = vmatpush.msra.mxu0 %v635
        %2731 = vmatpush.msra.mxu0 %v631
        %2732 = vmatpush.msra.mxu0 %v627
        %2733 = vmatpush.msra.mxu0 %v623
        %2734 = vmatmul.f32.gmra.mxu0 %v2657
        %v2735 = vpop.f32.mrf.mxu0
        %v2736 = vadd.f32 %v2716, %v2735
        %2737 = vdwg.mxu0
        %2738 = vmatpush.msra.mxu0 %v747
        %2739 = vmatpush.msra.mxu0 %v743
        %2740 = vmatpush.msra.mxu0 %v739
        %2741 = vmatpush.msra.mxu0 %v735
        %2742 = vmatpush.msra.mxu0 %v731
        %2743 = vmatpush.msra.mxu0 %v727
        %2744 = vmatpush.msra.mxu0 %v723
        %2745 = vmatpush.msra.mxu0 %v719
        %2746 = vmatpush.msra.mxu0 %v715
        %2747 = vmatpush.msra.mxu0 %v711
        %2748 = vmatpush.msra.mxu0 %v707
        %2749 = vmatpush.msra.mxu0 %v703
        %2750 = vmatpush.msra.mxu0 %v699
        %2751 = vmatpush.msra.mxu0 %v695
        %2752 = vmatpush.msra.mxu0 %v691
        %2753 = vmatpush.msra.mxu0 %v687
        %2754 = vmatmul.f32.gmra.mxu0 %v2663
        %v2755 = vpop.f32.mrf.mxu0
        %v2756 = vadd.f32 %v2736, %v2755
        %2757 = vdwg.mxu0
        %2758 = vmatpush.msra.mxu0 %v811
        %2759 = vmatpush.msra.mxu0 %v807
        %2760 = vmatpush.msra.mxu0 %v803
        %2761 = vmatpush.msra.mxu0 %v799
        %2762 = vmatpush.msra.mxu0 %v795
        %2763 = vmatpush.msra.mxu0 %v791
        %2764 = vmatpush.msra.mxu0 %v787
        %2765 = vmatpush.msra.mxu0 %v783
        %2766 = vmatpush.msra.mxu0 %v779
        %2767 = vmatpush.msra.mxu0 %v775
        %2768 = vmatpush.msra.mxu0 %v771
        %2769 = vmatpush.msra.mxu0 %v767
        %2770 = vmatpush.msra.mxu0 %v763
        %2771 = vmatpush.msra.mxu0 %v759
        %2772 = vmatpush.msra.mxu0 %v755
        %2773 = vmatpush.msra.mxu0 %v751
        %2774 = vmatmul.f32.gmra.mxu0 %v2669
        %v2775 = vpop.f32.mrf.mxu0
        %v2776 = vadd.f32 %v2756, %v2775
        %2777 = vdwg.mxu0
        %2778 = vmatpush.msra.mxu0 %v620
        %2779 = vmatpush.msra.mxu0 %v616
        %2780 = vmatpush.msra.mxu0 %v612
        %2781 = vmatpush.msra.mxu0 %v608
        %2782 = vmatpush.msra.mxu0 %v604
        %2783 = vmatpush.msra.mxu0 %v600
        %2784 = vmatpush.msra.mxu0 %v596
        %2785 = vmatpush.msra.mxu0 %v592
        %2786 = vmatpush.msra.mxu0 %v588
        %2787 = vmatpush.msra.mxu0 %v584
        %2788 = vmatpush.msra.mxu0 %v580
        %2789 = vmatpush.msra.mxu0 %v576
        %2790 = vmatpush.msra.mxu0 %v572
        %2791 = vmatpush.msra.mxu0 %v568
        %2792 = vmatpush.msra.mxu0 %v564
        %2793 = vmatpush.msra.mxu0 %v560
        %2794 = vmatmul.f32.gmra.mxu0 %v2651
        %v2795 = vpop.f32.mrf.mxu0
        %v2796 = vadd.f32 0.0, %v2795
        %2797 = vdwg.mxu0
        %2798 = vmatpush.msra.mxu0 %v684
        %2799 = vmatpush.msra.mxu0 %v680
        %2800 = vmatpush.msra.mxu0 %v676
        %2801 = vmatpush.msra.mxu0 %v672
        %2802 = vmatpush.msra.mxu0 %v668
        %2803 = vmatpush.msra.mxu0 %v664
        %2804 = vmatpush.msra.mxu0 %v660
        %2805 = vmatpush.msra.mxu0 %v656
        %2806 = vmatpush.msra.mxu0 %v652
        %2807 = vmatpush.msra.mxu0 %v648
        %2808 = vmatpush.msra.mxu0 %v644
        %2809 = vmatpush.msra.mxu0 %v640
        %2810 = vmatpush.msra.mxu0 %v636
        %2811 = vmatpush.msra.mxu0 %v632
        %2812 = vmatpush.msra.mxu0 %v628
        %2813 = vmatpush.msra.mxu0 %v624
        %2814 = vmatmul.f32.gmra.mxu0 %v2657
        %v2815 = vpop.f32.mrf.mxu0
        %v2816 = vadd.f32 %v2796, %v2815
        %2817 = vdwg.mxu0
        %2818 = vmatpush.msra.mxu0 %v748
        %2819 = vmatpush.msra.mxu0 %v744
        %2820 = vmatpush.msra.mxu0 %v740
        %2821 = vmatpush.msra.mxu0 %v736
        %2822 = vmatpush.msra.mxu0 %v732
        %2823 = vmatpush.msra.mxu0 %v728
        %2824 = vmatpush.msra.mxu0 %v724
        %2825 = vmatpush.msra.mxu0 %v720
        %2826 = vmatpush.msra.mxu0 %v716
        %2827 = vmatpush.msra.mxu0 %v712
        %2828 = vmatpush.msra.mxu0 %v708
        %2829 = vmatpush.msra.mxu0 %v704
        %2830 = vmatpush.msra.mxu0 %v700
        %2831 = vmatpush.msra.mxu0 %v696
        %2832 = vmatpush.msra.mxu0 %v692
        %2833 = vmatpush.msra.mxu0 %v688
        %2834 = vmatmul.f32.gmra.mxu0 %v2663
        %v2835 = vpop.f32.mrf.mxu0
        %v2836 = vadd.f32 %v2816, %v2835
        %2837 = vdwg.mxu0
        %2838 = vmatpush.msra.mxu0 %v812
        %2839 = vmatpush.msra.mxu0 %v808
        %2840 = vmatpush.msra.mxu0 %v804
        %2841 = vmatpush.msra.mxu0 %v800
        %2842 = vmatpush.msra.mxu0 %v796
        %2843 = vmatpush.msra.mxu0 %v792
        %2844 = vmatpush.msra.mxu0 %v788
        %2845 = vmatpush.msra.mxu0 %v784
        %2846 = vmatpush.msra.mxu0 %v780
        %2847 = vmatpush.msra.mxu0 %v776
        %2848 = vmatpush.msra.mxu0 %v772
        %2849 = vmatpush.msra.mxu0 %v768
        %2850 = vmatpush.msra.mxu0 %v764
        %2851 = vmatpush.msra.mxu0 %v760
        %2852 = vmatpush.msra.mxu0 %v756
        %2853 = vmatpush.msra.mxu0 %v752
        %2854 = vmatmul.f32.gmra.mxu0 %v2669
        %v2855 = vpop.f32.mrf.mxu0
        %v2856 = vadd.f32 %v2836, %v2855
        %2857 = vdwg.mxu0
        %2858 = vmatpush.msra.mxu0 %v621
        %2859 = vmatpush.msra.mxu0 %v617
        %2860 = vmatpush.msra.mxu0 %v613
        %2861 = vmatpush.msra.mxu0 %v609
        %2862 = vmatpush.msra.mxu0 %v605
        %2863 = vmatpush.msra.mxu0 %v601
        %2864 = vmatpush.msra.mxu0 %v597
        %2865 = vmatpush.msra.mxu0 %v593
        %2866 = vmatpush.msra.mxu0 %v589
        %2867 = vmatpush.msra.mxu0 %v585
        %2868 = vmatpush.msra.mxu0 %v581
        %2869 = vmatpush.msra.mxu0 %v577
        %2870 = vmatpush.msra.mxu0 %v573
        %2871 = vmatpush.msra.mxu0 %v569
        %2872 = vmatpush.msra.mxu0 %v565
        %2873 = vmatpush.msra.mxu0 %v561
        %2874 = vmatmul.f32.gmra.mxu0 %v2651
        %v2875 = vpop.f32.mrf.mxu0
        %v2876 = vadd.f32 0.0, %v2875
        %2877 = vdwg.mxu0
        %2878 = vmatpush.msra.mxu0 %v685
        %2879 = vmatpush.msra.mxu0 %v681
        %2880 = vmatpush.msra.mxu0 %v677
        %2881 = vmatpush.msra.mxu0 %v673
        %2882 = vmatpush.msra.mxu0 %v669
        %2883 = vmatpush.msra.mxu0 %v665
        %2884 = vmatpush.msra.mxu0 %v661
        %2885 = vmatpush.msra.mxu0 %v657
        %2886 = vmatpush.msra.mxu0 %v653
        %2887 = vmatpush.msra.mxu0 %v649
        %2888 = vmatpush.msra.mxu0 %v645
        %2889 = vmatpush.msra.mxu0 %v641
        %2890 = vmatpush.msra.mxu0 %v637
        %2891 = vmatpush.msra.mxu0 %v633
        %2892 = vmatpush.msra.mxu0 %v629
        %2893 = vmatpush.msra.mxu0 %v625
        %2894 = vmatmul.f32.gmra.mxu0 %v2657
        %v2895 = vpop.f32.mrf.mxu0
        %v2896 = vadd.f32 %v2876, %v2895
        %2897 = vdwg.mxu0
        %2898 = vmatpush.msra.mxu0 %v749
        %2899 = vmatpush.msra.mxu0 %v745
        %2900 = vmatpush.msra.mxu0 %v741
        %2901 = vmatpush.msra.mxu0 %v737
        %2902 = vmatpush.msra.mxu0 %v733
        %2903 = vmatpush.msra.mxu0 %v729
        %2904 = vmatpush.msra.mxu0 %v725
        %2905 = vmatpush.msra.mxu0 %v721
        %2906 = vmatpush.msra.mxu0 %v717
        %2907 = vmatpush.msra.mxu0 %v713
        %2908 = vmatpush.msra.mxu0 %v709
        %2909 = vmatpush.msra.mxu0 %v705
        %2910 = vmatpush.msra.mxu0 %v701
        %2911 = vmatpush.msra.mxu0 %v697
        %2912 = vmatpush.msra.mxu0 %v693
        %2913 = vmatpush.msra.mxu0 %v689
        %2914 = vmatmul.f32.gmra.mxu0 %v2663
        %v2915 = vpop.f32.mrf.mxu0
        %v2916 = vadd.f32 %v2896, %v2915
        %2917 = vdwg.mxu0
        %2918 = vmatpush.msra.mxu0 %v813
        %2919 = vmatpush.msra.mxu0 %v809
        %2920 = vmatpush.msra.mxu0 %v805
        %2921 = vmatpush.msra.mxu0 %v801
        %2922 = vmatpush.msra.mxu0 %v797
        %2923 = vmatpush.msra.mxu0 %v793
        %2924 = vmatpush.msra.mxu0 %v789
        %2925 = vmatpush.msra.mxu0 %v785
        %2926 = vmatpush.msra.mxu0 %v781
        %2927 = vmatpush.msra.mxu0 %v777
        %2928 = vmatpush.msra.mxu0 %v773
        %2929 = vmatpush.msra.mxu0 %v769
        %2930 = vmatpush.msra.mxu0 %v765
        %2931 = vmatpush.msra.mxu0 %v761
        %2932 = vmatpush.msra.mxu0 %v757
        %2933 = vmatpush.msra.mxu0 %v753
        %2934 = vmatmul.f32.gmra.mxu0 %v2669
        %v2935 = vpop.f32.mrf.mxu0
        %v2936 = vadd.f32 %v2916, %v2935
        %2937 = vdwg.mxu0
        %2938 = vmatpush.msra.mxu0 %v622
        %2939 = vmatpush.msra.mxu0 %v618
        %2940 = vmatpush.msra.mxu0 %v614
        %2941 = vmatpush.msra.mxu0 %v610
        %2942 = vmatpush.msra.mxu0 %v606
        %2943 = vmatpush.msra.mxu0 %v602
        %2944 = vmatpush.msra.mxu0 %v598
        %2945 = vmatpush.msra.mxu0 %v594
        %2946 = vmatpush.msra.mxu0 %v590
        %2947 = vmatpush.msra.mxu0 %v586
        %2948 = vmatpush.msra.mxu0 %v582
        %2949 = vmatpush.msra.mxu0 %v578
        %2950 = vmatpush.msra.mxu0 %v574
        %2951 = vmatpush.msra.mxu0 %v570
        %2952 = vmatpush.msra.mxu0 %v566
        %2953 = vmatpush.msra.mxu0 %v562
        %2954 = vmatmul.f32.gmra.mxu0 %v2651
        %v2955 = vpop.f32.mrf.mxu0
        %v2956 = vadd.f32 0.0, %v2955
        %2957 = vdwg.mxu0
        %2958 = vmatpush.msra.mxu0 %v686
        %2959 = vmatpush.msra.mxu0 %v682
        %2960 = vmatpush.msra.mxu0 %v678
        %2961 = vmatpush.msra.mxu0 %v674
        %2962 = vmatpush.msra.mxu0 %v670
        %2963 = vmatpush.msra.mxu0 %v666
        %2964 = vmatpush.msra.mxu0 %v662
        %2965 = vmatpush.msra.mxu0 %v658
        %2966 = vmatpush.msra.mxu0 %v654
        %2967 = vmatpush.msra.mxu0 %v650
        %2968 = vmatpush.msra.mxu0 %v646
        %2969 = vmatpush.msra.mxu0 %v642
        %2970 = vmatpush.msra.mxu0 %v638
        %2971 = vmatpush.msra.mxu0 %v634
        %2972 = vmatpush.msra.mxu0 %v630
        %2973 = vmatpush.msra.mxu0 %v626
        %2974 = vmatmul.f32.gmra.mxu0 %v2657
        %v2975 = vpop.f32.mrf.mxu0
        %v2976 = vadd.f32 %v2956, %v2975
        %2977 = vdwg.mxu0
        %2978 = vmatpush.msra.mxu0 %v750
        %2979 = vmatpush.msra.mxu0 %v746
        %2980 = vmatpush.msra.mxu0 %v742
        %2981 = vmatpush.msra.mxu0 %v738
        %2982 = vmatpush.msra.mxu0 %v734
        %2983 = vmatpush.msra.mxu0 %v730
        %2984 = vmatpush.msra.mxu0 %v726
        %2985 = vmatpush.msra.mxu0 %v722
        %2986 = vmatpush.msra.mxu0 %v718
        %2987 = vmatpush.msra.mxu0 %v714
        %2988 = vmatpush.msra.mxu0 %v710
        %2989 = vmatpush.msra.mxu0 %v706
        %2990 = vmatpush.msra.mxu0 %v702
        %2991 = vmatpush.msra.mxu0 %v698
        %2992 = vmatpush.msra.mxu0 %v694
        %2993 = vmatpush.msra.mxu0 %v690
        %2994 = vmatmul.f32.gmra.mxu0 %v2663
        %v2995 = vpop.f32.mrf.mxu0
        %v2996 = vadd.f32 %v2976, %v2995
        %2997 = vdwg.mxu0
        %2998 = vmatpush.msra.mxu0 %v814
        %2999 = vmatpush.msra.mxu0 %v810
        %3000 = vmatpush.msra.mxu0 %v806
        %3001 = vmatpush.msra.mxu0 %v802
        %3002 = vmatpush.msra.mxu0 %v798
        %3003 = vmatpush.msra.mxu0 %v794
        %3004 = vmatpush.msra.mxu0 %v790
        %3005 = vmatpush.msra.mxu0 %v786
        %3006 = vmatpush.msra.mxu0 %v782
        %3007 = vmatpush.msra.mxu0 %v778
        %3008 = vmatpush.msra.mxu0 %v774
        %3009 = vmatpush.msra.mxu0 %v770
        %3010 = vmatpush.msra.mxu0 %v766
        %3011 = vmatpush.msra.mxu0 %v762
        %3012 = vmatpush.msra.mxu0 %v758
        %3013 = vmatpush.msra.mxu0 %v754
        %3014 = vmatmul.f32.gmra.mxu0 %v2669
        %v3015 = vpop.f32.mrf.mxu0
        %v3016 = vadd.f32 %v2996, %v3015
        %3017 = vdwg.mxu0
        %3018 = vmatpush.msra.mxu0 %v619
        %3019 = vmatpush.msra.mxu0 %v615
        %3020 = vmatpush.msra.mxu0 %v611
        %3021 = vmatpush.msra.mxu0 %v607
        %3022 = vmatpush.msra.mxu0 %v603
        %3023 = vmatpush.msra.mxu0 %v599
        %3024 = vmatpush.msra.mxu0 %v595
        %3025 = vmatpush.msra.mxu0 %v591
        %3026 = vmatpush.msra.mxu0 %v587
        %3027 = vmatpush.msra.mxu0 %v583
        %3028 = vmatpush.msra.mxu0 %v579
        %3029 = vmatpush.msra.mxu0 %v575
        %3030 = vmatpush.msra.mxu0 %v571
        %3031 = vmatpush.msra.mxu0 %v567
        %3032 = vmatpush.msra.mxu0 %v563
        %3033 = vmatpush.msra.mxu0 %v559
        %3034 = vmatmul.f32.gmra.mxu0 %v2679
        %v3035 = vpop.f32.mrf.mxu0
        %v3036 = vadd.f32 0.0, %v3035
        %3037 = vdwg.mxu0
        %3038 = vmatpush.msra.mxu0 %v683
        %3039 = vmatpush.msra.mxu0 %v679
        %3040 = vmatpush.msra.mxu0 %v675
        %3041 = vmatpush.msra.mxu0 %v671
        %3042 = vmatpush.msra.mxu0 %v667
        %3043 = vmatpush.msra.mxu0 %v663
        %3044 = vmatpush.msra.mxu0 %v659
        %3045 = vmatpush.msra.mxu0 %v655
        %3046 = vmatpush.msra.mxu0 %v651
        %3047 = vmatpush.msra.mxu0 %v647
        %3048 = vmatpush.msra.mxu0 %v643
        %3049 = vmatpush.msra.mxu0 %v639
        %3050 = vmatpush.msra.mxu0 %v635
        %3051 = vmatpush.msra.mxu0 %v631
        %3052 = vmatpush.msra.mxu0 %v627
        %3053 = vmatpush.msra.mxu0 %v623
        %3054 = vmatmul.f32.gmra.mxu0 %v2685
        %v3055 = vpop.f32.mrf.mxu0
        %v3056 = vadd.f32 %v3036, %v3055
        %3057 = vdwg.mxu0
        %3058 = vmatpush.msra.mxu0 %v747
        %3059 = vmatpush.msra.mxu0 %v743
        %3060 = vmatpush.msra.mxu0 %v739
        %3061 = vmatpush.msra.mxu0 %v735
        %3062 = vmatpush.msra.mxu0 %v731
        %3063 = vmatpush.msra.mxu0 %v727
        %3064 = vmatpush.msra.mxu0 %v723
        %3065 = vmatpush.msra.mxu0 %v719
        %3066 = vmatpush.msra.mxu0 %v715
        %3067 = vmatpush.msra.mxu0 %v711
        %3068 = vmatpush.msra.mxu0 %v707
        %3069 = vmatpush.msra.mxu0 %v703
        %3070 = vmatpush.msra.mxu0 %v699
        %3071 = vmatpush.msra.mxu0 %v695
        %3072 = vmatpush.msra.mxu0 %v691
        %3073 = vmatpush.msra.mxu0 %v687
        %3074 = vmatmul.f32.gmra.mxu0 %v2691
        %v3075 = vpop.f32.mrf.mxu0
        %v3076 = vadd.f32 %v3056, %v3075
        %3077 = vdwg.mxu0
        %3078 = vmatpush.msra.mxu0 %v811
        %3079 = vmatpush.msra.mxu0 %v807
        %3080 = vmatpush.msra.mxu0 %v803
        %3081 = vmatpush.msra.mxu0 %v799
        %3082 = vmatpush.msra.mxu0 %v795
        %3083 = vmatpush.msra.mxu0 %v791
        %3084 = vmatpush.msra.mxu0 %v787
        %3085 = vmatpush.msra.mxu0 %v783
        %3086 = vmatpush.msra.mxu0 %v779
        %3087 = vmatpush.msra.mxu0 %v775
        %3088 = vmatpush.msra.mxu0 %v771
        %3089 = vmatpush.msra.mxu0 %v767
        %3090 = vmatpush.msra.mxu0 %v763
        %3091 = vmatpush.msra.mxu0 %v759
        %3092 = vmatpush.msra.mxu0 %v755
        %3093 = vmatpush.msra.mxu0 %v751
        %3094 = vmatmul.f32.gmra.mxu0 %v2697
        %v3095 = vpop.f32.mrf.mxu0
        %v3096 = vadd.f32 %v3076, %v3095
        %3097 = vdwg.mxu0
        %3098 = vmatpush.msra.mxu0 %v620
        %3099 = vmatpush.msra.mxu0 %v616
        %3100 = vmatpush.msra.mxu0 %v612
        %3101 = vmatpush.msra.mxu0 %v608
        %3102 = vmatpush.msra.mxu0 %v604
        %3103 = vmatpush.msra.mxu0 %v600
        %3104 = vmatpush.msra.mxu0 %v596
        %3105 = vmatpush.msra.mxu0 %v592
        %3106 = vmatpush.msra.mxu0 %v588
        %3107 = vmatpush.msra.mxu0 %v584
        %3108 = vmatpush.msra.mxu0 %v580
        %3109 = vmatpush.msra.mxu0 %v576
        %3110 = vmatpush.msra.mxu0 %v572
        %3111 = vmatpush.msra.mxu0 %v568
        %3112 = vmatpush.msra.mxu0 %v564
        %3113 = vmatpush.msra.mxu0 %v560
        %3114 = vmatmul.f32.gmra.mxu0 %v2679
        %v3115 = vpop.f32.mrf.mxu0
        %v3116 = vadd.f32 0.0, %v3115
        %3117 = vdwg.mxu0
        %3118 = vmatpush.msra.mxu0 %v684
        %3119 = vmatpush.msra.mxu0 %v680
        %3120 = vmatpush.msra.mxu0 %v676
        %3121 = vmatpush.msra.mxu0 %v672
        %3122 = vmatpush.msra.mxu0 %v668
        %3123 = vmatpush.msra.mxu0 %v664
        %3124 = vmatpush.msra.mxu0 %v660
        %3125 = vmatpush.msra.mxu0 %v656
        %3126 = vmatpush.msra.mxu0 %v652
        %3127 = vmatpush.msra.mxu0 %v648
        %3128 = vmatpush.msra.mxu0 %v644
        %3129 = vmatpush.msra.mxu0 %v640
        %3130 = vmatpush.msra.mxu0 %v636
        %3131 = vmatpush.msra.mxu0 %v632
        %3132 = vmatpush.msra.mxu0 %v628
        %3133 = vmatpush.msra.mxu0 %v624
        %3134 = vmatmul.f32.gmra.mxu0 %v2685
        %v3135 = vpop.f32.mrf.mxu0
        %v3136 = vadd.f32 %v3116, %v3135
        %3137 = vdwg.mxu0
        %3138 = vmatpush.msra.mxu0 %v748
        %3139 = vmatpush.msra.mxu0 %v744
        %3140 = vmatpush.msra.mxu0 %v740
        %3141 = vmatpush.msra.mxu0 %v736
        %3142 = vmatpush.msra.mxu0 %v732
        %3143 = vmatpush.msra.mxu0 %v728
        %3144 = vmatpush.msra.mxu0 %v724
        %3145 = vmatpush.msra.mxu0 %v720
        %3146 = vmatpush.msra.mxu0 %v716
        %3147 = vmatpush.msra.mxu0 %v712
        %3148 = vmatpush.msra.mxu0 %v708
        %3149 = vmatpush.msra.mxu0 %v704
        %3150 = vmatpush.msra.mxu0 %v700
        %3151 = vmatpush.msra.mxu0 %v696
        %3152 = vmatpush.msra.mxu0 %v692
        %3153 = vmatpush.msra.mxu0 %v688
        %3154 = vmatmul.f32.gmra.mxu0 %v2691
        %v3155 = vpop.f32.mrf.mxu0
        %v3156 = vadd.f32 %v3136, %v3155
        %3157 = vdwg.mxu0
        %3158 = vmatpush.msra.mxu0 %v812
        %3159 = vmatpush.msra.mxu0 %v808
        %3160 = vmatpush.msra.mxu0 %v804
        %3161 = vmatpush.msra.mxu0 %v800
        %3162 = vmatpush.msra.mxu0 %v796
        %3163 = vmatpush.msra.mxu0 %v792
        %3164 = vmatpush.msra.mxu0 %v788
        %3165 = vmatpush.msra.mxu0 %v784
        %3166 = vmatpush.msra.mxu0 %v780
        %3167 = vmatpush.msra.mxu0 %v776
        %3168 = vmatpush.msra.mxu0 %v772
        %3169 = vmatpush.msra.mxu0 %v768
        %3170 = vmatpush.msra.mxu0 %v764
        %3171 = vmatpush.msra.mxu0 %v760
        %3172 = vmatpush.msra.mxu0 %v756
        %3173 = vmatpush.msra.mxu0 %v752
        %3174 = vmatmul.f32.gmra.mxu0 %v2697
        %v3175 = vpop.f32.mrf.mxu0
        %v3176 = vadd.f32 %v3156, %v3175
        %3177 = vdwg.mxu0
        %3178 = vmatpush.msra.mxu0 %v621
        %3179 = vmatpush.msra.mxu0 %v617
        %3180 = vmatpush.msra.mxu0 %v613
        %3181 = vmatpush.msra.mxu0 %v609
        %3182 = vmatpush.msra.mxu0 %v605
        %3183 = vmatpush.msra.mxu0 %v601
        %3184 = vmatpush.msra.mxu0 %v597
        %3185 = vmatpush.msra.mxu0 %v593
        %3186 = vmatpush.msra.mxu0 %v589
        %3187 = vmatpush.msra.mxu0 %v585
        %3188 = vmatpush.msra.mxu0 %v581
        %3189 = vmatpush.msra.mxu0 %v577
        %3190 = vmatpush.msra.mxu0 %v573
        %3191 = vmatpush.msra.mxu0 %v569
        %3192 = vmatpush.msra.mxu0 %v565
        %3193 = vmatpush.msra.mxu0 %v561
        %3194 = vmatmul.f32.gmra.mxu0 %v2679
        %v3195 = vpop.f32.mrf.mxu0
        %v3196 = vadd.f32 0.0, %v3195
        %3197 = vdwg.mxu0
        %3198 = vmatpush.msra.mxu0 %v685
        %3199 = vmatpush.msra.mxu0 %v681
        %3200 = vmatpush.msra.mxu0 %v677
        %3201 = vmatpush.msra.mxu0 %v673
        %3202 = vmatpush.msra.mxu0 %v669
        %3203 = vmatpush.msra.mxu0 %v665
        %3204 = vmatpush.msra.mxu0 %v661
        %3205 = vmatpush.msra.mxu0 %v657
        %3206 = vmatpush.msra.mxu0 %v653
        %3207 = vmatpush.msra.mxu0 %v649
        %3208 = vmatpush.msra.mxu0 %v645
        %3209 = vmatpush.msra.mxu0 %v641
        %3210 = vmatpush.msra.mxu0 %v637
        %3211 = vmatpush.msra.mxu0 %v633
        %3212 = vmatpush.msra.mxu0 %v629
        %3213 = vmatpush.msra.mxu0 %v625
        %3214 = vmatmul.f32.gmra.mxu0 %v2685
        %v3215 = vpop.f32.mrf.mxu0
        %v3216 = vadd.f32 %v3196, %v3215
        %3217 = vdwg.mxu0
        %3218 = vmatpush.msra.mxu0 %v749
        %3219 = vmatpush.msra.mxu0 %v745
        %3220 = vmatpush.msra.mxu0 %v741
        %3221 = vmatpush.msra.mxu0 %v737
        %3222 = vmatpush.msra.mxu0 %v733
        %3223 = vmatpush.msra.mxu0 %v729
        %3224 = vmatpush.msra.mxu0 %v725
        %3225 = vmatpush.msra.mxu0 %v721
        %3226 = vmatpush.msra.mxu0 %v717
        %3227 = vmatpush.msra.mxu0 %v713
        %3228 = vmatpush.msra.mxu0 %v709
        %3229 = vmatpush.msra.mxu0 %v705
        %3230 = vmatpush.msra.mxu0 %v701
        %3231 = vmatpush.msra.mxu0 %v697
        %3232 = vmatpush.msra.mxu0 %v693
        %3233 = vmatpush.msra.mxu0 %v689
        %3234 = vmatmul.f32.gmra.mxu0 %v2691
        %v3235 = vpop.f32.mrf.mxu0
        %v3236 = vadd.f32 %v3216, %v3235
        %3237 = vdwg.mxu0
        %3238 = vmatpush.msra.mxu0 %v813
        %3239 = vmatpush.msra.mxu0 %v809
        %3240 = vmatpush.msra.mxu0 %v805
        %3241 = vmatpush.msra.mxu0 %v801
        %3242 = vmatpush.msra.mxu0 %v797
        %3243 = vmatpush.msra.mxu0 %v793
        %3244 = vmatpush.msra.mxu0 %v789
        %3245 = vmatpush.msra.mxu0 %v785
        %3246 = vmatpush.msra.mxu0 %v781
        %3247 = vmatpush.msra.mxu0 %v777
        %3248 = vmatpush.msra.mxu0 %v773
        %3249 = vmatpush.msra.mxu0 %v769
        %3250 = vmatpush.msra.mxu0 %v765
        %3251 = vmatpush.msra.mxu0 %v761
        %3252 = vmatpush.msra.mxu0 %v757
        %3253 = vmatpush.msra.mxu0 %v753
        %3254 = vmatmul.f32.gmra.mxu0 %v2697
        %v3255 = vpop.f32.mrf.mxu0
        %v3256 = vadd.f32 %v3236, %v3255
        %3257 = vdwg.mxu0
        %3258 = vmatpush.msra.mxu0 %v622
        %3259 = vmatpush.msra.mxu0 %v618
        %3260 = vmatpush.msra.mxu0 %v614
        %3261 = vmatpush.msra.mxu0 %v610
        %3262 = vmatpush.msra.mxu0 %v606
        %3263 = vmatpush.msra.mxu0 %v602
        %3264 = vmatpush.msra.mxu0 %v598
        %3265 = vmatpush.msra.mxu0 %v594
        %3266 = vmatpush.msra.mxu0 %v590
        %3267 = vmatpush.msra.mxu0 %v586
        %3268 = vmatpush.msra.mxu0 %v582
        %3269 = vmatpush.msra.mxu0 %v578
        %3270 = vmatpush.msra.mxu0 %v574
        %3271 = vmatpush.msra.mxu0 %v570
        %3272 = vmatpush.msra.mxu0 %v566
        %3273 = vmatpush.msra.mxu0 %v562
        %3274 = vmatmul.f32.gmra.mxu0 %v2679
        %v3275 = vpop.f32.mrf.mxu0
        %v3276 = vadd.f32 0.0, %v3275
        %3277 = vdwg.mxu0
        %3278 = vmatpush.msra.mxu0 %v686
        %3279 = vmatpush.msra.mxu0 %v682
        %3280 = vmatpush.msra.mxu0 %v678
        %3281 = vmatpush.msra.mxu0 %v674
        %3282 = vmatpush.msra.mxu0 %v670
        %3283 = vmatpush.msra.mxu0 %v666
        %3284 = vmatpush.msra.mxu0 %v662
        %3285 = vmatpush.msra.mxu0 %v658
        %3286 = vmatpush.msra.mxu0 %v654
        %3287 = vmatpush.msra.mxu0 %v650
        %3288 = vmatpush.msra.mxu0 %v646
        %3289 = vmatpush.msra.mxu0 %v642
        %3290 = vmatpush.msra.mxu0 %v638
        %3291 = vmatpush.msra.mxu0 %v634
        %3292 = vmatpush.msra.mxu0 %v630
        %3293 = vmatpush.msra.mxu0 %v626
        %3294 = vmatmul.f32.gmra.mxu0 %v2685
        %v3295 = vpop.f32.mrf.mxu0
        %v3296 = vadd.f32 %v3276, %v3295
        %3297 = vdwg.mxu0
        %3298 = vmatpush.msra.mxu0 %v750
        %3299 = vmatpush.msra.mxu0 %v746
        %3300 = vmatpush.msra.mxu0 %v742
        %3301 = vmatpush.msra.mxu0 %v738
        %3302 = vmatpush.msra.mxu0 %v734
        %3303 = vmatpush.msra.mxu0 %v730
        %3304 = vmatpush.msra.mxu0 %v726
        %3305 = vmatpush.msra.mxu0 %v722
        %3306 = vmatpush.msra.mxu0 %v718
        %3307 = vmatpush.msra.mxu0 %v714
        %3308 = vmatpush.msra.mxu0 %v710
        %3309 = vmatpush.msra.mxu0 %v706
        %3310 = vmatpush.msra.mxu0 %v702
        %3311 = vmatpush.msra.mxu0 %v698
        %3312 = vmatpush.msra.mxu0 %v694
        %3313 = vmatpush.msra.mxu0 %v690
        %3314 = vmatmul.f32.gmra.mxu0 %v2691
        %v3315 = vpop.f32.mrf.mxu0
        %v3316 = vadd.f32 %v3296, %v3315
        %3317 = vdwg.mxu0
        %3318 = vmatpush.msra.mxu0 %v814
        %3319 = vmatpush.msra.mxu0 %v810
        %3320 = vmatpush.msra.mxu0 %v806
        %3321 = vmatpush.msra.mxu0 %v802
        %3322 = vmatpush.msra.mxu0 %v798
        %3323 = vmatpush.msra.mxu0 %v794
        %3324 = vmatpush.msra.mxu0 %v790
        %3325 = vmatpush.msra.mxu0 %v786
        %3326 = vmatpush.msra.mxu0 %v782
        %3327 = vmatpush.msra.mxu0 %v778
        %3328 = vmatpush.msra.mxu0 %v774
        %3329 = vmatpush.msra.mxu0 %v770
        %3330 = vmatpush.msra.mxu0 %v766
        %3331 = vmatpush.msra.mxu0 %v762
        %3332 = vmatpush.msra.mxu0 %v758
        %3333 = vmatpush.msra.mxu0 %v754
        %3334 = vmatmul.f32.gmra.mxu0 %v2697
        %v3335 = vpop.f32.mrf.mxu0
        %v3336 = vadd.f32 %v3316, %v3335
        %3337 = vdwg.mxu0
        %v3338 = vmul.f32 %v2776, %v2776
        %v3339 = vmul.f32 %v2856, %v2856
        %v3340 = vmul.f32 %v2936, %v2936
        %v3341 = vmul.f32 %v3016, %v3016
        %v3342 = vsub.f32 %v3096, %v3338
        %v3343 = vsub.f32 %v3176, %v3339
        %v3344 = vsub.f32 %v3256, %v3340
        %v3345 = vsub.f32 %v3336, %v3341
        %v3346 = vadd.f32 %v3342, 1e-05
        %v3347 = vadd.f32 %v3343, 1e-05
        %v3348 = vadd.f32 %v3344, 1e-05
        %v3349 = vadd.f32 %v3345, 1e-05
        %v3350 = vrsqrt.pop %v3346
        %v3351 = vmul.f32 %v3350, %v3346
        %v3352 = vmul.f32 %v3351, %v3350
        %v3353 = vmul.f32 0.5, %v3352
        %v3354 = vsub.f32 1.5, %v3353
        %v3355 = vmul.f32 %v3350, %v3354
        %vm3356 = vweird.f32 %v3346
        %vm3357 = vweird.f32 %v3350
        %vm3358 = vmor %vm3356, %vm3357
        %v3359 = vsel %vm3358, %v3350, %v3355
        %v3360 = vrsqrt.pop %v3347
        %v3361 = vmul.f32 %v3360, %v3347
        %v3362 = vmul.f32 %v3361, %v3360
        %v3363 = vmul.f32 0.5, %v3362
        %v3364 = vsub.f32 1.5, %v3363
        %v3365 = vmul.f32 %v3360, %v3364
        %vm3366 = vweird.f32 %v3347
        %vm3367 = vweird.f32 %v3360
        %vm3368 = vmor %vm3366, %vm3367
        %v3369 = vsel %vm3368, %v3360, %v3365
        %v3370 = vrsqrt.pop %v3348
        %v3371 = vmul.f32 %v3370, %v3348
        %v3372 = vmul.f32 %v3371, %v3370
        %v3373 = vmul.f32 0.5, %v3372
        %v3374 = vsub.f32 1.5, %v3373
        %v3375 = vmul.f32 %v3370, %v3374
        %vm3376 = vweird.f32 %v3348
        %vm3377 = vweird.f32 %v3370
        %vm3378 = vmor %vm3376, %vm3377
        %v3379 = vsel %vm3378, %v3370, %v3375
        %v3380 = vrsqrt.pop %v3349
        %v3381 = vmul.f32 %v3380, %v3349
        %v3382 = vmul.f32 %v3381, %v3380
        %v3383 = vmul.f32 0.5, %v3382
        %v3384 = vsub.f32 1.5, %v3383
        %v3385 = vmul.f32 %v3380, %v3384
        %vm3386 = vweird.f32 %v3349
        %vm3387 = vweird.f32 %v3380
        %vm3388 = vmor %vm3386, %vm3387
        %v3389 = vsel %vm3388, %v3380, %v3385
        %v3390 = vperm.slane %v2776, 0
        %v3391 = vperm.slane %v2856, 0
        %v3392 = vperm.slane %v2936, 0
        %v3393 = vperm.slane %v3016, 0
        %v3394 = vsub.f32 %v2629, %v3390
        %v3395 = vsub.f32 %v2630, %v3391
        %v3396 = vsub.f32 %v2631, %v3392
        %v3397 = vsub.f32 %v2632, %v3393
        %v3398 = vperm.slane %v3359, 0
        %v3399 = vperm.slane %v3369, 0
        %v3400 = vperm.slane %v3379, 0
        %v3401 = vperm.slane %v3389, 0
        %v3402 = vmul.f32 %v3394, %v3398
        %v3403 = vmul.f32 %v3395, %v3399
        %v3404 = vmul.f32 %v3396, %v3400
        %v3405 = vmul.f32 %v3397, %v3401
        %v3406 = vld [vmem:[#allocation12] sm:$0xf]
        %v3408 = vperm.slane %v3406, 0
        %v3409 = vperm.slane %v3406, 1
        %v3410 = vperm.slane %v3406, 2
        %v3411 = vperm.slane %v3406, 3
        %v3416 = vmul.f32 %v3402, %v3408
        %v3417 = vmul.f32 %v3403, %v3409
        %v3418 = vmul.f32 %v3404, %v3410
        %v3419 = vmul.f32 %v3405, %v3411
        %v3420 = vld [vmem:[#allocation14] sm:$0xf]
        %v3422 = vperm.slane %v3420, 0
        %v3423 = vperm.slane %v3420, 1
        %v3424 = vperm.slane %v3420, 2
        %v3425 = vperm.slane %v3420, 3
        %v3430 = vadd.f32 %v3416, %v3422
        %v3431 = vadd.f32 %v3417, %v3423
        %v3432 = vadd.f32 %v3418, %v3424
        %v3433 = vadd.f32 %v3419, %v3425
        %v3434 = vmax.f32 %v3430, 0.0
        %v3435 = vmax.f32 %v3431, 0.0
        %v3436 = vmax.f32 %v3432, 0.0
        %v3437 = vmax.f32 %v3433, 0.0
        %v3438 = vmul.f32 %v3434, %v2634
        %v3439 = vmul.f32 %v3435, %v2635
        %v3440 = vmul.f32 %v3436, %v2636
        %v3441 = vmul.f32 %v3437, %v2637
        %v3442 = vlaneseq
        %vm3443 = vcmp.ge.s32.totalorder %v3442, 0
        %vm3444 = vcmp.lt.s32.totalorder %v3442, 512
        %vm3445 = vmand %vm3443, %vm3444
        %3446 = vst.msk [vmem:[#allocation2] ss:$8 sm:$0xf] %vm3445, 0.0
        %3447 = vst.msk [vmem:[#allocation2] ss:$8 sm:$0x0] %vm3445, 0.0
        %s3448 = scalar_lea.vmem [#allocation2], 33
        %3449 = vst.msk [vmem:[%s3448] ss:$8 sm:$0xf] %vm3445, 0.0
        %3450 = vst.msk [vmem:[%s3448] ss:$8 sm:$0x0] %vm3445, 0.0
        %v3455 = vrot.slane %v3438, 7
        %v3456 = vrot.slane %v3439, 7
        %v3457 = vrot.slane %v3440, 7
        %v3458 = vrot.slane %v3441, 7
        %3463 = vst [vmem:[#allocation2] sm:$0xfe] %v3455
        %3464 = vst [vmem:[#allocation2 + $0x8] sm:$0xfe] %v3456
        %3465 = vst [vmem:[#allocation2 + $0x10] sm:$0xfe] %v3457
        %3466 = vst [vmem:[#allocation2 + $0x18] sm:$0xfe] %v3458
        %3467 = vst [vmem:[#allocation2 + $0x20] sm:$0x1] %v3455
        %3468 = vst [vmem:[#allocation2 + $0x28] sm:$0x1] %v3456
        %3469 = vst [vmem:[#allocation2 + $0x30] sm:$0x1] %v3457
        %3470 = vst [vmem:[#allocation2 + $0x38] sm:$0x1] %v3458
        %v3471 = vld [vmem:[#allocation2] sm:$0xff]
        %v3472 = vld [vmem:[#allocation2 + $0x8] sm:$0xff]
        %v3473 = vld [vmem:[#allocation2 + $0x10] sm:$0xff]
        %v3474 = vld [vmem:[#allocation2 + $0x18] sm:$0xff]
        %v3475 = vld [vmem:[#allocation15] sm:$0xff]
        %v3476 = vld [vmem:[#allocation15 + $0x8] sm:$0xff]
        %v3477 = vld [vmem:[#allocation15 + $0x10] sm:$0xff]
        %v3478 = vld [vmem:[#allocation15 + $0x18] sm:$0xff]
        %v3479 = vld [vmem:[#allocation15 + $0x20] sm:$0xff]
        %v3480 = vld [vmem:[#allocation15 + $0x28] sm:$0xff]
        %v3481 = vld [vmem:[#allocation15 + $0x30] sm:$0xff]
        %v3482 = vld [vmem:[#allocation15 + $0x38] sm:$0xff]
        %v3483 = vld [vmem:[#allocation15 + $0x40] sm:$0xff]
        %v3484 = vld [vmem:[#allocation15 + $0x48] sm:$0xff]
        %v3485 = vld [vmem:[#allocation15 + $0x50] sm:$0xff]
        %v3486 = vld [vmem:[#allocation15 + $0x58] sm:$0xff]
        %v3487 = vld [vmem:[#allocation15 + $0x60] sm:$0xff]
        %v3488 = vld [vmem:[#allocation15 + $0x68] sm:$0xff]
        %v3489 = vld [vmem:[#allocation15 + $0x70] sm:$0xff]
        %v3490 = vld [vmem:[#allocation15 + $0x78] sm:$0xff]
        %v3491 = vld [vmem:[#allocation15 + $0x80] sm:$0xff]
        %v3492 = vld [vmem:[#allocation15 + $0x88] sm:$0xff]
        %v3493 = vld [vmem:[#allocation15 + $0x90] sm:$0xff]
        %v3494 = vld [vmem:[#allocation15 + $0x98] sm:$0xff]
        %v3495 = vld [vmem:[#allocation15 + $0xa0] sm:$0xff]
        %v3496 = vld [vmem:[#allocation15 + $0xa8] sm:$0xff]
        %v3497 = vld [vmem:[#allocation15 + $0xb0] sm:$0xff]
        %v3498 = vld [vmem:[#allocation15 + $0xb8] sm:$0xff]
        %v3499 = vld [vmem:[#allocation15 + $0xc0] sm:$0xff]
        %v3500 = vld [vmem:[#allocation15 + $0xc8] sm:$0xff]
        %v3501 = vld [vmem:[#allocation15 + $0xd0] sm:$0xff]
        %v3502 = vld [vmem:[#allocation15 + $0xd8] sm:$0xff]
        %v3503 = vld [vmem:[#allocation15 + $0xe0] sm:$0xff]
        %v3504 = vld [vmem:[#allocation15 + $0xe8] sm:$0xff]
        %v3505 = vld [vmem:[#allocation15 + $0xf0] sm:$0xff]
        %v3506 = vld [vmem:[#allocation15 + $0xf8] sm:$0xff]
        %v3507 = vld [vmem:[#allocation15 + $0x100] sm:$0xff]
        %v3508 = vld [vmem:[#allocation15 + $0x108] sm:$0xff]
        %v3509 = vld [vmem:[#allocation15 + $0x110] sm:$0xff]
        %v3510 = vld [vmem:[#allocation15 + $0x118] sm:$0xff]
        %v3511 = vld [vmem:[#allocation15 + $0x120] sm:$0xff]
        %v3512 = vld [vmem:[#allocation15 + $0x128] sm:$0xff]
        %v3513 = vld [vmem:[#allocation15 + $0x130] sm:$0xff]
        %v3514 = vld [vmem:[#allocation15 + $0x138] sm:$0xff]
        %v3515 = vld [vmem:[#allocation15 + $0x140] sm:$0xff]
        %v3516 = vld [vmem:[#allocation15 + $0x148] sm:$0xff]
        %v3517 = vld [vmem:[#allocation15 + $0x150] sm:$0xff]
        %v3518 = vld [vmem:[#allocation15 + $0x158] sm:$0xff]
        %v3519 = vld [vmem:[#allocation15 + $0x160] sm:$0xff]
        %v3520 = vld [vmem:[#allocation15 + $0x168] sm:$0xff]
        %v3521 = vld [vmem:[#allocation15 + $0x170] sm:$0xff]
        %v3522 = vld [vmem:[#allocation15 + $0x178] sm:$0xff]
        %v3523 = vld [vmem:[#allocation15 + $0x180] sm:$0xff]
        %v3524 = vld [vmem:[#allocation15 + $0x188] sm:$0xff]
        %v3525 = vld [vmem:[#allocation15 + $0x190] sm:$0xff]
        %v3526 = vld [vmem:[#allocation15 + $0x198] sm:$0xff]
        %v3527 = vld [vmem:[#allocation15 + $0x1a0] sm:$0xff]
        %v3528 = vld [vmem:[#allocation15 + $0x1a8] sm:$0xff]
        %v3529 = vld [vmem:[#allocation15 + $0x1b0] sm:$0xff]
        %v3530 = vld [vmem:[#allocation15 + $0x1b8] sm:$0xff]
        %v3531 = vld [vmem:[#allocation15 + $0x1c0] sm:$0xff]
        %v3532 = vld [vmem:[#allocation15 + $0x1c8] sm:$0xff]
        %v3533 = vld [vmem:[#allocation15 + $0x1d0] sm:$0xff]
        %v3534 = vld [vmem:[#allocation15 + $0x1d8] sm:$0xff]
        %v3535 = vld [vmem:[#allocation15 + $0x1e0] sm:$0xff]
        %v3536 = vld [vmem:[#allocation15 + $0x1e8] sm:$0xff]
        %v3537 = vld [vmem:[#allocation15 + $0x1f0] sm:$0xff]
        %v3538 = vld [vmem:[#allocation15 + $0x1f8] sm:$0xff]
        %v3539 = vld [vmem:[#allocation15 + $0x200] sm:$0xff]
        %v3540 = vld [vmem:[#allocation15 + $0x208] sm:$0xff]
        %v3541 = vld [vmem:[#allocation15 + $0x210] sm:$0xff]
        %v3542 = vld [vmem:[#allocation15 + $0x218] sm:$0xff]
        %v3543 = vld [vmem:[#allocation15 + $0x220] sm:$0xff]
        %v3544 = vld [vmem:[#allocation15 + $0x228] sm:$0xff]
        %v3545 = vld [vmem:[#allocation15 + $0x230] sm:$0xff]
        %v3546 = vld [vmem:[#allocation15 + $0x238] sm:$0xff]
        %v3547 = vld [vmem:[#allocation15 + $0x240] sm:$0xff]
        %v3548 = vld [vmem:[#allocation15 + $0x248] sm:$0xff]
        %v3549 = vld [vmem:[#allocation15 + $0x250] sm:$0xff]
        %v3550 = vld [vmem:[#allocation15 + $0x258] sm:$0xff]
        %v3551 = vld [vmem:[#allocation15 + $0x260] sm:$0xff]
        %v3552 = vld [vmem:[#allocation15 + $0x268] sm:$0xff]
        %v3553 = vld [vmem:[#allocation15 + $0x270] sm:$0xff]
        %v3554 = vld [vmem:[#allocation15 + $0x278] sm:$0xff]
        %v3555 = vld [vmem:[#allocation15 + $0x280] sm:$0xff]
        %v3556 = vld [vmem:[#allocation15 + $0x288] sm:$0xff]
        %v3557 = vld [vmem:[#allocation15 + $0x290] sm:$0xff]
        %v3558 = vld [vmem:[#allocation15 + $0x298] sm:$0xff]
        %v3559 = vld [vmem:[#allocation15 + $0x2a0] sm:$0xff]
        %v3560 = vld [vmem:[#allocation15 + $0x2a8] sm:$0xff]
        %v3561 = vld [vmem:[#allocation15 + $0x2b0] sm:$0xff]
        %v3562 = vld [vmem:[#allocation15 + $0x2b8] sm:$0xff]
        %v3563 = vld [vmem:[#allocation15 + $0x2c0] sm:$0xff]
        %v3564 = vld [vmem:[#allocation15 + $0x2c8] sm:$0xff]
        %v3565 = vld [vmem:[#allocation15 + $0x2d0] sm:$0xff]
        %v3566 = vld [vmem:[#allocation15 + $0x2d8] sm:$0xff]
        %v3567 = vld [vmem:[#allocation15 + $0x2e0] sm:$0xff]
        %v3568 = vld [vmem:[#allocation15 + $0x2e8] sm:$0xff]
        %v3569 = vld [vmem:[#allocation15 + $0x2f0] sm:$0xff]
        %v3570 = vld [vmem:[#allocation15 + $0x2f8] sm:$0xff]
        %v3571 = vld [vmem:[#allocation15 + $0x300] sm:$0xff]
        %v3572 = vld [vmem:[#allocation15 + $0x308] sm:$0xff]
        %v3573 = vld [vmem:[#allocation15 + $0x310] sm:$0xff]
        %v3574 = vld [vmem:[#allocation15 + $0x318] sm:$0xff]
        %v3575 = vld [vmem:[#allocation15 + $0x320] sm:$0xff]
        %v3576 = vld [vmem:[#allocation15 + $0x328] sm:$0xff]
        %v3577 = vld [vmem:[#allocation15 + $0x330] sm:$0xff]
        %v3578 = vld [vmem:[#allocation15 + $0x338] sm:$0xff]
        %v3579 = vld [vmem:[#allocation15 + $0x340] sm:$0xff]
        %v3580 = vld [vmem:[#allocation15 + $0x348] sm:$0xff]
        %v3581 = vld [vmem:[#allocation15 + $0x350] sm:$0xff]
        %v3582 = vld [vmem:[#allocation15 + $0x358] sm:$0xff]
        %v3583 = vld [vmem:[#allocation15 + $0x360] sm:$0xff]
        %v3584 = vld [vmem:[#allocation15 + $0x368] sm:$0xff]
        %v3585 = vld [vmem:[#allocation15 + $0x370] sm:$0xff]
        %v3586 = vld [vmem:[#allocation15 + $0x378] sm:$0xff]
        %v3587 = vld [vmem:[#allocation15 + $0x380] sm:$0xff]
        %v3588 = vld [vmem:[#allocation15 + $0x388] sm:$0xff]
        %v3589 = vld [vmem:[#allocation15 + $0x390] sm:$0xff]
        %v3590 = vld [vmem:[#allocation15 + $0x398] sm:$0xff]
        %v3591 = vld [vmem:[#allocation15 + $0x3a0] sm:$0xff]
        %v3592 = vld [vmem:[#allocation15 + $0x3a8] sm:$0xff]
        %v3593 = vld [vmem:[#allocation15 + $0x3b0] sm:$0xff]
        %v3594 = vld [vmem:[#allocation15 + $0x3b8] sm:$0xff]
        %v3595 = vld [vmem:[#allocation15 + $0x3c0] sm:$0xff]
        %v3596 = vld [vmem:[#allocation15 + $0x3c8] sm:$0xff]
        %v3597 = vld [vmem:[#allocation15 + $0x3d0] sm:$0xff]
        %v3598 = vld [vmem:[#allocation15 + $0x3d8] sm:$0xff]
        %v3599 = vld [vmem:[#allocation15 + $0x3e0] sm:$0xff]
        %v3600 = vld [vmem:[#allocation15 + $0x3e8] sm:$0xff]
        %v3601 = vld [vmem:[#allocation15 + $0x3f0] sm:$0xff]
        %v3602 = vld [vmem:[#allocation15 + $0x3f8] sm:$0xff]
        %v3603 = vld [vmem:[#allocation15 + $0x400] sm:$0xff]
        %v3604 = vld [vmem:[#allocation15 + $0x408] sm:$0xff]
        %v3605 = vld [vmem:[#allocation15 + $0x410] sm:$0xff]
        %v3606 = vld [vmem:[#allocation15 + $0x418] sm:$0xff]
        %v3607 = vld [vmem:[#allocation15 + $0x420] sm:$0xff]
        %v3608 = vld [vmem:[#allocation15 + $0x428] sm:$0xff]
        %v3609 = vld [vmem:[#allocation15 + $0x430] sm:$0xff]
        %v3610 = vld [vmem:[#allocation15 + $0x438] sm:$0xff]
        %v3611 = vld [vmem:[#allocation15 + $0x440] sm:$0xff]
        %v3612 = vld [vmem:[#allocation15 + $0x448] sm:$0xff]
        %v3613 = vld [vmem:[#allocation15 + $0x450] sm:$0xff]
        %v3614 = vld [vmem:[#allocation15 + $0x458] sm:$0xff]
        %v3615 = vld [vmem:[#allocation15 + $0x460] sm:$0xff]
        %v3616 = vld [vmem:[#allocation15 + $0x468] sm:$0xff]
        %v3617 = vld [vmem:[#allocation15 + $0x470] sm:$0xff]
        %v3618 = vld [vmem:[#allocation15 + $0x478] sm:$0xff]
        %v3619 = vld [vmem:[#allocation15 + $0x480] sm:$0xff]
        %v3620 = vld [vmem:[#allocation15 + $0x488] sm:$0xff]
        %v3621 = vld [vmem:[#allocation15 + $0x490] sm:$0xff]
        %v3622 = vld [vmem:[#allocation15 + $0x498] sm:$0xff]
        %v3623 = vld [vmem:[#allocation15 + $0x4a0] sm:$0xff]
        %v3624 = vld [vmem:[#allocation15 + $0x4a8] sm:$0xff]
        %v3625 = vld [vmem:[#allocation15 + $0x4b0] sm:$0xff]
        %v3626 = vld [vmem:[#allocation15 + $0x4b8] sm:$0xff]
        %v3627 = vld [vmem:[#allocation15 + $0x4c0] sm:$0xff]
        %v3628 = vld [vmem:[#allocation15 + $0x4c8] sm:$0xff]
        %v3629 = vld [vmem:[#allocation15 + $0x4d0] sm:$0xff]
        %v3630 = vld [vmem:[#allocation15 + $0x4d8] sm:$0xff]
        %v3631 = vld [vmem:[#allocation15 + $0x4e0] sm:$0xff]
        %v3632 = vld [vmem:[#allocation15 + $0x4e8] sm:$0xff]
        %v3633 = vld [vmem:[#allocation15 + $0x4f0] sm:$0xff]
        %v3634 = vld [vmem:[#allocation15 + $0x4f8] sm:$0xff]
        %v3635 = vld [vmem:[#allocation15 + $0x500] sm:$0xff]
        %v3636 = vld [vmem:[#allocation15 + $0x508] sm:$0xff]
        %v3637 = vld [vmem:[#allocation15 + $0x510] sm:$0xff]
        %v3638 = vld [vmem:[#allocation15 + $0x518] sm:$0xff]
        %v3639 = vld [vmem:[#allocation15 + $0x520] sm:$0xff]
        %v3640 = vld [vmem:[#allocation15 + $0x528] sm:$0xff]
        %v3641 = vld [vmem:[#allocation15 + $0x530] sm:$0xff]
        %v3642 = vld [vmem:[#allocation15 + $0x538] sm:$0xff]
        %v3643 = vld [vmem:[#allocation15 + $0x540] sm:$0xff]
        %v3644 = vld [vmem:[#allocation15 + $0x548] sm:$0xff]
        %v3645 = vld [vmem:[#allocation15 + $0x550] sm:$0xff]
        %v3646 = vld [vmem:[#allocation15 + $0x558] sm:$0xff]
        %v3647 = vld [vmem:[#allocation15 + $0x560] sm:$0xff]
        %v3648 = vld [vmem:[#allocation15 + $0x568] sm:$0xff]
        %v3649 = vld [vmem:[#allocation15 + $0x570] sm:$0xff]
        %v3650 = vld [vmem:[#allocation15 + $0x578] sm:$0xff]
        %v3651 = vld [vmem:[#allocation15 + $0x580] sm:$0xff]
        %v3652 = vld [vmem:[#allocation15 + $0x588] sm:$0xff]
        %v3653 = vld [vmem:[#allocation15 + $0x590] sm:$0xff]
        %v3654 = vld [vmem:[#allocation15 + $0x598] sm:$0xff]
        %v3655 = vld [vmem:[#allocation15 + $0x5a0] sm:$0xff]
        %v3656 = vld [vmem:[#allocation15 + $0x5a8] sm:$0xff]
        %v3657 = vld [vmem:[#allocation15 + $0x5b0] sm:$0xff]
        %v3658 = vld [vmem:[#allocation15 + $0x5b8] sm:$0xff]
        %v3659 = vld [vmem:[#allocation15 + $0x5c0] sm:$0xff]
        %v3660 = vld [vmem:[#allocation15 + $0x5c8] sm:$0xff]
        %v3661 = vld [vmem:[#allocation15 + $0x5d0] sm:$0xff]
        %v3662 = vld [vmem:[#allocation15 + $0x5d8] sm:$0xff]
        %v3663 = vld [vmem:[#allocation15 + $0x5e0] sm:$0xff]
        %v3664 = vld [vmem:[#allocation15 + $0x5e8] sm:$0xff]
        %v3665 = vld [vmem:[#allocation15 + $0x5f0] sm:$0xff]
        %v3666 = vld [vmem:[#allocation15 + $0x5f8] sm:$0xff]
        %v3667 = vld [vmem:[#allocation15 + $0x600] sm:$0xff]
        %v3668 = vld [vmem:[#allocation15 + $0x608] sm:$0xff]
        %v3669 = vld [vmem:[#allocation15 + $0x610] sm:$0xff]
        %v3670 = vld [vmem:[#allocation15 + $0x618] sm:$0xff]
        %v3671 = vld [vmem:[#allocation15 + $0x620] sm:$0xff]
        %v3672 = vld [vmem:[#allocation15 + $0x628] sm:$0xff]
        %v3673 = vld [vmem:[#allocation15 + $0x630] sm:$0xff]
        %v3674 = vld [vmem:[#allocation15 + $0x638] sm:$0xff]
        %v3675 = vld [vmem:[#allocation15 + $0x640] sm:$0xff]
        %v3676 = vld [vmem:[#allocation15 + $0x648] sm:$0xff]
        %v3677 = vld [vmem:[#allocation15 + $0x650] sm:$0xff]
        %v3678 = vld [vmem:[#allocation15 + $0x658] sm:$0xff]
        %v3679 = vld [vmem:[#allocation15 + $0x660] sm:$0xff]
        %v3680 = vld [vmem:[#allocation15 + $0x668] sm:$0xff]
        %v3681 = vld [vmem:[#allocation15 + $0x670] sm:$0xff]
        %v3682 = vld [vmem:[#allocation15 + $0x678] sm:$0xff]
        %v3683 = vld [vmem:[#allocation15 + $0x680] sm:$0xff]
        %v3684 = vld [vmem:[#allocation15 + $0x688] sm:$0xff]
        %v3685 = vld [vmem:[#allocation15 + $0x690] sm:$0xff]
        %v3686 = vld [vmem:[#allocation15 + $0x698] sm:$0xff]
        %v3687 = vld [vmem:[#allocation15 + $0x6a0] sm:$0xff]
        %v3688 = vld [vmem:[#allocation15 + $0x6a8] sm:$0xff]
        %v3689 = vld [vmem:[#allocation15 + $0x6b0] sm:$0xff]
        %v3690 = vld [vmem:[#allocation15 + $0x6b8] sm:$0xff]
        %v3691 = vld [vmem:[#allocation15 + $0x6c0] sm:$0xff]
        %v3692 = vld [vmem:[#allocation15 + $0x6c8] sm:$0xff]
        %v3693 = vld [vmem:[#allocation15 + $0x6d0] sm:$0xff]
        %v3694 = vld [vmem:[#allocation15 + $0x6d8] sm:$0xff]
        %v3695 = vld [vmem:[#allocation15 + $0x6e0] sm:$0xff]
        %v3696 = vld [vmem:[#allocation15 + $0x6e8] sm:$0xff]
        %v3697 = vld [vmem:[#allocation15 + $0x6f0] sm:$0xff]
        %v3698 = vld [vmem:[#allocation15 + $0x6f8] sm:$0xff]
        %v3699 = vld [vmem:[#allocation15 + $0x700] sm:$0xff]
        %v3700 = vld [vmem:[#allocation15 + $0x708] sm:$0xff]
        %v3701 = vld [vmem:[#allocation15 + $0x710] sm:$0xff]
        %v3702 = vld [vmem:[#allocation15 + $0x718] sm:$0xff]
        %v3703 = vld [vmem:[#allocation15 + $0x720] sm:$0xff]
        %v3704 = vld [vmem:[#allocation15 + $0x728] sm:$0xff]
        %v3705 = vld [vmem:[#allocation15 + $0x730] sm:$0xff]
        %v3706 = vld [vmem:[#allocation15 + $0x738] sm:$0xff]
        %v3707 = vld [vmem:[#allocation15 + $0x740] sm:$0xff]
        %v3708 = vld [vmem:[#allocation15 + $0x748] sm:$0xff]
        %v3709 = vld [vmem:[#allocation15 + $0x750] sm:$0xff]
        %v3710 = vld [vmem:[#allocation15 + $0x758] sm:$0xff]
        %v3711 = vld [vmem:[#allocation15 + $0x760] sm:$0xff]
        %v3712 = vld [vmem:[#allocation15 + $0x768] sm:$0xff]
        %v3713 = vld [vmem:[#allocation15 + $0x770] sm:$0xff]
        %v3714 = vld [vmem:[#allocation15 + $0x778] sm:$0xff]
        %v3715 = vld [vmem:[#allocation15 + $0x780] sm:$0xff]
        %v3716 = vld [vmem:[#allocation15 + $0x788] sm:$0xff]
        %v3717 = vld [vmem:[#allocation15 + $0x790] sm:$0xff]
        %v3718 = vld [vmem:[#allocation15 + $0x798] sm:$0xff]
        %v3719 = vld [vmem:[#allocation15 + $0x7a0] sm:$0xff]
        %v3720 = vld [vmem:[#allocation15 + $0x7a8] sm:$0xff]
        %v3721 = vld [vmem:[#allocation15 + $0x7b0] sm:$0xff]
        %v3722 = vld [vmem:[#allocation15 + $0x7b8] sm:$0xff]
        %v3723 = vld [vmem:[#allocation15 + $0x7c0] sm:$0xff]
        %v3724 = vld [vmem:[#allocation15 + $0x7c8] sm:$0xff]
        %v3725 = vld [vmem:[#allocation15 + $0x7d0] sm:$0xff]
        %v3726 = vld [vmem:[#allocation15 + $0x7d8] sm:$0xff]
        %v3727 = vld [vmem:[#allocation15 + $0x7e0] sm:$0xff]
        %v3728 = vld [vmem:[#allocation15 + $0x7e8] sm:$0xff]
        %v3729 = vld [vmem:[#allocation15 + $0x7f0] sm:$0xff]
        %v3730 = vld [vmem:[#allocation15 + $0x7f8] sm:$0xff]
        %v3731 = vld [vmem:[#allocation2] sm:$0xfe]
        %v3732 = vld [vmem:[#allocation2 + $0x8] sm:$0xfe]
        %v3733 = vld [vmem:[#allocation2 + $0x10] sm:$0xfe]
        %v3734 = vld [vmem:[#allocation2 + $0x18] sm:$0xfe]
        %v3735 = vld [vmem:[#allocation2 + $0x20] sm:$0x1]
        %v3736 = vld [vmem:[#allocation2 + $0x28] sm:$0x1]
        %v3737 = vld [vmem:[#allocation2 + $0x30] sm:$0x1]
        %v3738 = vld [vmem:[#allocation2 + $0x38] sm:$0x1]
        %s3739 = scalar_lea.vmem [#allocation15], 2048
        %v3740 = vld [vmem:[%s3739] sm:$0xff]
        %v3741 = vld [vmem:[%s3739 + $0x8] sm:$0xff]
        %v3742 = vld [vmem:[%s3739 + $0x10] sm:$0xff]
        %v3743 = vld [vmem:[%s3739 + $0x18] sm:$0xff]
        %v3744 = vld [vmem:[%s3739 + $0x20] sm:$0xff]
        %v3745 = vld [vmem:[%s3739 + $0x28] sm:$0xff]
        %v3746 = vld [vmem:[%s3739 + $0x30] sm:$0xff]
        %v3747 = vld [vmem:[%s3739 + $0x38] sm:$0xff]
        %v3748 = vld [vmem:[%s3739 + $0x40] sm:$0xff]
        %v3749 = vld [vmem:[%s3739 + $0x48] sm:$0xff]
        %v3750 = vld [vmem:[%s3739 + $0x50] sm:$0xff]
        %v3751 = vld [vmem:[%s3739 + $0x58] sm:$0xff]
        %v3752 = vld [vmem:[%s3739 + $0x60] sm:$0xff]
        %v3753 = vld [vmem:[%s3739 + $0x68] sm:$0xff]
        %v3754 = vld [vmem:[%s3739 + $0x70] sm:$0xff]
        %v3755 = vld [vmem:[%s3739 + $0x78] sm:$0xff]
        %v3756 = vld [vmem:[%s3739 + $0x80] sm:$0xff]
        %v3757 = vld [vmem:[%s3739 + $0x88] sm:$0xff]
        %v3758 = vld [vmem:[%s3739 + $0x90] sm:$0xff]
        %v3759 = vld [vmem:[%s3739 + $0x98] sm:$0xff]
        %v3760 = vld [vmem:[%s3739 + $0xa0] sm:$0xff]
        %v3761 = vld [vmem:[%s3739 + $0xa8] sm:$0xff]
        %v3762 = vld [vmem:[%s3739 + $0xb0] sm:$0xff]
        %v3763 = vld [vmem:[%s3739 + $0xb8] sm:$0xff]
        %v3764 = vld [vmem:[%s3739 + $0xc0] sm:$0xff]
        %v3765 = vld [vmem:[%s3739 + $0xc8] sm:$0xff]
        %v3766 = vld [vmem:[%s3739 + $0xd0] sm:$0xff]
        %v3767 = vld [vmem:[%s3739 + $0xd8] sm:$0xff]
        %v3768 = vld [vmem:[%s3739 + $0xe0] sm:$0xff]
        %v3769 = vld [vmem:[%s3739 + $0xe8] sm:$0xff]
        %v3770 = vld [vmem:[%s3739 + $0xf0] sm:$0xff]
        %v3771 = vld [vmem:[%s3739 + $0xf8] sm:$0xff]
        %v3772 = vld [vmem:[%s3739 + $0x100] sm:$0xff]
        %v3773 = vld [vmem:[%s3739 + $0x108] sm:$0xff]
        %v3774 = vld [vmem:[%s3739 + $0x110] sm:$0xff]
        %v3775 = vld [vmem:[%s3739 + $0x118] sm:$0xff]
        %v3776 = vld [vmem:[%s3739 + $0x120] sm:$0xff]
        %v3777 = vld [vmem:[%s3739 + $0x128] sm:$0xff]
        %v3778 = vld [vmem:[%s3739 + $0x130] sm:$0xff]
        %v3779 = vld [vmem:[%s3739 + $0x138] sm:$0xff]
        %v3780 = vld [vmem:[%s3739 + $0x140] sm:$0xff]
        %v3781 = vld [vmem:[%s3739 + $0x148] sm:$0xff]
        %v3782 = vld [vmem:[%s3739 + $0x150] sm:$0xff]
        %v3783 = vld [vmem:[%s3739 + $0x158] sm:$0xff]
        %v3784 = vld [vmem:[%s3739 + $0x160] sm:$0xff]
        %v3785 = vld [vmem:[%s3739 + $0x168] sm:$0xff]
        %v3786 = vld [vmem:[%s3739 + $0x170] sm:$0xff]
        %v3787 = vld [vmem:[%s3739 + $0x178] sm:$0xff]
        %v3788 = vld [vmem:[%s3739 + $0x180] sm:$0xff]
        %v3789 = vld [vmem:[%s3739 + $0x188] sm:$0xff]
        %v3790 = vld [vmem:[%s3739 + $0x190] sm:$0xff]
        %v3791 = vld [vmem:[%s3739 + $0x198] sm:$0xff]
        %v3792 = vld [vmem:[%s3739 + $0x1a0] sm:$0xff]
        %v3793 = vld [vmem:[%s3739 + $0x1a8] sm:$0xff]
        %v3794 = vld [vmem:[%s3739 + $0x1b0] sm:$0xff]
        %v3795 = vld [vmem:[%s3739 + $0x1b8] sm:$0xff]
        %v3796 = vld [vmem:[%s3739 + $0x1c0] sm:$0xff]
        %v3797 = vld [vmem:[%s3739 + $0x1c8] sm:$0xff]
        %v3798 = vld [vmem:[%s3739 + $0x1d0] sm:$0xff]
        %v3799 = vld [vmem:[%s3739 + $0x1d8] sm:$0xff]
        %v3800 = vld [vmem:[%s3739 + $0x1e0] sm:$0xff]
        %v3801 = vld [vmem:[%s3739 + $0x1e8] sm:$0xff]
        %v3802 = vld [vmem:[%s3739 + $0x1f0] sm:$0xff]
        %v3803 = vld [vmem:[%s3739 + $0x1f8] sm:$0xff]
        %v3804 = vld [vmem:[%s3739 + $0x200] sm:$0xff]
        %v3805 = vld [vmem:[%s3739 + $0x208] sm:$0xff]
        %v3806 = vld [vmem:[%s3739 + $0x210] sm:$0xff]
        %v3807 = vld [vmem:[%s3739 + $0x218] sm:$0xff]
        %v3808 = vld [vmem:[%s3739 + $0x220] sm:$0xff]
        %v3809 = vld [vmem:[%s3739 + $0x228] sm:$0xff]
        %v3810 = vld [vmem:[%s3739 + $0x230] sm:$0xff]
        %v3811 = vld [vmem:[%s3739 + $0x238] sm:$0xff]
        %v3812 = vld [vmem:[%s3739 + $0x240] sm:$0xff]
        %v3813 = vld [vmem:[%s3739 + $0x248] sm:$0xff]
        %v3814 = vld [vmem:[%s3739 + $0x250] sm:$0xff]
        %v3815 = vld [vmem:[%s3739 + $0x258] sm:$0xff]
        %v3816 = vld [vmem:[%s3739 + $0x260] sm:$0xff]
        %v3817 = vld [vmem:[%s3739 + $0x268] sm:$0xff]
        %v3818 = vld [vmem:[%s3739 + $0x270] sm:$0xff]
        %v3819 = vld [vmem:[%s3739 + $0x278] sm:$0xff]
        %v3820 = vld [vmem:[%s3739 + $0x280] sm:$0xff]
        %v3821 = vld [vmem:[%s3739 + $0x288] sm:$0xff]
        %v3822 = vld [vmem:[%s3739 + $0x290] sm:$0xff]
        %v3823 = vld [vmem:[%s3739 + $0x298] sm:$0xff]
        %v3824 = vld [vmem:[%s3739 + $0x2a0] sm:$0xff]
        %v3825 = vld [vmem:[%s3739 + $0x2a8] sm:$0xff]
        %v3826 = vld [vmem:[%s3739 + $0x2b0] sm:$0xff]
        %v3827 = vld [vmem:[%s3739 + $0x2b8] sm:$0xff]
        %v3828 = vld [vmem:[%s3739 + $0x2c0] sm:$0xff]
        %v3829 = vld [vmem:[%s3739 + $0x2c8] sm:$0xff]
        %v3830 = vld [vmem:[%s3739 + $0x2d0] sm:$0xff]
        %v3831 = vld [vmem:[%s3739 + $0x2d8] sm:$0xff]
        %v3832 = vld [vmem:[%s3739 + $0x2e0] sm:$0xff]
        %v3833 = vld [vmem:[%s3739 + $0x2e8] sm:$0xff]
        %v3834 = vld [vmem:[%s3739 + $0x2f0] sm:$0xff]
        %v3835 = vld [vmem:[%s3739 + $0x2f8] sm:$0xff]
        %v3836 = vld [vmem:[%s3739 + $0x300] sm:$0xff]
        %v3837 = vld [vmem:[%s3739 + $0x308] sm:$0xff]
        %v3838 = vld [vmem:[%s3739 + $0x310] sm:$0xff]
        %v3839 = vld [vmem:[%s3739 + $0x318] sm:$0xff]
        %v3840 = vld [vmem:[%s3739 + $0x320] sm:$0xff]
        %v3841 = vld [vmem:[%s3739 + $0x328] sm:$0xff]
        %v3842 = vld [vmem:[%s3739 + $0x330] sm:$0xff]
        %v3843 = vld [vmem:[%s3739 + $0x338] sm:$0xff]
        %v3844 = vld [vmem:[%s3739 + $0x340] sm:$0xff]
        %v3845 = vld [vmem:[%s3739 + $0x348] sm:$0xff]
        %v3846 = vld [vmem:[%s3739 + $0x350] sm:$0xff]
        %v3847 = vld [vmem:[%s3739 + $0x358] sm:$0xff]
        %v3848 = vld [vmem:[%s3739 + $0x360] sm:$0xff]
        %v3849 = vld [vmem:[%s3739 + $0x368] sm:$0xff]
        %v3850 = vld [vmem:[%s3739 + $0x370] sm:$0xff]
        %v3851 = vld [vmem:[%s3739 + $0x378] sm:$0xff]
        %v3852 = vld [vmem:[%s3739 + $0x380] sm:$0xff]
        %v3853 = vld [vmem:[%s3739 + $0x388] sm:$0xff]
        %v3854 = vld [vmem:[%s3739 + $0x390] sm:$0xff]
        %v3855 = vld [vmem:[%s3739 + $0x398] sm:$0xff]
        %v3856 = vld [vmem:[%s3739 + $0x3a0] sm:$0xff]
        %v3857 = vld [vmem:[%s3739 + $0x3a8] sm:$0xff]
        %v3858 = vld [vmem:[%s3739 + $0x3b0] sm:$0xff]
        %v3859 = vld [vmem:[%s3739 + $0x3b8] sm:$0xff]
        %v3860 = vld [vmem:[%s3739 + $0x3c0] sm:$0xff]
        %v3861 = vld [vmem:[%s3739 + $0x3c8] sm:$0xff]
        %v3862 = vld [vmem:[%s3739 + $0x3d0] sm:$0xff]
        %v3863 = vld [vmem:[%s3739 + $0x3d8] sm:$0xff]
        %v3864 = vld [vmem:[%s3739 + $0x3e0] sm:$0xff]
        %v3865 = vld [vmem:[%s3739 + $0x3e8] sm:$0xff]
        %v3866 = vld [vmem:[%s3739 + $0x3f0] sm:$0xff]
        %v3867 = vld [vmem:[%s3739 + $0x3f8] sm:$0xff]
        %v3868 = vld [vmem:[%s3739 + $0x400] sm:$0xff]
        %v3869 = vld [vmem:[%s3739 + $0x408] sm:$0xff]
        %v3870 = vld [vmem:[%s3739 + $0x410] sm:$0xff]
        %v3871 = vld [vmem:[%s3739 + $0x418] sm:$0xff]
        %v3872 = vld [vmem:[%s3739 + $0x420] sm:$0xff]
        %v3873 = vld [vmem:[%s3739 + $0x428] sm:$0xff]
        %v3874 = vld [vmem:[%s3739 + $0x430] sm:$0xff]
        %v3875 = vld [vmem:[%s3739 + $0x438] sm:$0xff]
        %v3876 = vld [vmem:[%s3739 + $0x440] sm:$0xff]
        %v3877 = vld [vmem:[%s3739 + $0x448] sm:$0xff]
        %v3878 = vld [vmem:[%s3739 + $0x450] sm:$0xff]
        %v3879 = vld [vmem:[%s3739 + $0x458] sm:$0xff]
        %v3880 = vld [vmem:[%s3739 + $0x460] sm:$0xff]
        %v3881 = vld [vmem:[%s3739 + $0x468] sm:$0xff]
        %v3882 = vld [vmem:[%s3739 + $0x470] sm:$0xff]
        %v3883 = vld [vmem:[%s3739 + $0x478] sm:$0xff]
        %v3884 = vld [vmem:[%s3739 + $0x480] sm:$0xff]
        %v3885 = vld [vmem:[%s3739 + $0x488] sm:$0xff]
        %v3886 = vld [vmem:[%s3739 + $0x490] sm:$0xff]
        %v3887 = vld [vmem:[%s3739 + $0x498] sm:$0xff]
        %v3888 = vld [vmem:[%s3739 + $0x4a0] sm:$0xff]
        %v3889 = vld [vmem:[%s3739 + $0x4a8] sm:$0xff]
        %v3890 = vld [vmem:[%s3739 + $0x4b0] sm:$0xff]
        %v3891 = vld [vmem:[%s3739 + $0x4b8] sm:$0xff]
        %v3892 = vld [vmem:[%s3739 + $0x4c0] sm:$0xff]
        %v3893 = vld [vmem:[%s3739 + $0x4c8] sm:$0xff]
        %v3894 = vld [vmem:[%s3739 + $0x4d0] sm:$0xff]
        %v3895 = vld [vmem:[%s3739 + $0x4d8] sm:$0xff]
        %v3896 = vld [vmem:[%s3739 + $0x4e0] sm:$0xff]
        %v3897 = vld [vmem:[%s3739 + $0x4e8] sm:$0xff]
        %v3898 = vld [vmem:[%s3739 + $0x4f0] sm:$0xff]
        %v3899 = vld [vmem:[%s3739 + $0x4f8] sm:$0xff]
        %v3900 = vld [vmem:[%s3739 + $0x500] sm:$0xff]
        %v3901 = vld [vmem:[%s3739 + $0x508] sm:$0xff]
        %v3902 = vld [vmem:[%s3739 + $0x510] sm:$0xff]
        %v3903 = vld [vmem:[%s3739 + $0x518] sm:$0xff]
        %v3904 = vld [vmem:[%s3739 + $0x520] sm:$0xff]
        %v3905 = vld [vmem:[%s3739 + $0x528] sm:$0xff]
        %v3906 = vld [vmem:[%s3739 + $0x530] sm:$0xff]
        %v3907 = vld [vmem:[%s3739 + $0x538] sm:$0xff]
        %v3908 = vld [vmem:[%s3739 + $0x540] sm:$0xff]
        %v3909 = vld [vmem:[%s3739 + $0x548] sm:$0xff]
        %v3910 = vld [vmem:[%s3739 + $0x550] sm:$0xff]
        %v3911 = vld [vmem:[%s3739 + $0x558] sm:$0xff]
        %v3912 = vld [vmem:[%s3739 + $0x560] sm:$0xff]
        %v3913 = vld [vmem:[%s3739 + $0x568] sm:$0xff]
        %v3914 = vld [vmem:[%s3739 + $0x570] sm:$0xff]
        %v3915 = vld [vmem:[%s3739 + $0x578] sm:$0xff]
        %v3916 = vld [vmem:[%s3739 + $0x580] sm:$0xff]
        %v3917 = vld [vmem:[%s3739 + $0x588] sm:$0xff]
        %v3918 = vld [vmem:[%s3739 + $0x590] sm:$0xff]
        %v3919 = vld [vmem:[%s3739 + $0x598] sm:$0xff]
        %v3920 = vld [vmem:[%s3739 + $0x5a0] sm:$0xff]
        %v3921 = vld [vmem:[%s3739 + $0x5a8] sm:$0xff]
        %v3922 = vld [vmem:[%s3739 + $0x5b0] sm:$0xff]
        %v3923 = vld [vmem:[%s3739 + $0x5b8] sm:$0xff]
        %v3924 = vld [vmem:[%s3739 + $0x5c0] sm:$0xff]
        %v3925 = vld [vmem:[%s3739 + $0x5c8] sm:$0xff]
        %v3926 = vld [vmem:[%s3739 + $0x5d0] sm:$0xff]
        %v3927 = vld [vmem:[%s3739 + $0x5d8] sm:$0xff]
        %v3928 = vld [vmem:[%s3739 + $0x5e0] sm:$0xff]
        %v3929 = vld [vmem:[%s3739 + $0x5e8] sm:$0xff]
        %v3930 = vld [vmem:[%s3739 + $0x5f0] sm:$0xff]
        %v3931 = vld [vmem:[%s3739 + $0x5f8] sm:$0xff]
        %v3932 = vld [vmem:[%s3739 + $0x600] sm:$0xff]
        %v3933 = vld [vmem:[%s3739 + $0x608] sm:$0xff]
        %v3934 = vld [vmem:[%s3739 + $0x610] sm:$0xff]
        %v3935 = vld [vmem:[%s3739 + $0x618] sm:$0xff]
        %v3936 = vld [vmem:[%s3739 + $0x620] sm:$0xff]
        %v3937 = vld [vmem:[%s3739 + $0x628] sm:$0xff]
        %v3938 = vld [vmem:[%s3739 + $0x630] sm:$0xff]
        %v3939 = vld [vmem:[%s3739 + $0x638] sm:$0xff]
        %v3940 = vld [vmem:[%s3739 + $0x640] sm:$0xff]
        %v3941 = vld [vmem:[%s3739 + $0x648] sm:$0xff]
        %v3942 = vld [vmem:[%s3739 + $0x650] sm:$0xff]
        %v3943 = vld [vmem:[%s3739 + $0x658] sm:$0xff]
        %v3944 = vld [vmem:[%s3739 + $0x660] sm:$0xff]
        %v3945 = vld [vmem:[%s3739 + $0x668] sm:$0xff]
        %v3946 = vld [vmem:[%s3739 + $0x670] sm:$0xff]
        %v3947 = vld [vmem:[%s3739 + $0x678] sm:$0xff]
        %v3948 = vld [vmem:[%s3739 + $0x680] sm:$0xff]
        %v3949 = vld [vmem:[%s3739 + $0x688] sm:$0xff]
        %v3950 = vld [vmem:[%s3739 + $0x690] sm:$0xff]
        %v3951 = vld [vmem:[%s3739 + $0x698] sm:$0xff]
        %v3952 = vld [vmem:[%s3739 + $0x6a0] sm:$0xff]
        %v3953 = vld [vmem:[%s3739 + $0x6a8] sm:$0xff]
        %v3954 = vld [vmem:[%s3739 + $0x6b0] sm:$0xff]
        %v3955 = vld [vmem:[%s3739 + $0x6b8] sm:$0xff]
        %v3956 = vld [vmem:[%s3739 + $0x6c0] sm:$0xff]
        %v3957 = vld [vmem:[%s3739 + $0x6c8] sm:$0xff]
        %v3958 = vld [vmem:[%s3739 + $0x6d0] sm:$0xff]
        %v3959 = vld [vmem:[%s3739 + $0x6d8] sm:$0xff]
        %v3960 = vld [vmem:[%s3739 + $0x6e0] sm:$0xff]
        %v3961 = vld [vmem:[%s3739 + $0x6e8] sm:$0xff]
        %v3962 = vld [vmem:[%s3739 + $0x6f0] sm:$0xff]
        %v3963 = vld [vmem:[%s3739 + $0x6f8] sm:$0xff]
        %v3964 = vld [vmem:[%s3739 + $0x700] sm:$0xff]
        %v3965 = vld [vmem:[%s3739 + $0x708] sm:$0xff]
        %v3966 = vld [vmem:[%s3739 + $0x710] sm:$0xff]
        %v3967 = vld [vmem:[%s3739 + $0x718] sm:$0xff]
        %v3968 = vld [vmem:[%s3739 + $0x720] sm:$0xff]
        %v3969 = vld [vmem:[%s3739 + $0x728] sm:$0xff]
        %v3970 = vld [vmem:[%s3739 + $0x730] sm:$0xff]
        %v3971 = vld [vmem:[%s3739 + $0x738] sm:$0xff]
        %v3972 = vld [vmem:[%s3739 + $0x740] sm:$0xff]
        %v3973 = vld [vmem:[%s3739 + $0x748] sm:$0xff]
        %v3974 = vld [vmem:[%s3739 + $0x750] sm:$0xff]
        %v3975 = vld [vmem:[%s3739 + $0x758] sm:$0xff]
        %v3976 = vld [vmem:[%s3739 + $0x760] sm:$0xff]
        %v3977 = vld [vmem:[%s3739 + $0x768] sm:$0xff]
        %v3978 = vld [vmem:[%s3739 + $0x770] sm:$0xff]
        %v3979 = vld [vmem:[%s3739 + $0x778] sm:$0xff]
        %v3980 = vld [vmem:[%s3739 + $0x780] sm:$0xff]
        %v3981 = vld [vmem:[%s3739 + $0x788] sm:$0xff]
        %v3982 = vld [vmem:[%s3739 + $0x790] sm:$0xff]
        %v3983 = vld [vmem:[%s3739 + $0x798] sm:$0xff]
        %v3984 = vld [vmem:[%s3739 + $0x7a0] sm:$0xff]
        %v3985 = vld [vmem:[%s3739 + $0x7a8] sm:$0xff]
        %v3986 = vld [vmem:[%s3739 + $0x7b0] sm:$0xff]
        %v3987 = vld [vmem:[%s3739 + $0x7b8] sm:$0xff]
        %v3988 = vld [vmem:[%s3739 + $0x7c0] sm:$0xff]
        %v3989 = vld [vmem:[%s3739 + $0x7c8] sm:$0xff]
        %v3990 = vld [vmem:[%s3739 + $0x7d0] sm:$0xff]
        %v3991 = vld [vmem:[%s3739 + $0x7d8] sm:$0xff]
        %v3992 = vld [vmem:[%s3739 + $0x7e0] sm:$0xff]
        %v3993 = vld [vmem:[%s3739 + $0x7e8] sm:$0xff]
        %v3994 = vld [vmem:[%s3739 + $0x7f0] sm:$0xff]
        %v3995 = vld [vmem:[%s3739 + $0x7f8] sm:$0xff]
        %v4004 = vrot.slane %v3731, 1
        %v4005 = vrot.slane %v3735, 1
        %v4006 = vsel %vm1348, %v4004, %v4005
        %v4007 = vrot.slane %v3732, 1
        %v4008 = vrot.slane %v3736, 1
        %v4009 = vsel %vm1348, %v4007, %v4008
        %v4010 = vrot.slane %v3733, 1
        %v4011 = vrot.slane %v3737, 1
        %v4012 = vsel %vm1348, %v4010, %v4011
        %v4013 = vrot.slane %v3734, 1
        %v4014 = vrot.slane %v3738, 1
        %v4015 = vsel %vm1348, %v4013, %v4014
        %4020 = vmatpush.msra.mxu0 %v3800
        %4021 = vmatpush.msra.mxu0 %v3796
        %4022 = vmatpush.msra.mxu0 %v3792
        %4023 = vmatpush.msra.mxu0 %v3788
        %4024 = vmatpush.msra.mxu0 %v3784
        %4025 = vmatpush.msra.mxu0 %v3780
        %4026 = vmatpush.msra.mxu0 %v3776
        %4027 = vmatpush.msra.mxu0 %v3772
        %4028 = vmatpush.msra.mxu0 %v3768
        %4029 = vmatpush.msra.mxu0 %v3764
        %4030 = vmatpush.msra.mxu0 %v3760
        %4031 = vmatpush.msra.mxu0 %v3756
        %4032 = vmatpush.msra.mxu0 %v3752
        %4033 = vmatpush.msra.mxu0 %v3748
        %4034 = vmatpush.msra.mxu0 %v3744
        %4035 = vmatpush.msra.mxu0 %v3740
        %4036 = vmatmul.f32.gmra.mxu0 %v4006
        %v4037 = vpop.f32.mrf.mxu0
        %v4038 = vadd.f32 0.0, %v4037
        %4039 = vdwg.mxu0
        %4040 = vmatpush.msra.mxu0 %v3864
        %4041 = vmatpush.msra.mxu0 %v3860
        %4042 = vmatpush.msra.mxu0 %v3856
        %4043 = vmatpush.msra.mxu0 %v3852
        %4044 = vmatpush.msra.mxu0 %v3848
        %4045 = vmatpush.msra.mxu0 %v3844
        %4046 = vmatpush.msra.mxu0 %v3840
        %4047 = vmatpush.msra.mxu0 %v3836
        %4048 = vmatpush.msra.mxu0 %v3832
        %4049 = vmatpush.msra.mxu0 %v3828
        %4050 = vmatpush.msra.mxu0 %v3824
        %4051 = vmatpush.msra.mxu0 %v3820
        %4052 = vmatpush.msra.mxu0 %v3816
        %4053 = vmatpush.msra.mxu0 %v3812
        %4054 = vmatpush.msra.mxu0 %v3808
        %4055 = vmatpush.msra.mxu0 %v3804
        %4056 = vmatmul.f32.gmra.mxu0 %v4009
        %v4057 = vpop.f32.mrf.mxu0
        %v4058 = vadd.f32 %v4038, %v4057
        %4059 = vdwg.mxu0
        %4060 = vmatpush.msra.mxu0 %v3928
        %4061 = vmatpush.msra.mxu0 %v3924
        %4062 = vmatpush.msra.mxu0 %v3920
        %4063 = vmatpush.msra.mxu0 %v3916
        %4064 = vmatpush.msra.mxu0 %v3912
        %4065 = vmatpush.msra.mxu0 %v3908
        %4066 = vmatpush.msra.mxu0 %v3904
        %4067 = vmatpush.msra.mxu0 %v3900
        %4068 = vmatpush.msra.mxu0 %v3896
        %4069 = vmatpush.msra.mxu0 %v3892
        %4070 = vmatpush.msra.mxu0 %v3888
        %4071 = vmatpush.msra.mxu0 %v3884
        %4072 = vmatpush.msra.mxu0 %v3880
        %4073 = vmatpush.msra.mxu0 %v3876
        %4074 = vmatpush.msra.mxu0 %v3872
        %4075 = vmatpush.msra.mxu0 %v3868
        %4076 = vmatmul.f32.gmra.mxu0 %v4012
        %v4077 = vpop.f32.mrf.mxu0
        %v4078 = vadd.f32 %v4058, %v4077
        %4079 = vdwg.mxu0
        %4080 = vmatpush.msra.mxu0 %v3992
        %4081 = vmatpush.msra.mxu0 %v3988
        %4082 = vmatpush.msra.mxu0 %v3984
        %4083 = vmatpush.msra.mxu0 %v3980
        %4084 = vmatpush.msra.mxu0 %v3976
        %4085 = vmatpush.msra.mxu0 %v3972
        %4086 = vmatpush.msra.mxu0 %v3968
        %4087 = vmatpush.msra.mxu0 %v3964
        %4088 = vmatpush.msra.mxu0 %v3960
        %4089 = vmatpush.msra.mxu0 %v3956
        %4090 = vmatpush.msra.mxu0 %v3952
        %4091 = vmatpush.msra.mxu0 %v3948
        %4092 = vmatpush.msra.mxu0 %v3944
        %4093 = vmatpush.msra.mxu0 %v3940
        %4094 = vmatpush.msra.mxu0 %v3936
        %4095 = vmatpush.msra.mxu0 %v3932
        %4096 = vmatmul.f32.gmra.mxu0 %v4015
        %v4097 = vpop.f32.mrf.mxu0
        %v4098 = vadd.f32 %v4078, %v4097
        %4099 = vdwg.mxu0
        %4100 = vmatpush.msra.mxu0 %v3801
        %4101 = vmatpush.msra.mxu0 %v3797
        %4102 = vmatpush.msra.mxu0 %v3793
        %4103 = vmatpush.msra.mxu0 %v3789
        %4104 = vmatpush.msra.mxu0 %v3785
        %4105 = vmatpush.msra.mxu0 %v3781
        %4106 = vmatpush.msra.mxu0 %v3777
        %4107 = vmatpush.msra.mxu0 %v3773
        %4108 = vmatpush.msra.mxu0 %v3769
        %4109 = vmatpush.msra.mxu0 %v3765
        %4110 = vmatpush.msra.mxu0 %v3761
        %4111 = vmatpush.msra.mxu0 %v3757
        %4112 = vmatpush.msra.mxu0 %v3753
        %4113 = vmatpush.msra.mxu0 %v3749
        %4114 = vmatpush.msra.mxu0 %v3745
        %4115 = vmatpush.msra.mxu0 %v3741
        %4116 = vmatmul.f32.gmra.mxu0 %v4006
        %v4117 = vpop.f32.mrf.mxu0
        %v4118 = vadd.f32 0.0, %v4117
        %4119 = vdwg.mxu0
        %4120 = vmatpush.msra.mxu0 %v3865
        %4121 = vmatpush.msra.mxu0 %v3861
        %4122 = vmatpush.msra.mxu0 %v3857
        %4123 = vmatpush.msra.mxu0 %v3853
        %4124 = vmatpush.msra.mxu0 %v3849
        %4125 = vmatpush.msra.mxu0 %v3845
        %4126 = vmatpush.msra.mxu0 %v3841
        %4127 = vmatpush.msra.mxu0 %v3837
        %4128 = vmatpush.msra.mxu0 %v3833
        %4129 = vmatpush.msra.mxu0 %v3829
        %4130 = vmatpush.msra.mxu0 %v3825
        %4131 = vmatpush.msra.mxu0 %v3821
        %4132 = vmatpush.msra.mxu0 %v3817
        %4133 = vmatpush.msra.mxu0 %v3813
        %4134 = vmatpush.msra.mxu0 %v3809
        %4135 = vmatpush.msra.mxu0 %v3805
        %4136 = vmatmul.f32.gmra.mxu0 %v4009
        %v4137 = vpop.f32.mrf.mxu0
        %v4138 = vadd.f32 %v4118, %v4137
        %4139 = vdwg.mxu0
        %4140 = vmatpush.msra.mxu0 %v3929
        %4141 = vmatpush.msra.mxu0 %v3925
        %4142 = vmatpush.msra.mxu0 %v3921
        %4143 = vmatpush.msra.mxu0 %v3917
        %4144 = vmatpush.msra.mxu0 %v3913
        %4145 = vmatpush.msra.mxu0 %v3909
        %4146 = vmatpush.msra.mxu0 %v3905
        %4147 = vmatpush.msra.mxu0 %v3901
        %4148 = vmatpush.msra.mxu0 %v3897
        %4149 = vmatpush.msra.mxu0 %v3893
        %4150 = vmatpush.msra.mxu0 %v3889
        %4151 = vmatpush.msra.mxu0 %v3885
        %4152 = vmatpush.msra.mxu0 %v3881
        %4153 = vmatpush.msra.mxu0 %v3877
        %4154 = vmatpush.msra.mxu0 %v3873
        %4155 = vmatpush.msra.mxu0 %v3869
        %4156 = vmatmul.f32.gmra.mxu0 %v4012
        %v4157 = vpop.f32.mrf.mxu0
        %v4158 = vadd.f32 %v4138, %v4157
        %4159 = vdwg.mxu0
        %4160 = vmatpush.msra.mxu0 %v3993
        %4161 = vmatpush.msra.mxu0 %v3989
        %4162 = vmatpush.msra.mxu0 %v3985
        %4163 = vmatpush.msra.mxu0 %v3981
        %4164 = vmatpush.msra.mxu0 %v3977
        %4165 = vmatpush.msra.mxu0 %v3973
        %4166 = vmatpush.msra.mxu0 %v3969
        %4167 = vmatpush.msra.mxu0 %v3965
        %4168 = vmatpush.msra.mxu0 %v3961
        %4169 = vmatpush.msra.mxu0 %v3957
        %4170 = vmatpush.msra.mxu0 %v3953
        %4171 = vmatpush.msra.mxu0 %v3949
        %4172 = vmatpush.msra.mxu0 %v3945
        %4173 = vmatpush.msra.mxu0 %v3941
        %4174 = vmatpush.msra.mxu0 %v3937
        %4175 = vmatpush.msra.mxu0 %v3933
        %4176 = vmatmul.f32.gmra.mxu0 %v4015
        %v4177 = vpop.f32.mrf.mxu0
        %v4178 = vadd.f32 %v4158, %v4177
        %4179 = vdwg.mxu0
        %4180 = vmatpush.msra.mxu0 %v3802
        %4181 = vmatpush.msra.mxu0 %v3798
        %4182 = vmatpush.msra.mxu0 %v3794
        %4183 = vmatpush.msra.mxu0 %v3790
        %4184 = vmatpush.msra.mxu0 %v3786
        %4185 = vmatpush.msra.mxu0 %v3782
        %4186 = vmatpush.msra.mxu0 %v3778
        %4187 = vmatpush.msra.mxu0 %v3774
        %4188 = vmatpush.msra.mxu0 %v3770
        %4189 = vmatpush.msra.mxu0 %v3766
        %4190 = vmatpush.msra.mxu0 %v3762
        %4191 = vmatpush.msra.mxu0 %v3758
        %4192 = vmatpush.msra.mxu0 %v3754
        %4193 = vmatpush.msra.mxu0 %v3750
        %4194 = vmatpush.msra.mxu0 %v3746
        %4195 = vmatpush.msra.mxu0 %v3742
        %4196 = vmatmul.f32.gmra.mxu0 %v4006
        %v4197 = vpop.f32.mrf.mxu0
        %v4198 = vadd.f32 0.0, %v4197
        %4199 = vdwg.mxu0
        %4200 = vmatpush.msra.mxu0 %v3866
        %4201 = vmatpush.msra.mxu0 %v3862
        %4202 = vmatpush.msra.mxu0 %v3858
        %4203 = vmatpush.msra.mxu0 %v3854
        %4204 = vmatpush.msra.mxu0 %v3850
        %4205 = vmatpush.msra.mxu0 %v3846
        %4206 = vmatpush.msra.mxu0 %v3842
        %4207 = vmatpush.msra.mxu0 %v3838
        %4208 = vmatpush.msra.mxu0 %v3834
        %4209 = vmatpush.msra.mxu0 %v3830
        %4210 = vmatpush.msra.mxu0 %v3826
        %4211 = vmatpush.msra.mxu0 %v3822
        %4212 = vmatpush.msra.mxu0 %v3818
        %4213 = vmatpush.msra.mxu0 %v3814
        %4214 = vmatpush.msra.mxu0 %v3810
        %4215 = vmatpush.msra.mxu0 %v3806
        %4216 = vmatmul.f32.gmra.mxu0 %v4009
        %v4217 = vpop.f32.mrf.mxu0
        %v4218 = vadd.f32 %v4198, %v4217
        %4219 = vdwg.mxu0
        %4220 = vmatpush.msra.mxu0 %v3930
        %4221 = vmatpush.msra.mxu0 %v3926
        %4222 = vmatpush.msra.mxu0 %v3922
        %4223 = vmatpush.msra.mxu0 %v3918
        %4224 = vmatpush.msra.mxu0 %v3914
        %4225 = vmatpush.msra.mxu0 %v3910
        %4226 = vmatpush.msra.mxu0 %v3906
        %4227 = vmatpush.msra.mxu0 %v3902
        %4228 = vmatpush.msra.mxu0 %v3898
        %4229 = vmatpush.msra.mxu0 %v3894
        %4230 = vmatpush.msra.mxu0 %v3890
        %4231 = vmatpush.msra.mxu0 %v3886
        %4232 = vmatpush.msra.mxu0 %v3882
        %4233 = vmatpush.msra.mxu0 %v3878
        %4234 = vmatpush.msra.mxu0 %v3874
        %4235 = vmatpush.msra.mxu0 %v3870
        %4236 = vmatmul.f32.gmra.mxu0 %v4012
        %v4237 = vpop.f32.mrf.mxu0
        %v4238 = vadd.f32 %v4218, %v4237
        %4239 = vdwg.mxu0
        %4240 = vmatpush.msra.mxu0 %v3994
        %4241 = vmatpush.msra.mxu0 %v3990
        %4242 = vmatpush.msra.mxu0 %v3986
        %4243 = vmatpush.msra.mxu0 %v3982
        %4244 = vmatpush.msra.mxu0 %v3978
        %4245 = vmatpush.msra.mxu0 %v3974
        %4246 = vmatpush.msra.mxu0 %v3970
        %4247 = vmatpush.msra.mxu0 %v3966
        %4248 = vmatpush.msra.mxu0 %v3962
        %4249 = vmatpush.msra.mxu0 %v3958
        %4250 = vmatpush.msra.mxu0 %v3954
        %4251 = vmatpush.msra.mxu0 %v3950
        %4252 = vmatpush.msra.mxu0 %v3946
        %4253 = vmatpush.msra.mxu0 %v3942
        %4254 = vmatpush.msra.mxu0 %v3938
        %4255 = vmatpush.msra.mxu0 %v3934
        %4256 = vmatmul.f32.gmra.mxu0 %v4015
        %v4257 = vpop.f32.mrf.mxu0
        %v4258 = vadd.f32 %v4238, %v4257
        %4259 = vdwg.mxu0
        %4260 = vmatpush.msra.mxu0 %v3803
        %4261 = vmatpush.msra.mxu0 %v3799
        %4262 = vmatpush.msra.mxu0 %v3795
        %4263 = vmatpush.msra.mxu0 %v3791
        %4264 = vmatpush.msra.mxu0 %v3787
        %4265 = vmatpush.msra.mxu0 %v3783
        %4266 = vmatpush.msra.mxu0 %v3779
        %4267 = vmatpush.msra.mxu0 %v3775
        %4268 = vmatpush.msra.mxu0 %v3771
        %4269 = vmatpush.msra.mxu0 %v3767
        %4270 = vmatpush.msra.mxu0 %v3763
        %4271 = vmatpush.msra.mxu0 %v3759
        %4272 = vmatpush.msra.mxu0 %v3755
        %4273 = vmatpush.msra.mxu0 %v3751
        %4274 = vmatpush.msra.mxu0 %v3747
        %4275 = vmatpush.msra.mxu0 %v3743
        %4276 = vmatmul.f32.gmra.mxu0 %v4006
        %v4277 = vpop.f32.mrf.mxu0
        %v4278 = vadd.f32 0.0, %v4277
        %4279 = vdwg.mxu0
        %4280 = vmatpush.msra.mxu0 %v3867
        %4281 = vmatpush.msra.mxu0 %v3863
        %4282 = vmatpush.msra.mxu0 %v3859
        %4283 = vmatpush.msra.mxu0 %v3855
        %4284 = vmatpush.msra.mxu0 %v3851
        %4285 = vmatpush.msra.mxu0 %v3847
        %4286 = vmatpush.msra.mxu0 %v3843
        %4287 = vmatpush.msra.mxu0 %v3839
        %4288 = vmatpush.msra.mxu0 %v3835
        %4289 = vmatpush.msra.mxu0 %v3831
        %4290 = vmatpush.msra.mxu0 %v3827
        %4291 = vmatpush.msra.mxu0 %v3823
        %4292 = vmatpush.msra.mxu0 %v3819
        %4293 = vmatpush.msra.mxu0 %v3815
        %4294 = vmatpush.msra.mxu0 %v3811
        %4295 = vmatpush.msra.mxu0 %v3807
        %4296 = vmatmul.f32.gmra.mxu0 %v4009
        %v4297 = vpop.f32.mrf.mxu0
        %v4298 = vadd.f32 %v4278, %v4297
        %4299 = vdwg.mxu0
        %4300 = vmatpush.msra.mxu0 %v3931
        %4301 = vmatpush.msra.mxu0 %v3927
        %4302 = vmatpush.msra.mxu0 %v3923
        %4303 = vmatpush.msra.mxu0 %v3919
        %4304 = vmatpush.msra.mxu0 %v3915
        %4305 = vmatpush.msra.mxu0 %v3911
        %4306 = vmatpush.msra.mxu0 %v3907
        %4307 = vmatpush.msra.mxu0 %v3903
        %4308 = vmatpush.msra.mxu0 %v3899
        %4309 = vmatpush.msra.mxu0 %v3895
        %4310 = vmatpush.msra.mxu0 %v3891
        %4311 = vmatpush.msra.mxu0 %v3887
        %4312 = vmatpush.msra.mxu0 %v3883
        %4313 = vmatpush.msra.mxu0 %v3879
        %4314 = vmatpush.msra.mxu0 %v3875
        %4315 = vmatpush.msra.mxu0 %v3871
        %4316 = vmatmul.f32.gmra.mxu0 %v4012
        %v4317 = vpop.f32.mrf.mxu0
        %v4318 = vadd.f32 %v4298, %v4317
        %4319 = vdwg.mxu0
        %4320 = vmatpush.msra.mxu0 %v3995
        %4321 = vmatpush.msra.mxu0 %v3991
        %4322 = vmatpush.msra.mxu0 %v3987
        %4323 = vmatpush.msra.mxu0 %v3983
        %4324 = vmatpush.msra.mxu0 %v3979
        %4325 = vmatpush.msra.mxu0 %v3975
        %4326 = vmatpush.msra.mxu0 %v3971
        %4327 = vmatpush.msra.mxu0 %v3967
        %4328 = vmatpush.msra.mxu0 %v3963
        %4329 = vmatpush.msra.mxu0 %v3959
        %4330 = vmatpush.msra.mxu0 %v3955
        %4331 = vmatpush.msra.mxu0 %v3951
        %4332 = vmatpush.msra.mxu0 %v3947
        %4333 = vmatpush.msra.mxu0 %v3943
        %4334 = vmatpush.msra.mxu0 %v3939
        %4335 = vmatpush.msra.mxu0 %v3935
        %4336 = vmatmul.f32.gmra.mxu0 %v4015
        %v4337 = vpop.f32.mrf.mxu0
        %v4338 = vadd.f32 %v4318, %v4337
        %4339 = vdwg.mxu0
        %4340 = vmatpush.msra.mxu0 %v3535
        %4341 = vmatpush.msra.mxu0 %v3531
        %4342 = vmatpush.msra.mxu0 %v3527
        %4343 = vmatpush.msra.mxu0 %v3523
        %4344 = vmatpush.msra.mxu0 %v3519
        %4345 = vmatpush.msra.mxu0 %v3515
        %4346 = vmatpush.msra.mxu0 %v3511
        %4347 = vmatpush.msra.mxu0 %v3507
        %4348 = vmatpush.msra.mxu0 %v3503
        %4349 = vmatpush.msra.mxu0 %v3499
        %4350 = vmatpush.msra.mxu0 %v3495
        %4351 = vmatpush.msra.mxu0 %v3491
        %4352 = vmatpush.msra.mxu0 %v3487
        %4353 = vmatpush.msra.mxu0 %v3483
        %4354 = vmatpush.msra.mxu0 %v3479
        %4355 = vmatpush.msra.mxu0 %v3475
        %4356 = vmatmul.f32.gmra.mxu0 %v3471
        %v4357 = vpop.f32.mrf.mxu0
        %v4358 = vadd.f32 %v4098, %v4357
        %4359 = vdwg.mxu0
        %4360 = vmatpush.msra.mxu0 %v3599
        %4361 = vmatpush.msra.mxu0 %v3595
        %4362 = vmatpush.msra.mxu0 %v3591
        %4363 = vmatpush.msra.mxu0 %v3587
        %4364 = vmatpush.msra.mxu0 %v3583
        %4365 = vmatpush.msra.mxu0 %v3579
        %4366 = vmatpush.msra.mxu0 %v3575
        %4367 = vmatpush.msra.mxu0 %v3571
        %4368 = vmatpush.msra.mxu0 %v3567
        %4369 = vmatpush.msra.mxu0 %v3563
        %4370 = vmatpush.msra.mxu0 %v3559
        %4371 = vmatpush.msra.mxu0 %v3555
        %4372 = vmatpush.msra.mxu0 %v3551
        %4373 = vmatpush.msra.mxu0 %v3547
        %4374 = vmatpush.msra.mxu0 %v3543
        %4375 = vmatpush.msra.mxu0 %v3539
        %4376 = vmatmul.f32.gmra.mxu0 %v3472
        %v4377 = vpop.f32.mrf.mxu0
        %v4378 = vadd.f32 %v4358, %v4377
        %4379 = vdwg.mxu0
        %4380 = vmatpush.msra.mxu0 %v3663
        %4381 = vmatpush.msra.mxu0 %v3659
        %4382 = vmatpush.msra.mxu0 %v3655
        %4383 = vmatpush.msra.mxu0 %v3651
        %4384 = vmatpush.msra.mxu0 %v3647
        %4385 = vmatpush.msra.mxu0 %v3643
        %4386 = vmatpush.msra.mxu0 %v3639
        %4387 = vmatpush.msra.mxu0 %v3635
        %4388 = vmatpush.msra.mxu0 %v3631
        %4389 = vmatpush.msra.mxu0 %v3627
        %4390 = vmatpush.msra.mxu0 %v3623
        %4391 = vmatpush.msra.mxu0 %v3619
        %4392 = vmatpush.msra.mxu0 %v3615
        %4393 = vmatpush.msra.mxu0 %v3611
        %4394 = vmatpush.msra.mxu0 %v3607
        %4395 = vmatpush.msra.mxu0 %v3603
        %4396 = vmatmul.f32.gmra.mxu0 %v3473
        %v4397 = vpop.f32.mrf.mxu0
        %v4398 = vadd.f32 %v4378, %v4397
        %4399 = vdwg.mxu0
        %4400 = vmatpush.msra.mxu0 %v3727
        %4401 = vmatpush.msra.mxu0 %v3723
        %4402 = vmatpush.msra.mxu0 %v3719
        %4403 = vmatpush.msra.mxu0 %v3715
        %4404 = vmatpush.msra.mxu0 %v3711
        %4405 = vmatpush.msra.mxu0 %v3707
        %4406 = vmatpush.msra.mxu0 %v3703
        %4407 = vmatpush.msra.mxu0 %v3699
        %4408 = vmatpush.msra.mxu0 %v3695
        %4409 = vmatpush.msra.mxu0 %v3691
        %4410 = vmatpush.msra.mxu0 %v3687
        %4411 = vmatpush.msra.mxu0 %v3683
        %4412 = vmatpush.msra.mxu0 %v3679
        %4413 = vmatpush.msra.mxu0 %v3675
        %4414 = vmatpush.msra.mxu0 %v3671
        %4415 = vmatpush.msra.mxu0 %v3667
        %4416 = vmatmul.f32.gmra.mxu0 %v3474
        %v4417 = vpop.f32.mrf.mxu0
        %v4418 = vadd.f32 %v4398, %v4417
        %4419 = vdwg.mxu0
        %4420 = vmatpush.msra.mxu0 %v3536
        %4421 = vmatpush.msra.mxu0 %v3532
        %4422 = vmatpush.msra.mxu0 %v3528
        %4423 = vmatpush.msra.mxu0 %v3524
        %4424 = vmatpush.msra.mxu0 %v3520
        %4425 = vmatpush.msra.mxu0 %v3516
        %4426 = vmatpush.msra.mxu0 %v3512
        %4427 = vmatpush.msra.mxu0 %v3508
        %4428 = vmatpush.msra.mxu0 %v3504
        %4429 = vmatpush.msra.mxu0 %v3500
        %4430 = vmatpush.msra.mxu0 %v3496
        %4431 = vmatpush.msra.mxu0 %v3492
        %4432 = vmatpush.msra.mxu0 %v3488
        %4433 = vmatpush.msra.mxu0 %v3484
        %4434 = vmatpush.msra.mxu0 %v3480
        %4435 = vmatpush.msra.mxu0 %v3476
        %4436 = vmatmul.f32.gmra.mxu0 %v3471
        %v4437 = vpop.f32.mrf.mxu0
        %v4438 = vadd.f32 %v4178, %v4437
        %4439 = vdwg.mxu0
        %4440 = vmatpush.msra.mxu0 %v3600
        %4441 = vmatpush.msra.mxu0 %v3596
        %4442 = vmatpush.msra.mxu0 %v3592
        %4443 = vmatpush.msra.mxu0 %v3588
        %4444 = vmatpush.msra.mxu0 %v3584
        %4445 = vmatpush.msra.mxu0 %v3580
        %4446 = vmatpush.msra.mxu0 %v3576
        %4447 = vmatpush.msra.mxu0 %v3572
        %4448 = vmatpush.msra.mxu0 %v3568
        %4449 = vmatpush.msra.mxu0 %v3564
        %4450 = vmatpush.msra.mxu0 %v3560
        %4451 = vmatpush.msra.mxu0 %v3556
        %4452 = vmatpush.msra.mxu0 %v3552
        %4453 = vmatpush.msra.mxu0 %v3548
        %4454 = vmatpush.msra.mxu0 %v3544
        %4455 = vmatpush.msra.mxu0 %v3540
        %4456 = vmatmul.f32.gmra.mxu0 %v3472
        %v4457 = vpop.f32.mrf.mxu0
        %v4458 = vadd.f32 %v4438, %v4457
        %4459 = vdwg.mxu0
        %4460 = vmatpush.msra.mxu0 %v3664
        %4461 = vmatpush.msra.mxu0 %v3660
        %4462 = vmatpush.msra.mxu0 %v3656
        %4463 = vmatpush.msra.mxu0 %v3652
        %4464 = vmatpush.msra.mxu0 %v3648
        %4465 = vmatpush.msra.mxu0 %v3644
        %4466 = vmatpush.msra.mxu0 %v3640
        %4467 = vmatpush.msra.mxu0 %v3636
        %4468 = vmatpush.msra.mxu0 %v3632
        %4469 = vmatpush.msra.mxu0 %v3628
        %4470 = vmatpush.msra.mxu0 %v3624
        %4471 = vmatpush.msra.mxu0 %v3620
        %4472 = vmatpush.msra.mxu0 %v3616
        %4473 = vmatpush.msra.mxu0 %v3612
        %4474 = vmatpush.msra.mxu0 %v3608
        %4475 = vmatpush.msra.mxu0 %v3604
        %4476 = vmatmul.f32.gmra.mxu0 %v3473
        %v4477 = vpop.f32.mrf.mxu0
        %v4478 = vadd.f32 %v4458, %v4477
        %4479 = vdwg.mxu0
        %4480 = vmatpush.msra.mxu0 %v3728
        %4481 = vmatpush.msra.mxu0 %v3724
        %4482 = vmatpush.msra.mxu0 %v3720
        %4483 = vmatpush.msra.mxu0 %v3716
        %4484 = vmatpush.msra.mxu0 %v3712
        %4485 = vmatpush.msra.mxu0 %v3708
        %4486 = vmatpush.msra.mxu0 %v3704
        %4487 = vmatpush.msra.mxu0 %v3700
        %4488 = vmatpush.msra.mxu0 %v3696
        %4489 = vmatpush.msra.mxu0 %v3692
        %4490 = vmatpush.msra.mxu0 %v3688
        %4491 = vmatpush.msra.mxu0 %v3684
        %4492 = vmatpush.msra.mxu0 %v3680
        %4493 = vmatpush.msra.mxu0 %v3676
        %4494 = vmatpush.msra.mxu0 %v3672
        %4495 = vmatpush.msra.mxu0 %v3668
        %4496 = vmatmul.f32.gmra.mxu0 %v3474
        %v4497 = vpop.f32.mrf.mxu0
        %v4498 = vadd.f32 %v4478, %v4497
        %4499 = vdwg.mxu0
        %4500 = vmatpush.msra.mxu0 %v3537
        %4501 = vmatpush.msra.mxu0 %v3533
        %4502 = vmatpush.msra.mxu0 %v3529
        %4503 = vmatpush.msra.mxu0 %v3525
        %4504 = vmatpush.msra.mxu0 %v3521
        %4505 = vmatpush.msra.mxu0 %v3517
        %4506 = vmatpush.msra.mxu0 %v3513
        %4507 = vmatpush.msra.mxu0 %v3509
        %4508 = vmatpush.msra.mxu0 %v3505
        %4509 = vmatpush.msra.mxu0 %v3501
        %4510 = vmatpush.msra.mxu0 %v3497
        %4511 = vmatpush.msra.mxu0 %v3493
        %4512 = vmatpush.msra.mxu0 %v3489
        %4513 = vmatpush.msra.mxu0 %v3485
        %4514 = vmatpush.msra.mxu0 %v3481
        %4515 = vmatpush.msra.mxu0 %v3477
        %4516 = vmatmul.f32.gmra.mxu0 %v3471
        %v4517 = vpop.f32.mrf.mxu0
        %v4518 = vadd.f32 %v4258, %v4517
        %4519 = vdwg.mxu0
        %4520 = vmatpush.msra.mxu0 %v3601
        %4521 = vmatpush.msra.mxu0 %v3597
        %4522 = vmatpush.msra.mxu0 %v3593
        %4523 = vmatpush.msra.mxu0 %v3589
        %4524 = vmatpush.msra.mxu0 %v3585
        %4525 = vmatpush.msra.mxu0 %v3581
        %4526 = vmatpush.msra.mxu0 %v3577
        %4527 = vmatpush.msra.mxu0 %v3573
        %4528 = vmatpush.msra.mxu0 %v3569
        %4529 = vmatpush.msra.mxu0 %v3565
        %4530 = vmatpush.msra.mxu0 %v3561
        %4531 = vmatpush.msra.mxu0 %v3557
        %4532 = vmatpush.msra.mxu0 %v3553
        %4533 = vmatpush.msra.mxu0 %v3549
        %4534 = vmatpush.msra.mxu0 %v3545
        %4535 = vmatpush.msra.mxu0 %v3541
        %4536 = vmatmul.f32.gmra.mxu0 %v3472
        %v4537 = vpop.f32.mrf.mxu0
        %v4538 = vadd.f32 %v4518, %v4537
        %4539 = vdwg.mxu0
        %4540 = vmatpush.msra.mxu0 %v3665
        %4541 = vmatpush.msra.mxu0 %v3661
        %4542 = vmatpush.msra.mxu0 %v3657
        %4543 = vmatpush.msra.mxu0 %v3653
        %4544 = vmatpush.msra.mxu0 %v3649
        %4545 = vmatpush.msra.mxu0 %v3645
        %4546 = vmatpush.msra.mxu0 %v3641
        %4547 = vmatpush.msra.mxu0 %v3637
        %4548 = vmatpush.msra.mxu0 %v3633
        %4549 = vmatpush.msra.mxu0 %v3629
        %4550 = vmatpush.msra.mxu0 %v3625
        %4551 = vmatpush.msra.mxu0 %v3621
        %4552 = vmatpush.msra.mxu0 %v3617
        %4553 = vmatpush.msra.mxu0 %v3613
        %4554 = vmatpush.msra.mxu0 %v3609
        %4555 = vmatpush.msra.mxu0 %v3605
        %4556 = vmatmul.f32.gmra.mxu0 %v3473
        %v4557 = vpop.f32.mrf.mxu0
        %v4558 = vadd.f32 %v4538, %v4557
        %4559 = vdwg.mxu0
        %4560 = vmatpush.msra.mxu0 %v3729
        %4561 = vmatpush.msra.mxu0 %v3725
        %4562 = vmatpush.msra.mxu0 %v3721
        %4563 = vmatpush.msra.mxu0 %v3717
        %4564 = vmatpush.msra.mxu0 %v3713
        %4565 = vmatpush.msra.mxu0 %v3709
        %4566 = vmatpush.msra.mxu0 %v3705
        %4567 = vmatpush.msra.mxu0 %v3701
        %4568 = vmatpush.msra.mxu0 %v3697
        %4569 = vmatpush.msra.mxu0 %v3693
        %4570 = vmatpush.msra.mxu0 %v3689
        %4571 = vmatpush.msra.mxu0 %v3685
        %4572 = vmatpush.msra.mxu0 %v3681
        %4573 = vmatpush.msra.mxu0 %v3677
        %4574 = vmatpush.msra.mxu0 %v3673
        %4575 = vmatpush.msra.mxu0 %v3669
        %4576 = vmatmul.f32.gmra.mxu0 %v3474
        %v4577 = vpop.f32.mrf.mxu0
        %v4578 = vadd.f32 %v4558, %v4577
        %4579 = vdwg.mxu0
        %4580 = vmatpush.msra.mxu0 %v3538
        %4581 = vmatpush.msra.mxu0 %v3534
        %4582 = vmatpush.msra.mxu0 %v3530
        %4583 = vmatpush.msra.mxu0 %v3526
        %4584 = vmatpush.msra.mxu0 %v3522
        %4585 = vmatpush.msra.mxu0 %v3518
        %4586 = vmatpush.msra.mxu0 %v3514
        %4587 = vmatpush.msra.mxu0 %v3510
        %4588 = vmatpush.msra.mxu0 %v3506
        %4589 = vmatpush.msra.mxu0 %v3502
        %4590 = vmatpush.msra.mxu0 %v3498
        %4591 = vmatpush.msra.mxu0 %v3494
        %4592 = vmatpush.msra.mxu0 %v3490
        %4593 = vmatpush.msra.mxu0 %v3486
        %4594 = vmatpush.msra.mxu0 %v3482
        %4595 = vmatpush.msra.mxu0 %v3478
        %4596 = vmatmul.f32.gmra.mxu0 %v3471
        %v4597 = vpop.f32.mrf.mxu0
        %v4598 = vadd.f32 %v4338, %v4597
        %4599 = vdwg.mxu0
        %4600 = vmatpush.msra.mxu0 %v3602
        %4601 = vmatpush.msra.mxu0 %v3598
        %4602 = vmatpush.msra.mxu0 %v3594
        %4603 = vmatpush.msra.mxu0 %v3590
        %4604 = vmatpush.msra.mxu0 %v3586
        %4605 = vmatpush.msra.mxu0 %v3582
        %4606 = vmatpush.msra.mxu0 %v3578
        %4607 = vmatpush.msra.mxu0 %v3574
        %4608 = vmatpush.msra.mxu0 %v3570
        %4609 = vmatpush.msra.mxu0 %v3566
        %4610 = vmatpush.msra.mxu0 %v3562
        %4611 = vmatpush.msra.mxu0 %v3558
        %4612 = vmatpush.msra.mxu0 %v3554
        %4613 = vmatpush.msra.mxu0 %v3550
        %4614 = vmatpush.msra.mxu0 %v3546
        %4615 = vmatpush.msra.mxu0 %v3542
        %4616 = vmatmul.f32.gmra.mxu0 %v3472
        %v4617 = vpop.f32.mrf.mxu0
        %v4618 = vadd.f32 %v4598, %v4617
        %4619 = vdwg.mxu0
        %4620 = vmatpush.msra.mxu0 %v3666
        %4621 = vmatpush.msra.mxu0 %v3662
        %4622 = vmatpush.msra.mxu0 %v3658
        %4623 = vmatpush.msra.mxu0 %v3654
        %4624 = vmatpush.msra.mxu0 %v3650
        %4625 = vmatpush.msra.mxu0 %v3646
        %4626 = vmatpush.msra.mxu0 %v3642
        %4627 = vmatpush.msra.mxu0 %v3638
        %4628 = vmatpush.msra.mxu0 %v3634
        %4629 = vmatpush.msra.mxu0 %v3630
        %4630 = vmatpush.msra.mxu0 %v3626
        %4631 = vmatpush.msra.mxu0 %v3622
        %4632 = vmatpush.msra.mxu0 %v3618
        %4633 = vmatpush.msra.mxu0 %v3614
        %4634 = vmatpush.msra.mxu0 %v3610
        %4635 = vmatpush.msra.mxu0 %v3606
        %4636 = vmatmul.f32.gmra.mxu0 %v3473
        %v4637 = vpop.f32.mrf.mxu0
        %v4638 = vadd.f32 %v4618, %v4637
        %4639 = vdwg.mxu0
        %4640 = vmatpush.msra.mxu0 %v3730
        %4641 = vmatpush.msra.mxu0 %v3726
        %4642 = vmatpush.msra.mxu0 %v3722
        %4643 = vmatpush.msra.mxu0 %v3718
        %4644 = vmatpush.msra.mxu0 %v3714
        %4645 = vmatpush.msra.mxu0 %v3710
        %4646 = vmatpush.msra.mxu0 %v3706
        %4647 = vmatpush.msra.mxu0 %v3702
        %4648 = vmatpush.msra.mxu0 %v3698
        %4649 = vmatpush.msra.mxu0 %v3694
        %4650 = vmatpush.msra.mxu0 %v3690
        %4651 = vmatpush.msra.mxu0 %v3686
        %4652 = vmatpush.msra.mxu0 %v3682
        %4653 = vmatpush.msra.mxu0 %v3678
        %4654 = vmatpush.msra.mxu0 %v3674
        %4655 = vmatpush.msra.mxu0 %v3670
        %4656 = vmatmul.f32.gmra.mxu0 %v3474
        %v4657 = vpop.f32.mrf.mxu0
        %v4658 = vadd.f32 %v4638, %v4657
        %4659 = vdwg.mxu0
        %v4660 = vld [vmem:[#allocation2] sm:$0xfc]
        %v4661 = vld [vmem:[#allocation2 + $0x8] sm:$0xfc]
        %v4662 = vld [vmem:[#allocation2 + $0x10] sm:$0xfc]
        %v4663 = vld [vmem:[#allocation2 + $0x18] sm:$0xfc]
        %v4664 = vld [vmem:[#allocation2 + $0x20] sm:$0x3]
        %v4665 = vld [vmem:[#allocation2 + $0x28] sm:$0x3]
        %v4666 = vld [vmem:[#allocation2 + $0x30] sm:$0x3]
        %v4667 = vld [vmem:[#allocation2 + $0x38] sm:$0x3]
        %s4668 = scalar_lea.vmem [#allocation15], 4096
        %v4669 = vld [vmem:[%s4668] sm:$0xff]
        %v4670 = vld [vmem:[%s4668 + $0x8] sm:$0xff]
        %v4671 = vld [vmem:[%s4668 + $0x10] sm:$0xff]
        %v4672 = vld [vmem:[%s4668 + $0x18] sm:$0xff]
        %v4673 = vld [vmem:[%s4668 + $0x20] sm:$0xff]
        %v4674 = vld [vmem:[%s4668 + $0x28] sm:$0xff]
        %v4675 = vld [vmem:[%s4668 + $0x30] sm:$0xff]
        %v4676 = vld [vmem:[%s4668 + $0x38] sm:$0xff]
        %v4677 = vld [vmem:[%s4668 + $0x40] sm:$0xff]
        %v4678 = vld [vmem:[%s4668 + $0x48] sm:$0xff]
        %v4679 = vld [vmem:[%s4668 + $0x50] sm:$0xff]
        %v4680 = vld [vmem:[%s4668 + $0x58] sm:$0xff]
        %v4681 = vld [vmem:[%s4668 + $0x60] sm:$0xff]
        %v4682 = vld [vmem:[%s4668 + $0x68] sm:$0xff]
        %v4683 = vld [vmem:[%s4668 + $0x70] sm:$0xff]
        %v4684 = vld [vmem:[%s4668 + $0x78] sm:$0xff]
        %v4685 = vld [vmem:[%s4668 + $0x80] sm:$0xff]
        %v4686 = vld [vmem:[%s4668 + $0x88] sm:$0xff]
        %v4687 = vld [vmem:[%s4668 + $0x90] sm:$0xff]
        %v4688 = vld [vmem:[%s4668 + $0x98] sm:$0xff]
        %v4689 = vld [vmem:[%s4668 + $0xa0] sm:$0xff]
        %v4690 = vld [vmem:[%s4668 + $0xa8] sm:$0xff]
        %v4691 = vld [vmem:[%s4668 + $0xb0] sm:$0xff]
        %v4692 = vld [vmem:[%s4668 + $0xb8] sm:$0xff]
        %v4693 = vld [vmem:[%s4668 + $0xc0] sm:$0xff]
        %v4694 = vld [vmem:[%s4668 + $0xc8] sm:$0xff]
        %v4695 = vld [vmem:[%s4668 + $0xd0] sm:$0xff]
        %v4696 = vld [vmem:[%s4668 + $0xd8] sm:$0xff]
        %v4697 = vld [vmem:[%s4668 + $0xe0] sm:$0xff]
        %v4698 = vld [vmem:[%s4668 + $0xe8] sm:$0xff]
        %v4699 = vld [vmem:[%s4668 + $0xf0] sm:$0xff]
        %v4700 = vld [vmem:[%s4668 + $0xf8] sm:$0xff]
        %v4701 = vld [vmem:[%s4668 + $0x100] sm:$0xff]
        %v4702 = vld [vmem:[%s4668 + $0x108] sm:$0xff]
        %v4703 = vld [vmem:[%s4668 + $0x110] sm:$0xff]
        %v4704 = vld [vmem:[%s4668 + $0x118] sm:$0xff]
        %v4705 = vld [vmem:[%s4668 + $0x120] sm:$0xff]
        %v4706 = vld [vmem:[%s4668 + $0x128] sm:$0xff]
        %v4707 = vld [vmem:[%s4668 + $0x130] sm:$0xff]
        %v4708 = vld [vmem:[%s4668 + $0x138] sm:$0xff]
        %v4709 = vld [vmem:[%s4668 + $0x140] sm:$0xff]
        %v4710 = vld [vmem:[%s4668 + $0x148] sm:$0xff]
        %v4711 = vld [vmem:[%s4668 + $0x150] sm:$0xff]
        %v4712 = vld [vmem:[%s4668 + $0x158] sm:$0xff]
        %v4713 = vld [vmem:[%s4668 + $0x160] sm:$0xff]
        %v4714 = vld [vmem:[%s4668 + $0x168] sm:$0xff]
        %v4715 = vld [vmem:[%s4668 + $0x170] sm:$0xff]
        %v4716 = vld [vmem:[%s4668 + $0x178] sm:$0xff]
        %v4717 = vld [vmem:[%s4668 + $0x180] sm:$0xff]
        %v4718 = vld [vmem:[%s4668 + $0x188] sm:$0xff]
        %v4719 = vld [vmem:[%s4668 + $0x190] sm:$0xff]
        %v4720 = vld [vmem:[%s4668 + $0x198] sm:$0xff]
        %v4721 = vld [vmem:[%s4668 + $0x1a0] sm:$0xff]
        %v4722 = vld [vmem:[%s4668 + $0x1a8] sm:$0xff]
        %v4723 = vld [vmem:[%s4668 + $0x1b0] sm:$0xff]
        %v4724 = vld [vmem:[%s4668 + $0x1b8] sm:$0xff]
        %v4725 = vld [vmem:[%s4668 + $0x1c0] sm:$0xff]
        %v4726 = vld [vmem:[%s4668 + $0x1c8] sm:$0xff]
        %v4727 = vld [vmem:[%s4668 + $0x1d0] sm:$0xff]
        %v4728 = vld [vmem:[%s4668 + $0x1d8] sm:$0xff]
        %v4729 = vld [vmem:[%s4668 + $0x1e0] sm:$0xff]
        %v4730 = vld [vmem:[%s4668 + $0x1e8] sm:$0xff]
        %v4731 = vld [vmem:[%s4668 + $0x1f0] sm:$0xff]
        %v4732 = vld [vmem:[%s4668 + $0x1f8] sm:$0xff]
        %v4733 = vld [vmem:[%s4668 + $0x200] sm:$0xff]
        %v4734 = vld [vmem:[%s4668 + $0x208] sm:$0xff]
        %v4735 = vld [vmem:[%s4668 + $0x210] sm:$0xff]
        %v4736 = vld [vmem:[%s4668 + $0x218] sm:$0xff]
        %v4737 = vld [vmem:[%s4668 + $0x220] sm:$0xff]
        %v4738 = vld [vmem:[%s4668 + $0x228] sm:$0xff]
        %v4739 = vld [vmem:[%s4668 + $0x230] sm:$0xff]
        %v4740 = vld [vmem:[%s4668 + $0x238] sm:$0xff]
        %v4741 = vld [vmem:[%s4668 + $0x240] sm:$0xff]
        %v4742 = vld [vmem:[%s4668 + $0x248] sm:$0xff]
        %v4743 = vld [vmem:[%s4668 + $0x250] sm:$0xff]
        %v4744 = vld [vmem:[%s4668 + $0x258] sm:$0xff]
        %v4745 = vld [vmem:[%s4668 + $0x260] sm:$0xff]
        %v4746 = vld [vmem:[%s4668 + $0x268] sm:$0xff]
        %v4747 = vld [vmem:[%s4668 + $0x270] sm:$0xff]
        %v4748 = vld [vmem:[%s4668 + $0x278] sm:$0xff]
        %v4749 = vld [vmem:[%s4668 + $0x280] sm:$0xff]
        %v4750 = vld [vmem:[%s4668 + $0x288] sm:$0xff]
        %v4751 = vld [vmem:[%s4668 + $0x290] sm:$0xff]
        %v4752 = vld [vmem:[%s4668 + $0x298] sm:$0xff]
        %v4753 = vld [vmem:[%s4668 + $0x2a0] sm:$0xff]
        %v4754 = vld [vmem:[%s4668 + $0x2a8] sm:$0xff]
        %v4755 = vld [vmem:[%s4668 + $0x2b0] sm:$0xff]
        %v4756 = vld [vmem:[%s4668 + $0x2b8] sm:$0xff]
        %v4757 = vld [vmem:[%s4668 + $0x2c0] sm:$0xff]
        %v4758 = vld [vmem:[%s4668 + $0x2c8] sm:$0xff]
        %v4759 = vld [vmem:[%s4668 + $0x2d0] sm:$0xff]
        %v4760 = vld [vmem:[%s4668 + $0x2d8] sm:$0xff]
        %v4761 = vld [vmem:[%s4668 + $0x2e0] sm:$0xff]
        %v4762 = vld [vmem:[%s4668 + $0x2e8] sm:$0xff]
        %v4763 = vld [vmem:[%s4668 + $0x2f0] sm:$0xff]
        %v4764 = vld [vmem:[%s4668 + $0x2f8] sm:$0xff]
        %v4765 = vld [vmem:[%s4668 + $0x300] sm:$0xff]
        %v4766 = vld [vmem:[%s4668 + $0x308] sm:$0xff]
        %v4767 = vld [vmem:[%s4668 + $0x310] sm:$0xff]
        %v4768 = vld [vmem:[%s4668 + $0x318] sm:$0xff]
        %v4769 = vld [vmem:[%s4668 + $0x320] sm:$0xff]
        %v4770 = vld [vmem:[%s4668 + $0x328] sm:$0xff]
        %v4771 = vld [vmem:[%s4668 + $0x330] sm:$0xff]
        %v4772 = vld [vmem:[%s4668 + $0x338] sm:$0xff]
        %v4773 = vld [vmem:[%s4668 + $0x340] sm:$0xff]
        %v4774 = vld [vmem:[%s4668 + $0x348] sm:$0xff]
        %v4775 = vld [vmem:[%s4668 + $0x350] sm:$0xff]
        %v4776 = vld [vmem:[%s4668 + $0x358] sm:$0xff]
        %v4777 = vld [vmem:[%s4668 + $0x360] sm:$0xff]
        %v4778 = vld [vmem:[%s4668 + $0x368] sm:$0xff]
        %v4779 = vld [vmem:[%s4668 + $0x370] sm:$0xff]
        %v4780 = vld [vmem:[%s4668 + $0x378] sm:$0xff]
        %v4781 = vld [vmem:[%s4668 + $0x380] sm:$0xff]
        %v4782 = vld [vmem:[%s4668 + $0x388] sm:$0xff]
        %v4783 = vld [vmem:[%s4668 + $0x390] sm:$0xff]
        %v4784 = vld [vmem:[%s4668 + $0x398] sm:$0xff]
        %v4785 = vld [vmem:[%s4668 + $0x3a0] sm:$0xff]
        %v4786 = vld [vmem:[%s4668 + $0x3a8] sm:$0xff]
        %v4787 = vld [vmem:[%s4668 + $0x3b0] sm:$0xff]
        %v4788 = vld [vmem:[%s4668 + $0x3b8] sm:$0xff]
        %v4789 = vld [vmem:[%s4668 + $0x3c0] sm:$0xff]
        %v4790 = vld [vmem:[%s4668 + $0x3c8] sm:$0xff]
        %v4791 = vld [vmem:[%s4668 + $0x3d0] sm:$0xff]
        %v4792 = vld [vmem:[%s4668 + $0x3d8] sm:$0xff]
        %v4793 = vld [vmem:[%s4668 + $0x3e0] sm:$0xff]
        %v4794 = vld [vmem:[%s4668 + $0x3e8] sm:$0xff]
        %v4795 = vld [vmem:[%s4668 + $0x3f0] sm:$0xff]
        %v4796 = vld [vmem:[%s4668 + $0x3f8] sm:$0xff]
        %v4797 = vld [vmem:[%s4668 + $0x400] sm:$0xff]
        %v4798 = vld [vmem:[%s4668 + $0x408] sm:$0xff]
        %v4799 = vld [vmem:[%s4668 + $0x410] sm:$0xff]
        %v4800 = vld [vmem:[%s4668 + $0x418] sm:$0xff]
        %v4801 = vld [vmem:[%s4668 + $0x420] sm:$0xff]
        %v4802 = vld [vmem:[%s4668 + $0x428] sm:$0xff]
        %v4803 = vld [vmem:[%s4668 + $0x430] sm:$0xff]
        %v4804 = vld [vmem:[%s4668 + $0x438] sm:$0xff]
        %v4805 = vld [vmem:[%s4668 + $0x440] sm:$0xff]
        %v4806 = vld [vmem:[%s4668 + $0x448] sm:$0xff]
        %v4807 = vld [vmem:[%s4668 + $0x450] sm:$0xff]
        %v4808 = vld [vmem:[%s4668 + $0x458] sm:$0xff]
        %v4809 = vld [vmem:[%s4668 + $0x460] sm:$0xff]
        %v4810 = vld [vmem:[%s4668 + $0x468] sm:$0xff]
        %v4811 = vld [vmem:[%s4668 + $0x470] sm:$0xff]
        %v4812 = vld [vmem:[%s4668 + $0x478] sm:$0xff]
        %v4813 = vld [vmem:[%s4668 + $0x480] sm:$0xff]
        %v4814 = vld [vmem:[%s4668 + $0x488] sm:$0xff]
        %v4815 = vld [vmem:[%s4668 + $0x490] sm:$0xff]
        %v4816 = vld [vmem:[%s4668 + $0x498] sm:$0xff]
        %v4817 = vld [vmem:[%s4668 + $0x4a0] sm:$0xff]
        %v4818 = vld [vmem:[%s4668 + $0x4a8] sm:$0xff]
        %v4819 = vld [vmem:[%s4668 + $0x4b0] sm:$0xff]
        %v4820 = vld [vmem:[%s4668 + $0x4b8] sm:$0xff]
        %v4821 = vld [vmem:[%s4668 + $0x4c0] sm:$0xff]
        %v4822 = vld [vmem:[%s4668 + $0x4c8] sm:$0xff]
        %v4823 = vld [vmem:[%s4668 + $0x4d0] sm:$0xff]
        %v4824 = vld [vmem:[%s4668 + $0x4d8] sm:$0xff]
        %v4825 = vld [vmem:[%s4668 + $0x4e0] sm:$0xff]
        %v4826 = vld [vmem:[%s4668 + $0x4e8] sm:$0xff]
        %v4827 = vld [vmem:[%s4668 + $0x4f0] sm:$0xff]
        %v4828 = vld [vmem:[%s4668 + $0x4f8] sm:$0xff]
        %v4829 = vld [vmem:[%s4668 + $0x500] sm:$0xff]
        %v4830 = vld [vmem:[%s4668 + $0x508] sm:$0xff]
        %v4831 = vld [vmem:[%s4668 + $0x510] sm:$0xff]
        %v4832 = vld [vmem:[%s4668 + $0x518] sm:$0xff]
        %v4833 = vld [vmem:[%s4668 + $0x520] sm:$0xff]
        %v4834 = vld [vmem:[%s4668 + $0x528] sm:$0xff]
        %v4835 = vld [vmem:[%s4668 + $0x530] sm:$0xff]
        %v4836 = vld [vmem:[%s4668 + $0x538] sm:$0xff]
        %v4837 = vld [vmem:[%s4668 + $0x540] sm:$0xff]
        %v4838 = vld [vmem:[%s4668 + $0x548] sm:$0xff]
        %v4839 = vld [vmem:[%s4668 + $0x550] sm:$0xff]
        %v4840 = vld [vmem:[%s4668 + $0x558] sm:$0xff]
        %v4841 = vld [vmem:[%s4668 + $0x560] sm:$0xff]
        %v4842 = vld [vmem:[%s4668 + $0x568] sm:$0xff]
        %v4843 = vld [vmem:[%s4668 + $0x570] sm:$0xff]
        %v4844 = vld [vmem:[%s4668 + $0x578] sm:$0xff]
        %v4845 = vld [vmem:[%s4668 + $0x580] sm:$0xff]
        %v4846 = vld [vmem:[%s4668 + $0x588] sm:$0xff]
        %v4847 = vld [vmem:[%s4668 + $0x590] sm:$0xff]
        %v4848 = vld [vmem:[%s4668 + $0x598] sm:$0xff]
        %v4849 = vld [vmem:[%s4668 + $0x5a0] sm:$0xff]
        %v4850 = vld [vmem:[%s4668 + $0x5a8] sm:$0xff]
        %v4851 = vld [vmem:[%s4668 + $0x5b0] sm:$0xff]
        %v4852 = vld [vmem:[%s4668 + $0x5b8] sm:$0xff]
        %v4853 = vld [vmem:[%s4668 + $0x5c0] sm:$0xff]
        %v4854 = vld [vmem:[%s4668 + $0x5c8] sm:$0xff]
        %v4855 = vld [vmem:[%s4668 + $0x5d0] sm:$0xff]
        %v4856 = vld [vmem:[%s4668 + $0x5d8] sm:$0xff]
        %v4857 = vld [vmem:[%s4668 + $0x5e0] sm:$0xff]
        %v4858 = vld [vmem:[%s4668 + $0x5e8] sm:$0xff]
        %v4859 = vld [vmem:[%s4668 + $0x5f0] sm:$0xff]
        %v4860 = vld [vmem:[%s4668 + $0x5f8] sm:$0xff]
        %v4861 = vld [vmem:[%s4668 + $0x600] sm:$0xff]
        %v4862 = vld [vmem:[%s4668 + $0x608] sm:$0xff]
        %v4863 = vld [vmem:[%s4668 + $0x610] sm:$0xff]
        %v4864 = vld [vmem:[%s4668 + $0x618] sm:$0xff]
        %v4865 = vld [vmem:[%s4668 + $0x620] sm:$0xff]
        %v4866 = vld [vmem:[%s4668 + $0x628] sm:$0xff]
        %v4867 = vld [vmem:[%s4668 + $0x630] sm:$0xff]
        %v4868 = vld [vmem:[%s4668 + $0x638] sm:$0xff]
        %v4869 = vld [vmem:[%s4668 + $0x640] sm:$0xff]
        %v4870 = vld [vmem:[%s4668 + $0x648] sm:$0xff]
        %v4871 = vld [vmem:[%s4668 + $0x650] sm:$0xff]
        %v4872 = vld [vmem:[%s4668 + $0x658] sm:$0xff]
        %v4873 = vld [vmem:[%s4668 + $0x660] sm:$0xff]
        %v4874 = vld [vmem:[%s4668 + $0x668] sm:$0xff]
        %v4875 = vld [vmem:[%s4668 + $0x670] sm:$0xff]
        %v4876 = vld [vmem:[%s4668 + $0x678] sm:$0xff]
        %v4877 = vld [vmem:[%s4668 + $0x680] sm:$0xff]
        %v4878 = vld [vmem:[%s4668 + $0x688] sm:$0xff]
        %v4879 = vld [vmem:[%s4668 + $0x690] sm:$0xff]
        %v4880 = vld [vmem:[%s4668 + $0x698] sm:$0xff]
        %v4881 = vld [vmem:[%s4668 + $0x6a0] sm:$0xff]
        %v4882 = vld [vmem:[%s4668 + $0x6a8] sm:$0xff]
        %v4883 = vld [vmem:[%s4668 + $0x6b0] sm:$0xff]
        %v4884 = vld [vmem:[%s4668 + $0x6b8] sm:$0xff]
        %v4885 = vld [vmem:[%s4668 + $0x6c0] sm:$0xff]
        %v4886 = vld [vmem:[%s4668 + $0x6c8] sm:$0xff]
        %v4887 = vld [vmem:[%s4668 + $0x6d0] sm:$0xff]
        %v4888 = vld [vmem:[%s4668 + $0x6d8] sm:$0xff]
        %v4889 = vld [vmem:[%s4668 + $0x6e0] sm:$0xff]
        %v4890 = vld [vmem:[%s4668 + $0x6e8] sm:$0xff]
        %v4891 = vld [vmem:[%s4668 + $0x6f0] sm:$0xff]
        %v4892 = vld [vmem:[%s4668 + $0x6f8] sm:$0xff]
        %v4893 = vld [vmem:[%s4668 + $0x700] sm:$0xff]
        %v4894 = vld [vmem:[%s4668 + $0x708] sm:$0xff]
        %v4895 = vld [vmem:[%s4668 + $0x710] sm:$0xff]
        %v4896 = vld [vmem:[%s4668 + $0x718] sm:$0xff]
        %v4897 = vld [vmem:[%s4668 + $0x720] sm:$0xff]
        %v4898 = vld [vmem:[%s4668 + $0x728] sm:$0xff]
        %v4899 = vld [vmem:[%s4668 + $0x730] sm:$0xff]
        %v4900 = vld [vmem:[%s4668 + $0x738] sm:$0xff]
        %v4901 = vld [vmem:[%s4668 + $0x740] sm:$0xff]
        %v4902 = vld [vmem:[%s4668 + $0x748] sm:$0xff]
        %v4903 = vld [vmem:[%s4668 + $0x750] sm:$0xff]
        %v4904 = vld [vmem:[%s4668 + $0x758] sm:$0xff]
        %v4905 = vld [vmem:[%s4668 + $0x760] sm:$0xff]
        %v4906 = vld [vmem:[%s4668 + $0x768] sm:$0xff]
        %v4907 = vld [vmem:[%s4668 + $0x770] sm:$0xff]
        %v4908 = vld [vmem:[%s4668 + $0x778] sm:$0xff]
        %v4909 = vld [vmem:[%s4668 + $0x780] sm:$0xff]
        %v4910 = vld [vmem:[%s4668 + $0x788] sm:$0xff]
        %v4911 = vld [vmem:[%s4668 + $0x790] sm:$0xff]
        %v4912 = vld [vmem:[%s4668 + $0x798] sm:$0xff]
        %v4913 = vld [vmem:[%s4668 + $0x7a0] sm:$0xff]
        %v4914 = vld [vmem:[%s4668 + $0x7a8] sm:$0xff]
        %v4915 = vld [vmem:[%s4668 + $0x7b0] sm:$0xff]
        %v4916 = vld [vmem:[%s4668 + $0x7b8] sm:$0xff]
        %v4917 = vld [vmem:[%s4668 + $0x7c0] sm:$0xff]
        %v4918 = vld [vmem:[%s4668 + $0x7c8] sm:$0xff]
        %v4919 = vld [vmem:[%s4668 + $0x7d0] sm:$0xff]
        %v4920 = vld [vmem:[%s4668 + $0x7d8] sm:$0xff]
        %v4921 = vld [vmem:[%s4668 + $0x7e0] sm:$0xff]
        %v4922 = vld [vmem:[%s4668 + $0x7e8] sm:$0xff]
        %v4923 = vld [vmem:[%s4668 + $0x7f0] sm:$0xff]
        %v4924 = vld [vmem:[%s4668 + $0x7f8] sm:$0xff]
        %v4933 = vrot.slane %v4660, 2
        %v4934 = vrot.slane %v4664, 2
        %v4935 = vsel %vm2278, %v4933, %v4934
        %v4936 = vrot.slane %v4661, 2
        %v4937 = vrot.slane %v4665, 2
        %v4938 = vsel %vm2278, %v4936, %v4937
        %v4939 = vrot.slane %v4662, 2
        %v4940 = vrot.slane %v4666, 2
        %v4941 = vsel %vm2278, %v4939, %v4940
        %v4942 = vrot.slane %v4663, 2
        %v4943 = vrot.slane %v4667, 2
        %v4944 = vsel %vm2278, %v4942, %v4943
        %4949 = vmatpush.msra.mxu0 %v4729
        %4950 = vmatpush.msra.mxu0 %v4725
        %4951 = vmatpush.msra.mxu0 %v4721
        %4952 = vmatpush.msra.mxu0 %v4717
        %4953 = vmatpush.msra.mxu0 %v4713
        %4954 = vmatpush.msra.mxu0 %v4709
        %4955 = vmatpush.msra.mxu0 %v4705
        %4956 = vmatpush.msra.mxu0 %v4701
        %4957 = vmatpush.msra.mxu0 %v4697
        %4958 = vmatpush.msra.mxu0 %v4693
        %4959 = vmatpush.msra.mxu0 %v4689
        %4960 = vmatpush.msra.mxu0 %v4685
        %4961 = vmatpush.msra.mxu0 %v4681
        %4962 = vmatpush.msra.mxu0 %v4677
        %4963 = vmatpush.msra.mxu0 %v4673
        %4964 = vmatpush.msra.mxu0 %v4669
        %4965 = vmatmul.f32.gmra.mxu0 %v4935
        %v4966 = vpop.f32.mrf.mxu0
        %v4967 = vadd.f32 0.0, %v4966
        %4968 = vdwg.mxu0
        %4969 = vmatpush.msra.mxu0 %v4793
        %4970 = vmatpush.msra.mxu0 %v4789
        %4971 = vmatpush.msra.mxu0 %v4785
        %4972 = vmatpush.msra.mxu0 %v4781
        %4973 = vmatpush.msra.mxu0 %v4777
        %4974 = vmatpush.msra.mxu0 %v4773
        %4975 = vmatpush.msra.mxu0 %v4769
        %4976 = vmatpush.msra.mxu0 %v4765
        %4977 = vmatpush.msra.mxu0 %v4761
        %4978 = vmatpush.msra.mxu0 %v4757
        %4979 = vmatpush.msra.mxu0 %v4753
        %4980 = vmatpush.msra.mxu0 %v4749
        %4981 = vmatpush.msra.mxu0 %v4745
        %4982 = vmatpush.msra.mxu0 %v4741
        %4983 = vmatpush.msra.mxu0 %v4737
        %4984 = vmatpush.msra.mxu0 %v4733
        %4985 = vmatmul.f32.gmra.mxu0 %v4938
        %v4986 = vpop.f32.mrf.mxu0
        %v4987 = vadd.f32 %v4967, %v4986
        %4988 = vdwg.mxu0
        %4989 = vmatpush.msra.mxu0 %v4857
        %4990 = vmatpush.msra.mxu0 %v4853
        %4991 = vmatpush.msra.mxu0 %v4849
        %4992 = vmatpush.msra.mxu0 %v4845
        %4993 = vmatpush.msra.mxu0 %v4841
        %4994 = vmatpush.msra.mxu0 %v4837
        %4995 = vmatpush.msra.mxu0 %v4833
        %4996 = vmatpush.msra.mxu0 %v4829
        %4997 = vmatpush.msra.mxu0 %v4825
        %4998 = vmatpush.msra.mxu0 %v4821
        %4999 = vmatpush.msra.mxu0 %v4817
        %5000 = vmatpush.msra.mxu0 %v4813
        %5001 = vmatpush.msra.mxu0 %v4809
        %5002 = vmatpush.msra.mxu0 %v4805
        %5003 = vmatpush.msra.mxu0 %v4801
        %5004 = vmatpush.msra.mxu0 %v4797
        %5005 = vmatmul.f32.gmra.mxu0 %v4941
        %v5006 = vpop.f32.mrf.mxu0
        %v5007 = vadd.f32 %v4987, %v5006
        %5008 = vdwg.mxu0
        %5009 = vmatpush.msra.mxu0 %v4921
        %5010 = vmatpush.msra.mxu0 %v4917
        %5011 = vmatpush.msra.mxu0 %v4913
        %5012 = vmatpush.msra.mxu0 %v4909
        %5013 = vmatpush.msra.mxu0 %v4905
        %5014 = vmatpush.msra.mxu0 %v4901
        %5015 = vmatpush.msra.mxu0 %v4897
        %5016 = vmatpush.msra.mxu0 %v4893
        %5017 = vmatpush.msra.mxu0 %v4889
        %5018 = vmatpush.msra.mxu0 %v4885
        %5019 = vmatpush.msra.mxu0 %v4881
        %5020 = vmatpush.msra.mxu0 %v4877
        %5021 = vmatpush.msra.mxu0 %v4873
        %5022 = vmatpush.msra.mxu0 %v4869
        %5023 = vmatpush.msra.mxu0 %v4865
        %5024 = vmatpush.msra.mxu0 %v4861
        %5025 = vmatmul.f32.gmra.mxu0 %v4944
        %v5026 = vpop.f32.mrf.mxu0
        %v5027 = vadd.f32 %v5007, %v5026
        %5028 = vdwg.mxu0
        %5029 = vmatpush.msra.mxu0 %v4730
        %5030 = vmatpush.msra.mxu0 %v4726
        %5031 = vmatpush.msra.mxu0 %v4722
        %5032 = vmatpush.msra.mxu0 %v4718
        %5033 = vmatpush.msra.mxu0 %v4714
        %5034 = vmatpush.msra.mxu0 %v4710
        %5035 = vmatpush.msra.mxu0 %v4706
        %5036 = vmatpush.msra.mxu0 %v4702
        %5037 = vmatpush.msra.mxu0 %v4698
        %5038 = vmatpush.msra.mxu0 %v4694
        %5039 = vmatpush.msra.mxu0 %v4690
        %5040 = vmatpush.msra.mxu0 %v4686
        %5041 = vmatpush.msra.mxu0 %v4682
        %5042 = vmatpush.msra.mxu0 %v4678
        %5043 = vmatpush.msra.mxu0 %v4674
        %5044 = vmatpush.msra.mxu0 %v4670
        %5045 = vmatmul.f32.gmra.mxu0 %v4935
        %v5046 = vpop.f32.mrf.mxu0
        %v5047 = vadd.f32 0.0, %v5046
        %5048 = vdwg.mxu0
        %5049 = vmatpush.msra.mxu0 %v4794
        %5050 = vmatpush.msra.mxu0 %v4790
        %5051 = vmatpush.msra.mxu0 %v4786
        %5052 = vmatpush.msra.mxu0 %v4782
        %5053 = vmatpush.msra.mxu0 %v4778
        %5054 = vmatpush.msra.mxu0 %v4774
        %5055 = vmatpush.msra.mxu0 %v4770
        %5056 = vmatpush.msra.mxu0 %v4766
        %5057 = vmatpush.msra.mxu0 %v4762
        %5058 = vmatpush.msra.mxu0 %v4758
        %5059 = vmatpush.msra.mxu0 %v4754
        %5060 = vmatpush.msra.mxu0 %v4750
        %5061 = vmatpush.msra.mxu0 %v4746
        %5062 = vmatpush.msra.mxu0 %v4742
        %5063 = vmatpush.msra.mxu0 %v4738
        %5064 = vmatpush.msra.mxu0 %v4734
        %5065 = vmatmul.f32.gmra.mxu0 %v4938
        %v5066 = vpop.f32.mrf.mxu0
        %v5067 = vadd.f32 %v5047, %v5066
        %5068 = vdwg.mxu0
        %5069 = vmatpush.msra.mxu0 %v4858
        %5070 = vmatpush.msra.mxu0 %v4854
        %5071 = vmatpush.msra.mxu0 %v4850
        %5072 = vmatpush.msra.mxu0 %v4846
        %5073 = vmatpush.msra.mxu0 %v4842
        %5074 = vmatpush.msra.mxu0 %v4838
        %5075 = vmatpush.msra.mxu0 %v4834
        %5076 = vmatpush.msra.mxu0 %v4830
        %5077 = vmatpush.msra.mxu0 %v4826
        %5078 = vmatpush.msra.mxu0 %v4822
        %5079 = vmatpush.msra.mxu0 %v4818
        %5080 = vmatpush.msra.mxu0 %v4814
        %5081 = vmatpush.msra.mxu0 %v4810
        %5082 = vmatpush.msra.mxu0 %v4806
        %5083 = vmatpush.msra.mxu0 %v4802
        %5084 = vmatpush.msra.mxu0 %v4798
        %5085 = vmatmul.f32.gmra.mxu0 %v4941
        %v5086 = vpop.f32.mrf.mxu0
        %v5087 = vadd.f32 %v5067, %v5086
        %5088 = vdwg.mxu0
        %5089 = vmatpush.msra.mxu0 %v4922
        %5090 = vmatpush.msra.mxu0 %v4918
        %5091 = vmatpush.msra.mxu0 %v4914
        %5092 = vmatpush.msra.mxu0 %v4910
        %5093 = vmatpush.msra.mxu0 %v4906
        %5094 = vmatpush.msra.mxu0 %v4902
        %5095 = vmatpush.msra.mxu0 %v4898
        %5096 = vmatpush.msra.mxu0 %v4894
        %5097 = vmatpush.msra.mxu0 %v4890
        %5098 = vmatpush.msra.mxu0 %v4886
        %5099 = vmatpush.msra.mxu0 %v4882
        %5100 = vmatpush.msra.mxu0 %v4878
        %5101 = vmatpush.msra.mxu0 %v4874
        %5102 = vmatpush.msra.mxu0 %v4870
        %5103 = vmatpush.msra.mxu0 %v4866
        %5104 = vmatpush.msra.mxu0 %v4862
        %5105 = vmatmul.f32.gmra.mxu0 %v4944
        %v5106 = vpop.f32.mrf.mxu0
        %v5107 = vadd.f32 %v5087, %v5106
        %5108 = vdwg.mxu0
        %5109 = vmatpush.msra.mxu0 %v4731
        %5110 = vmatpush.msra.mxu0 %v4727
        %5111 = vmatpush.msra.mxu0 %v4723
        %5112 = vmatpush.msra.mxu0 %v4719
        %5113 = vmatpush.msra.mxu0 %v4715
        %5114 = vmatpush.msra.mxu0 %v4711
        %5115 = vmatpush.msra.mxu0 %v4707
        %5116 = vmatpush.msra.mxu0 %v4703
        %5117 = vmatpush.msra.mxu0 %v4699
        %5118 = vmatpush.msra.mxu0 %v4695
        %5119 = vmatpush.msra.mxu0 %v4691
        %5120 = vmatpush.msra.mxu0 %v4687
        %5121 = vmatpush.msra.mxu0 %v4683
        %5122 = vmatpush.msra.mxu0 %v4679
        %5123 = vmatpush.msra.mxu0 %v4675
        %5124 = vmatpush.msra.mxu0 %v4671
        %5125 = vmatmul.f32.gmra.mxu0 %v4935
        %v5126 = vpop.f32.mrf.mxu0
        %v5127 = vadd.f32 0.0, %v5126
        %5128 = vdwg.mxu0
        %5129 = vmatpush.msra.mxu0 %v4795
        %5130 = vmatpush.msra.mxu0 %v4791
        %5131 = vmatpush.msra.mxu0 %v4787
        %5132 = vmatpush.msra.mxu0 %v4783
        %5133 = vmatpush.msra.mxu0 %v4779
        %5134 = vmatpush.msra.mxu0 %v4775
        %5135 = vmatpush.msra.mxu0 %v4771
        %5136 = vmatpush.msra.mxu0 %v4767
        %5137 = vmatpush.msra.mxu0 %v4763
        %5138 = vmatpush.msra.mxu0 %v4759
        %5139 = vmatpush.msra.mxu0 %v4755
        %5140 = vmatpush.msra.mxu0 %v4751
        %5141 = vmatpush.msra.mxu0 %v4747
        %5142 = vmatpush.msra.mxu0 %v4743
        %5143 = vmatpush.msra.mxu0 %v4739
        %5144 = vmatpush.msra.mxu0 %v4735
        %5145 = vmatmul.f32.gmra.mxu0 %v4938
        %v5146 = vpop.f32.mrf.mxu0
        %v5147 = vadd.f32 %v5127, %v5146
        %5148 = vdwg.mxu0
        %5149 = vmatpush.msra.mxu0 %v4859
        %5150 = vmatpush.msra.mxu0 %v4855
        %5151 = vmatpush.msra.mxu0 %v4851
        %5152 = vmatpush.msra.mxu0 %v4847
        %5153 = vmatpush.msra.mxu0 %v4843
        %5154 = vmatpush.msra.mxu0 %v4839
        %5155 = vmatpush.msra.mxu0 %v4835
        %5156 = vmatpush.msra.mxu0 %v4831
        %5157 = vmatpush.msra.mxu0 %v4827
        %5158 = vmatpush.msra.mxu0 %v4823
        %5159 = vmatpush.msra.mxu0 %v4819
        %5160 = vmatpush.msra.mxu0 %v4815
        %5161 = vmatpush.msra.mxu0 %v4811
        %5162 = vmatpush.msra.mxu0 %v4807
        %5163 = vmatpush.msra.mxu0 %v4803
        %5164 = vmatpush.msra.mxu0 %v4799
        %5165 = vmatmul.f32.gmra.mxu0 %v4941
        %v5166 = vpop.f32.mrf.mxu0
        %v5167 = vadd.f32 %v5147, %v5166
        %5168 = vdwg.mxu0
        %5169 = vmatpush.msra.mxu0 %v4923
        %5170 = vmatpush.msra.mxu0 %v4919
        %5171 = vmatpush.msra.mxu0 %v4915
        %5172 = vmatpush.msra.mxu0 %v4911
        %5173 = vmatpush.msra.mxu0 %v4907
        %5174 = vmatpush.msra.mxu0 %v4903
        %5175 = vmatpush.msra.mxu0 %v4899
        %5176 = vmatpush.msra.mxu0 %v4895
        %5177 = vmatpush.msra.mxu0 %v4891
        %5178 = vmatpush.msra.mxu0 %v4887
        %5179 = vmatpush.msra.mxu0 %v4883
        %5180 = vmatpush.msra.mxu0 %v4879
        %5181 = vmatpush.msra.mxu0 %v4875
        %5182 = vmatpush.msra.mxu0 %v4871
        %5183 = vmatpush.msra.mxu0 %v4867
        %5184 = vmatpush.msra.mxu0 %v4863
        %5185 = vmatmul.f32.gmra.mxu0 %v4944
        %v5186 = vpop.f32.mrf.mxu0
        %v5187 = vadd.f32 %v5167, %v5186
        %5188 = vdwg.mxu0
        %5189 = vmatpush.msra.mxu0 %v4732
        %5190 = vmatpush.msra.mxu0 %v4728
        %5191 = vmatpush.msra.mxu0 %v4724
        %5192 = vmatpush.msra.mxu0 %v4720
        %5193 = vmatpush.msra.mxu0 %v4716
        %5194 = vmatpush.msra.mxu0 %v4712
        %5195 = vmatpush.msra.mxu0 %v4708
        %5196 = vmatpush.msra.mxu0 %v4704
        %5197 = vmatpush.msra.mxu0 %v4700
        %5198 = vmatpush.msra.mxu0 %v4696
        %5199 = vmatpush.msra.mxu0 %v4692
        %5200 = vmatpush.msra.mxu0 %v4688
        %5201 = vmatpush.msra.mxu0 %v4684
        %5202 = vmatpush.msra.mxu0 %v4680
        %5203 = vmatpush.msra.mxu0 %v4676
        %5204 = vmatpush.msra.mxu0 %v4672
        %5205 = vmatmul.f32.gmra.mxu0 %v4935
        %v5206 = vpop.f32.mrf.mxu0
        %v5207 = vadd.f32 0.0, %v5206
        %5208 = vdwg.mxu0
        %5209 = vmatpush.msra.mxu0 %v4796
        %5210 = vmatpush.msra.mxu0 %v4792
        %5211 = vmatpush.msra.mxu0 %v4788
        %5212 = vmatpush.msra.mxu0 %v4784
        %5213 = vmatpush.msra.mxu0 %v4780
        %5214 = vmatpush.msra.mxu0 %v4776
        %5215 = vmatpush.msra.mxu0 %v4772
        %5216 = vmatpush.msra.mxu0 %v4768
        %5217 = vmatpush.msra.mxu0 %v4764
        %5218 = vmatpush.msra.mxu0 %v4760
        %5219 = vmatpush.msra.mxu0 %v4756
        %5220 = vmatpush.msra.mxu0 %v4752
        %5221 = vmatpush.msra.mxu0 %v4748
        %5222 = vmatpush.msra.mxu0 %v4744
        %5223 = vmatpush.msra.mxu0 %v4740
        %5224 = vmatpush.msra.mxu0 %v4736
        %5225 = vmatmul.f32.gmra.mxu0 %v4938
        %v5226 = vpop.f32.mrf.mxu0
        %v5227 = vadd.f32 %v5207, %v5226
        %5228 = vdwg.mxu0
        %5229 = vmatpush.msra.mxu0 %v4860
        %5230 = vmatpush.msra.mxu0 %v4856
        %5231 = vmatpush.msra.mxu0 %v4852
        %5232 = vmatpush.msra.mxu0 %v4848
        %5233 = vmatpush.msra.mxu0 %v4844
        %5234 = vmatpush.msra.mxu0 %v4840
        %5235 = vmatpush.msra.mxu0 %v4836
        %5236 = vmatpush.msra.mxu0 %v4832
        %5237 = vmatpush.msra.mxu0 %v4828
        %5238 = vmatpush.msra.mxu0 %v4824
        %5239 = vmatpush.msra.mxu0 %v4820
        %5240 = vmatpush.msra.mxu0 %v4816
        %5241 = vmatpush.msra.mxu0 %v4812
        %5242 = vmatpush.msra.mxu0 %v4808
        %5243 = vmatpush.msra.mxu0 %v4804
        %5244 = vmatpush.msra.mxu0 %v4800
        %5245 = vmatmul.f32.gmra.mxu0 %v4941
        %v5246 = vpop.f32.mrf.mxu0
        %v5247 = vadd.f32 %v5227, %v5246
        %5248 = vdwg.mxu0
        %5249 = vmatpush.msra.mxu0 %v4924
        %5250 = vmatpush.msra.mxu0 %v4920
        %5251 = vmatpush.msra.mxu0 %v4916
        %5252 = vmatpush.msra.mxu0 %v4912
        %5253 = vmatpush.msra.mxu0 %v4908
        %5254 = vmatpush.msra.mxu0 %v4904
        %5255 = vmatpush.msra.mxu0 %v4900
        %5256 = vmatpush.msra.mxu0 %v4896
        %5257 = vmatpush.msra.mxu0 %v4892
        %5258 = vmatpush.msra.mxu0 %v4888
        %5259 = vmatpush.msra.mxu0 %v4884
        %5260 = vmatpush.msra.mxu0 %v4880
        %5261 = vmatpush.msra.mxu0 %v4876
        %5262 = vmatpush.msra.mxu0 %v4872
        %5263 = vmatpush.msra.mxu0 %v4868
        %5264 = vmatpush.msra.mxu0 %v4864
        %5265 = vmatmul.f32.gmra.mxu0 %v4944
        %v5266 = vpop.f32.mrf.mxu0
        %v5267 = vadd.f32 %v5247, %v5266
        %5268 = vdwg.mxu0
        %v5269 = vadd.f32 %v4418, %v5027
        %v5270 = vadd.f32 %v4498, %v5107
        %v5271 = vadd.f32 %v4578, %v5187
        %v5272 = vadd.f32 %v4658, %v5267
        %v5273 = vld [vmem:[#allocation17] sm:$0xf]
        %v5275 = vperm.slane %v5273, 0
        %v5276 = vperm.slane %v5273, 1
        %v5277 = vperm.slane %v5273, 2
        %v5278 = vperm.slane %v5273, 3
        %v5283 = vadd.f32 %v5269, %v5275
        %v5284 = vadd.f32 %v5270, %v5276
        %v5285 = vadd.f32 %v5271, %v5277
        %v5286 = vadd.f32 %v5272, %v5278
        %v5287 = vmul.f32 %v5283, %v2634
        %v5288 = vmul.f32 %v5284, %v2635
        %v5289 = vmul.f32 %v5285, %v2636
        %v5290 = vmul.f32 %v5286, %v2637
        %v5291 = vrot.slane %v5287, 4
        %v5292 = vadd.f32 %v5287, %v5291
        %v5293 = vrot.slane %v5292, 2
        %v5294 = vadd.f32 %v5292, %v5293
        %v5295 = vrot.slane %v5294, 1
        %v5296 = vadd.f32 %v5294, %v5295
        %v5297 = vrot.slane %v5288, 4
        %v5298 = vadd.f32 %v5288, %v5297
        %v5299 = vrot.slane %v5298, 2
        %v5300 = vadd.f32 %v5298, %v5299
        %v5301 = vrot.slane %v5300, 1
        %v5302 = vadd.f32 %v5300, %v5301
        %v5303 = vrot.slane %v5289, 4
        %v5304 = vadd.f32 %v5289, %v5303
        %v5305 = vrot.slane %v5304, 2
        %v5306 = vadd.f32 %v5304, %v5305
        %v5307 = vrot.slane %v5306, 1
        %v5308 = vadd.f32 %v5306, %v5307
        %v5309 = vrot.slane %v5290, 4
        %v5310 = vadd.f32 %v5290, %v5309
        %v5311 = vrot.slane %v5310, 2
        %v5312 = vadd.f32 %v5310, %v5311
        %v5313 = vrot.slane %v5312, 1
        %v5314 = vadd.f32 %v5312, %v5313
        %v5315 = vmul.f32 %v5287, %v5287
        %v5316 = vmul.f32 %v5288, %v5288
        %v5317 = vmul.f32 %v5289, %v5289
        %v5318 = vmul.f32 %v5290, %v5290
        %v5319 = vrot.slane %v5315, 4
        %v5320 = vadd.f32 %v5315, %v5319
        %v5321 = vrot.slane %v5320, 2
        %v5322 = vadd.f32 %v5320, %v5321
        %v5323 = vrot.slane %v5322, 1
        %v5324 = vadd.f32 %v5322, %v5323
        %v5325 = vrot.slane %v5316, 4
        %v5326 = vadd.f32 %v5316, %v5325
        %v5327 = vrot.slane %v5326, 2
        %v5328 = vadd.f32 %v5326, %v5327
        %v5329 = vrot.slane %v5328, 1
        %v5330 = vadd.f32 %v5328, %v5329
        %v5331 = vrot.slane %v5317, 4
        %v5332 = vadd.f32 %v5317, %v5331
        %v5333 = vrot.slane %v5332, 2
        %v5334 = vadd.f32 %v5332, %v5333
        %v5335 = vrot.slane %v5334, 1
        %v5336 = vadd.f32 %v5334, %v5335
        %v5337 = vrot.slane %v5318, 4
        %v5338 = vadd.f32 %v5318, %v5337
        %v5339 = vrot.slane %v5338, 2
        %v5340 = vadd.f32 %v5338, %v5339
        %v5341 = vrot.slane %v5340, 1
        %v5342 = vadd.f32 %v5340, %v5341
        %5343 = vmatpush.msra.mxu0 %v619
        %5344 = vmatpush.msra.mxu0 %v615
        %5345 = vmatpush.msra.mxu0 %v611
        %5346 = vmatpush.msra.mxu0 %v607
        %5347 = vmatpush.msra.mxu0 %v603
        %5348 = vmatpush.msra.mxu0 %v599
        %5349 = vmatpush.msra.mxu0 %v595
        %5350 = vmatpush.msra.mxu0 %v591
        %5351 = vmatpush.msra.mxu0 %v587
        %5352 = vmatpush.msra.mxu0 %v583
        %5353 = vmatpush.msra.mxu0 %v579
        %5354 = vmatpush.msra.mxu0 %v575
        %5355 = vmatpush.msra.mxu0 %v571
        %5356 = vmatpush.msra.mxu0 %v567
        %5357 = vmatpush.msra.mxu0 %v563
        %5358 = vmatpush.msra.mxu0 %v559
        %5359 = vmatmul.f32.gmra.mxu0 %v5296
        %v5360 = vpop.f32.mrf.mxu0
        %v5361 = vadd.f32 0.0, %v5360
        %5362 = vdwg.mxu0
        %5363 = vmatpush.msra.mxu0 %v683
        %5364 = vmatpush.msra.mxu0 %v679
        %5365 = vmatpush.msra.mxu0 %v675
        %5366 = vmatpush.msra.mxu0 %v671
        %5367 = vmatpush.msra.mxu0 %v667
        %5368 = vmatpush.msra.mxu0 %v663
        %5369 = vmatpush.msra.mxu0 %v659
        %5370 = vmatpush.msra.mxu0 %v655
        %5371 = vmatpush.msra.mxu0 %v651
        %5372 = vmatpush.msra.mxu0 %v647
        %5373 = vmatpush.msra.mxu0 %v643
        %5374 = vmatpush.msra.mxu0 %v639
        %5375 = vmatpush.msra.mxu0 %v635
        %5376 = vmatpush.msra.mxu0 %v631
        %5377 = vmatpush.msra.mxu0 %v627
        %5378 = vmatpush.msra.mxu0 %v623
        %5379 = vmatmul.f32.gmra.mxu0 %v5302
        %v5380 = vpop.f32.mrf.mxu0
        %v5381 = vadd.f32 %v5361, %v5380
        %5382 = vdwg.mxu0
        %5383 = vmatpush.msra.mxu0 %v747
        %5384 = vmatpush.msra.mxu0 %v743
        %5385 = vmatpush.msra.mxu0 %v739
        %5386 = vmatpush.msra.mxu0 %v735
        %5387 = vmatpush.msra.mxu0 %v731
        %5388 = vmatpush.msra.mxu0 %v727
        %5389 = vmatpush.msra.mxu0 %v723
        %5390 = vmatpush.msra.mxu0 %v719
        %5391 = vmatpush.msra.mxu0 %v715
        %5392 = vmatpush.msra.mxu0 %v711
        %5393 = vmatpush.msra.mxu0 %v707
        %5394 = vmatpush.msra.mxu0 %v703
        %5395 = vmatpush.msra.mxu0 %v699
        %5396 = vmatpush.msra.mxu0 %v695
        %5397 = vmatpush.msra.mxu0 %v691
        %5398 = vmatpush.msra.mxu0 %v687
        %5399 = vmatmul.f32.gmra.mxu0 %v5308
        %v5400 = vpop.f32.mrf.mxu0
        %v5401 = vadd.f32 %v5381, %v5400
        %5402 = vdwg.mxu0
        %5403 = vmatpush.msra.mxu0 %v811
        %5404 = vmatpush.msra.mxu0 %v807
        %5405 = vmatpush.msra.mxu0 %v803
        %5406 = vmatpush.msra.mxu0 %v799
        %5407 = vmatpush.msra.mxu0 %v795
        %5408 = vmatpush.msra.mxu0 %v791
        %5409 = vmatpush.msra.mxu0 %v787
        %5410 = vmatpush.msra.mxu0 %v783
        %5411 = vmatpush.msra.mxu0 %v779
        %5412 = vmatpush.msra.mxu0 %v775
        %5413 = vmatpush.msra.mxu0 %v771
        %5414 = vmatpush.msra.mxu0 %v767
        %5415 = vmatpush.msra.mxu0 %v763
        %5416 = vmatpush.msra.mxu0 %v759
        %5417 = vmatpush.msra.mxu0 %v755
        %5418 = vmatpush.msra.mxu0 %v751
        %5419 = vmatmul.f32.gmra.mxu0 %v5314
        %v5420 = vpop.f32.mrf.mxu0
        %v5421 = vadd.f32 %v5401, %v5420
        %5422 = vdwg.mxu0
        %5423 = vmatpush.msra.mxu0 %v620
        %5424 = vmatpush.msra.mxu0 %v616
        %5425 = vmatpush.msra.mxu0 %v612
        %5426 = vmatpush.msra.mxu0 %v608
        %5427 = vmatpush.msra.mxu0 %v604
        %5428 = vmatpush.msra.mxu0 %v600
        %5429 = vmatpush.msra.mxu0 %v596
        %5430 = vmatpush.msra.mxu0 %v592
        %5431 = vmatpush.msra.mxu0 %v588
        %5432 = vmatpush.msra.mxu0 %v584
        %5433 = vmatpush.msra.mxu0 %v580
        %5434 = vmatpush.msra.mxu0 %v576
        %5435 = vmatpush.msra.mxu0 %v572
        %5436 = vmatpush.msra.mxu0 %v568
        %5437 = vmatpush.msra.mxu0 %v564
        %5438 = vmatpush.msra.mxu0 %v560
        %5439 = vmatmul.f32.gmra.mxu0 %v5296
        %v5440 = vpop.f32.mrf.mxu0
        %v5441 = vadd.f32 0.0, %v5440
        %5442 = vdwg.mxu0
        %5443 = vmatpush.msra.mxu0 %v684
        %5444 = vmatpush.msra.mxu0 %v680
        %5445 = vmatpush.msra.mxu0 %v676
        %5446 = vmatpush.msra.mxu0 %v672
        %5447 = vmatpush.msra.mxu0 %v668
        %5448 = vmatpush.msra.mxu0 %v664
        %5449 = vmatpush.msra.mxu0 %v660
        %5450 = vmatpush.msra.mxu0 %v656
        %5451 = vmatpush.msra.mxu0 %v652
        %5452 = vmatpush.msra.mxu0 %v648
        %5453 = vmatpush.msra.mxu0 %v644
        %5454 = vmatpush.msra.mxu0 %v640
        %5455 = vmatpush.msra.mxu0 %v636
        %5456 = vmatpush.msra.mxu0 %v632
        %5457 = vmatpush.msra.mxu0 %v628
        %5458 = vmatpush.msra.mxu0 %v624
        %5459 = vmatmul.f32.gmra.mxu0 %v5302
        %v5460 = vpop.f32.mrf.mxu0
        %v5461 = vadd.f32 %v5441, %v5460
        %5462 = vdwg.mxu0
        %5463 = vmatpush.msra.mxu0 %v748
        %5464 = vmatpush.msra.mxu0 %v744
        %5465 = vmatpush.msra.mxu0 %v740
        %5466 = vmatpush.msra.mxu0 %v736
        %5467 = vmatpush.msra.mxu0 %v732
        %5468 = vmatpush.msra.mxu0 %v728
        %5469 = vmatpush.msra.mxu0 %v724
        %5470 = vmatpush.msra.mxu0 %v720
        %5471 = vmatpush.msra.mxu0 %v716
        %5472 = vmatpush.msra.mxu0 %v712
        %5473 = vmatpush.msra.mxu0 %v708
        %5474 = vmatpush.msra.mxu0 %v704
        %5475 = vmatpush.msra.mxu0 %v700
        %5476 = vmatpush.msra.mxu0 %v696
        %5477 = vmatpush.msra.mxu0 %v692
        %5478 = vmatpush.msra.mxu0 %v688
        %5479 = vmatmul.f32.gmra.mxu0 %v5308
        %v5480 = vpop.f32.mrf.mxu0
        %v5481 = vadd.f32 %v5461, %v5480
        %5482 = vdwg.mxu0
        %5483 = vmatpush.msra.mxu0 %v812
        %5484 = vmatpush.msra.mxu0 %v808
        %5485 = vmatpush.msra.mxu0 %v804
        %5486 = vmatpush.msra.mxu0 %v800
        %5487 = vmatpush.msra.mxu0 %v796
        %5488 = vmatpush.msra.mxu0 %v792
        %5489 = vmatpush.msra.mxu0 %v788
        %5490 = vmatpush.msra.mxu0 %v784
        %5491 = vmatpush.msra.mxu0 %v780
        %5492 = vmatpush.msra.mxu0 %v776
        %5493 = vmatpush.msra.mxu0 %v772
        %5494 = vmatpush.msra.mxu0 %v768
        %5495 = vmatpush.msra.mxu0 %v764
        %5496 = vmatpush.msra.mxu0 %v760
        %5497 = vmatpush.msra.mxu0 %v756
        %5498 = vmatpush.msra.mxu0 %v752
        %5499 = vmatmul.f32.gmra.mxu0 %v5314
        %v5500 = vpop.f32.mrf.mxu0
        %v5501 = vadd.f32 %v5481, %v5500
        %5502 = vdwg.mxu0
        %5503 = vmatpush.msra.mxu0 %v621
        %5504 = vmatpush.msra.mxu0 %v617
        %5505 = vmatpush.msra.mxu0 %v613
        %5506 = vmatpush.msra.mxu0 %v609
        %5507 = vmatpush.msra.mxu0 %v605
        %5508 = vmatpush.msra.mxu0 %v601
        %5509 = vmatpush.msra.mxu0 %v597
        %5510 = vmatpush.msra.mxu0 %v593
        %5511 = vmatpush.msra.mxu0 %v589
        %5512 = vmatpush.msra.mxu0 %v585
        %5513 = vmatpush.msra.mxu0 %v581
        %5514 = vmatpush.msra.mxu0 %v577
        %5515 = vmatpush.msra.mxu0 %v573
        %5516 = vmatpush.msra.mxu0 %v569
        %5517 = vmatpush.msra.mxu0 %v565
        %5518 = vmatpush.msra.mxu0 %v561
        %5519 = vmatmul.f32.gmra.mxu0 %v5296
        %v5520 = vpop.f32.mrf.mxu0
        %v5521 = vadd.f32 0.0, %v5520
        %5522 = vdwg.mxu0
        %5523 = vmatpush.msra.mxu0 %v685
        %5524 = vmatpush.msra.mxu0 %v681
        %5525 = vmatpush.msra.mxu0 %v677
        %5526 = vmatpush.msra.mxu0 %v673
        %5527 = vmatpush.msra.mxu0 %v669
        %5528 = vmatpush.msra.mxu0 %v665
        %5529 = vmatpush.msra.mxu0 %v661
        %5530 = vmatpush.msra.mxu0 %v657
        %5531 = vmatpush.msra.mxu0 %v653
        %5532 = vmatpush.msra.mxu0 %v649
        %5533 = vmatpush.msra.mxu0 %v645
        %5534 = vmatpush.msra.mxu0 %v641
        %5535 = vmatpush.msra.mxu0 %v637
        %5536 = vmatpush.msra.mxu0 %v633
        %5537 = vmatpush.msra.mxu0 %v629
        %5538 = vmatpush.msra.mxu0 %v625
        %5539 = vmatmul.f32.gmra.mxu0 %v5302
        %v5540 = vpop.f32.mrf.mxu0
        %v5541 = vadd.f32 %v5521, %v5540
        %5542 = vdwg.mxu0
        %5543 = vmatpush.msra.mxu0 %v749
        %5544 = vmatpush.msra.mxu0 %v745
        %5545 = vmatpush.msra.mxu0 %v741
        %5546 = vmatpush.msra.mxu0 %v737
        %5547 = vmatpush.msra.mxu0 %v733
        %5548 = vmatpush.msra.mxu0 %v729
        %5549 = vmatpush.msra.mxu0 %v725
        %5550 = vmatpush.msra.mxu0 %v721
        %5551 = vmatpush.msra.mxu0 %v717
        %5552 = vmatpush.msra.mxu0 %v713
        %5553 = vmatpush.msra.mxu0 %v709
        %5554 = vmatpush.msra.mxu0 %v705
        %5555 = vmatpush.msra.mxu0 %v701
        %5556 = vmatpush.msra.mxu0 %v697
        %5557 = vmatpush.msra.mxu0 %v693
        %5558 = vmatpush.msra.mxu0 %v689
        %5559 = vmatmul.f32.gmra.mxu0 %v5308
        %v5560 = vpop.f32.mrf.mxu0
        %v5561 = vadd.f32 %v5541, %v5560
        %5562 = vdwg.mxu0
        %5563 = vmatpush.msra.mxu0 %v813
        %5564 = vmatpush.msra.mxu0 %v809
        %5565 = vmatpush.msra.mxu0 %v805
        %5566 = vmatpush.msra.mxu0 %v801
        %5567 = vmatpush.msra.mxu0 %v797
        %5568 = vmatpush.msra.mxu0 %v793
        %5569 = vmatpush.msra.mxu0 %v789
        %5570 = vmatpush.msra.mxu0 %v785
        %5571 = vmatpush.msra.mxu0 %v781
        %5572 = vmatpush.msra.mxu0 %v777
        %5573 = vmatpush.msra.mxu0 %v773
        %5574 = vmatpush.msra.mxu0 %v769
        %5575 = vmatpush.msra.mxu0 %v765
        %5576 = vmatpush.msra.mxu0 %v761
        %5577 = vmatpush.msra.mxu0 %v757
        %5578 = vmatpush.msra.mxu0 %v753
        %5579 = vmatmul.f32.gmra.mxu0 %v5314
        %v5580 = vpop.f32.mrf.mxu0
        %v5581 = vadd.f32 %v5561, %v5580
        %5582 = vdwg.mxu0
        %5583 = vmatpush.msra.mxu0 %v622
        %5584 = vmatpush.msra.mxu0 %v618
        %5585 = vmatpush.msra.mxu0 %v614
        %5586 = vmatpush.msra.mxu0 %v610
        %5587 = vmatpush.msra.mxu0 %v606
        %5588 = vmatpush.msra.mxu0 %v602
        %5589 = vmatpush.msra.mxu0 %v598
        %5590 = vmatpush.msra.mxu0 %v594
        %5591 = vmatpush.msra.mxu0 %v590
        %5592 = vmatpush.msra.mxu0 %v586
        %5593 = vmatpush.msra.mxu0 %v582
        %5594 = vmatpush.msra.mxu0 %v578
        %5595 = vmatpush.msra.mxu0 %v574
        %5596 = vmatpush.msra.mxu0 %v570
        %5597 = vmatpush.msra.mxu0 %v566
        %5598 = vmatpush.msra.mxu0 %v562
        %5599 = vmatmul.f32.gmra.mxu0 %v5296
        %v5600 = vpop.f32.mrf.mxu0
        %v5601 = vadd.f32 0.0, %v5600
        %5602 = vdwg.mxu0
        %5603 = vmatpush.msra.mxu0 %v686
        %5604 = vmatpush.msra.mxu0 %v682
        %5605 = vmatpush.msra.mxu0 %v678
        %5606 = vmatpush.msra.mxu0 %v674
        %5607 = vmatpush.msra.mxu0 %v670
        %5608 = vmatpush.msra.mxu0 %v666
        %5609 = vmatpush.msra.mxu0 %v662
        %5610 = vmatpush.msra.mxu0 %v658
        %5611 = vmatpush.msra.mxu0 %v654
        %5612 = vmatpush.msra.mxu0 %v650
        %5613 = vmatpush.msra.mxu0 %v646
        %5614 = vmatpush.msra.mxu0 %v642
        %5615 = vmatpush.msra.mxu0 %v638
        %5616 = vmatpush.msra.mxu0 %v634
        %5617 = vmatpush.msra.mxu0 %v630
        %5618 = vmatpush.msra.mxu0 %v626
        %5619 = vmatmul.f32.gmra.mxu0 %v5302
        %v5620 = vpop.f32.mrf.mxu0
        %v5621 = vadd.f32 %v5601, %v5620
        %5622 = vdwg.mxu0
        %5623 = vmatpush.msra.mxu0 %v750
        %5624 = vmatpush.msra.mxu0 %v746
        %5625 = vmatpush.msra.mxu0 %v742
        %5626 = vmatpush.msra.mxu0 %v738
        %5627 = vmatpush.msra.mxu0 %v734
        %5628 = vmatpush.msra.mxu0 %v730
        %5629 = vmatpush.msra.mxu0 %v726
        %5630 = vmatpush.msra.mxu0 %v722
        %5631 = vmatpush.msra.mxu0 %v718
        %5632 = vmatpush.msra.mxu0 %v714
        %5633 = vmatpush.msra.mxu0 %v710
        %5634 = vmatpush.msra.mxu0 %v706
        %5635 = vmatpush.msra.mxu0 %v702
        %5636 = vmatpush.msra.mxu0 %v698
        %5637 = vmatpush.msra.mxu0 %v694
        %5638 = vmatpush.msra.mxu0 %v690
        %5639 = vmatmul.f32.gmra.mxu0 %v5308
        %v5640 = vpop.f32.mrf.mxu0
        %v5641 = vadd.f32 %v5621, %v5640
        %5642 = vdwg.mxu0
        %5643 = vmatpush.msra.mxu0 %v814
        %5644 = vmatpush.msra.mxu0 %v810
        %5645 = vmatpush.msra.mxu0 %v806
        %5646 = vmatpush.msra.mxu0 %v802
        %5647 = vmatpush.msra.mxu0 %v798
        %5648 = vmatpush.msra.mxu0 %v794
        %5649 = vmatpush.msra.mxu0 %v790
        %5650 = vmatpush.msra.mxu0 %v786
        %5651 = vmatpush.msra.mxu0 %v782
        %5652 = vmatpush.msra.mxu0 %v778
        %5653 = vmatpush.msra.mxu0 %v774
        %5654 = vmatpush.msra.mxu0 %v770
        %5655 = vmatpush.msra.mxu0 %v766
        %5656 = vmatpush.msra.mxu0 %v762
        %5657 = vmatpush.msra.mxu0 %v758
        %5658 = vmatpush.msra.mxu0 %v754
        %5659 = vmatmul.f32.gmra.mxu0 %v5314
        %v5660 = vpop.f32.mrf.mxu0
        %v5661 = vadd.f32 %v5641, %v5660
        %5662 = vdwg.mxu0
        %5663 = vmatpush.msra.mxu0 %v619
        %5664 = vmatpush.msra.mxu0 %v615
        %5665 = vmatpush.msra.mxu0 %v611
        %5666 = vmatpush.msra.mxu0 %v607
        %5667 = vmatpush.msra.mxu0 %v603
        %5668 = vmatpush.msra.mxu0 %v599
        %5669 = vmatpush.msra.mxu0 %v595
        %5670 = vmatpush.msra.mxu0 %v591
        %5671 = vmatpush.msra.mxu0 %v587
        %5672 = vmatpush.msra.mxu0 %v583
        %5673 = vmatpush.msra.mxu0 %v579
        %5674 = vmatpush.msra.mxu0 %v575
        %5675 = vmatpush.msra.mxu0 %v571
        %5676 = vmatpush.msra.mxu0 %v567
        %5677 = vmatpush.msra.mxu0 %v563
        %5678 = vmatpush.msra.mxu0 %v559
        %5679 = vmatmul.f32.gmra.mxu0 %v5324
        %v5680 = vpop.f32.mrf.mxu0
        %v5681 = vadd.f32 0.0, %v5680
        %5682 = vdwg.mxu0
        %5683 = vmatpush.msra.mxu0 %v683
        %5684 = vmatpush.msra.mxu0 %v679
        %5685 = vmatpush.msra.mxu0 %v675
        %5686 = vmatpush.msra.mxu0 %v671
        %5687 = vmatpush.msra.mxu0 %v667
        %5688 = vmatpush.msra.mxu0 %v663
        %5689 = vmatpush.msra.mxu0 %v659
        %5690 = vmatpush.msra.mxu0 %v655
        %5691 = vmatpush.msra.mxu0 %v651
        %5692 = vmatpush.msra.mxu0 %v647
        %5693 = vmatpush.msra.mxu0 %v643
        %5694 = vmatpush.msra.mxu0 %v639
        %5695 = vmatpush.msra.mxu0 %v635
        %5696 = vmatpush.msra.mxu0 %v631
        %5697 = vmatpush.msra.mxu0 %v627
        %5698 = vmatpush.msra.mxu0 %v623
        %5699 = vmatmul.f32.gmra.mxu0 %v5330
        %v5700 = vpop.f32.mrf.mxu0
        %v5701 = vadd.f32 %v5681, %v5700
        %5702 = vdwg.mxu0
        %5703 = vmatpush.msra.mxu0 %v747
        %5704 = vmatpush.msra.mxu0 %v743
        %5705 = vmatpush.msra.mxu0 %v739
        %5706 = vmatpush.msra.mxu0 %v735
        %5707 = vmatpush.msra.mxu0 %v731
        %5708 = vmatpush.msra.mxu0 %v727
        %5709 = vmatpush.msra.mxu0 %v723
        %5710 = vmatpush.msra.mxu0 %v719
        %5711 = vmatpush.msra.mxu0 %v715
        %5712 = vmatpush.msra.mxu0 %v711
        %5713 = vmatpush.msra.mxu0 %v707
        %5714 = vmatpush.msra.mxu0 %v703
        %5715 = vmatpush.msra.mxu0 %v699
        %5716 = vmatpush.msra.mxu0 %v695
        %5717 = vmatpush.msra.mxu0 %v691
        %5718 = vmatpush.msra.mxu0 %v687
        %5719 = vmatmul.f32.gmra.mxu0 %v5336
        %v5720 = vpop.f32.mrf.mxu0
        %v5721 = vadd.f32 %v5701, %v5720
        %5722 = vdwg.mxu0
        %5723 = vmatpush.msra.mxu0 %v811
        %5724 = vmatpush.msra.mxu0 %v807
        %5725 = vmatpush.msra.mxu0 %v803
        %5726 = vmatpush.msra.mxu0 %v799
        %5727 = vmatpush.msra.mxu0 %v795
        %5728 = vmatpush.msra.mxu0 %v791
        %5729 = vmatpush.msra.mxu0 %v787
        %5730 = vmatpush.msra.mxu0 %v783
        %5731 = vmatpush.msra.mxu0 %v779
        %5732 = vmatpush.msra.mxu0 %v775
        %5733 = vmatpush.msra.mxu0 %v771
        %5734 = vmatpush.msra.mxu0 %v767
        %5735 = vmatpush.msra.mxu0 %v763
        %5736 = vmatpush.msra.mxu0 %v759
        %5737 = vmatpush.msra.mxu0 %v755
        %5738 = vmatpush.msra.mxu0 %v751
        %5739 = vmatmul.f32.gmra.mxu0 %v5342
        %v5740 = vpop.f32.mrf.mxu0
        %v5741 = vadd.f32 %v5721, %v5740
        %5742 = vdwg.mxu0
        %5743 = vmatpush.msra.mxu0 %v620
        %5744 = vmatpush.msra.mxu0 %v616
        %5745 = vmatpush.msra.mxu0 %v612
        %5746 = vmatpush.msra.mxu0 %v608
        %5747 = vmatpush.msra.mxu0 %v604
        %5748 = vmatpush.msra.mxu0 %v600
        %5749 = vmatpush.msra.mxu0 %v596
        %5750 = vmatpush.msra.mxu0 %v592
        %5751 = vmatpush.msra.mxu0 %v588
        %5752 = vmatpush.msra.mxu0 %v584
        %5753 = vmatpush.msra.mxu0 %v580
        %5754 = vmatpush.msra.mxu0 %v576
        %5755 = vmatpush.msra.mxu0 %v572
        %5756 = vmatpush.msra.mxu0 %v568
        %5757 = vmatpush.msra.mxu0 %v564
        %5758 = vmatpush.msra.mxu0 %v560
        %5759 = vmatmul.f32.gmra.mxu0 %v5324
        %v5760 = vpop.f32.mrf.mxu0
        %v5761 = vadd.f32 0.0, %v5760
        %5762 = vdwg.mxu0
        %5763 = vmatpush.msra.mxu0 %v684
        %5764 = vmatpush.msra.mxu0 %v680
        %5765 = vmatpush.msra.mxu0 %v676
        %5766 = vmatpush.msra.mxu0 %v672
        %5767 = vmatpush.msra.mxu0 %v668
        %5768 = vmatpush.msra.mxu0 %v664
        %5769 = vmatpush.msra.mxu0 %v660
        %5770 = vmatpush.msra.mxu0 %v656
        %5771 = vmatpush.msra.mxu0 %v652
        %5772 = vmatpush.msra.mxu0 %v648
        %5773 = vmatpush.msra.mxu0 %v644
        %5774 = vmatpush.msra.mxu0 %v640
        %5775 = vmatpush.msra.mxu0 %v636
        %5776 = vmatpush.msra.mxu0 %v632
        %5777 = vmatpush.msra.mxu0 %v628
        %5778 = vmatpush.msra.mxu0 %v624
        %5779 = vmatmul.f32.gmra.mxu0 %v5330
        %v5780 = vpop.f32.mrf.mxu0
        %v5781 = vadd.f32 %v5761, %v5780
        %5782 = vdwg.mxu0
        %5783 = vmatpush.msra.mxu0 %v748
        %5784 = vmatpush.msra.mxu0 %v744
        %5785 = vmatpush.msra.mxu0 %v740
        %5786 = vmatpush.msra.mxu0 %v736
        %5787 = vmatpush.msra.mxu0 %v732
        %5788 = vmatpush.msra.mxu0 %v728
        %5789 = vmatpush.msra.mxu0 %v724
        %5790 = vmatpush.msra.mxu0 %v720
        %5791 = vmatpush.msra.mxu0 %v716
        %5792 = vmatpush.msra.mxu0 %v712
        %5793 = vmatpush.msra.mxu0 %v708
        %5794 = vmatpush.msra.mxu0 %v704
        %5795 = vmatpush.msra.mxu0 %v700
        %5796 = vmatpush.msra.mxu0 %v696
        %5797 = vmatpush.msra.mxu0 %v692
        %5798 = vmatpush.msra.mxu0 %v688
        %5799 = vmatmul.f32.gmra.mxu0 %v5336
        %v5800 = vpop.f32.mrf.mxu0
        %v5801 = vadd.f32 %v5781, %v5800
        %5802 = vdwg.mxu0
        %5803 = vmatpush.msra.mxu0 %v812
        %5804 = vmatpush.msra.mxu0 %v808
        %5805 = vmatpush.msra.mxu0 %v804
        %5806 = vmatpush.msra.mxu0 %v800
        %5807 = vmatpush.msra.mxu0 %v796
        %5808 = vmatpush.msra.mxu0 %v792
        %5809 = vmatpush.msra.mxu0 %v788
        %5810 = vmatpush.msra.mxu0 %v784
        %5811 = vmatpush.msra.mxu0 %v780
        %5812 = vmatpush.msra.mxu0 %v776
        %5813 = vmatpush.msra.mxu0 %v772
        %5814 = vmatpush.msra.mxu0 %v768
        %5815 = vmatpush.msra.mxu0 %v764
        %5816 = vmatpush.msra.mxu0 %v760
        %5817 = vmatpush.msra.mxu0 %v756
        %5818 = vmatpush.msra.mxu0 %v752
        %5819 = vmatmul.f32.gmra.mxu0 %v5342
        %v5820 = vpop.f32.mrf.mxu0
        %v5821 = vadd.f32 %v5801, %v5820
        %5822 = vdwg.mxu0
        %5823 = vmatpush.msra.mxu0 %v621
        %5824 = vmatpush.msra.mxu0 %v617
        %5825 = vmatpush.msra.mxu0 %v613
        %5826 = vmatpush.msra.mxu0 %v609
        %5827 = vmatpush.msra.mxu0 %v605
        %5828 = vmatpush.msra.mxu0 %v601
        %5829 = vmatpush.msra.mxu0 %v597
        %5830 = vmatpush.msra.mxu0 %v593
        %5831 = vmatpush.msra.mxu0 %v589
        %5832 = vmatpush.msra.mxu0 %v585
        %5833 = vmatpush.msra.mxu0 %v581
        %5834 = vmatpush.msra.mxu0 %v577
        %5835 = vmatpush.msra.mxu0 %v573
        %5836 = vmatpush.msra.mxu0 %v569
        %5837 = vmatpush.msra.mxu0 %v565
        %5838 = vmatpush.msra.mxu0 %v561
        %5839 = vmatmul.f32.gmra.mxu0 %v5324
        %v5840 = vpop.f32.mrf.mxu0
        %v5841 = vadd.f32 0.0, %v5840
        %5842 = vdwg.mxu0
        %5843 = vmatpush.msra.mxu0 %v685
        %5844 = vmatpush.msra.mxu0 %v681
        %5845 = vmatpush.msra.mxu0 %v677
        %5846 = vmatpush.msra.mxu0 %v673
        %5847 = vmatpush.msra.mxu0 %v669
        %5848 = vmatpush.msra.mxu0 %v665
        %5849 = vmatpush.msra.mxu0 %v661
        %5850 = vmatpush.msra.mxu0 %v657
        %5851 = vmatpush.msra.mxu0 %v653
        %5852 = vmatpush.msra.mxu0 %v649
        %5853 = vmatpush.msra.mxu0 %v645
        %5854 = vmatpush.msra.mxu0 %v641
        %5855 = vmatpush.msra.mxu0 %v637
        %5856 = vmatpush.msra.mxu0 %v633
        %5857 = vmatpush.msra.mxu0 %v629
        %5858 = vmatpush.msra.mxu0 %v625
        %5859 = vmatmul.f32.gmra.mxu0 %v5330
        %v5860 = vpop.f32.mrf.mxu0
        %v5861 = vadd.f32 %v5841, %v5860
        %5862 = vdwg.mxu0
        %5863 = vmatpush.msra.mxu0 %v749
        %5864 = vmatpush.msra.mxu0 %v745
        %5865 = vmatpush.msra.mxu0 %v741
        %5866 = vmatpush.msra.mxu0 %v737
        %5867 = vmatpush.msra.mxu0 %v733
        %5868 = vmatpush.msra.mxu0 %v729
        %5869 = vmatpush.msra.mxu0 %v725
        %5870 = vmatpush.msra.mxu0 %v721
        %5871 = vmatpush.msra.mxu0 %v717
        %5872 = vmatpush.msra.mxu0 %v713
        %5873 = vmatpush.msra.mxu0 %v709
        %5874 = vmatpush.msra.mxu0 %v705
        %5875 = vmatpush.msra.mxu0 %v701
        %5876 = vmatpush.msra.mxu0 %v697
        %5877 = vmatpush.msra.mxu0 %v693
        %5878 = vmatpush.msra.mxu0 %v689
        %5879 = vmatmul.f32.gmra.mxu0 %v5336
        %v5880 = vpop.f32.mrf.mxu0
        %v5881 = vadd.f32 %v5861, %v5880
        %5882 = vdwg.mxu0
        %5883 = vmatpush.msra.mxu0 %v813
        %5884 = vmatpush.msra.mxu0 %v809
        %5885 = vmatpush.msra.mxu0 %v805
        %5886 = vmatpush.msra.mxu0 %v801
        %5887 = vmatpush.msra.mxu0 %v797
        %5888 = vmatpush.msra.mxu0 %v793
        %5889 = vmatpush.msra.mxu0 %v789
        %5890 = vmatpush.msra.mxu0 %v785
        %5891 = vmatpush.msra.mxu0 %v781
        %5892 = vmatpush.msra.mxu0 %v777
        %5893 = vmatpush.msra.mxu0 %v773
        %5894 = vmatpush.msra.mxu0 %v769
        %5895 = vmatpush.msra.mxu0 %v765
        %5896 = vmatpush.msra.mxu0 %v761
        %5897 = vmatpush.msra.mxu0 %v757
        %5898 = vmatpush.msra.mxu0 %v753
        %5899 = vmatmul.f32.gmra.mxu0 %v5342
        %v5900 = vpop.f32.mrf.mxu0
        %v5901 = vadd.f32 %v5881, %v5900
        %5902 = vdwg.mxu0
        %5903 = vmatpush.msra.mxu0 %v622
        %5904 = vmatpush.msra.mxu0 %v618
        %5905 = vmatpush.msra.mxu0 %v614
        %5906 = vmatpush.msra.mxu0 %v610
        %5907 = vmatpush.msra.mxu0 %v606
        %5908 = vmatpush.msra.mxu0 %v602
        %5909 = vmatpush.msra.mxu0 %v598
        %5910 = vmatpush.msra.mxu0 %v594
        %5911 = vmatpush.msra.mxu0 %v590
        %5912 = vmatpush.msra.mxu0 %v586
        %5913 = vmatpush.msra.mxu0 %v582
        %5914 = vmatpush.msra.mxu0 %v578
        %5915 = vmatpush.msra.mxu0 %v574
        %5916 = vmatpush.msra.mxu0 %v570
        %5917 = vmatpush.msra.mxu0 %v566
        %5918 = vmatpush.msra.mxu0 %v562
        %5919 = vmatmul.f32.gmra.mxu0 %v5324
        %v5920 = vpop.f32.mrf.mxu0
        %v5921 = vadd.f32 0.0, %v5920
        %5922 = vdwg.mxu0
        %5923 = vmatpush.msra.mxu0 %v686
        %5924 = vmatpush.msra.mxu0 %v682
        %5925 = vmatpush.msra.mxu0 %v678
        %5926 = vmatpush.msra.mxu0 %v674
        %5927 = vmatpush.msra.mxu0 %v670
        %5928 = vmatpush.msra.mxu0 %v666
        %5929 = vmatpush.msra.mxu0 %v662
        %5930 = vmatpush.msra.mxu0 %v658
        %5931 = vmatpush.msra.mxu0 %v654
        %5932 = vmatpush.msra.mxu0 %v650
        %5933 = vmatpush.msra.mxu0 %v646
        %5934 = vmatpush.msra.mxu0 %v642
        %5935 = vmatpush.msra.mxu0 %v638
        %5936 = vmatpush.msra.mxu0 %v634
        %5937 = vmatpush.msra.mxu0 %v630
        %5938 = vmatpush.msra.mxu0 %v626
        %5939 = vmatmul.f32.gmra.mxu0 %v5330
        %v5940 = vpop.f32.mrf.mxu0
        %v5941 = vadd.f32 %v5921, %v5940
        %5942 = vdwg.mxu0
        %5943 = vmatpush.msra.mxu0 %v750
        %5944 = vmatpush.msra.mxu0 %v746
        %5945 = vmatpush.msra.mxu0 %v742
        %5946 = vmatpush.msra.mxu0 %v738
        %5947 = vmatpush.msra.mxu0 %v734
        %5948 = vmatpush.msra.mxu0 %v730
        %5949 = vmatpush.msra.mxu0 %v726
        %5950 = vmatpush.msra.mxu0 %v722
        %5951 = vmatpush.msra.mxu0 %v718
        %5952 = vmatpush.msra.mxu0 %v714
        %5953 = vmatpush.msra.mxu0 %v710
        %5954 = vmatpush.msra.mxu0 %v706
        %5955 = vmatpush.msra.mxu0 %v702
        %5956 = vmatpush.msra.mxu0 %v698
        %5957 = vmatpush.msra.mxu0 %v694
        %5958 = vmatpush.msra.mxu0 %v690
        %5959 = vmatmul.f32.gmra.mxu0 %v5336
        %v5960 = vpop.f32.mrf.mxu0
        %v5961 = vadd.f32 %v5941, %v5960
        %5962 = vdwg.mxu0
        %5963 = vmatpush.msra.mxu0 %v814
        %5964 = vmatpush.msra.mxu0 %v810
        %5965 = vmatpush.msra.mxu0 %v806
        %5966 = vmatpush.msra.mxu0 %v802
        %5967 = vmatpush.msra.mxu0 %v798
        %5968 = vmatpush.msra.mxu0 %v794
        %5969 = vmatpush.msra.mxu0 %v790
        %5970 = vmatpush.msra.mxu0 %v786
        %5971 = vmatpush.msra.mxu0 %v782
        %5972 = vmatpush.msra.mxu0 %v778
        %5973 = vmatpush.msra.mxu0 %v774
        %5974 = vmatpush.msra.mxu0 %v770
        %5975 = vmatpush.msra.mxu0 %v766
        %5976 = vmatpush.msra.mxu0 %v762
        %5977 = vmatpush.msra.mxu0 %v758
        %5978 = vmatpush.msra.mxu0 %v754
        %5979 = vmatmul.f32.gmra.mxu0 %v5342
        %v5980 = vpop.f32.mrf.mxu0
        %v5981 = vadd.f32 %v5961, %v5980
        %5982 = vdwg.mxu0
        %v5983 = vmul.f32 %v5421, %v5421
        %v5984 = vmul.f32 %v5501, %v5501
        %v5985 = vmul.f32 %v5581, %v5581
        %v5986 = vmul.f32 %v5661, %v5661
        %v5987 = vsub.f32 %v5741, %v5983
        %v5988 = vsub.f32 %v5821, %v5984
        %v5989 = vsub.f32 %v5901, %v5985
        %v5990 = vsub.f32 %v5981, %v5986
        %v5991 = vadd.f32 %v5987, 1e-05
        %v5992 = vadd.f32 %v5988, 1e-05
        %v5993 = vadd.f32 %v5989, 1e-05
        %v5994 = vadd.f32 %v5990, 1e-05
        %v5995 = vrsqrt.pop %v5991
        %v5996 = vmul.f32 %v5995, %v5991
        %v5997 = vmul.f32 %v5996, %v5995
        %v5998 = vmul.f32 0.5, %v5997
        %v5999 = vsub.f32 1.5, %v5998
        %v6000 = vmul.f32 %v5995, %v5999
        %vm6001 = vweird.f32 %v5991
        %vm6002 = vweird.f32 %v5995
        %vm6003 = vmor %vm6001, %vm6002
        %v6004 = vsel %vm6003, %v5995, %v6000
        %v6005 = vrsqrt.pop %v5992
        %v6006 = vmul.f32 %v6005, %v5992
        %v6007 = vmul.f32 %v6006, %v6005
        %v6008 = vmul.f32 0.5, %v6007
        %v6009 = vsub.f32 1.5, %v6008
        %v6010 = vmul.f32 %v6005, %v6009
        %vm6011 = vweird.f32 %v5992
        %vm6012 = vweird.f32 %v6005
        %vm6013 = vmor %vm6011, %vm6012
        %v6014 = vsel %vm6013, %v6005, %v6010
        %v6015 = vrsqrt.pop %v5993
        %v6016 = vmul.f32 %v6015, %v5993
        %v6017 = vmul.f32 %v6016, %v6015
        %v6018 = vmul.f32 0.5, %v6017
        %v6019 = vsub.f32 1.5, %v6018
        %v6020 = vmul.f32 %v6015, %v6019
        %vm6021 = vweird.f32 %v5993
        %vm6022 = vweird.f32 %v6015
        %vm6023 = vmor %vm6021, %vm6022
        %v6024 = vsel %vm6023, %v6015, %v6020
        %v6025 = vrsqrt.pop %v5994
        %v6026 = vmul.f32 %v6025, %v5994
        %v6027 = vmul.f32 %v6026, %v6025
        %v6028 = vmul.f32 0.5, %v6027
        %v6029 = vsub.f32 1.5, %v6028
        %v6030 = vmul.f32 %v6025, %v6029
        %vm6031 = vweird.f32 %v5994
        %vm6032 = vweird.f32 %v6025
        %vm6033 = vmor %vm6031, %vm6032
        %v6034 = vsel %vm6033, %v6025, %v6030
        %v6035 = vperm.slane %v5421, 0
        %v6036 = vperm.slane %v5501, 0
        %v6037 = vperm.slane %v5581, 0
        %v6038 = vperm.slane %v5661, 0
        %v6039 = vsub.f32 %v5283, %v6035
        %v6040 = vsub.f32 %v5284, %v6036
        %v6041 = vsub.f32 %v5285, %v6037
        %v6042 = vsub.f32 %v5286, %v6038
        %v6043 = vperm.slane %v6004, 0
        %v6044 = vperm.slane %v6014, 0
        %v6045 = vperm.slane %v6024, 0
        %v6046 = vperm.slane %v6034, 0
        %v6047 = vmul.f32 %v6039, %v6043
        %v6048 = vmul.f32 %v6040, %v6044
        %v6049 = vmul.f32 %v6041, %v6045
        %v6050 = vmul.f32 %v6042, %v6046
        %v6051 = vld [vmem:[#allocation18] sm:$0xf]
        %v6053 = vperm.slane %v6051, 0
        %v6054 = vperm.slane %v6051, 1
        %v6055 = vperm.slane %v6051, 2
        %v6056 = vperm.slane %v6051, 3
        %v6061 = vmul.f32 %v6047, %v6053
        %v6062 = vmul.f32 %v6048, %v6054
        %v6063 = vmul.f32 %v6049, %v6055
        %v6064 = vmul.f32 %v6050, %v6056
        %v6065 = vld [vmem:[#allocation20] sm:$0xf]
        %v6067 = vperm.slane %v6065, 0
        %v6068 = vperm.slane %v6065, 1
        %v6069 = vperm.slane %v6065, 2
        %v6070 = vperm.slane %v6065, 3
        %v6075 = vadd.f32 %v6061, %v6067
        %v6076 = vadd.f32 %v6062, %v6068
        %v6077 = vadd.f32 %v6063, %v6069
        %v6078 = vadd.f32 %v6064, %v6070
        %v6079 = vld [vmem:[%s468] sm:$0xfe]
        %v6080 = vld [vmem:[%s468 + $0x8] sm:$0xfe]
        %v6081 = vld [vmem:[%s468 + $0x10] sm:$0xfe]
        %v6082 = vld [vmem:[%s468 + $0x18] sm:$0xfe]
        %v6083 = vld [vmem:[%s468 + $0x20] sm:$0x1]
        %v6084 = vld [vmem:[%s468 + $0x28] sm:$0x1]
        %v6085 = vld [vmem:[%s468 + $0x30] sm:$0x1]
        %v6086 = vld [vmem:[%s468 + $0x38] sm:$0x1]
        %v6091 = vrot.slane %v6075, 7
        %v6092 = vrot.slane %v6076, 7
        %v6093 = vrot.slane %v6077, 7
        %v6094 = vrot.slane %v6078, 7
        %v6099 = vadd.f32 %v6079, %v6091
        %v6100 = vadd.f32 %v6080, %v6092
        %v6101 = vadd.f32 %v6081, %v6093
        %v6102 = vadd.f32 %v6082, %v6094
        %v6103 = vadd.f32 %v6083, %v6091
        %v6104 = vadd.f32 %v6084, %v6092
        %v6105 = vadd.f32 %v6085, %v6093
        %v6106 = vadd.f32 %v6086, %v6094
        %v6107 = vmax.f32 %v6099, 0.0
        %v6108 = vmax.f32 %v6100, 0.0
        %v6109 = vmax.f32 %v6101, 0.0
        %v6110 = vmax.f32 %v6102, 0.0
        %v6111 = vmax.f32 %v6103, 0.0
        %v6112 = vmax.f32 %v6104, 0.0
        %v6113 = vmax.f32 %v6105, 0.0
        %v6114 = vmax.f32 %v6106, 0.0
        %v6123 = vrot.slane %v6107, 1
        %v6124 = vrot.slane %v6111, 1
        %v6125 = vsel %vm1348, %v6123, %v6124
        %v6126 = vrot.slane %v6108, 1
        %v6127 = vrot.slane %v6112, 1
        %v6128 = vsel %vm1348, %v6126, %v6127
        %v6129 = vrot.slane %v6109, 1
        %v6130 = vrot.slane %v6113, 1
        %v6131 = vsel %vm1348, %v6129, %v6130
        %v6132 = vrot.slane %v6110, 1
        %v6133 = vrot.slane %v6114, 1
        %v6134 = vsel %vm1348, %v6132, %v6133
        %6139 = vst [vmem:[%s557] sm:$0xff] %v6125
        %6140 = vst [vmem:[%s557 + $0x8] sm:$0xff] %v6128
        %6141 = vst [vmem:[%s557 + $0x10] sm:$0xff] %v6131
        %6142 = vst [vmem:[%s557 + $0x18] sm:$0xff] %v6134
        %s6143 = sand.u32 %s277, 1
        %s6144 = scalar_lea.sflag [#allocation5], %s6143
        %s6145 = sand.u32 %s277, 1
        %s6146 = smul.addr %s6145, 32
        %s6147 = scalar_lea.vmem [#allocation21], %s6146
        // Predicated region
        $region109: #{tpu_custom_call.1} parent=63 // pred_check
          %p6148 = pneg %p287
        $region110: #{tpu_custom_call.1} parent=63 // pred_check_branch
          %6150 = sbr.rel (%p6148) target = $region112
        $region111: #{tpu_custom_call.1} parent=63 // pred_region
          %6152 = vsyncadd %s6144, 0
          %s6153 = smul.addr %s33, 4
          %s6154 = smul.addr %s6153, 8
          %s6155 = scalar_lea.hbm %s11, %s6154
          %s6157 = sshll.u32 %s6147, 4
          %s6158 = int_to_ptr.vmem [resolvable:$true] %s6157
          %s6159 = sshll.u32 %s6155, 4
          %s6160 = int_to_ptr.hbm [resolvable:$true] %s6159
          %6162 = dma.vmem_to_hbm [thread:$0]  %s6158, 512, %s6160, %s6144
        $region112: #{tpu_custom_call.1} parent=63 // pred_fallthru
          _
      $region64: #{tpu_custom_call.1} parent=5 // pred_fallthru
        _
      %p6163 = scmp.le.s32.totalorder 2, %s28
      // Predicated region
      $region113: #{tpu_custom_call.1} parent=5 // pred_check
        %p6164 = pneg %p6163
      $region114: #{tpu_custom_call.1} parent=5 // pred_check_branch
        %6166 = sbr.rel (%p6164) target = $region116
      $region115: #{tpu_custom_call.1} parent=5 // pred_region
        %s6167 = ssub.s32 %s28, 2
        // Predicated region
        $region117: #{tpu_custom_call.1} parent=115 // pred_check
          %p6168 = pneg %p293
        $region118: #{tpu_custom_call.1} parent=115 // pred_check_branch
          %6170 = sbr.rel (%p6168) target = $region120
        $region119: #{tpu_custom_call.1} parent=115 // pred_region
          %s6171 = sand.u32 %s278, 1
          %s6172 = scalar_lea.sflag [#allocation5], %s6171
          %s6173 = sand.u32 %s278, 1
          %s6174 = smul.addr %s6173, 32
          %s6175 = scalar_lea.vmem [#allocation21], %s6174
          %6177 = dma.done %s6172, 512
        $region120: #{tpu_custom_call.1} parent=115 // pred_fallthru
          _
      $region116: #{tpu_custom_call.1} parent=5 // pred_fallthru
        _
    $region6: #{tpu_custom_call.1} parent=1 // loop_footer
      %s32 = sadd.s32 1, %s28
    $region7: #{tpu_custom_call.1} parent=1 // loop_footer_branch
      %27 = sbr.rel target = $region3
    $region8: #{tpu_custom_call.1} parent=1 // loop_exit
      _
    %6178 = vsyncpa [#allocation4], 1
    %s6179 = scalar_lea.sflag [#allocation4], 1
    %6180 = vsyncpa %s6179, 1
    %6181 = vsyncpa [#allocation7], 1
    %6182 = vsyncpa [#allocation10], 1
    %6183 = vsyncpa [#allocation13], 1
    %6184 = vsyncpa [#allocation16], 1
    %6185 = vsyncpa [#allocation19], 1
    %6186 = vsyncpa [#allocation5], 1
    %s6187 = scalar_lea.sflag [#allocation5], 1
    %6188 = vsyncpa %s6187, 1

</llo_original>
